<compile_context>
chip_gen: v6e
topology: v6e:2x2x1
jax: 0.10.0
libtpu: 0.0.40
codegen_flags: <defaults>
</compile_context>

<pallas_src>
import jax
import jax.numpy as jnp
from jax.experimental import pallas as pl
from jax.experimental.pallas import tpu as pltpu

_BN_EPS = 1e-5


# --------------------------------------------------------------------------
# kernels
# --------------------------------------------------------------------------

def _upconv_conv1_kernel(x_ref, w_ref, z_ref, st_ref, xpad_ref, im_ref):
    """Fused ConvTranspose2d(2x2, s2, bias) + Conv2d(3x3, pad 1) (pre-BN).

    x_ref   : (1, H, W, C1)           one input sample (NHWC)
    w_ref   : (9*(C1+1), 4*c_mid)     combined weights (all taps, all parities)
    z_ref   : (1, H*W, 4*c_mid)       parity-packed pre-BN conv1 output
    st_ref  : (1, 2, 4*c_mid)         per-sample [sum, sum_sq] for BN1
    xpad_ref: (H+2, W+2, C1+1)        VMEM: zero-padded input + ones channel
    im_ref  : (H*W, 9*(C1+1))         VMEM: im2col matrix
    """
    _, H, W, C1 = x_ref.shape
    cin = C1 + 1
    HW = H * W

    # Zero-padded input with an extra ones channel (folds the transposed-conv
    # bias; the zero border makes out-of-range upsampled taps vanish).
    xpad_ref[...] = jnp.zeros(xpad_ref.shape, xpad_ref.dtype)
    xpad_ref[1:H + 1, 1:W + 1, 0:C1] = x_ref[0]
    xpad_ref[1:H + 1, 1:W + 1, C1:C1 + 1] = jnp.ones((H, W, 1), jnp.float32)

    # im2col over the 3x3 neighbourhood of the *low-res* padded input; one
    # matmul produces all four output parities at once (parity-packed cols).
    for du in range(3):
        for dv in range(3):
            g = du * 3 + dv
            win = xpad_ref[du:du + H, dv:dv + W, :]
            im_ref[:, g * cin:(g + 1) * cin] = win.reshape(HW, cin)

    z = jnp.dot(im_ref[...], w_ref[...],
                preferred_element_type=jnp.float32)        # (HW, 4*c_mid)
    z_ref[0] = z
    st_ref[0] = jnp.concatenate(
        [jnp.sum(z, axis=0, keepdims=True),
         jnp.sum(z * z, axis=0, keepdims=True)], axis=0)


# (plane parity, padded row/col offset) for upsampled tap offset th = r - 1
_COMBO = ((1, 0), (0, 1), (1, 1), (0, 2))


def _bn1_conv2_kernel(z1_ref, sc_ref, sh_ref, w_ref, z2_ref, st_ref,
                      apad_ref, im_ref):
    """Fused BN1-apply + ReLU + Conv2d(3x3, pad 1) (pre-BN2).

    z1_ref  : (1, H*W, 4*c_mid)       parity-packed pre-BN conv1 output
    sc_ref  : (1, 4*c_mid)            BN1 scale (channel, tiled over parities)
    sh_ref  : (1, 4*c_mid)            BN1 shift
    w_ref   : (16*c_mid, 4*C2)        combined conv2 weights (all parities)
    z2_ref  : (1, H*W, 4*C2)          parity-packed pre-BN conv2 output
    st_ref  : (1, 2, 4*C2)            per-sample [sum, sum_sq] for BN2
    apad_ref: (4, H+2, W+2, c_mid)    VMEM: zero-padded activation parity planes
    im_ref  : (H*W, 16*c_mid)         VMEM: im2col matrix
    """
    _, Hp, Wp, c_mid = apad_ref.shape
    H, W = Hp - 2, Wp - 2
    HW = H * W

    # BN1 + ReLU as one FMA pass over the whole parity-packed block.
    a1 = jnp.maximum(z1_ref[...] * sc_ref[...] + sh_ref[...], 0.0)

    apad_ref[...] = jnp.zeros(apad_ref.shape, apad_ref.dtype)
    for p in range(4):
        apad_ref[p, 1:H + 1, 1:W + 1, :] = (
            a1[0, :, p * c_mid:(p + 1) * c_mid].reshape(H, W, c_mid))

    # 16 distinct windows (4 row-combos x 4 col-combos); a single matmul
    # produces all four output parities (weights zero where a parity does not
    # touch a window).
    for ri in range(4):
        al, du = _COMBO[ri]
        for ci in range(4):
            be, dv = _COMBO[ci]
            g = ri * 4 + ci
            win = apad_ref[al * 2 + be, du:du + H, dv:dv + W, :]
            im_ref[:, g * c_mid:(g + 1) * c_mid] = win.reshape(HW, c_mid)

    z = jnp.dot(im_ref[...], w_ref[...],
                preferred_element_type=jnp.float32)        # (HW, 4*C2)
    z2_ref[0] = z
    st_ref[0] = jnp.concatenate(
        [jnp.sum(z, axis=0, keepdims=True),
         jnp.sum(z * z, axis=0, keepdims=True)], axis=0)


def _bn2_relu_kernel(z_ref, sc_ref, sh_ref, o_ref):
    o_ref[...] = jnp.maximum(z_ref[...] * sc_ref[...] + sh_ref[...], 0.0)


# --------------------------------------------------------------------------
# wrapper helpers
# --------------------------------------------------------------------------

def _compiler_params():
    return pltpu.CompilerParams(
        dimension_semantics=("parallel",),
        vmem_limit_bytes=32 * 1024 * 1024,
    )


def _build_w1_combined(up_w, up_b, conv1_w):
    """Fold ConvTranspose2d(2x2,s2)+bias and conv1 into ONE matmul weight.

    Returns (9*(C1+1), 4*c_mid): row group g = du*3+dv multiplies the window
    xpad[du:du+H, dv:dv+W, :] (xpad = zero-padded input with a trailing ones
    channel carrying the transposed-conv bias); column group p = a*2+b is the
    output parity of the 2x upsampled grid.
    """
    C1 = up_w.shape[0]
    c_mid = conv1_w.shape[0]
    cin = C1 + 1
    bias_row = jnp.broadcast_to(up_b.reshape(1, C1, 1, 1), (1, C1, 2, 2))
    wt_aug = jnp.concatenate([up_w, bias_row], axis=0)   # (C1+1, C1, 2, 2)
    w1m = jnp.transpose(conv1_w, (2, 3, 1, 0))           # (3, 3, C1, c_mid)

    w = jnp.zeros((9 * cin, 4 * c_mid), jnp.float32)
    for a in range(2):
        for b in range(2):
            p = a * 2 + b
            for kh in range(3):
                th = a + kh - 1
                du, al = th // 2 + 1, th % 2
                for kw in range(3):
                    tw = b + kw - 1
                    dv, be = tw // 2 + 1, tw % 2
                    g = du * 3 + dv
                    blk = wt_aug[:, :, al, be] @ w1m[kh, kw]   # (cin, c_mid)
                    w = w.at[g * cin:(g + 1) * cin,
                             p * c_mid:(p + 1) * c_mid].add(blk)
    return w


def _build_w2_combined(conv2_w):
    """Scatter conv2's 3x3 taps into the 16-window / 4-parity matmul weight.

    Returns (16*c_mid, 4*C2): row group g = ri*4+ci multiplies window
    combo (ri, ci) built in the kernel; column group p = a*2+b is the parity.
    """
    C2, c_mid = conv2_w.shape[0], conv2_w.shape[1]
    w2m = jnp.transpose(conv2_w, (2, 3, 1, 0))            # (3, 3, c_mid, C2)
    w = jnp.zeros((16 * c_mid, 4 * C2), jnp.float32)
    for a in range(2):
        for b in range(2):
            p = a * 2 + b
            for kh in range(3):
                ri = a + kh
                for kw in range(3):
                    ci = b + kw
                    g = ri * 4 + ci
                    w = w.at[g * c_mid:(g + 1) * c_mid,
                             p * C2:(p + 1) * C2].set(w2m[kh, kw])
    return w


def _bn_scale_shift(stats, gamma, beta, count):
    """stats: (N, 2, 4*C) parity-tiled per-sample [sum, sum_sq]."""
    C = gamma.shape[0]
    total = jnp.sum(stats, axis=0).reshape(2, 4, C).sum(axis=1)   # (2, C)
    mean = total[0] / count
    var = total[1] / count - mean * mean           # biased var (training BN)
    scale = gamma * jax.lax.rsqrt(var + _BN_EPS)
    shift = beta - mean * scale
    return scale, shift


def stack_decoder_forward(params, x_nchw):
    N, C1, H, W = x_nchw.shape
    c_mid = params["conv1_w"].shape[0]
    C2 = params["conv2_w"].shape[0]
    HW = H * W
    count = float(N * 4 * H * W)                   # N * (2H) * (2W)

    x_nhwc = jnp.transpose(x_nchw, (0, 2, 3, 1)).astype(jnp.float32)
    w1c = _build_w1_combined(params["up_w"], params["up_b"], params["conv1_w"])
    w2c = _build_w2_combined(params["conv2_w"])

    # ---- stage 1: ConvTranspose2d + conv1 (pre-BN) + per-sample stats -------
    z1, s1 = pl.pallas_call(
        _upconv_conv1_kernel,
        grid=(N,),
        in_specs=[
            pl.BlockSpec((1, H, W, C1), lambda n: (n, 0, 0, 0)),
            pl.BlockSpec((9 * (C1 + 1), 4 * c_mid), lambda n: (0, 0)),
        ],
        out_specs=[
            pl.BlockSpec((1, HW, 4 * c_mid), lambda n: (n, 0, 0)),
            pl.BlockSpec((1, 2, 4 * c_mid), lambda n: (n, 0, 0)),
        ],
        out_shape=[
            jax.ShapeDtypeStruct((N, HW, 4 * c_mid), jnp.float32),
            jax.ShapeDtypeStruct((N, 2, 4 * c_mid), jnp.float32),
        ],
        scratch_shapes=[
            pltpu.VMEM((H + 2, W + 2, C1 + 1), jnp.float32),
            pltpu.VMEM((HW, 9 * (C1 + 1)), jnp.float32),
        ],
        compiler_params=_compiler_params(),
    )(x_nhwc, w1c)

    scale1, shift1 = _bn_scale_shift(s1, params["bn1_g"], params["bn1_b"], count)
    scale1_t = jnp.tile(scale1, 4).reshape(1, 4 * c_mid)
    shift1_t = jnp.tile(shift1, 4).reshape(1, 4 * c_mid)

    # ---- stage 2: BN1 + ReLU + conv2 (pre-BN) + per-sample stats ------------
    z2, s2 = pl.pallas_call(
        _bn1_conv2_kernel,
        grid=(N,),
        in_specs=[
            pl.BlockSpec((1, HW, 4 * c_mid), lambda n: (n, 0, 0)),
            pl.BlockSpec((1, 4 * c_mid), lambda n: (0, 0)),
            pl.BlockSpec((1, 4 * c_mid), lambda n: (0, 0)),
            pl.BlockSpec((16 * c_mid, 4 * C2), lambda n: (0, 0)),
        ],
        out_specs=[
            pl.BlockSpec((1, HW, 4 * C2), lambda n: (n, 0, 0)),
            pl.BlockSpec((1, 2, 4 * C2), lambda n: (n, 0, 0)),
        ],
        out_shape=[
            jax.ShapeDtypeStruct((N, HW, 4 * C2), jnp.float32),
            jax.ShapeDtypeStruct((N, 2, 4 * C2), jnp.float32),
        ],
        scratch_shapes=[
            pltpu.VMEM((4, H + 2, W + 2, c_mid), jnp.float32),
            pltpu.VMEM((HW, 16 * c_mid), jnp.float32),
        ],
        compiler_params=_compiler_params(),
    )(z1, scale1_t, shift1_t, w2c)

    scale2, shift2 = _bn_scale_shift(s2, params["bn2_g"], params["bn2_b"], count)
    scale2_t = jnp.tile(scale2, 4).reshape(1, 4 * C2)
    shift2_t = jnp.tile(shift2, 4).reshape(1, 4 * C2)

    # ---- stage 3: BN2 + ReLU ------------------------------------------------
    y = pl.pallas_call(
        _bn2_relu_kernel,
        grid=(N,),
        in_specs=[
            pl.BlockSpec((1, HW, 4 * C2), lambda n: (n, 0, 0)),
            pl.BlockSpec((1, 4 * C2), lambda n: (0, 0)),
            pl.BlockSpec((1, 4 * C2), lambda n: (0, 0)),
        ],
        out_specs=pl.BlockSpec((1, HW, 4 * C2), lambda n: (n, 0, 0)),
        out_shape=jax.ShapeDtypeStruct((N, HW, 4 * C2), jnp.float32),
        compiler_params=_compiler_params(),
    )(z2, scale2_t, shift2_t)

    # Parity-packed (N, H*W, 2*2*C2) -> NCHW (N, C2, 2H, 2W).  Pure layout
    # glue; XLA fuses it with the mandatory NHWC->NCHW boundary transpose.
    out = y.reshape(N, H, W, 2, 2, C2).transpose(0, 5, 1, 3, 2, 4)
    return out.reshape(N, C2, 2 * H, 2 * W)


# --------------------------------------------------------------------------
# params + pure-JAX reference
# --------------------------------------------------------------------------

def init_stack_decoder_params(key, channel1, channel2):
    k = jax.random.split(key, 4)
    c_mid = channel1 // 2
    return {
        # ConvTranspose2d(channel1, channel1, kernel_size=(2, 2), stride=2)
        "up_w": 0.1 * jax.random.normal(k[0], (channel1, channel1, 2, 2), jnp.float32),
        "up_b": 0.1 * jax.random.normal(k[1], (channel1,), jnp.float32),
        # ConvBlock(channel1 -> channel1 // 2)
        "conv1_w": 0.1 * jax.random.normal(k[2], (c_mid, channel1, 3, 3), jnp.float32),
        "bn1_g": jnp.ones((c_mid,), jnp.float32),
        "bn1_b": jnp.zeros((c_mid,), jnp.float32),
        # ConvBlock(channel1 // 2 -> channel2)
        "conv2_w": 0.1 * jax.random.normal(k[3], (channel2, c_mid, 3, 3), jnp.float32),
        "bn2_g": jnp.ones((channel2,), jnp.float32),
        "bn2_b": jnp.zeros((channel2,), jnp.float32),
    }


def reference_forward(params, x_nchw):
    x = jnp.transpose(x_nchw, (0, 2, 3, 1))
    # transposed conv 2x2 stride 2 (+ bias)
    y = jnp.einsum('nhwi,ioab->nhawbo', x, params["up_w"])
    N, H, _, W, _, Co = y.shape
    y = y.reshape(N, 2 * H, 2 * W, Co) + params["up_b"]

    def block(xx, w_oihw, g, b):
        w = jnp.transpose(w_oihw, (2, 3, 1, 0))
        c = jax.lax.conv_general_dilated(
            xx, w, window_strides=(1, 1), padding=((1, 1), (1, 1)),
            dimension_numbers=('NHWC', 'HWIO', 'NHWC'))
        m = jnp.mean(c, axis=(0, 1, 2), keepdims=True)
        v = jnp.mean((c - m) ** 2, axis=(0, 1, 2), keepdims=True)
        return jnp.maximum((c - m) * jax.lax.rsqrt(v + _BN_EPS) * g + b, 0.0)

    y = block(y, params["conv1_w"], params["bn1_g"], params["bn1_b"])
    y = block(y, params["conv2_w"], params["bn2_g"], params["bn2_b"])
    return jnp.transpose(y, (0, 3, 1, 2))


if __name__ == "__main__":
    key = jax.random.PRNGKey(0)
    kx, kp = jax.random.split(key)
    channel1, channel2 = 8, 4
    x = jax.random.normal(kx, (2, channel1, 16, 16), jnp.float32)   # NCHW input
    params = init_stack_decoder_params(kp, channel1, channel2)

    fwd = jax.jit(stack_decoder_forward)
    out = jax.block_until_ready(fwd(params, x))
    ref = jax.block_until_ready(reference_forward(params, x))

    assert out.shape == (2, channel2, 32, 32), out.shape
    max_err = float(jnp.max(jnp.abs(out - ref)))
    assert jnp.allclose(out, ref, atol=2e-4, rtol=2e-4), max_err
    print("KERNEL_OK")
</pallas_src>

<mosaic_0001>
module attributes {stable_mosaic.version = 11 : i64} {
  func.func @_upconv_conv1_kernel(%arg0: i32, %arg1: memref<1x16x16x8xf32, #tpu.memory_space<vmem>>, %arg2: memref<81x16xf32, #tpu.memory_space<vmem>>, %arg3: memref<1x256x16xf32, #tpu.memory_space<vmem>>, %arg4: memref<1x2x16xf32, #tpu.memory_space<vmem>>, %arg5: memref<18x18x9xf32, #tpu.memory_space<vmem>>, %arg6: memref<256x81xf32, #tpu.memory_space<vmem>>) attributes {dimension_semantics = [#tpu.dimension_semantics<parallel>], iteration_bounds = array<i64: 2>, scalar_prefetch = 0 : i64, scratch_operands = 2 : i64, tpu.core_type = #tpu.core_type<tc>, window_params = [{transform_indices = @transform_0, window_bounds = array<i64: 1, 16, 16, 8>}, {pipeline_mode = #tpu.pipeline_mode<synchronous>, transform_indices = @transform_1, window_bounds = array<i64: 81, 16>}, {transform_indices = @transform_2, window_bounds = array<i64: 1, 256, 16>}, {transform_indices = @transform_3, window_bounds = array<i64: 1, 2, 16>}]} {
    %cst = arith.constant 0.000000e+00 : f32
    %0 = vector.broadcast %cst : f32 to vector<18x18x9xf32>
    %c0 = arith.constant 0 : index
    %c0_0 = arith.constant 0 : index
    %c0_1 = arith.constant 0 : index
    %1 = vector.load %arg5[%c0, %c0_0, %c0_1] : memref<18x18x9xf32, #tpu.memory_space<vmem>>, vector<18x18x9xf32>
    tpu.vector_store %arg5[%c0, %c0_0, %c0_1], %0 {strides = array<i32>} : memref<18x18x9xf32, #tpu.memory_space<vmem>>, vector<18x18x9xf32>,
    %c0_2 = arith.constant 0 : index
    %c0_3 = arith.constant 0 : index
    %c0_4 = arith.constant 0 : index
    %c0_5 = arith.constant 0 : index
    %2 = vector.load %arg1[%c0_2, %c0_3, %c0_4, %c0_5] : memref<1x16x16x8xf32, #tpu.memory_space<vmem>>, vector<1x16x16x8xf32>
    %3 = vector.shape_cast %2 : vector<1x16x16x8xf32> to vector<16x16x8xf32>
    %c1 = arith.constant 1 : index
    %c1_6 = arith.constant 1 : index
    %c0_7 = arith.constant 0 : index
    %4 = vector.load %arg5[%c1, %c1_6, %c0_7] : memref<18x18x9xf32, #tpu.memory_space<vmem>>, vector<16x16x8xf32>
    tpu.vector_store %arg5[%c1, %c1_6, %c0_7], %3 {strides = array<i32>} : memref<18x18x9xf32, #tpu.memory_space<vmem>>, vector<16x16x8xf32>,
    %cst_8 = arith.constant 1.000000e+00 : f32
    %5 = vector.broadcast %cst_8 : f32 to vector<16x16x1xf32>
    %c1_9 = arith.constant 1 : index
    %c1_10 = arith.constant 1 : index
    %c8 = arith.constant 8 : index
    %6 = vector.load %arg5[%c1_9, %c1_10, %c8] : memref<18x18x9xf32, #tpu.memory_space<vmem>>, vector<16x16x1xf32>
    tpu.vector_store %arg5[%c1_9, %c1_10, %c8], %5 {strides = array<i32>} : memref<18x18x9xf32, #tpu.memory_space<vmem>>, vector<16x16x1xf32>,
    %c0_11 = arith.constant 0 : index
    %c0_12 = arith.constant 0 : index
    %c0_13 = arith.constant 0 : index
    %7 = vector.load %arg5[%c0_11, %c0_12, %c0_13] : memref<18x18x9xf32, #tpu.memory_space<vmem>>, vector<16x16x9xf32>
    %8 = vector.shape_cast %7 : vector<16x16x9xf32> to vector<256x9xf32>
    %c0_14 = arith.constant 0 : index
    %c0_15 = arith.constant 0 : index
    %9 = vector.load %arg6[%c0_14, %c0_15] : memref<256x81xf32, #tpu.memory_space<vmem>>, vector<256x9xf32>
    tpu.vector_store %arg6[%c0_14, %c0_15], %8 {strides = array<i32>} : memref<256x81xf32, #tpu.memory_space<vmem>>, vector<256x9xf32>,
    %c0_16 = arith.constant 0 : index
    %c1_17 = arith.constant 1 : index
    %c0_18 = arith.constant 0 : index
    %10 = vector.load %arg5[%c0_16, %c1_17, %c0_18] : memref<18x18x9xf32, #tpu.memory_space<vmem>>, vector<16x16x9xf32>
    %11 = vector.shape_cast %10 : vector<16x16x9xf32> to vector<256x9xf32>
    %c0_19 = arith.constant 0 : index
    %c9 = arith.constant 9 : index
    %12 = vector.load %arg6[%c0_19, %c9] : memref<256x81xf32, #tpu.memory_space<vmem>>, vector<256x9xf32>
    tpu.vector_store %arg6[%c0_19, %c9], %11 {strides = array<i32>} : memref<256x81xf32, #tpu.memory_space<vmem>>, vector<256x9xf32>,
    %c0_20 = arith.constant 0 : index
    %c2 = arith.constant 2 : index
    %c0_21 = arith.constant 0 : index
    %13 = vector.load %arg5[%c0_20, %c2, %c0_21] : memref<18x18x9xf32, #tpu.memory_space<vmem>>, vector<16x16x9xf32>
    %14 = vector.shape_cast %13 : vector<16x16x9xf32> to vector<256x9xf32>
    %c0_22 = arith.constant 0 : index
    %c18 = arith.constant 18 : index
    %15 = vector.load %arg6[%c0_22, %c18] : memref<256x81xf32, #tpu.memory_space<vmem>>, vector<256x9xf32>
    tpu.vector_store %arg6[%c0_22, %c18], %14 {strides = array<i32>} : memref<256x81xf32, #tpu.memory_space<vmem>>, vector<256x9xf32>,
    %c1_23 = arith.constant 1 : index
    %c0_24 = arith.constant 0 : index
    %c0_25 = arith.constant 0 : index
    %16 = vector.load %arg5[%c1_23, %c0_24, %c0_25] : memref<18x18x9xf32, #tpu.memory_space<vmem>>, vector<16x16x9xf32>
    %17 = vector.shape_cast %16 : vector<16x16x9xf32> to vector<256x9xf32>
    %c0_26 = arith.constant 0 : index
    %c27 = arith.constant 27 : index
    %18 = vector.load %arg6[%c0_26, %c27] : memref<256x81xf32, #tpu.memory_space<vmem>>, vector<256x9xf32>
    tpu.vector_store %arg6[%c0_26, %c27], %17 {strides = array<i32>} : memref<256x81xf32, #tpu.memory_space<vmem>>, vector<256x9xf32>,
    %c1_27 = arith.constant 1 : index
    %c1_28 = arith.constant 1 : index
    %c0_29 = arith.constant 0 : index
    %19 = vector.load %arg5[%c1_27, %c1_28, %c0_29] : memref<18x18x9xf32, #tpu.memory_space<vmem>>, vector<16x16x9xf32>
    %20 = vector.shape_cast %19 : vector<16x16x9xf32> to vector<256x9xf32>
    %c0_30 = arith.constant 0 : index
    %c36 = arith.constant 36 : index
    %21 = vector.load %arg6[%c0_30, %c36] : memref<256x81xf32, #tpu.memory_space<vmem>>, vector<256x9xf32>
    tpu.vector_store %arg6[%c0_30, %c36], %20 {strides = array<i32>} : memref<256x81xf32, #tpu.memory_space<vmem>>, vector<256x9xf32>,
    %c1_31 = arith.constant 1 : index
    %c2_32 = arith.constant 2 : index
    %c0_33 = arith.constant 0 : index
    %22 = vector.load %arg5[%c1_31, %c2_32, %c0_33] : memref<18x18x9xf32, #tpu.memory_space<vmem>>, vector<16x16x9xf32>
    %23 = vector.shape_cast %22 : vector<16x16x9xf32> to vector<256x9xf32>
    %c0_34 = arith.constant 0 : index
    %c45 = arith.constant 45 : index
    %24 = vector.load %arg6[%c0_34, %c45] : memref<256x81xf32, #tpu.memory_space<vmem>>, vector<256x9xf32>
    tpu.vector_store %arg6[%c0_34, %c45], %23 {strides = array<i32>} : memref<256x81xf32, #tpu.memory_space<vmem>>, vector<256x9xf32>,
    %c2_35 = arith.constant 2 : index
    %c0_36 = arith.constant 0 : index
    %c0_37 = arith.constant 0 : index
    %25 = vector.load %arg5[%c2_35, %c0_36, %c0_37] : memref<18x18x9xf32, #tpu.memory_space<vmem>>, vector<16x16x9xf32>
    %26 = vector.shape_cast %25 : vector<16x16x9xf32> to vector<256x9xf32>
    %c0_38 = arith.constant 0 : index
    %c54 = arith.constant 54 : index
    %27 = vector.load %arg6[%c0_38, %c54] : memref<256x81xf32, #tpu.memory_space<vmem>>, vector<256x9xf32>
    tpu.vector_store %arg6[%c0_38, %c54], %26 {strides = array<i32>} : memref<256x81xf32, #tpu.memory_space<vmem>>, vector<256x9xf32>,
    %c2_39 = arith.constant 2 : index
    %c1_40 = arith.constant 1 : index
    %c0_41 = arith.constant 0 : index
    %28 = vector.load %arg5[%c2_39, %c1_40, %c0_41] : memref<18x18x9xf32, #tpu.memory_space<vmem>>, vector<16x16x9xf32>
    %29 = vector.shape_cast %28 : vector<16x16x9xf32> to vector<256x9xf32>
    %c0_42 = arith.constant 0 : index
    %c63 = arith.constant 63 : index
    %30 = vector.load %arg6[%c0_42, %c63] : memref<256x81xf32, #tpu.memory_space<vmem>>, vector<256x9xf32>
    tpu.vector_store %arg6[%c0_42, %c63], %29 {strides = array<i32>} : memref<256x81xf32, #tpu.memory_space<vmem>>, vector<256x9xf32>,
    %c2_43 = arith.constant 2 : index
    %c2_44 = arith.constant 2 : index
    %c0_45 = arith.constant 0 : index
    %31 = vector.load %arg5[%c2_43, %c2_44, %c0_45] : memref<18x18x9xf32, #tpu.memory_space<vmem>>, vector<16x16x9xf32>
    %32 = vector.shape_cast %31 : vector<16x16x9xf32> to vector<256x9xf32>
    %c0_46 = arith.constant 0 : index
    %c72 = arith.constant 72 : index
    %33 = vector.load %arg6[%c0_46, %c72] : memref<256x81xf32, #tpu.memory_space<vmem>>, vector<256x9xf32>
    tpu.vector_store %arg6[%c0_46, %c72], %32 {strides = array<i32>} : memref<256x81xf32, #tpu.memory_space<vmem>>, vector<256x9xf32>,
    %c0_47 = arith.constant 0 : index
    %c0_48 = arith.constant 0 : index
    %34 = vector.load %arg6[%c0_47, %c0_48] : memref<256x81xf32, #tpu.memory_space<vmem>>, vector<256x81xf32>
    %c0_49 = arith.constant 0 : index
    %c0_50 = arith.constant 0 : index
    %35 = vector.load %arg2[%c0_49, %c0_50] : memref<81x16xf32, #tpu.memory_space<vmem>>, vector<81x16xf32>
    %cst_51 = arith.constant dense<0.000000e+00> : vector<256x16xf32>
    %36 = tpu.matmul %34, %35, %cst_51 {dimension_numbers = #tpu.dot_dimension_numbers<[1], [0], [0], [1], [0, 0, 1, 1], [], []>} : vector<256x81xf32>, vector<81x16xf32>, vector<256x16xf32> -> vector<256x16xf32>
    %c0_52 = arith.constant 0 : index
    %c0_53 = arith.constant 0 : index
    %c0_54 = arith.constant 0 : index
    %37 = vector.load %arg3[%c0_52, %c0_53, %c0_54] : memref<1x256x16xf32, #tpu.memory_space<vmem>>, vector<1x256x16xf32>
    %38 = vector.shape_cast %37 : vector<1x256x16xf32> to vector<256x16xf32>
    %39 = vector.shape_cast %36 : vector<256x16xf32> to vector<1x256x16xf32>
    tpu.vector_store %arg3[%c0_52, %c0_53, %c0_54], %39 {strides = array<i32>} : memref<1x256x16xf32, #tpu.memory_space<vmem>>, vector<1x256x16xf32>,
    %cst_55 = arith.constant dense<0.000000e+00> : vector<16xf32>
    %40 = vector.multi_reduction <add>, %36, %cst_55 [0] : vector<256x16xf32> to vector<16xf32>
    %41 = vector.shape_cast %40 : vector<16xf32> to vector<1x16xf32>
    %42 = arith.mulf %36, %36 : vector<256x16xf32>
    %cst_56 = arith.constant dense<0.000000e+00> : vector<16xf32>
    %43 = vector.multi_reduction <add>, %42, %cst_56 [0] : vector<256x16xf32> to vector<16xf32>
    %44 = vector.shape_cast %43 : vector<16xf32> to vector<1x16xf32>
    %45 = tpu.concatenate %41, %44 in 0 : vector<1x16xf32>, vector<1x16xf32> -> vector<2x16xf32>
    %c0_57 = arith.constant 0 : index
    %c0_58 = arith.constant 0 : index
    %c0_59 = arith.constant 0 : index
    %46 = vector.load %arg4[%c0_57, %c0_58, %c0_59] : memref<1x2x16xf32, #tpu.memory_space<vmem>>, vector<1x2x16xf32>
    %47 = vector.shape_cast %46 : vector<1x2x16xf32> to vector<2x16xf32>
    %48 = vector.shape_cast %45 : vector<2x16xf32> to vector<1x2x16xf32>
    tpu.vector_store %arg4[%c0_57, %c0_58, %c0_59], %48 {strides = array<i32>} : memref<1x2x16xf32, #tpu.memory_space<vmem>>, vector<1x2x16xf32>,
    return
  }
  func.func @transform_0(%arg0: i32) -> (i32, i32, i32, i32) {
    %c0_i32 = arith.constant 0 : i32
    %c0_i32_0 = arith.constant 0 : i32
    %c0_i32_1 = arith.constant 0 : i32
    %c0_i32_2 = arith.constant 0 : i32
    return %arg0, %c0_i32, %c0_i32_0, %c0_i32_1 : i32, i32, i32, i32
  }
  func.func @transform_1(%arg0: i32) -> (i32, i32) {
    %c0_i32 = arith.constant 0 : i32
    %c0_i32_0 = arith.constant 0 : i32
    %c0_i32_1 = arith.constant 0 : i32
    return %c0_i32, %c0_i32_0 : i32, i32
  }
  func.func @transform_2(%arg0: i32) -> (i32, i32, i32) {
    %c0_i32 = arith.constant 0 : i32
    %c0_i32_0 = arith.constant 0 : i32
    %c0_i32_1 = arith.constant 0 : i32
    return %arg0, %c0_i32, %c0_i32_0 : i32, i32, i32
  }
  func.func @transform_3(%arg0: i32) -> (i32, i32, i32) {
    %c0_i32 = arith.constant 0 : i32
    %c0_i32_0 = arith.constant 0 : i32
    %c0_i32_1 = arith.constant 0 : i32
    return %arg0, %c0_i32, %c0_i32_0 : i32, i32, i32
  }
}

module attributes {stable_mosaic.version = 11 : i64} {
  func.func @_bn2_relu_kernel(%arg0: i32, %arg1: memref<1x256x16xf32, #tpu.memory_space<vmem>>, %arg2: memref<1x16xf32, #tpu.memory_space<vmem>>, %arg3: memref<1x16xf32, #tpu.memory_space<vmem>>, %arg4: memref<1x256x16xf32, #tpu.memory_space<vmem>>) attributes {dimension_semantics = [#tpu.dimension_semantics<parallel>], iteration_bounds = array<i64: 2>, scalar_prefetch = 0 : i64, scratch_operands = 0 : i64, tpu.core_type = #tpu.core_type<tc>, window_params = [{transform_indices = @transform_0, window_bounds = array<i64: 1, 256, 16>}, {pipeline_mode = #tpu.pipeline_mode<synchronous>, transform_indices = @transform_1, window_bounds = array<i64: 1, 16>}, {pipeline_mode = #tpu.pipeline_mode<synchronous>, transform_indices = @transform_2, window_bounds = array<i64: 1, 16>}, {transform_indices = @transform_3, window_bounds = array<i64: 1, 256, 16>}]} {
    %c0 = arith.constant 0 : index
    %c0_0 = arith.constant 0 : index
    %c0_1 = arith.constant 0 : index
    %0 = vector.load %arg1[%c0, %c0_0, %c0_1] : memref<1x256x16xf32, #tpu.memory_space<vmem>>, vector<1x256x16xf32>
    %c0_2 = arith.constant 0 : index
    %c0_3 = arith.constant 0 : index
    %1 = vector.load %arg2[%c0_2, %c0_3] : memref<1x16xf32, #tpu.memory_space<vmem>>, vector<1x16xf32>
    %2 = vector.shape_cast %1 : vector<1x16xf32> to vector<1x1x16xf32>
    %3 = vector.broadcast %2 : vector<1x1x16xf32> to vector<1x256x16xf32>
    %4 = arith.mulf %0, %3 : vector<1x256x16xf32>
    %c0_4 = arith.constant 0 : index
    %c0_5 = arith.constant 0 : index
    %5 = vector.load %arg3[%c0_4, %c0_5] : memref<1x16xf32, #tpu.memory_space<vmem>>, vector<1x16xf32>
    %6 = vector.shape_cast %5 : vector<1x16xf32> to vector<1x1x16xf32>
    %7 = vector.broadcast %6 : vector<1x1x16xf32> to vector<1x256x16xf32>
    %8 = arith.addf %4, %7 : vector<1x256x16xf32>
    %cst = arith.constant 0.000000e+00 : f32
    %9 = vector.broadcast %cst : f32 to vector<1x256x16xf32>
    %10 = arith.maximumf %8, %9 : vector<1x256x16xf32>
    %c0_6 = arith.constant 0 : index
    %c0_7 = arith.constant 0 : index
    %c0_8 = arith.constant 0 : index
    %11 = vector.load %arg4[%c0_6, %c0_7, %c0_8] : memref<1x256x16xf32, #tpu.memory_space<vmem>>, vector<1x256x16xf32>
    tpu.vector_store %arg4[%c0_6, %c0_7, %c0_8], %10 {strides = array<i32>} : memref<1x256x16xf32, #tpu.memory_space<vmem>>, vector<1x256x16xf32>,
    return
  }
  func.func @transform_0(%arg0: i32) -> (i32, i32, i32) {
    %c0_i32 = arith.constant 0 : i32
    %c0_i32_0 = arith.constant 0 : i32
    %c0_i32_1 = arith.constant 0 : i32
    return %arg0, %c0_i32, %c0_i32_0 : i32, i32, i32
  }
  func.func @transform_1(%arg0: i32) -> (i32, i32) {
    %c0_i32 = arith.constant 0 : i32
    %c0_i32_0 = arith.constant 0 : i32
    %c0_i32_1 = arith.constant 0 : i32
    return %c0_i32, %c0_i32_0 : i32, i32
  }
  func.func @transform_2(%arg0: i32) -> (i32, i32) {
    %c0_i32 = arith.constant 0 : i32
    %c0_i32_0 = arith.constant 0 : i32
    %c0_i32_1 = arith.constant 0 : i32
    return %c0_i32, %c0_i32_0 : i32, i32
  }
  func.func @transform_3(%arg0: i32) -> (i32, i32, i32) {
    %c0_i32 = arith.constant 0 : i32
    %c0_i32_0 = arith.constant 0 : i32
    %c0_i32_1 = arith.constant 0 : i32
    return %arg0, %c0_i32, %c0_i32_0 : i32, i32, i32
  }
}

module attributes {stable_mosaic.version = 11 : i64} {
  func.func @_bn1_conv2_kernel(%arg0: i32, %arg1: memref<1x256x16xf32, #tpu.memory_space<vmem>>, %arg2: memref<1x16xf32, #tpu.memory_space<vmem>>, %arg3: memref<1x16xf32, #tpu.memory_space<vmem>>, %arg4: memref<64x16xf32, #tpu.memory_space<vmem>>, %arg5: memref<1x256x16xf32, #tpu.memory_space<vmem>>, %arg6: memref<1x2x16xf32, #tpu.memory_space<vmem>>, %arg7: memref<4x18x18x4xf32, #tpu.memory_space<vmem>>, %arg8: memref<256x64xf32, #tpu.memory_space<vmem>>) attributes {dimension_semantics = [#tpu.dimension_semantics<parallel>], iteration_bounds = array<i64: 2>, scalar_prefetch = 0 : i64, scratch_operands = 2 : i64, tpu.core_type = #tpu.core_type<tc>, window_params = [{transform_indices = @transform_0, window_bounds = array<i64: 1, 256, 16>}, {pipeline_mode = #tpu.pipeline_mode<synchronous>, transform_indices = @transform_1, window_bounds = array<i64: 1, 16>}, {pipeline_mode = #tpu.pipeline_mode<synchronous>, transform_indices = @transform_2, window_bounds = array<i64: 1, 16>}, {pipeline_mode = #tpu.pipeline_mode<synchronous>, transform_indices = @transform_3, window_bounds = array<i64: 64, 16>}, {transform_indices = @transform_4, window_bounds = array<i64: 1, 256, 16>}, {transform_indices = @transform_5, window_bounds = array<i64: 1, 2, 16>}]} {
    %c0 = arith.constant 0 : index
    %c0_0 = arith.constant 0 : index
    %c0_1 = arith.constant 0 : index
    %0 = vector.load %arg1[%c0, %c0_0, %c0_1] : memref<1x256x16xf32, #tpu.memory_space<vmem>>, vector<1x256x16xf32>
    %c0_2 = arith.constant 0 : index
    %c0_3 = arith.constant 0 : index
    %1 = vector.load %arg2[%c0_2, %c0_3] : memref<1x16xf32, #tpu.memory_space<vmem>>, vector<1x16xf32>
    %2 = vector.shape_cast %1 : vector<1x16xf32> to vector<1x1x16xf32>
    %3 = vector.broadcast %2 : vector<1x1x16xf32> to vector<1x256x16xf32>
    %4 = arith.mulf %0, %3 : vector<1x256x16xf32>
    %c0_4 = arith.constant 0 : index
    %c0_5 = arith.constant 0 : index
    %5 = vector.load %arg3[%c0_4, %c0_5] : memref<1x16xf32, #tpu.memory_space<vmem>>, vector<1x16xf32>
    %6 = vector.shape_cast %5 : vector<1x16xf32> to vector<1x1x16xf32>
    %7 = vector.broadcast %6 : vector<1x1x16xf32> to vector<1x256x16xf32>
    %8 = arith.addf %4, %7 : vector<1x256x16xf32>
    %cst = arith.constant 0.000000e+00 : f32
    %9 = vector.broadcast %cst : f32 to vector<1x256x16xf32>
    %10 = arith.maximumf %8, %9 : vector<1x256x16xf32>
    %cst_6 = arith.constant 0.000000e+00 : f32
    %11 = vector.broadcast %cst_6 : f32 to vector<4x18x18x4xf32>
    %c0_7 = arith.constant 0 : index
    %c0_8 = arith.constant 0 : index
    %c0_9 = arith.constant 0 : index
    %c0_10 = arith.constant 0 : index
    %12 = vector.load %arg7[%c0_7, %c0_8, %c0_9, %c0_10] : memref<4x18x18x4xf32, #tpu.memory_space<vmem>>, vector<4x18x18x4xf32>
    tpu.vector_store %arg7[%c0_7, %c0_8, %c0_9, %c0_10], %11 {strides = array<i32>} : memref<4x18x18x4xf32, #tpu.memory_space<vmem>>, vector<4x18x18x4xf32>,
    %13 = vector.extract_strided_slice %10 {offsets = [0, 0, 0], sizes = [1, 256, 4], strides = [1, 1, 1]} : vector<1x256x16xf32> to vector<1x256x4xf32>
    %14 = vector.shape_cast %13 : vector<1x256x4xf32> to vector<256x4xf32>
    %15 = vector.shape_cast %14 : vector<256x4xf32> to vector<16x16x4xf32>
    %c0_11 = arith.constant 0 : index
    %c1 = arith.constant 1 : index
    %c1_12 = arith.constant 1 : index
    %c0_13 = arith.constant 0 : index
    %16 = vector.load %arg7[%c0_11, %c1, %c1_12, %c0_13] : memref<4x18x18x4xf32, #tpu.memory_space<vmem>>, vector<1x16x16x4xf32>
    %17 = vector.shape_cast %16 : vector<1x16x16x4xf32> to vector<16x16x4xf32>
    %18 = vector.shape_cast %15 : vector<16x16x4xf32> to vector<1x16x16x4xf32>
    tpu.vector_store %arg7[%c0_11, %c1, %c1_12, %c0_13], %18 {strides = array<i32>} : memref<4x18x18x4xf32, #tpu.memory_space<vmem>>, vector<1x16x16x4xf32>,
    %19 = vector.extract_strided_slice %10 {offsets = [0, 0, 4], sizes = [1, 256, 4], strides = [1, 1, 1]} : vector<1x256x16xf32> to vector<1x256x4xf32>
    %20 = vector.shape_cast %19 : vector<1x256x4xf32> to vector<256x4xf32>
    %21 = vector.shape_cast %20 : vector<256x4xf32> to vector<16x16x4xf32>
    %c1_14 = arith.constant 1 : index
    %c1_15 = arith.constant 1 : index
    %c1_16 = arith.constant 1 : index
    %c0_17 = arith.constant 0 : index
    %22 = vector.load %arg7[%c1_14, %c1_15, %c1_16, %c0_17] : memref<4x18x18x4xf32, #tpu.memory_space<vmem>>, vector<1x16x16x4xf32>
    %23 = vector.shape_cast %22 : vector<1x16x16x4xf32> to vector<16x16x4xf32>
    %24 = vector.shape_cast %21 : vector<16x16x4xf32> to vector<1x16x16x4xf32>
    tpu.vector_store %arg7[%c1_14, %c1_15, %c1_16, %c0_17], %24 {strides = array<i32>} : memref<4x18x18x4xf32, #tpu.memory_space<vmem>>, vector<1x16x16x4xf32>,
    %25 = vector.extract_strided_slice %10 {offsets = [0, 0, 8], sizes = [1, 256, 4], strides = [1, 1, 1]} : vector<1x256x16xf32> to vector<1x256x4xf32>
    %26 = vector.shape_cast %25 : vector<1x256x4xf32> to vector<256x4xf32>
    %27 = vector.shape_cast %26 : vector<256x4xf32> to vector<16x16x4xf32>
    %c2 = arith.constant 2 : index
    %c1_18 = arith.constant 1 : index
    %c1_19 = arith.constant 1 : index
    %c0_20 = arith.constant 0 : index
    %28 = vector.load %arg7[%c2, %c1_18, %c1_19, %c0_20] : memref<4x18x18x4xf32, #tpu.memory_space<vmem>>, vector<1x16x16x4xf32>
    %29 = vector.shape_cast %28 : vector<1x16x16x4xf32> to vector<16x16x4xf32>
    %30 = vector.shape_cast %27 : vector<16x16x4xf32> to vector<1x16x16x4xf32>
    tpu.vector_store %arg7[%c2, %c1_18, %c1_19, %c0_20], %30 {strides = array<i32>} : memref<4x18x18x4xf32, #tpu.memory_space<vmem>>, vector<1x16x16x4xf32>,
    %31 = vector.extract_strided_slice %10 {offsets = [0, 0, 12], sizes = [1, 256, 4], strides = [1, 1, 1]} : vector<1x256x16xf32> to vector<1x256x4xf32>
    %32 = vector.shape_cast %31 : vector<1x256x4xf32> to vector<256x4xf32>
    %33 = vector.shape_cast %32 : vector<256x4xf32> to vector<16x16x4xf32>
    %c3 = arith.constant 3 : index
    %c1_21 = arith.constant 1 : index
    %c1_22 = arith.constant 1 : index
    %c0_23 = arith.constant 0 : index
    %34 = vector.load %arg7[%c3, %c1_21, %c1_22, %c0_23] : memref<4x18x18x4xf32, #tpu.memory_space<vmem>>, vector<1x16x16x4xf32>
    %35 = vector.shape_cast %34 : vector<1x16x16x4xf32> to vector<16x16x4xf32>
    %36 = vector.shape_cast %33 : vector<16x16x4xf32> to vector<1x16x16x4xf32>
    tpu.vector_store %arg7[%c3, %c1_21, %c1_22, %c0_23], %36 {strides = array<i32>} : memref<4x18x18x4xf32, #tpu.memory_space<vmem>>, vector<1x16x16x4xf32>,
    %c3_24 = arith.constant 3 : index
    %c0_25 = arith.constant 0 : index
    %c0_26 = arith.constant 0 : index
    %c0_27 = arith.constant 0 : index
    %37 = vector.load %arg7[%c3_24, %c0_25, %c0_26, %c0_27] : memref<4x18x18x4xf32, #tpu.memory_space<vmem>>, vector<1x16x16x4xf32>
    %38 = vector.shape_cast %37 : vector<1x16x16x4xf32> to vector<16x16x4xf32>
    %39 = vector.shape_cast %38 : vector<16x16x4xf32> to vector<256x4xf32>
    %c0_28 = arith.constant 0 : index
    %c0_29 = arith.constant 0 : index
    %40 = vector.load %arg8[%c0_28, %c0_29] : memref<256x64xf32, #tpu.memory_space<vmem>>, vector<256x4xf32>
    tpu.vector_store %arg8[%c0_28, %c0_29], %39 {strides = array<i32>} : memref<256x64xf32, #tpu.memory_space<vmem>>, vector<256x4xf32>,
    %c2_30 = arith.constant 2 : index
    %c0_31 = arith.constant 0 : index
    %c1_32 = arith.constant 1 : index
    %c0_33 = arith.constant 0 : index
    %41 = vector.load %arg7[%c2_30, %c0_31, %c1_32, %c0_33] : memref<4x18x18x4xf32, #tpu.memory_space<vmem>>, vector<1x16x16x4xf32>
    %42 = vector.shape_cast %41 : vector<1x16x16x4xf32> to vector<16x16x4xf32>
    %43 = vector.shape_cast %42 : vector<16x16x4xf32> to vector<256x4xf32>
    %c0_34 = arith.constant 0 : index
    %c4 = arith.constant 4 : index
    %44 = vector.load %arg8[%c0_34, %c4] : memref<256x64xf32, #tpu.memory_space<vmem>>, vector<256x4xf32>
    tpu.vector_store %arg8[%c0_34, %c4], %43 {strides = array<i32>} : memref<256x64xf32, #tpu.memory_space<vmem>>, vector<256x4xf32>,
    %c3_35 = arith.constant 3 : index
    %c0_36 = arith.constant 0 : index
    %c1_37 = arith.constant 1 : index
    %c0_38 = arith.constant 0 : index
    %45 = vector.load %arg7[%c3_35, %c0_36, %c1_37, %c0_38] : memref<4x18x18x4xf32, #tpu.memory_space<vmem>>, vector<1x16x16x4xf32>
    %46 = vector.shape_cast %45 : vector<1x16x16x4xf32> to vector<16x16x4xf32>
    %47 = vector.shape_cast %46 : vector<16x16x4xf32> to vector<256x4xf32>
    %c0_39 = arith.constant 0 : index
    %c8 = arith.constant 8 : index
    %48 = vector.load %arg8[%c0_39, %c8] : memref<256x64xf32, #tpu.memory_space<vmem>>, vector<256x4xf32>
    tpu.vector_store %arg8[%c0_39, %c8], %47 {strides = array<i32>} : memref<256x64xf32, #tpu.memory_space<vmem>>, vector<256x4xf32>,
    %c2_40 = arith.constant 2 : index
    %c0_41 = arith.constant 0 : index
    %c2_42 = arith.constant 2 : index
    %c0_43 = arith.constant 0 : index
    %49 = vector.load %arg7[%c2_40, %c0_41, %c2_42, %c0_43] : memref<4x18x18x4xf32, #tpu.memory_space<vmem>>, vector<1x16x16x4xf32>
    %50 = vector.shape_cast %49 : vector<1x16x16x4xf32> to vector<16x16x4xf32>
    %51 = vector.shape_cast %50 : vector<16x16x4xf32> to vector<256x4xf32>
    %c0_44 = arith.constant 0 : index
    %c12 = arith.constant 12 : index
    %52 = vector.load %arg8[%c0_44, %c12] : memref<256x64xf32, #tpu.memory_space<vmem>>, vector<256x4xf32>
    tpu.vector_store %arg8[%c0_44, %c12], %51 {strides = array<i32>} : memref<256x64xf32, #tpu.memory_space<vmem>>, vector<256x4xf32>,
    %c1_45 = arith.constant 1 : index
    %c1_46 = arith.constant 1 : index
    %c0_47 = arith.constant 0 : index
    %c0_48 = arith.constant 0 : index
    %53 = vector.load %arg7[%c1_45, %c1_46, %c0_47, %c0_48] : memref<4x18x18x4xf32, #tpu.memory_space<vmem>>, vector<1x16x16x4xf32>
    %54 = vector.shape_cast %53 : vector<1x16x16x4xf32> to vector<16x16x4xf32>
    %55 = vector.shape_cast %54 : vector<16x16x4xf32> to vector<256x4xf32>
    %c0_49 = arith.constant 0 : index
    %c16 = arith.constant 16 : index
    %56 = vector.load %arg8[%c0_49, %c16] : memref<256x64xf32, #tpu.memory_space<vmem>>, vector<256x4xf32>
    tpu.vector_store %arg8[%c0_49, %c16], %55 {strides = array<i32>} : memref<256x64xf32, #tpu.memory_space<vmem>>, vector<256x4xf32>,
    %c0_50 = arith.constant 0 : index
    %c1_51 = arith.constant 1 : index
    %c1_52 = arith.constant 1 : index
    %c0_53 = arith.constant 0 : index
    %57 = vector.load %arg7[%c0_50, %c1_51, %c1_52, %c0_53] : memref<4x18x18x4xf32, #tpu.memory_space<vmem>>, vector<1x16x16x4xf32>
    %58 = vector.shape_cast %57 : vector<1x16x16x4xf32> to vector<16x16x4xf32>
    %59 = vector.shape_cast %58 : vector<16x16x4xf32> to vector<256x4xf32>
    %c0_54 = arith.constant 0 : index
    %c20 = arith.constant 20 : index
    %60 = vector.load %arg8[%c0_54, %c20] : memref<256x64xf32, #tpu.memory_space<vmem>>, vector<256x4xf32>
    tpu.vector_store %arg8[%c0_54, %c20], %59 {strides = array<i32>} : memref<256x64xf32, #tpu.memory_space<vmem>>, vector<256x4xf32>,
    %c1_55 = arith.constant 1 : index
    %c1_56 = arith.constant 1 : index
    %c1_57 = arith.constant 1 : index
    %c0_58 = arith.constant 0 : index
    %61 = vector.load %arg7[%c1_55, %c1_56, %c1_57, %c0_58] : memref<4x18x18x4xf32, #tpu.memory_space<vmem>>, vector<1x16x16x4xf32>
    %62 = vector.shape_cast %61 : vector<1x16x16x4xf32> to vector<16x16x4xf32>
    %63 = vector.shape_cast %62 : vector<16x16x4xf32> to vector<256x4xf32>
    %c0_59 = arith.constant 0 : index
    %c24 = arith.constant 24 : index
    %64 = vector.load %arg8[%c0_59, %c24] : memref<256x64xf32, #tpu.memory_space<vmem>>, vector<256x4xf32>
    tpu.vector_store %arg8[%c0_59, %c24], %63 {strides = array<i32>} : memref<256x64xf32, #tpu.memory_space<vmem>>, vector<256x4xf32>,
    %c0_60 = arith.constant 0 : index
    %c1_61 = arith.constant 1 : index
    %c2_62 = arith.constant 2 : index
    %c0_63 = arith.constant 0 : index
    %65 = vector.load %arg7[%c0_60, %c1_61, %c2_62, %c0_63] : memref<4x18x18x4xf32, #tpu.memory_space<vmem>>, vector<1x16x16x4xf32>
    %66 = vector.shape_cast %65 : vector<1x16x16x4xf32> to vector<16x16x4xf32>
    %67 = vector.shape_cast %66 : vector<16x16x4xf32> to vector<256x4xf32>
    %c0_64 = arith.constant 0 : index
    %c28 = arith.constant 28 : index
    %68 = vector.load %arg8[%c0_64, %c28] : memref<256x64xf32, #tpu.memory_space<vmem>>, vector<256x4xf32>
    tpu.vector_store %arg8[%c0_64, %c28], %67 {strides = array<i32>} : memref<256x64xf32, #tpu.memory_space<vmem>>, vector<256x4xf32>,
    %c3_65 = arith.constant 3 : index
    %c1_66 = arith.constant 1 : index
    %c0_67 = arith.constant 0 : index
    %c0_68 = arith.constant 0 : index
    %69 = vector.load %arg7[%c3_65, %c1_66, %c0_67, %c0_68] : memref<4x18x18x4xf32, #tpu.memory_space<vmem>>, vector<1x16x16x4xf32>
    %70 = vector.shape_cast %69 : vector<1x16x16x4xf32> to vector<16x16x4xf32>
    %71 = vector.shape_cast %70 : vector<16x16x4xf32> to vector<256x4xf32>
    %c0_69 = arith.constant 0 : index
    %c32 = arith.constant 32 : index
    %72 = vector.load %arg8[%c0_69, %c32] : memref<256x64xf32, #tpu.memory_space<vmem>>, vector<256x4xf32>
    tpu.vector_store %arg8[%c0_69, %c32], %71 {strides = array<i32>} : memref<256x64xf32, #tpu.memory_space<vmem>>, vector<256x4xf32>,
    %c2_70 = arith.constant 2 : index
    %c1_71 = arith.constant 1 : index
    %c1_72 = arith.constant 1 : index
    %c0_73 = arith.constant 0 : index
    %73 = vector.load %arg7[%c2_70, %c1_71, %c1_72, %c0_73] : memref<4x18x18x4xf32, #tpu.memory_space<vmem>>, vector<1x16x16x4xf32>
    %74 = vector.shape_cast %73 : vector<1x16x16x4xf32> to vector<16x16x4xf32>
    %75 = vector.shape_cast %74 : vector<16x16x4xf32> to vector<256x4xf32>
    %c0_74 = arith.constant 0 : index
    %c36 = arith.constant 36 : index
    %76 = vector.load %arg8[%c0_74, %c36] : memref<256x64xf32, #tpu.memory_space<vmem>>, vector<256x4xf32>
    tpu.vector_store %arg8[%c0_74, %c36], %75 {strides = array<i32>} : memref<256x64xf32, #tpu.memory_space<vmem>>, vector<256x4xf32>,
    %c3_75 = arith.constant 3 : index
    %c1_76 = arith.constant 1 : index
    %c1_77 = arith.constant 1 : index
    %c0_78 = arith.constant 0 : index
    %77 = vector.load %arg7[%c3_75, %c1_76, %c1_77, %c0_78] : memref<4x18x18x4xf32, #tpu.memory_space<vmem>>, vector<1x16x16x4xf32>
    %78 = vector.shape_cast %77 : vector<1x16x16x4xf32> to vector<16x16x4xf32>
    %79 = vector.shape_cast %78 : vector<16x16x4xf32> to vector<256x4xf32>
    %c0_79 = arith.constant 0 : index
    %c40 = arith.constant 40 : index
    %80 = vector.load %arg8[%c0_79, %c40] : memref<256x64xf32, #tpu.memory_space<vmem>>, vector<256x4xf32>
    tpu.vector_store %arg8[%c0_79, %c40], %79 {strides = array<i32>} : memref<256x64xf32, #tpu.memory_space<vmem>>, vector<256x4xf32>,
    %c2_80 = arith.constant 2 : index
    %c1_81 = arith.constant 1 : index
    %c2_82 = arith.constant 2 : index
    %c0_83 = arith.constant 0 : index
    %81 = vector.load %arg7[%c2_80, %c1_81, %c2_82, %c0_83] : memref<4x18x18x4xf32, #tpu.memory_space<vmem>>, vector<1x16x16x4xf32>
    %82 = vector.shape_cast %81 : vector<1x16x16x4xf32> to vector<16x16x4xf32>
    %83 = vector.shape_cast %82 : vector<16x16x4xf32> to vector<256x4xf32>
    %c0_84 = arith.constant 0 : index
    %c44 = arith.constant 44 : index
    %84 = vector.load %arg8[%c0_84, %c44] : memref<256x64xf32, #tpu.memory_space<vmem>>, vector<256x4xf32>
    tpu.vector_store %arg8[%c0_84, %c44], %83 {strides = array<i32>} : memref<256x64xf32, #tpu.memory_space<vmem>>, vector<256x4xf32>,
    %c1_85 = arith.constant 1 : index
    %c2_86 = arith.constant 2 : index
    %c0_87 = arith.constant 0 : index
    %c0_88 = arith.constant 0 : index
    %85 = vector.load %arg7[%c1_85, %c2_86, %c0_87, %c0_88] : memref<4x18x18x4xf32, #tpu.memory_space<vmem>>, vector<1x16x16x4xf32>
    %86 = vector.shape_cast %85 : vector<1x16x16x4xf32> to vector<16x16x4xf32>
    %87 = vector.shape_cast %86 : vector<16x16x4xf32> to vector<256x4xf32>
    %c0_89 = arith.constant 0 : index
    %c48 = arith.constant 48 : index
    %88 = vector.load %arg8[%c0_89, %c48] : memref<256x64xf32, #tpu.memory_space<vmem>>, vector<256x4xf32>
    tpu.vector_store %arg8[%c0_89, %c48], %87 {strides = array<i32>} : memref<256x64xf32, #tpu.memory_space<vmem>>, vector<256x4xf32>,
    %c0_90 = arith.constant 0 : index
    %c2_91 = arith.constant 2 : index
    %c1_92 = arith.constant 1 : index
    %c0_93 = arith.constant 0 : index
    %89 = vector.load %arg7[%c0_90, %c2_91, %c1_92, %c0_93] : memref<4x18x18x4xf32, #tpu.memory_space<vmem>>, vector<1x16x16x4xf32>
    %90 = vector.shape_cast %89 : vector<1x16x16x4xf32> to vector<16x16x4xf32>
    %91 = vector.shape_cast %90 : vector<16x16x4xf32> to vector<256x4xf32>
    %c0_94 = arith.constant 0 : index
    %c52 = arith.constant 52 : index
    %92 = vector.load %arg8[%c0_94, %c52] : memref<256x64xf32, #tpu.memory_space<vmem>>, vector<256x4xf32>
    tpu.vector_store %arg8[%c0_94, %c52], %91 {strides = array<i32>} : memref<256x64xf32, #tpu.memory_space<vmem>>, vector<256x4xf32>,
    %c1_95 = arith.constant 1 : index
    %c2_96 = arith.constant 2 : index
    %c1_97 = arith.constant 1 : index
    %c0_98 = arith.constant 0 : index
    %93 = vector.load %arg7[%c1_95, %c2_96, %c1_97, %c0_98] : memref<4x18x18x4xf32, #tpu.memory_space<vmem>>, vector<1x16x16x4xf32>
    %94 = vector.shape_cast %93 : vector<1x16x16x4xf32> to vector<16x16x4xf32>
    %95 = vector.shape_cast %94 : vector<16x16x4xf32> to vector<256x4xf32>
    %c0_99 = arith.constant 0 : index
    %c56 = arith.constant 56 : index
    %96 = vector.load %arg8[%c0_99, %c56] : memref<256x64xf32, #tpu.memory_space<vmem>>, vector<256x4xf32>
    tpu.vector_store %arg8[%c0_99, %c56], %95 {strides = array<i32>} : memref<256x64xf32, #tpu.memory_space<vmem>>, vector<256x4xf32>,
    %c0_100 = arith.constant 0 : index
    %c2_101 = arith.constant 2 : index
    %c2_102 = arith.constant 2 : index
    %c0_103 = arith.constant 0 : index
    %97 = vector.load %arg7[%c0_100, %c2_101, %c2_102, %c0_103] : memref<4x18x18x4xf32, #tpu.memory_space<vmem>>, vector<1x16x16x4xf32>
    %98 = vector.shape_cast %97 : vector<1x16x16x4xf32> to vector<16x16x4xf32>
    %99 = vector.shape_cast %98 : vector<16x16x4xf32> to vector<256x4xf32>
    %c0_104 = arith.constant 0 : index
    %c60 = arith.constant 60 : index
    %100 = vector.load %arg8[%c0_104, %c60] : memref<256x64xf32, #tpu.memory_space<vmem>>, vector<256x4xf32>
    tpu.vector_store %arg8[%c0_104, %c60], %99 {strides = array<i32>} : memref<256x64xf32, #tpu.memory_space<vmem>>, vector<256x4xf32>,
    %c0_105 = arith.constant 0 : index
    %c0_106 = arith.constant 0 : index
    %101 = vector.load %arg8[%c0_105, %c0_106] : memref<256x64xf32, #tpu.memory_space<vmem>>, vector<256x64xf32>
    %c0_107 = arith.constant 0 : index
    %c0_108 = arith.constant 0 : index
    %102 = vector.load %arg4[%c0_107, %c0_108] : memref<64x16xf32, #tpu.memory_space<vmem>>, vector<64x16xf32>
    %cst_109 = arith.constant dense<0.000000e+00> : vector<256x16xf32>
    %103 = tpu.matmul %101, %102, %cst_109 {dimension_numbers = #tpu.dot_dimension_numbers<[1], [0], [0], [1], [0, 0, 1, 1], [], []>} : vector<256x64xf32>, vector<64x16xf32>, vector<256x16xf32> -> vector<256x16xf32>
    %c0_110 = arith.constant 0 : index
    %c0_111 = arith.constant 0 : index
    %c0_112 = arith.constant 0 : index
    %104 = vector.load %arg5[%c0_110, %c0_111, %c0_112] : memref<1x256x16xf32, #tpu.memory_space<vmem>>, vector<1x256x16xf32>
    %105 = vector.shape_cast %104 : vector<1x256x16xf32> to vector<256x16xf32>
    %106 = vector.shape_cast %103 : vector<256x16xf32> to vector<1x256x16xf32>
    tpu.vector_store %arg5[%c0_110, %c0_111, %c0_112], %106 {strides = array<i32>} : memref<1x256x16xf32, #tpu.memory_space<vmem>>, vector<1x256x16xf32>,
    %cst_113 = arith.constant dense<0.000000e+00> : vector<16xf32>
    %107 = vector.multi_reduction <add>, %103, %cst_113 [0] : vector<256x16xf32> to vector<16xf32>
    %108 = vector.shape_cast %107 : vector<16xf32> to vector<1x16xf32>
    %109 = arith.mulf %103, %103 : vector<256x16xf32>
    %cst_114 = arith.constant dense<0.000000e+00> : vector<16xf32>
    %110 = vector.multi_reduction <add>, %109, %cst_114 [0] : vector<256x16xf32> to vector<16xf32>
    %111 = vector.shape_cast %110 : vector<16xf32> to vector<1x16xf32>
    %112 = tpu.concatenate %108, %111 in 0 : vector<1x16xf32>, vector<1x16xf32> -> vector<2x16xf32>
    %c0_115 = arith.constant 0 : index
    %c0_116 = arith.constant 0 : index
    %c0_117 = arith.constant 0 : index
    %113 = vector.load %arg6[%c0_115, %c0_116, %c0_117] : memref<1x2x16xf32, #tpu.memory_space<vmem>>, vector<1x2x16xf32>
    %114 = vector.shape_cast %113 : vector<1x2x16xf32> to vector<2x16xf32>
    %115 = vector.shape_cast %112 : vector<2x16xf32> to vector<1x2x16xf32>
    tpu.vector_store %arg6[%c0_115, %c0_116, %c0_117], %115 {strides = array<i32>} : memref<1x2x16xf32, #tpu.memory_space<vmem>>, vector<1x2x16xf32>,
    return
  }
  func.func @transform_0(%arg0: i32) -> (i32, i32, i32) {
    %c0_i32 = arith.constant 0 : i32
    %c0_i32_0 = arith.constant 0 : i32
    %c0_i32_1 = arith.constant 0 : i32
    return %arg0, %c0_i32, %c0_i32_0 : i32, i32, i32
  }
  func.func @transform_1(%arg0: i32) -> (i32, i32) {
    %c0_i32 = arith.constant 0 : i32
    %c0_i32_0 = arith.constant 0 : i32
    %c0_i32_1 = arith.constant 0 : i32
    return %c0_i32, %c0_i32_0 : i32, i32
  }
  func.func @transform_2(%arg0: i32) -> (i32, i32) {
    %c0_i32 = arith.constant 0 : i32
    %c0_i32_0 = arith.constant 0 : i32
    %c0_i32_1 = arith.constant 0 : i32
    return %c0_i32, %c0_i32_0 : i32, i32
  }
  func.func @transform_3(%arg0: i32) -> (i32, i32) {
    %c0_i32 = arith.constant 0 : i32
    %c0_i32_0 = arith.constant 0 : i32
    %c0_i32_1 = arith.constant 0 : i32
    return %c0_i32, %c0_i32_0 : i32, i32
  }
  func.func @transform_4(%arg0: i32) -> (i32, i32, i32) {
    %c0_i32 = arith.constant 0 : i32
    %c0_i32_0 = arith.constant 0 : i32
    %c0_i32_1 = arith.constant 0 : i32
    return %arg0, %c0_i32, %c0_i32_0 : i32, i32, i32
  }
  func.func @transform_5(%arg0: i32) -> (i32, i32, i32) {
    %c0_i32 = arith.constant 0 : i32
    %c0_i32_0 = arith.constant 0 : i32
    %c0_i32_1 = arith.constant 0 : i32
    return %arg0, %c0_i32, %c0_i32_0 : i32, i32, i32
  }
}

</mosaic_0001>

<llo_original>
// kernel: tile.28
$region0: #{tile.28}
  #allocation0 [shape = 's32[1]{0}', space=sflag, size = 0x4, scoped, tag = 'scoped memory for tile.28']
  %s0 = inlined_call_operand.vmem [shape: f32[4], index: 0, kind: input, shape index: {}]
  %s1 = inlined_call_operand.vmem [shape: f32[4,4], index: 1, kind: output, shape index: {}]
  // Predicated region
  $region2: #{tile.28} parent=0 // pred_check
    _
  $region3: #{tile.28} parent=0 // pred_check_branch
    %3 = sbr.rel (0) target = $region5
  $region4: #{tile.28} parent=0 // pred_region
    _
  $region5: #{tile.28} parent=0 // pred_fallthru
    _
  %v4 = vld [vmem:[%s0] ss:$0 sm:$0xff]
  %5 = vst [vmem:[%s1] sm:$0xf] %v4

// kernel: tile.29
$region0: #{tile.29}
  %s0 = inlined_call_operand.vmem [shape: f32[4,4], index: 0, kind: input, shape index: {}]
  %s1 = inlined_call_operand.vmem [shape: f32[1,16], index: 1, kind: output, shape index: {}]
  $region1: #{tile.29} parent=0
    #allocation0 [shape = 'u8[4096]{0}', space=vmem, size = 0x1000, scoped, tag = 'scoped mem for output reshape']
    #allocation1 [shape = 'u8[4096]{0}', space=vmem, size = 0x1000, scoped, tag = 'scoped mem for input reshape']
    %s3 = sshll.u32 1, 4
    %s4 = ssub.s32 %s3, 1
    %v5 = vld [vmem:[%s0] sm:%s4]
    %6 = vst [vmem:[#allocation1] sm:%s4] %v5
    %v7 = vld [vmem:[#allocation1] sm:$0x1]
    %vm8 = vcmask 31744
    %9 = vst.msk [vmem:[#allocation0] sm:$0x1] %vm8, %v7
    %s10 = scalar_lea.vmem [#allocation1], 3
    %v11 = vld [vmem:[%s10] sm:$0x1]
    %12 = vrot.lane.b32.xlu0 %v11, 12
    %v13 = vpop.permute.xlu0 %12
    %vm14 = vcmask 130144
    %15 = vst.msk [vmem:[#allocation0] sm:$0x1] %vm14, %v13
    %s16 = scalar_lea.vmem [#allocation1], 2
    %v17 = vld [vmem:[%s16] sm:$0x1]
    %18 = vrot.lane.b32.xlu0 %v17, 8
    %v19 = vpop.permute.xlu0 %18
    %vm20 = vcmask 97344
    %21 = vst.msk [vmem:[#allocation0] sm:$0x1] %vm20, %v19
    %s22 = scalar_lea.vmem [#allocation1], 1
    %v23 = vld [vmem:[%s22] sm:$0x1]
    %24 = vrot.lane.b32.xlu0 %v23, 4
    %v25 = vpop.permute.xlu0 %24
    %vm26 = vcmask 64544
    %27 = vst.msk [vmem:[#allocation0] sm:$0x1] %vm26, %v25
    %s29 = sshll.u32 1, 1
    %s30 = ssub.s32 %s29, 1
    %v32 = vld [vmem:[#allocation0] sm:%s30]
    %s33 = sshll.u32 1, 1
    %s34 = ssub.s32 %s33, 1
    %35 = vst [vmem:[%s1] sm:%s34] %v32

// kernel: stack_decoder_forward.5
$region0: #{stack_decoder_forward.5}
  #allocation0 [shape = 'u32[]', space=smem, size = 0x4, offset = 0x4, fixed_abs, tag = 'smem constant byte address 0x4 - core index']
  #allocation1 [shape = 'u32[144,128]{1,0:T(1,128)}', space=vmem, size = 0x12000, scoped, tag = 'internal scratch']
  %s0 = inlined_call_operand.vmem [shape: f32[2,256,16], index: 0, kind: input, shape index: {}]
  %s1 = inlined_call_operand.vmem [shape: f32[1,16], index: 1, kind: input, shape index: {}]
  %s2 = inlined_call_operand.vmem [shape: f32[1,16], index: 2, kind: input, shape index: {}]
  %s3 = inlined_call_operand.vmem [shape: f32[2,256,16], index: 3, kind: output, shape index: {}]
  %s4 = sld [smem:[#allocation0]]
  $region45: #{stack_decoder_forward.5} parent=0
    _
  %s6 = ssub.s32 1, %s4
  %s7 = scalar_select 0, %s6, %s4
  loop: start=0, step=1, limit=4
  $region2: #{stack_decoder_forward.5} parent=0 // loop_pre_header
    _
  $region3: #{stack_decoder_forward.5} parent=0 // loop_header
    %s9 = sphi 0, %s13
    %p10 = scmp.ge.s32.totalorder %s9, 4
    %s19 = sphi 0, %s21
    %s22 = sphi 0, %s19
    %s23 = sphi 0, %s22
    %s39 = sphi 0, %s23
    %s43 = sphi 0, %s43
    %s45 = sphi 0, %s43
    %s46 = sphi 0, %s45
    %s60 = sphi 0, %s46
    %s64 = sphi 0, %s64
    %s66 = sphi 0, %s64
    %s67 = sphi 0, %s66
    %s81 = sphi 0, %s67
    %s87 = sphi 0, %s89
    %s90 = sphi 0, %s87
    %s91 = sphi 0, %s90
    %s107 = sphi 0, %s91
  $region4: #{stack_decoder_forward.5} parent=0 // loop_header_branch
    %12 = sbr.rel (%p10) target = $region8
  $region5: #{stack_decoder_forward.5} parent=0 // loop_body
    %s14 = ssub.s32 %s9, 1
    %s15 = ssub.s32 %s9, 2
    %s16 = sadd.s32 %s9, 1
    %s17 = ssub.s32 %s9, %s16
    %p18 = scmp.eq.s32.totalorder %s17, 0
    %s20 = sadd.s32 %s19, 1
    %s21 = scalar_select %p18, %s19, %s20
    %p24 = pneg %p18
    %p25 = scmp.eq.s32.totalorder %s9, 1
    %p26 = por %p24, %p25
    %p27 = scmp.ne.s32.totalorder %s19, %s22
    %p28 = scmp.eq.s32.totalorder %s9, 0
    %p29 = por %p27, %p28
    %p30 = scmp.ne.s32.totalorder %s19, %s22
    %p31 = scmp.eq.s32.totalorder %s14, 1
    %p32 = por %p30, %p31
    %p33 = scmp.ne.s32.totalorder %s22, %s23
    %p34 = scmp.eq.s32.totalorder %s14, 0
    %p35 = por %p33, %p34
    %p36 = scmp.ne.s32.totalorder %s22, %s23
    %p37 = scmp.eq.s32.totalorder %s15, 1
    %p38 = por %p36, %p37
    %p40 = scmp.ne.s32.totalorder %s23, %s39
    %p41 = scmp.eq.s32.totalorder %s15, 0
    %p42 = por %p40, %p41
    %s44 = sadd.s32 %s43, 1
    %p47 = scmp.eq.s32.totalorder %s9, 1
    %p48 = scmp.ne.s32.totalorder %s43, %s45
    %p49 = scmp.eq.s32.totalorder %s9, 0
    %p50 = por %p48, %p49
    %p51 = scmp.ne.s32.totalorder %s43, %s45
    %p52 = scmp.eq.s32.totalorder %s14, 1
    %p53 = por %p51, %p52
    %p54 = scmp.ne.s32.totalorder %s45, %s46
    %p55 = scmp.eq.s32.totalorder %s14, 0
    %p56 = por %p54, %p55
    %p57 = scmp.ne.s32.totalorder %s45, %s46
    %p58 = scmp.eq.s32.totalorder %s15, 1
    %p59 = por %p57, %p58
    %p61 = scmp.ne.s32.totalorder %s46, %s60
    %p62 = scmp.eq.s32.totalorder %s15, 0
    %p63 = por %p61, %p62
    %s65 = sadd.s32 %s64, 1
    %p68 = scmp.eq.s32.totalorder %s9, 1
    %p69 = scmp.ne.s32.totalorder %s64, %s66
    %p70 = scmp.eq.s32.totalorder %s9, 0
    %p71 = por %p69, %p70
    %p72 = scmp.ne.s32.totalorder %s64, %s66
    %p73 = scmp.eq.s32.totalorder %s14, 1
    %p74 = por %p72, %p73
    %p75 = scmp.ne.s32.totalorder %s66, %s67
    %p76 = scmp.eq.s32.totalorder %s14, 0
    %p77 = por %p75, %p76
    %p78 = scmp.ne.s32.totalorder %s66, %s67
    %p79 = scmp.eq.s32.totalorder %s15, 1
    %p80 = por %p78, %p79
    %p82 = scmp.ne.s32.totalorder %s67, %s81
    %p83 = scmp.eq.s32.totalorder %s15, 0
    %p84 = por %p82, %p83
    %s85 = ssub.s32 %s9, %s16
    %p86 = scmp.eq.s32.totalorder %s85, 0
    %s88 = sadd.s32 %s87, 1
    %s89 = scalar_select %p86, %s87, %s88
    %p92 = pneg %p86
    %p93 = scmp.eq.s32.totalorder %s9, 1
    %p94 = por %p92, %p93
    %p95 = scmp.ne.s32.totalorder %s87, %s90
    %p96 = scmp.eq.s32.totalorder %s9, 0
    %p97 = por %p95, %p96
    %p98 = scmp.ne.s32.totalorder %s87, %s90
    %p99 = scmp.eq.s32.totalorder %s14, 1
    %p100 = por %p98, %p99
    %p101 = scmp.ne.s32.totalorder %s90, %s91
    %p102 = scmp.eq.s32.totalorder %s14, 0
    %p103 = por %p101, %p102
    %p104 = scmp.ne.s32.totalorder %s90, %s91
    %p105 = scmp.eq.s32.totalorder %s15, 1
    %p106 = por %p104, %p105
    %p108 = scmp.ne.s32.totalorder %s91, %s107
    %p109 = scmp.eq.s32.totalorder %s15, 0
    %p110 = por %p108, %p109
    %p111 = scmp.le.s32.totalorder 1, %s9
    %p112 = scmp.lt.s32.totalorder %s9, 3
    %p113 = pnand %p111, %p112
    %p114 = pneg %p113
    // Predicated region
    $region9: #{stack_decoder_forward.5} parent=5 // pred_check
      _
    $region10: #{stack_decoder_forward.5} parent=5 // pred_check_branch
      %116 = sbr.rel (%p113) target = $region12
    $region11: #{stack_decoder_forward.5} parent=5 // pred_region
      %s117 = ssub.s32 %s9, 1
      // Predicated region
      $region13: #{stack_decoder_forward.5} parent=11 // pred_check
        %p118 = pneg %p56
      $region14: #{stack_decoder_forward.5} parent=11 // pred_check_branch
        %120 = sbr.rel (%p118) target = $region16
      $region15: #{stack_decoder_forward.5} parent=11 // pred_region
        _
      $region16: #{stack_decoder_forward.5} parent=11 // pred_fallthru
        _
      // Predicated region
      $region17: #{stack_decoder_forward.5} parent=11 // pred_check
        %p121 = pneg %p77
      $region18: #{stack_decoder_forward.5} parent=11 // pred_check_branch
        %123 = sbr.rel (%p121) target = $region20
      $region19: #{stack_decoder_forward.5} parent=11 // pred_region
        _
      $region20: #{stack_decoder_forward.5} parent=11 // pred_fallthru
        _
    $region12: #{stack_decoder_forward.5} parent=5 // pred_fallthru
      _
    %p124 = scmp.lt.s32.totalorder %s9, 2
    // Predicated region
    $region21: #{stack_decoder_forward.5} parent=5 // pred_check
      %p125 = pneg %p124
    $region22: #{stack_decoder_forward.5} parent=5 // pred_check_branch
      %127 = sbr.rel (%p125) target = $region24
    $region23: #{stack_decoder_forward.5} parent=5 // pred_region
      // Predicated region
      $region25: #{stack_decoder_forward.5} parent=23 // pred_check
        %p128 = pneg %p29
      $region26: #{stack_decoder_forward.5} parent=23 // pred_check_branch
        %130 = sbr.rel (%p128) target = $region28
      $region27: #{stack_decoder_forward.5} parent=23 // pred_region
        %p131 = scmp.lt.s32.totalorder %s9, 1
        %s132 = scalar_select %p131, %s9, 1
        %s133 = smul.addr %s132, 32
        %s134 = smul.addr %s133, 8
        %s135 = scalar_lea.vmem %s0, %s134
      $region28: #{stack_decoder_forward.5} parent=23 // pred_fallthru
        _
    $region24: #{stack_decoder_forward.5} parent=5 // pred_fallthru
      _
    %p136 = scmp.le.s32.totalorder 1, %s9
    %p137 = scmp.lt.s32.totalorder %s9, 3
    %p138 = pnand %p136, %p137
    %p139 = pneg %p138
    // Predicated region
    $region29: #{stack_decoder_forward.5} parent=5 // pred_check
      _
    $region30: #{stack_decoder_forward.5} parent=5 // pred_check_branch
      %141 = sbr.rel (%p138) target = $region32
    $region31: #{stack_decoder_forward.5} parent=5 // pred_region
      %s142 = ssub.s32 %s9, 1
      %p143 = scmp.lt.s32.totalorder %s14, 1
      %s144 = scalar_select %p143, %s14, 1
      %s145 = smul.addr %s144, 32
      %s146 = smul.addr %s145, 8
      %s147 = scalar_lea.vmem %s0, %s146
      %p148 = pneg %p35
      %p149 = pneg %p32
      %p150 = pneg %p56
      %p151 = pneg %p53
      %p152 = pneg %p77
      %p153 = pneg %p74
      %p154 = pneg %p103
      %p155 = pneg %p100
      %p156 = scmp.lt.s32.totalorder %s14, 1
      %s157 = scalar_select %p156, %s14, 1
      %s158 = smul.addr %s157, 32
      %s159 = smul.addr %s158, 8
      %s160 = scalar_lea.vmem %s3, %s159
      %p161 = scmp.lt.s32.totalorder %s14, 1
      %s162 = scalar_select %p161, %s14, 1
      %s163 = smul.addr %s162, 32
      %s164 = smul.addr %s163, 8
      %s165 = scalar_lea.vmem %s0, %s164
      %p166 = scmp.lt.s32.totalorder %s14, 1
      %s167 = scalar_select %p166, %s14, 1
      %s168 = smul.addr %s167, 32
      %s169 = smul.addr %s168, 8
      %s170 = scalar_lea.vmem %s3, %s169
      %v171 = vld [vmem:[%s165] sm:$0xff]
      %v172 = vld [vmem:[%s165 + $0x8] sm:$0xff]
      %v173 = vld [vmem:[%s165 + $0x10] sm:$0xff]
      %v174 = vld [vmem:[%s165 + $0x18] sm:$0xff]
      %v175 = vld [vmem:[%s165 + $0x20] sm:$0xff]
      %v176 = vld [vmem:[%s165 + $0x28] sm:$0xff]
      %v177 = vld [vmem:[%s165 + $0x30] sm:$0xff]
      %v178 = vld [vmem:[%s165 + $0x38] sm:$0xff]
      %v179 = vld [vmem:[%s165 + $0x40] sm:$0xff]
      %v180 = vld [vmem:[%s165 + $0x48] sm:$0xff]
      %v181 = vld [vmem:[%s165 + $0x50] sm:$0xff]
      %v182 = vld [vmem:[%s165 + $0x58] sm:$0xff]
      %v183 = vld [vmem:[%s165 + $0x60] sm:$0xff]
      %v184 = vld [vmem:[%s165 + $0x68] sm:$0xff]
      %v185 = vld [vmem:[%s165 + $0x70] sm:$0xff]
      %v186 = vld [vmem:[%s165 + $0x78] sm:$0xff]
      %v187 = vld [vmem:[%s165 + $0x80] sm:$0xff]
      %v188 = vld [vmem:[%s165 + $0x88] sm:$0xff]
      %v189 = vld [vmem:[%s165 + $0x90] sm:$0xff]
      %v190 = vld [vmem:[%s165 + $0x98] sm:$0xff]
      %v191 = vld [vmem:[%s165 + $0xa0] sm:$0xff]
      %v192 = vld [vmem:[%s165 + $0xa8] sm:$0xff]
      %v193 = vld [vmem:[%s165 + $0xb0] sm:$0xff]
      %v194 = vld [vmem:[%s165 + $0xb8] sm:$0xff]
      %v195 = vld [vmem:[%s165 + $0xc0] sm:$0xff]
      %v196 = vld [vmem:[%s165 + $0xc8] sm:$0xff]
      %v197 = vld [vmem:[%s165 + $0xd0] sm:$0xff]
      %v198 = vld [vmem:[%s165 + $0xd8] sm:$0xff]
      %v199 = vld [vmem:[%s165 + $0xe0] sm:$0xff]
      %v200 = vld [vmem:[%s165 + $0xe8] sm:$0xff]
      %v201 = vld [vmem:[%s165 + $0xf0] sm:$0xff]
      %v202 = vld [vmem:[%s165 + $0xf8] sm:$0xff]
      %v203 = vld [vmem:[%s1] sm:$0x1]
      %v205 = vlaneseq
      %v206 = vshrl.u32 %v205, 7
      %v207 = vsub.s32 0, %v206
      %v208 = vrot.slane %v203, %v207
      %v210 = vmul.f32 %v171, %v208
      %v211 = vmul.f32 %v172, %v208
      %v212 = vmul.f32 %v173, %v208
      %v213 = vmul.f32 %v174, %v208
      %v214 = vmul.f32 %v175, %v208
      %v215 = vmul.f32 %v176, %v208
      %v216 = vmul.f32 %v177, %v208
      %v217 = vmul.f32 %v178, %v208
      %v218 = vmul.f32 %v179, %v208
      %v219 = vmul.f32 %v180, %v208
      %v220 = vmul.f32 %v181, %v208
      %v221 = vmul.f32 %v182, %v208
      %v222 = vmul.f32 %v183, %v208
      %v223 = vmul.f32 %v184, %v208
      %v224 = vmul.f32 %v185, %v208
      %v225 = vmul.f32 %v186, %v208
      %v226 = vmul.f32 %v187, %v208
      %v227 = vmul.f32 %v188, %v208
      %v228 = vmul.f32 %v189, %v208
      %v229 = vmul.f32 %v190, %v208
      %v230 = vmul.f32 %v191, %v208
      %v231 = vmul.f32 %v192, %v208
      %v232 = vmul.f32 %v193, %v208
      %v233 = vmul.f32 %v194, %v208
      %v234 = vmul.f32 %v195, %v208
      %v235 = vmul.f32 %v196, %v208
      %v236 = vmul.f32 %v197, %v208
      %v237 = vmul.f32 %v198, %v208
      %v238 = vmul.f32 %v199, %v208
      %v239 = vmul.f32 %v200, %v208
      %v240 = vmul.f32 %v201, %v208
      %v241 = vmul.f32 %v202, %v208
      %v242 = vld [vmem:[%s2] sm:$0x1]
      %v244 = vlaneseq
      %v245 = vshrl.u32 %v244, 7
      %v246 = vsub.s32 0, %v245
      %v247 = vrot.slane %v242, %v246
      %v249 = vadd.f32 %v210, %v247
      %v250 = vadd.f32 %v211, %v247
      %v251 = vadd.f32 %v212, %v247
      %v252 = vadd.f32 %v213, %v247
      %v253 = vadd.f32 %v214, %v247
      %v254 = vadd.f32 %v215, %v247
      %v255 = vadd.f32 %v216, %v247
      %v256 = vadd.f32 %v217, %v247
      %v257 = vadd.f32 %v218, %v247
      %v258 = vadd.f32 %v219, %v247
      %v259 = vadd.f32 %v220, %v247
      %v260 = vadd.f32 %v221, %v247
      %v261 = vadd.f32 %v222, %v247
      %v262 = vadd.f32 %v223, %v247
      %v263 = vadd.f32 %v224, %v247
      %v264 = vadd.f32 %v225, %v247
      %v265 = vadd.f32 %v226, %v247
      %v266 = vadd.f32 %v227, %v247
      %v267 = vadd.f32 %v228, %v247
      %v268 = vadd.f32 %v229, %v247
      %v269 = vadd.f32 %v230, %v247
      %v270 = vadd.f32 %v231, %v247
      %v271 = vadd.f32 %v232, %v247
      %v272 = vadd.f32 %v233, %v247
      %v273 = vadd.f32 %v234, %v247
      %v274 = vadd.f32 %v235, %v247
      %v275 = vadd.f32 %v236, %v247
      %v276 = vadd.f32 %v237, %v247
      %v277 = vadd.f32 %v238, %v247
      %v278 = vadd.f32 %v239, %v247
      %v279 = vadd.f32 %v240, %v247
      %v280 = vadd.f32 %v241, %v247
      %v281 = vmax.f32 %v249, 0.0
      %v282 = vmax.f32 %v250, 0.0
      %v283 = vmax.f32 %v251, 0.0
      %v284 = vmax.f32 %v252, 0.0
      %v285 = vmax.f32 %v253, 0.0
      %v286 = vmax.f32 %v254, 0.0
      %v287 = vmax.f32 %v255, 0.0
      %v288 = vmax.f32 %v256, 0.0
      %v289 = vmax.f32 %v257, 0.0
      %v290 = vmax.f32 %v258, 0.0
      %v291 = vmax.f32 %v259, 0.0
      %v292 = vmax.f32 %v260, 0.0
      %v293 = vmax.f32 %v261, 0.0
      %v294 = vmax.f32 %v262, 0.0
      %v295 = vmax.f32 %v263, 0.0
      %v296 = vmax.f32 %v264, 0.0
      %v297 = vmax.f32 %v265, 0.0
      %v298 = vmax.f32 %v266, 0.0
      %v299 = vmax.f32 %v267, 0.0
      %v300 = vmax.f32 %v268, 0.0
      %v301 = vmax.f32 %v269, 0.0
      %v302 = vmax.f32 %v270, 0.0
      %v303 = vmax.f32 %v271, 0.0
      %v304 = vmax.f32 %v272, 0.0
      %v305 = vmax.f32 %v273, 0.0
      %v306 = vmax.f32 %v274, 0.0
      %v307 = vmax.f32 %v275, 0.0
      %v308 = vmax.f32 %v276, 0.0
      %v309 = vmax.f32 %v277, 0.0
      %v310 = vmax.f32 %v278, 0.0
      %v311 = vmax.f32 %v279, 0.0
      %v312 = vmax.f32 %v280, 0.0
      %vm313 = vcmask 130048
      %314 = vst.msk [vmem:[%s170] sm:$0xff] %vm313, %v281
      %315 = vst.msk [vmem:[%s170 + $0x8] sm:$0xff] %vm313, %v282
      %316 = vst.msk [vmem:[%s170 + $0x10] sm:$0xff] %vm313, %v283
      %317 = vst.msk [vmem:[%s170 + $0x18] sm:$0xff] %vm313, %v284
      %318 = vst.msk [vmem:[%s170 + $0x20] sm:$0xff] %vm313, %v285
      %319 = vst.msk [vmem:[%s170 + $0x28] sm:$0xff] %vm313, %v286
      %320 = vst.msk [vmem:[%s170 + $0x30] sm:$0xff] %vm313, %v287
      %321 = vst.msk [vmem:[%s170 + $0x38] sm:$0xff] %vm313, %v288
      %322 = vst.msk [vmem:[%s170 + $0x40] sm:$0xff] %vm313, %v289
      %323 = vst.msk [vmem:[%s170 + $0x48] sm:$0xff] %vm313, %v290
      %324 = vst.msk [vmem:[%s170 + $0x50] sm:$0xff] %vm313, %v291
      %325 = vst.msk [vmem:[%s170 + $0x58] sm:$0xff] %vm313, %v292
      %326 = vst.msk [vmem:[%s170 + $0x60] sm:$0xff] %vm313, %v293
      %327 = vst.msk [vmem:[%s170 + $0x68] sm:$0xff] %vm313, %v294
      %328 = vst.msk [vmem:[%s170 + $0x70] sm:$0xff] %vm313, %v295
      %329 = vst.msk [vmem:[%s170 + $0x78] sm:$0xff] %vm313, %v296
      %330 = vst.msk [vmem:[%s170 + $0x80] sm:$0xff] %vm313, %v297
      %331 = vst.msk [vmem:[%s170 + $0x88] sm:$0xff] %vm313, %v298
      %332 = vst.msk [vmem:[%s170 + $0x90] sm:$0xff] %vm313, %v299
      %333 = vst.msk [vmem:[%s170 + $0x98] sm:$0xff] %vm313, %v300
      %334 = vst.msk [vmem:[%s170 + $0xa0] sm:$0xff] %vm313, %v301
      %335 = vst.msk [vmem:[%s170 + $0xa8] sm:$0xff] %vm313, %v302
      %336 = vst.msk [vmem:[%s170 + $0xb0] sm:$0xff] %vm313, %v303
      %337 = vst.msk [vmem:[%s170 + $0xb8] sm:$0xff] %vm313, %v304
      %338 = vst.msk [vmem:[%s170 + $0xc0] sm:$0xff] %vm313, %v305
      %339 = vst.msk [vmem:[%s170 + $0xc8] sm:$0xff] %vm313, %v306
      %340 = vst.msk [vmem:[%s170 + $0xd0] sm:$0xff] %vm313, %v307
      %341 = vst.msk [vmem:[%s170 + $0xd8] sm:$0xff] %vm313, %v308
      %342 = vst.msk [vmem:[%s170 + $0xe0] sm:$0xff] %vm313, %v309
      %343 = vst.msk [vmem:[%s170 + $0xe8] sm:$0xff] %vm313, %v310
      %344 = vst.msk [vmem:[%s170 + $0xf0] sm:$0xff] %vm313, %v311
      %345 = vst.msk [vmem:[%s170 + $0xf8] sm:$0xff] %vm313, %v312
      %p346 = scmp.lt.s32.totalorder %s14, 1
      %s347 = scalar_select %p346, %s14, 1
      %s348 = smul.addr %s347, 32
      %s349 = smul.addr %s348, 8
      %s350 = scalar_lea.vmem %s3, %s349
      // Predicated region
      $region33: #{stack_decoder_forward.5} parent=31 // pred_check
        %p351 = pneg %p100
      $region34: #{stack_decoder_forward.5} parent=31 // pred_check_branch
        %353 = sbr.rel (%p351) target = $region36
      $region35: #{stack_decoder_forward.5} parent=31 // pred_region
        _
      $region36: #{stack_decoder_forward.5} parent=31 // pred_fallthru
        _
    $region32: #{stack_decoder_forward.5} parent=5 // pred_fallthru
      _
    %p354 = scmp.le.s32.totalorder 2, %s9
    // Predicated region
    $region37: #{stack_decoder_forward.5} parent=5 // pred_check
      %p355 = pneg %p354
    $region38: #{stack_decoder_forward.5} parent=5 // pred_check_branch
      %357 = sbr.rel (%p355) target = $region40
    $region39: #{stack_decoder_forward.5} parent=5 // pred_region
      %s358 = ssub.s32 %s9, 2
      // Predicated region
      $region41: #{stack_decoder_forward.5} parent=39 // pred_check
        %p359 = pneg %p106
      $region42: #{stack_decoder_forward.5} parent=39 // pred_check_branch
        %361 = sbr.rel (%p359) target = $region44
      $region43: #{stack_decoder_forward.5} parent=39 // pred_region
        %p362 = scmp.lt.s32.totalorder %s15, 1
        %s363 = scalar_select %p362, %s15, 1
        %s364 = smul.addr %s363, 32
        %s365 = smul.addr %s364, 8
        %s366 = scalar_lea.vmem %s3, %s365
      $region44: #{stack_decoder_forward.5} parent=39 // pred_fallthru
        _
    $region40: #{stack_decoder_forward.5} parent=5 // pred_fallthru
      _
  $region6: #{stack_decoder_forward.5} parent=0 // loop_footer
    %s13 = sadd.s32 1, %s9
  $region7: #{stack_decoder_forward.5} parent=0 // loop_footer_branch
    %8 = sbr.rel target = $region3
  $region8: #{stack_decoder_forward.5} parent=0 // loop_exit
    _

// kernel: stack_decoder_forward.3
$region0: #{stack_decoder_forward.3}
  #allocation0 [shape = 'u32[]', space=smem, size = 0x4, offset = 0x4, fixed_abs, tag = 'smem constant byte address 0x4 - core index']
  #allocation1 [shape = 'u32[144,128]{1,0:T(1,128)}', space=vmem, size = 0x12000, scoped, tag = 'internal scratch']
  #allocation2 [shape = 'f32[18,18,9]{2,1,0:T(8,128)}', space=vmem, size = 0x36000, scoped, tag = 'scratch operand']
  #allocation3 [shape = 'f32[256,81]{1,0:T(8,128)}', space=vmem, size = 0x20000, scoped, tag = 'scratch operand']
  %s0 = inlined_call_operand.vmem [shape: f32[2,16,16,8], index: 0, kind: input, shape index: {}]
  %s1 = inlined_call_operand.vmem [shape: f32[81,16], index: 1, kind: input, shape index: {}]
  %s2 = inlined_call_operand.vmem [shape: f32[2,256,16], index: 2, kind: output, shape index: {0}]
  %s3 = inlined_call_operand.vmem [shape: f32[2,2,16], index: 3, kind: output, shape index: {1}]
  %4 = xla_tuple %s2, %s3
  %s5 = sld [smem:[#allocation0]]
  $region49: #{stack_decoder_forward.3} parent=0
    _
  %s7 = ssub.s32 1, %s5
  %s8 = scalar_select 0, %s7, %s5
  loop: start=0, step=1, limit=4
  $region2: #{stack_decoder_forward.3} parent=0 // loop_pre_header
    _
  $region3: #{stack_decoder_forward.3} parent=0 // loop_header
    %s10 = sphi 0, %s14
    %p11 = scmp.ge.s32.totalorder %s10, 4
    %s20 = sphi 0, %s22
    %s23 = sphi 0, %s20
    %s24 = sphi 0, %s23
    %s40 = sphi 0, %s24
    %s44 = sphi 0, %s44
    %s46 = sphi 0, %s44
    %s47 = sphi 0, %s46
    %s61 = sphi 0, %s47
    %s67 = sphi 0, %s69
    %s70 = sphi 0, %s67
    %s71 = sphi 0, %s70
    %s87 = sphi 0, %s71
    %s93 = sphi 0, %s95
    %s96 = sphi 0, %s93
    %s97 = sphi 0, %s96
    %s113 = sphi 0, %s97
  $region4: #{stack_decoder_forward.3} parent=0 // loop_header_branch
    %13 = sbr.rel (%p11) target = $region8
  $region5: #{stack_decoder_forward.3} parent=0 // loop_body
    %s15 = ssub.s32 %s10, 1
    %s16 = ssub.s32 %s10, 2
    %s17 = sadd.s32 %s10, 1
    %s18 = ssub.s32 %s10, %s17
    %p19 = scmp.eq.s32.totalorder %s18, 0
    %s21 = sadd.s32 %s20, 1
    %s22 = scalar_select %p19, %s20, %s21
    %p25 = pneg %p19
    %p26 = scmp.eq.s32.totalorder %s10, 1
    %p27 = por %p25, %p26
    %p28 = scmp.ne.s32.totalorder %s20, %s23
    %p29 = scmp.eq.s32.totalorder %s10, 0
    %p30 = por %p28, %p29
    %p31 = scmp.ne.s32.totalorder %s20, %s23
    %p32 = scmp.eq.s32.totalorder %s15, 1
    %p33 = por %p31, %p32
    %p34 = scmp.ne.s32.totalorder %s23, %s24
    %p35 = scmp.eq.s32.totalorder %s15, 0
    %p36 = por %p34, %p35
    %p37 = scmp.ne.s32.totalorder %s23, %s24
    %p38 = scmp.eq.s32.totalorder %s16, 1
    %p39 = por %p37, %p38
    %p41 = scmp.ne.s32.totalorder %s24, %s40
    %p42 = scmp.eq.s32.totalorder %s16, 0
    %p43 = por %p41, %p42
    %s45 = sadd.s32 %s44, 1
    %p48 = scmp.eq.s32.totalorder %s10, 1
    %p49 = scmp.ne.s32.totalorder %s44, %s46
    %p50 = scmp.eq.s32.totalorder %s10, 0
    %p51 = por %p49, %p50
    %p52 = scmp.ne.s32.totalorder %s44, %s46
    %p53 = scmp.eq.s32.totalorder %s15, 1
    %p54 = por %p52, %p53
    %p55 = scmp.ne.s32.totalorder %s46, %s47
    %p56 = scmp.eq.s32.totalorder %s15, 0
    %p57 = por %p55, %p56
    %p58 = scmp.ne.s32.totalorder %s46, %s47
    %p59 = scmp.eq.s32.totalorder %s16, 1
    %p60 = por %p58, %p59
    %p62 = scmp.ne.s32.totalorder %s47, %s61
    %p63 = scmp.eq.s32.totalorder %s16, 0
    %p64 = por %p62, %p63
    %s65 = ssub.s32 %s10, %s17
    %p66 = scmp.eq.s32.totalorder %s65, 0
    %s68 = sadd.s32 %s67, 1
    %s69 = scalar_select %p66, %s67, %s68
    %p72 = pneg %p66
    %p73 = scmp.eq.s32.totalorder %s10, 1
    %p74 = por %p72, %p73
    %p75 = scmp.ne.s32.totalorder %s67, %s70
    %p76 = scmp.eq.s32.totalorder %s10, 0
    %p77 = por %p75, %p76
    %p78 = scmp.ne.s32.totalorder %s67, %s70
    %p79 = scmp.eq.s32.totalorder %s15, 1
    %p80 = por %p78, %p79
    %p81 = scmp.ne.s32.totalorder %s70, %s71
    %p82 = scmp.eq.s32.totalorder %s15, 0
    %p83 = por %p81, %p82
    %p84 = scmp.ne.s32.totalorder %s70, %s71
    %p85 = scmp.eq.s32.totalorder %s16, 1
    %p86 = por %p84, %p85
    %p88 = scmp.ne.s32.totalorder %s71, %s87
    %p89 = scmp.eq.s32.totalorder %s16, 0
    %p90 = por %p88, %p89
    %s91 = ssub.s32 %s10, %s17
    %p92 = scmp.eq.s32.totalorder %s91, 0
    %s94 = sadd.s32 %s93, 1
    %s95 = scalar_select %p92, %s93, %s94
    %p98 = pneg %p92
    %p99 = scmp.eq.s32.totalorder %s10, 1
    %p100 = por %p98, %p99
    %p101 = scmp.ne.s32.totalorder %s93, %s96
    %p102 = scmp.eq.s32.totalorder %s10, 0
    %p103 = por %p101, %p102
    %p104 = scmp.ne.s32.totalorder %s93, %s96
    %p105 = scmp.eq.s32.totalorder %s15, 1
    %p106 = por %p104, %p105
    %p107 = scmp.ne.s32.totalorder %s96, %s97
    %p108 = scmp.eq.s32.totalorder %s15, 0
    %p109 = por %p107, %p108
    %p110 = scmp.ne.s32.totalorder %s96, %s97
    %p111 = scmp.eq.s32.totalorder %s16, 1
    %p112 = por %p110, %p111
    %p114 = scmp.ne.s32.totalorder %s97, %s113
    %p115 = scmp.eq.s32.totalorder %s16, 0
    %p116 = por %p114, %p115
    %p117 = scmp.le.s32.totalorder 1, %s10
    %p118 = scmp.lt.s32.totalorder %s10, 3
    %p119 = pnand %p117, %p118
    %p120 = pneg %p119
    // Predicated region
    $region9: #{stack_decoder_forward.3} parent=5 // pred_check
      _
    $region10: #{stack_decoder_forward.3} parent=5 // pred_check_branch
      %122 = sbr.rel (%p119) target = $region12
    $region11: #{stack_decoder_forward.3} parent=5 // pred_region
      %s123 = ssub.s32 %s10, 1
      // Predicated region
      $region13: #{stack_decoder_forward.3} parent=11 // pred_check
        %p124 = pneg %p57
      $region14: #{stack_decoder_forward.3} parent=11 // pred_check_branch
        %126 = sbr.rel (%p124) target = $region16
      $region15: #{stack_decoder_forward.3} parent=11 // pred_region
        _
      $region16: #{stack_decoder_forward.3} parent=11 // pred_fallthru
        _
    $region12: #{stack_decoder_forward.3} parent=5 // pred_fallthru
      _
    %p127 = scmp.lt.s32.totalorder %s10, 2
    // Predicated region
    $region17: #{stack_decoder_forward.3} parent=5 // pred_check
      %p128 = pneg %p127
    $region18: #{stack_decoder_forward.3} parent=5 // pred_check_branch
      %130 = sbr.rel (%p128) target = $region20
    $region19: #{stack_decoder_forward.3} parent=5 // pred_region
      // Predicated region
      $region21: #{stack_decoder_forward.3} parent=19 // pred_check
        %p131 = pneg %p30
      $region22: #{stack_decoder_forward.3} parent=19 // pred_check_branch
        %133 = sbr.rel (%p131) target = $region24
      $region23: #{stack_decoder_forward.3} parent=19 // pred_region
        %p134 = scmp.lt.s32.totalorder %s10, 1
        %s135 = scalar_select %p134, %s10, 1
        %s136 = smul.addr %s135, 32
        %s137 = smul.addr %s136, 8
        %s138 = scalar_lea.vmem %s0, %s137
      $region24: #{stack_decoder_forward.3} parent=19 // pred_fallthru
        _
    $region20: #{stack_decoder_forward.3} parent=5 // pred_fallthru
      _
    %p139 = scmp.le.s32.totalorder 1, %s10
    %p140 = scmp.lt.s32.totalorder %s10, 3
    %p141 = pnand %p139, %p140
    %p142 = pneg %p141
    // Predicated region
    $region25: #{stack_decoder_forward.3} parent=5 // pred_check
      _
    $region26: #{stack_decoder_forward.3} parent=5 // pred_check_branch
      %144 = sbr.rel (%p141) target = $region28
    $region27: #{stack_decoder_forward.3} parent=5 // pred_region
      %s145 = ssub.s32 %s10, 1
      %p146 = scmp.lt.s32.totalorder %s15, 1
      %s147 = scalar_select %p146, %s15, 1
      %s148 = smul.addr %s147, 32
      %s149 = smul.addr %s148, 8
      %s150 = scalar_lea.vmem %s0, %s149
      %p151 = pneg %p36
      %p152 = pneg %p33
      %p153 = pneg %p57
      %p154 = pneg %p54
      %p155 = pneg %p83
      %p156 = pneg %p80
      %p157 = scmp.lt.s32.totalorder %s15, 1
      %s158 = scalar_select %p157, %s15, 1
      %s159 = smul.addr %s158, 32
      %s160 = smul.addr %s159, 8
      %s161 = scalar_lea.vmem %s2, %s160
      %p162 = pneg %p109
      %p163 = pneg %p106
      %p164 = scmp.lt.s32.totalorder %s15, 1
      %s165 = scalar_select %p164, %s15, 1
      %s166 = smul.addr %s165, 2
      %s167 = scalar_lea.vmem %s3, %s166
      %p168 = scmp.lt.s32.totalorder %s15, 1
      %s169 = scalar_select %p168, %s15, 1
      %s170 = smul.addr %s169, 32
      %s171 = smul.addr %s170, 8
      %s172 = scalar_lea.vmem %s0, %s171
      %p173 = scmp.lt.s32.totalorder %s15, 1
      %s174 = scalar_select %p173, %s15, 1
      %s175 = smul.addr %s174, 32
      %s176 = smul.addr %s175, 8
      %s177 = scalar_lea.vmem %s2, %s176
      %p178 = scmp.lt.s32.totalorder %s15, 1
      %s179 = scalar_select %p178, %s15, 1
      %s180 = smul.addr %s179, 2
      %s181 = scalar_lea.vmem %s3, %s180
      %vm182 = vcmask 72704
      %183 = vst.msk [vmem:[#allocation2] sm:$0xff] %vm182, 0.0
      %184 = vst.msk [vmem:[#allocation2 + $0x8] sm:$0xff] %vm182, 0.0
      %vm185 = vcmask 66560
      %186 = vst.msk [vmem:[#allocation2 + $0x10] sm:$0x3] %vm185, 0.0
      %187 = vst.msk [vmem:[#allocation2 + $0x18] sm:$0xff] %vm182, 0.0
      %188 = vst.msk [vmem:[#allocation2 + $0x20] sm:$0xff] %vm182, 0.0
      %189 = vst.msk [vmem:[#allocation2 + $0x28] sm:$0x3] %vm185, 0.0
      %190 = vst.msk [vmem:[#allocation2 + $0x30] sm:$0xff] %vm182, 0.0
      %191 = vst.msk [vmem:[#allocation2 + $0x38] sm:$0xff] %vm182, 0.0
      %192 = vst.msk [vmem:[#allocation2 + $0x40] sm:$0x3] %vm185, 0.0
      %193 = vst.msk [vmem:[#allocation2 + $0x48] sm:$0xff] %vm182, 0.0
      %194 = vst.msk [vmem:[#allocation2 + $0x50] sm:$0xff] %vm182, 0.0
      %195 = vst.msk [vmem:[#allocation2 + $0x58] sm:$0x3] %vm185, 0.0
      %196 = vst.msk [vmem:[#allocation2 + $0x60] sm:$0xff] %vm182, 0.0
      %197 = vst.msk [vmem:[#allocation2 + $0x68] sm:$0xff] %vm182, 0.0
      %198 = vst.msk [vmem:[#allocation2 + $0x70] sm:$0x3] %vm185, 0.0
      %199 = vst.msk [vmem:[#allocation2 + $0x78] sm:$0xff] %vm182, 0.0
      %200 = vst.msk [vmem:[#allocation2 + $0x80] sm:$0xff] %vm182, 0.0
      %201 = vst.msk [vmem:[#allocation2 + $0x88] sm:$0x3] %vm185, 0.0
      %202 = vst.msk [vmem:[#allocation2 + $0x90] sm:$0xff] %vm182, 0.0
      %203 = vst.msk [vmem:[#allocation2 + $0x98] sm:$0xff] %vm182, 0.0
      %204 = vst.msk [vmem:[#allocation2 + $0xa0] sm:$0x3] %vm185, 0.0
      %205 = vst.msk [vmem:[#allocation2 + $0xa8] sm:$0xff] %vm182, 0.0
      %206 = vst.msk [vmem:[#allocation2 + $0xb0] sm:$0xff] %vm182, 0.0
      %207 = vst.msk [vmem:[#allocation2 + $0xb8] sm:$0x3] %vm185, 0.0
      %208 = vst.msk [vmem:[#allocation2 + $0xc0] sm:$0xff] %vm182, 0.0
      %209 = vst.msk [vmem:[#allocation2 + $0xc8] sm:$0xff] %vm182, 0.0
      %210 = vst.msk [vmem:[#allocation2 + $0xd0] sm:$0x3] %vm185, 0.0
      %211 = vst.msk [vmem:[#allocation2 + $0xd8] sm:$0xff] %vm182, 0.0
      %212 = vst.msk [vmem:[#allocation2 + $0xe0] sm:$0xff] %vm182, 0.0
      %213 = vst.msk [vmem:[#allocation2 + $0xe8] sm:$0x3] %vm185, 0.0
      %214 = vst.msk [vmem:[#allocation2 + $0xf0] sm:$0xff] %vm182, 0.0
      %215 = vst.msk [vmem:[#allocation2 + $0xf8] sm:$0xff] %vm182, 0.0
      %216 = vst.msk [vmem:[#allocation2 + $0x100] sm:$0x3] %vm185, 0.0
      %217 = vst.msk [vmem:[#allocation2 + $0x108] sm:$0xff] %vm182, 0.0
      %218 = vst.msk [vmem:[#allocation2 + $0x110] sm:$0xff] %vm182, 0.0
      %219 = vst.msk [vmem:[#allocation2 + $0x118] sm:$0x3] %vm185, 0.0
      %220 = vst.msk [vmem:[#allocation2 + $0x120] sm:$0xff] %vm182, 0.0
      %221 = vst.msk [vmem:[#allocation2 + $0x128] sm:$0xff] %vm182, 0.0
      %222 = vst.msk [vmem:[#allocation2 + $0x130] sm:$0x3] %vm185, 0.0
      %223 = vst.msk [vmem:[#allocation2 + $0x138] sm:$0xff] %vm182, 0.0
      %224 = vst.msk [vmem:[#allocation2 + $0x140] sm:$0xff] %vm182, 0.0
      %225 = vst.msk [vmem:[#allocation2 + $0x148] sm:$0x3] %vm185, 0.0
      %226 = vst.msk [vmem:[#allocation2 + $0x150] sm:$0xff] %vm182, 0.0
      %227 = vst.msk [vmem:[#allocation2 + $0x158] sm:$0xff] %vm182, 0.0
      %228 = vst.msk [vmem:[#allocation2 + $0x160] sm:$0x3] %vm185, 0.0
      %229 = vst.msk [vmem:[#allocation2 + $0x168] sm:$0xff] %vm182, 0.0
      %230 = vst.msk [vmem:[#allocation2 + $0x170] sm:$0xff] %vm182, 0.0
      %231 = vst.msk [vmem:[#allocation2 + $0x178] sm:$0x3] %vm185, 0.0
      %232 = vst.msk [vmem:[#allocation2 + $0x180] sm:$0xff] %vm182, 0.0
      %233 = vst.msk [vmem:[#allocation2 + $0x188] sm:$0xff] %vm182, 0.0
      %234 = vst.msk [vmem:[#allocation2 + $0x190] sm:$0x3] %vm185, 0.0
      %235 = vst.msk [vmem:[#allocation2 + $0x198] sm:$0xff] %vm182, 0.0
      %236 = vst.msk [vmem:[#allocation2 + $0x1a0] sm:$0xff] %vm182, 0.0
      %237 = vst.msk [vmem:[#allocation2 + $0x1a8] sm:$0x3] %vm185, 0.0
      %v238 = vld [vmem:[%s172] sm:$0xff]
      %v239 = vld [vmem:[%s172 + $0x8] sm:$0xff]
      %v240 = vld [vmem:[%s172 + $0x10] sm:$0xff]
      %v241 = vld [vmem:[%s172 + $0x18] sm:$0xff]
      %v242 = vld [vmem:[%s172 + $0x20] sm:$0xff]
      %v243 = vld [vmem:[%s172 + $0x28] sm:$0xff]
      %v244 = vld [vmem:[%s172 + $0x30] sm:$0xff]
      %v245 = vld [vmem:[%s172 + $0x38] sm:$0xff]
      %v246 = vld [vmem:[%s172 + $0x40] sm:$0xff]
      %v247 = vld [vmem:[%s172 + $0x48] sm:$0xff]
      %v248 = vld [vmem:[%s172 + $0x50] sm:$0xff]
      %v249 = vld [vmem:[%s172 + $0x58] sm:$0xff]
      %v250 = vld [vmem:[%s172 + $0x60] sm:$0xff]
      %v251 = vld [vmem:[%s172 + $0x68] sm:$0xff]
      %v252 = vld [vmem:[%s172 + $0x70] sm:$0xff]
      %v253 = vld [vmem:[%s172 + $0x78] sm:$0xff]
      %v254 = vld [vmem:[%s172 + $0x80] sm:$0xff]
      %v255 = vld [vmem:[%s172 + $0x88] sm:$0xff]
      %v256 = vld [vmem:[%s172 + $0x90] sm:$0xff]
      %v257 = vld [vmem:[%s172 + $0x98] sm:$0xff]
      %v258 = vld [vmem:[%s172 + $0xa0] sm:$0xff]
      %v259 = vld [vmem:[%s172 + $0xa8] sm:$0xff]
      %v260 = vld [vmem:[%s172 + $0xb0] sm:$0xff]
      %v261 = vld [vmem:[%s172 + $0xb8] sm:$0xff]
      %v262 = vld [vmem:[%s172 + $0xc0] sm:$0xff]
      %v263 = vld [vmem:[%s172 + $0xc8] sm:$0xff]
      %v264 = vld [vmem:[%s172 + $0xd0] sm:$0xff]
      %v265 = vld [vmem:[%s172 + $0xd8] sm:$0xff]
      %v266 = vld [vmem:[%s172 + $0xe0] sm:$0xff]
      %v267 = vld [vmem:[%s172 + $0xe8] sm:$0xff]
      %v268 = vld [vmem:[%s172 + $0xf0] sm:$0xff]
      %v269 = vld [vmem:[%s172 + $0xf8] sm:$0xff]
      %s270 = scalar_lea.vmem [#allocation2], 24
      %vm271 = vcmask 64512
      %272 = vst.msk [vmem:[%s270 + $0x1] sm:$0xff] %vm271, %v238
      %273 = vst.msk [vmem:[%s270 + $0x9] sm:$0xff] %vm271, %v239
      %274 = vst.msk [vmem:[%s270 + $0x19] sm:$0xff] %vm271, %v240
      %275 = vst.msk [vmem:[%s270 + $0x21] sm:$0xff] %vm271, %v241
      %276 = vst.msk [vmem:[%s270 + $0x31] sm:$0xff] %vm271, %v242
      %277 = vst.msk [vmem:[%s270 + $0x39] sm:$0xff] %vm271, %v243
      %278 = vst.msk [vmem:[%s270 + $0x49] sm:$0xff] %vm271, %v244
      %279 = vst.msk [vmem:[%s270 + $0x51] sm:$0xff] %vm271, %v245
      %280 = vst.msk [vmem:[%s270 + $0x61] sm:$0xff] %vm271, %v246
      %281 = vst.msk [vmem:[%s270 + $0x69] sm:$0xff] %vm271, %v247
      %282 = vst.msk [vmem:[%s270 + $0x79] sm:$0xff] %vm271, %v248
      %283 = vst.msk [vmem:[%s270 + $0x81] sm:$0xff] %vm271, %v249
      %284 = vst.msk [vmem:[%s270 + $0x91] sm:$0xff] %vm271, %v250
      %285 = vst.msk [vmem:[%s270 + $0x99] sm:$0xff] %vm271, %v251
      %286 = vst.msk [vmem:[%s270 + $0xa9] sm:$0xff] %vm271, %v252
      %287 = vst.msk [vmem:[%s270 + $0xb1] sm:$0xff] %vm271, %v253
      %288 = vst.msk [vmem:[%s270 + $0xc1] sm:$0xff] %vm271, %v254
      %289 = vst.msk [vmem:[%s270 + $0xc9] sm:$0xff] %vm271, %v255
      %290 = vst.msk [vmem:[%s270 + $0xd9] sm:$0xff] %vm271, %v256
      %291 = vst.msk [vmem:[%s270 + $0xe1] sm:$0xff] %vm271, %v257
      %292 = vst.msk [vmem:[%s270 + $0xf1] sm:$0xff] %vm271, %v258
      %293 = vst.msk [vmem:[%s270 + $0xf9] sm:$0xff] %vm271, %v259
      %294 = vst.msk [vmem:[%s270 + $0x109] sm:$0xff] %vm271, %v260
      %295 = vst.msk [vmem:[%s270 + $0x111] sm:$0xff] %vm271, %v261
      %296 = vst.msk [vmem:[%s270 + $0x121] sm:$0xff] %vm271, %v262
      %297 = vst.msk [vmem:[%s270 + $0x129] sm:$0xff] %vm271, %v263
      %298 = vst.msk [vmem:[%s270 + $0x139] sm:$0xff] %vm271, %v264
      %299 = vst.msk [vmem:[%s270 + $0x141] sm:$0xff] %vm271, %v265
      %300 = vst.msk [vmem:[%s270 + $0x151] sm:$0xff] %vm271, %v266
      %301 = vst.msk [vmem:[%s270 + $0x159] sm:$0xff] %vm271, %v267
      %302 = vst.msk [vmem:[%s270 + $0x169] sm:$0xff] %vm271, %v268
      %303 = vst.msk [vmem:[%s270 + $0x171] sm:$0xff] %vm271, %v269
      %vm304 = vcmask 72768
      %305 = vst.msk [vmem:[%s270 + $0x1] sm:$0xff] %vm304, 1.0
      %306 = vst.msk [vmem:[%s270 + $0x9] sm:$0xff] %vm304, 1.0
      %307 = vst.msk [vmem:[%s270 + $0x19] sm:$0xff] %vm304, 1.0
      %308 = vst.msk [vmem:[%s270 + $0x21] sm:$0xff] %vm304, 1.0
      %309 = vst.msk [vmem:[%s270 + $0x31] sm:$0xff] %vm304, 1.0
      %310 = vst.msk [vmem:[%s270 + $0x39] sm:$0xff] %vm304, 1.0
      %311 = vst.msk [vmem:[%s270 + $0x49] sm:$0xff] %vm304, 1.0
      %312 = vst.msk [vmem:[%s270 + $0x51] sm:$0xff] %vm304, 1.0
      %313 = vst.msk [vmem:[%s270 + $0x61] sm:$0xff] %vm304, 1.0
      %314 = vst.msk [vmem:[%s270 + $0x69] sm:$0xff] %vm304, 1.0
      %315 = vst.msk [vmem:[%s270 + $0x79] sm:$0xff] %vm304, 1.0
      %316 = vst.msk [vmem:[%s270 + $0x81] sm:$0xff] %vm304, 1.0
      %317 = vst.msk [vmem:[%s270 + $0x91] sm:$0xff] %vm304, 1.0
      %318 = vst.msk [vmem:[%s270 + $0x99] sm:$0xff] %vm304, 1.0
      %319 = vst.msk [vmem:[%s270 + $0xa9] sm:$0xff] %vm304, 1.0
      %320 = vst.msk [vmem:[%s270 + $0xb1] sm:$0xff] %vm304, 1.0
      %321 = vst.msk [vmem:[%s270 + $0xc1] sm:$0xff] %vm304, 1.0
      %322 = vst.msk [vmem:[%s270 + $0xc9] sm:$0xff] %vm304, 1.0
      %323 = vst.msk [vmem:[%s270 + $0xd9] sm:$0xff] %vm304, 1.0
      %324 = vst.msk [vmem:[%s270 + $0xe1] sm:$0xff] %vm304, 1.0
      %325 = vst.msk [vmem:[%s270 + $0xf1] sm:$0xff] %vm304, 1.0
      %326 = vst.msk [vmem:[%s270 + $0xf9] sm:$0xff] %vm304, 1.0
      %327 = vst.msk [vmem:[%s270 + $0x109] sm:$0xff] %vm304, 1.0
      %328 = vst.msk [vmem:[%s270 + $0x111] sm:$0xff] %vm304, 1.0
      %329 = vst.msk [vmem:[%s270 + $0x121] sm:$0xff] %vm304, 1.0
      %330 = vst.msk [vmem:[%s270 + $0x129] sm:$0xff] %vm304, 1.0
      %331 = vst.msk [vmem:[%s270 + $0x139] sm:$0xff] %vm304, 1.0
      %332 = vst.msk [vmem:[%s270 + $0x141] sm:$0xff] %vm304, 1.0
      %333 = vst.msk [vmem:[%s270 + $0x151] sm:$0xff] %vm304, 1.0
      %334 = vst.msk [vmem:[%s270 + $0x159] sm:$0xff] %vm304, 1.0
      %335 = vst.msk [vmem:[%s270 + $0x169] sm:$0xff] %vm304, 1.0
      %336 = vst.msk [vmem:[%s270 + $0x171] sm:$0xff] %vm304, 1.0
      %v337 = vld [vmem:[#allocation2] sm:$0xff]
      %v338 = vld [vmem:[#allocation2 + $0x8] sm:$0xff]
      %v339 = vld [vmem:[#allocation2 + $0x18] sm:$0xff]
      %v340 = vld [vmem:[#allocation2 + $0x20] sm:$0xff]
      %v341 = vld [vmem:[#allocation2 + $0x30] sm:$0xff]
      %v342 = vld [vmem:[#allocation2 + $0x38] sm:$0xff]
      %v343 = vld [vmem:[#allocation2 + $0x48] sm:$0xff]
      %v344 = vld [vmem:[#allocation2 + $0x50] sm:$0xff]
      %v345 = vld [vmem:[#allocation2 + $0x60] sm:$0xff]
      %v346 = vld [vmem:[#allocation2 + $0x68] sm:$0xff]
      %v347 = vld [vmem:[#allocation2 + $0x78] sm:$0xff]
      %v348 = vld [vmem:[#allocation2 + $0x80] sm:$0xff]
      %v349 = vld [vmem:[#allocation2 + $0x90] sm:$0xff]
      %v350 = vld [vmem:[#allocation2 + $0x98] sm:$0xff]
      %v351 = vld [vmem:[#allocation2 + $0xa8] sm:$0xff]
      %v352 = vld [vmem:[#allocation2 + $0xb0] sm:$0xff]
      %v353 = vld [vmem:[#allocation2 + $0xc0] sm:$0xff]
      %v354 = vld [vmem:[#allocation2 + $0xc8] sm:$0xff]
      %v355 = vld [vmem:[#allocation2 + $0xd8] sm:$0xff]
      %v356 = vld [vmem:[#allocation2 + $0xe0] sm:$0xff]
      %v357 = vld [vmem:[#allocation2 + $0xf0] sm:$0xff]
      %v358 = vld [vmem:[#allocation2 + $0xf8] sm:$0xff]
      %v359 = vld [vmem:[#allocation2 + $0x108] sm:$0xff]
      %v360 = vld [vmem:[#allocation2 + $0x110] sm:$0xff]
      %v361 = vld [vmem:[#allocation2 + $0x120] sm:$0xff]
      %v362 = vld [vmem:[#allocation2 + $0x128] sm:$0xff]
      %v363 = vld [vmem:[#allocation2 + $0x138] sm:$0xff]
      %v364 = vld [vmem:[#allocation2 + $0x140] sm:$0xff]
      %v365 = vld [vmem:[#allocation2 + $0x150] sm:$0xff]
      %v366 = vld [vmem:[#allocation2 + $0x158] sm:$0xff]
      %v367 = vld [vmem:[#allocation2 + $0x168] sm:$0xff]
      %v368 = vld [vmem:[#allocation2 + $0x170] sm:$0xff]
      %369 = vst.msk [vmem:[#allocation3] sm:$0xff] %vm182, %v337
      %370 = vst.msk [vmem:[#allocation3 + $0x8] sm:$0xff] %vm182, %v338
      %371 = vst.msk [vmem:[#allocation3 + $0x10] sm:$0xff] %vm182, %v339
      %372 = vst.msk [vmem:[#allocation3 + $0x18] sm:$0xff] %vm182, %v340
      %373 = vst.msk [vmem:[#allocation3 + $0x20] sm:$0xff] %vm182, %v341
      %374 = vst.msk [vmem:[#allocation3 + $0x28] sm:$0xff] %vm182, %v342
      %375 = vst.msk [vmem:[#allocation3 + $0x30] sm:$0xff] %vm182, %v343
      %376 = vst.msk [vmem:[#allocation3 + $0x38] sm:$0xff] %vm182, %v344
      %377 = vst.msk [vmem:[#allocation3 + $0x40] sm:$0xff] %vm182, %v345
      %378 = vst.msk [vmem:[#allocation3 + $0x48] sm:$0xff] %vm182, %v346
      %379 = vst.msk [vmem:[#allocation3 + $0x50] sm:$0xff] %vm182, %v347
      %380 = vst.msk [vmem:[#allocation3 + $0x58] sm:$0xff] %vm182, %v348
      %381 = vst.msk [vmem:[#allocation3 + $0x60] sm:$0xff] %vm182, %v349
      %382 = vst.msk [vmem:[#allocation3 + $0x68] sm:$0xff] %vm182, %v350
      %383 = vst.msk [vmem:[#allocation3 + $0x70] sm:$0xff] %vm182, %v351
      %384 = vst.msk [vmem:[#allocation3 + $0x78] sm:$0xff] %vm182, %v352
      %385 = vst.msk [vmem:[#allocation3 + $0x80] sm:$0xff] %vm182, %v353
      %386 = vst.msk [vmem:[#allocation3 + $0x88] sm:$0xff] %vm182, %v354
      %387 = vst.msk [vmem:[#allocation3 + $0x90] sm:$0xff] %vm182, %v355
      %388 = vst.msk [vmem:[#allocation3 + $0x98] sm:$0xff] %vm182, %v356
      %389 = vst.msk [vmem:[#allocation3 + $0xa0] sm:$0xff] %vm182, %v357
      %390 = vst.msk [vmem:[#allocation3 + $0xa8] sm:$0xff] %vm182, %v358
      %391 = vst.msk [vmem:[#allocation3 + $0xb0] sm:$0xff] %vm182, %v359
      %392 = vst.msk [vmem:[#allocation3 + $0xb8] sm:$0xff] %vm182, %v360
      %393 = vst.msk [vmem:[#allocation3 + $0xc0] sm:$0xff] %vm182, %v361
      %394 = vst.msk [vmem:[#allocation3 + $0xc8] sm:$0xff] %vm182, %v362
      %395 = vst.msk [vmem:[#allocation3 + $0xd0] sm:$0xff] %vm182, %v363
      %396 = vst.msk [vmem:[#allocation3 + $0xd8] sm:$0xff] %vm182, %v364
      %397 = vst.msk [vmem:[#allocation3 + $0xe0] sm:$0xff] %vm182, %v365
      %398 = vst.msk [vmem:[#allocation3 + $0xe8] sm:$0xff] %vm182, %v366
      %399 = vst.msk [vmem:[#allocation3 + $0xf0] sm:$0xff] %vm182, %v367
      %400 = vst.msk [vmem:[#allocation3 + $0xf8] sm:$0xff] %vm182, %v368
      %v401 = vld [vmem:[#allocation2 + $0x1] sm:$0xff]
      %v402 = vld [vmem:[#allocation2 + $0x9] sm:$0xff]
      %v403 = vld [vmem:[#allocation2 + $0x19] sm:$0xff]
      %v404 = vld [vmem:[#allocation2 + $0x21] sm:$0xff]
      %v405 = vld [vmem:[#allocation2 + $0x31] sm:$0xff]
      %v406 = vld [vmem:[#allocation2 + $0x39] sm:$0xff]
      %v407 = vld [vmem:[#allocation2 + $0x49] sm:$0xff]
      %v408 = vld [vmem:[#allocation2 + $0x51] sm:$0xff]
      %v409 = vld [vmem:[#allocation2 + $0x61] sm:$0xff]
      %v410 = vld [vmem:[#allocation2 + $0x69] sm:$0xff]
      %v411 = vld [vmem:[#allocation2 + $0x79] sm:$0xff]
      %v412 = vld [vmem:[#allocation2 + $0x81] sm:$0xff]
      %v413 = vld [vmem:[#allocation2 + $0x91] sm:$0xff]
      %v414 = vld [vmem:[#allocation2 + $0x99] sm:$0xff]
      %v415 = vld [vmem:[#allocation2 + $0xa9] sm:$0xff]
      %v416 = vld [vmem:[#allocation2 + $0xb1] sm:$0xff]
      %v417 = vld [vmem:[#allocation2 + $0xc1] sm:$0xff]
      %v418 = vld [vmem:[#allocation2 + $0xc9] sm:$0xff]
      %v419 = vld [vmem:[#allocation2 + $0xd9] sm:$0xff]
      %v420 = vld [vmem:[#allocation2 + $0xe1] sm:$0xff]
      %v421 = vld [vmem:[#allocation2 + $0xf1] sm:$0xff]
      %v422 = vld [vmem:[#allocation2 + $0xf9] sm:$0xff]
      %v423 = vld [vmem:[#allocation2 + $0x109] sm:$0xff]
      %v424 = vld [vmem:[#allocation2 + $0x111] sm:$0xff]
      %v425 = vld [vmem:[#allocation2 + $0x121] sm:$0xff]
      %v426 = vld [vmem:[#allocation2 + $0x129] sm:$0xff]
      %v427 = vld [vmem:[#allocation2 + $0x139] sm:$0xff]
      %v428 = vld [vmem:[#allocation2 + $0x141] sm:$0xff]
      %v429 = vld [vmem:[#allocation2 + $0x151] sm:$0xff]
      %v430 = vld [vmem:[#allocation2 + $0x159] sm:$0xff]
      %v431 = vld [vmem:[#allocation2 + $0x169] sm:$0xff]
      %v432 = vld [vmem:[#allocation2 + $0x171] sm:$0xff]
      %465 = vrot.lane.b32.xlu0 %v401, 9
      %v466 = vpop.permute.xlu0 %465
      %467 = vrot.lane.b32.xlu0 %v402, 9
      %v468 = vpop.permute.xlu0 %467
      %469 = vrot.lane.b32.xlu0 %v403, 9
      %v470 = vpop.permute.xlu0 %469
      %471 = vrot.lane.b32.xlu0 %v404, 9
      %v472 = vpop.permute.xlu0 %471
      %473 = vrot.lane.b32.xlu0 %v405, 9
      %v474 = vpop.permute.xlu0 %473
      %475 = vrot.lane.b32.xlu0 %v406, 9
      %v476 = vpop.permute.xlu0 %475
      %477 = vrot.lane.b32.xlu0 %v407, 9
      %v478 = vpop.permute.xlu0 %477
      %479 = vrot.lane.b32.xlu0 %v408, 9
      %v480 = vpop.permute.xlu0 %479
      %481 = vrot.lane.b32.xlu0 %v409, 9
      %v482 = vpop.permute.xlu0 %481
      %483 = vrot.lane.b32.xlu0 %v410, 9
      %v484 = vpop.permute.xlu0 %483
      %485 = vrot.lane.b32.xlu0 %v411, 9
      %v486 = vpop.permute.xlu0 %485
      %487 = vrot.lane.b32.xlu0 %v412, 9
      %v488 = vpop.permute.xlu0 %487
      %489 = vrot.lane.b32.xlu0 %v413, 9
      %v490 = vpop.permute.xlu0 %489
      %491 = vrot.lane.b32.xlu0 %v414, 9
      %v492 = vpop.permute.xlu0 %491
      %493 = vrot.lane.b32.xlu0 %v415, 9
      %v494 = vpop.permute.xlu0 %493
      %495 = vrot.lane.b32.xlu0 %v416, 9
      %v496 = vpop.permute.xlu0 %495
      %497 = vrot.lane.b32.xlu0 %v417, 9
      %v498 = vpop.permute.xlu0 %497
      %499 = vrot.lane.b32.xlu0 %v418, 9
      %v500 = vpop.permute.xlu0 %499
      %501 = vrot.lane.b32.xlu0 %v419, 9
      %v502 = vpop.permute.xlu0 %501
      %503 = vrot.lane.b32.xlu0 %v420, 9
      %v504 = vpop.permute.xlu0 %503
      %505 = vrot.lane.b32.xlu0 %v421, 9
      %v506 = vpop.permute.xlu0 %505
      %507 = vrot.lane.b32.xlu0 %v422, 9
      %v508 = vpop.permute.xlu0 %507
      %509 = vrot.lane.b32.xlu0 %v423, 9
      %v510 = vpop.permute.xlu0 %509
      %511 = vrot.lane.b32.xlu0 %v424, 9
      %v512 = vpop.permute.xlu0 %511
      %513 = vrot.lane.b32.xlu0 %v425, 9
      %v514 = vpop.permute.xlu0 %513
      %515 = vrot.lane.b32.xlu0 %v426, 9
      %v516 = vpop.permute.xlu0 %515
      %517 = vrot.lane.b32.xlu0 %v427, 9
      %v518 = vpop.permute.xlu0 %517
      %519 = vrot.lane.b32.xlu0 %v428, 9
      %v520 = vpop.permute.xlu0 %519
      %521 = vrot.lane.b32.xlu0 %v429, 9
      %v522 = vpop.permute.xlu0 %521
      %523 = vrot.lane.b32.xlu0 %v430, 9
      %v524 = vpop.permute.xlu0 %523
      %525 = vrot.lane.b32.xlu0 %v431, 9
      %v526 = vpop.permute.xlu0 %525
      %527 = vrot.lane.b32.xlu0 %v432, 9
      %v528 = vpop.permute.xlu0 %527
      %vm561 = vcmask 146504
      %562 = vst.msk [vmem:[#allocation3] sm:$0xff] %vm561, %v466
      %563 = vst.msk [vmem:[#allocation3 + $0x8] sm:$0xff] %vm561, %v468
      %564 = vst.msk [vmem:[#allocation3 + $0x10] sm:$0xff] %vm561, %v470
      %565 = vst.msk [vmem:[#allocation3 + $0x18] sm:$0xff] %vm561, %v472
      %566 = vst.msk [vmem:[#allocation3 + $0x20] sm:$0xff] %vm561, %v474
      %567 = vst.msk [vmem:[#allocation3 + $0x28] sm:$0xff] %vm561, %v476
      %568 = vst.msk [vmem:[#allocation3 + $0x30] sm:$0xff] %vm561, %v478
      %569 = vst.msk [vmem:[#allocation3 + $0x38] sm:$0xff] %vm561, %v480
      %570 = vst.msk [vmem:[#allocation3 + $0x40] sm:$0xff] %vm561, %v482
      %571 = vst.msk [vmem:[#allocation3 + $0x48] sm:$0xff] %vm561, %v484
      %572 = vst.msk [vmem:[#allocation3 + $0x50] sm:$0xff] %vm561, %v486
      %573 = vst.msk [vmem:[#allocation3 + $0x58] sm:$0xff] %vm561, %v488
      %574 = vst.msk [vmem:[#allocation3 + $0x60] sm:$0xff] %vm561, %v490
      %575 = vst.msk [vmem:[#allocation3 + $0x68] sm:$0xff] %vm561, %v492
      %576 = vst.msk [vmem:[#allocation3 + $0x70] sm:$0xff] %vm561, %v494
      %577 = vst.msk [vmem:[#allocation3 + $0x78] sm:$0xff] %vm561, %v496
      %578 = vst.msk [vmem:[#allocation3 + $0x80] sm:$0xff] %vm561, %v498
      %579 = vst.msk [vmem:[#allocation3 + $0x88] sm:$0xff] %vm561, %v500
      %580 = vst.msk [vmem:[#allocation3 + $0x90] sm:$0xff] %vm561, %v502
      %581 = vst.msk [vmem:[#allocation3 + $0x98] sm:$0xff] %vm561, %v504
      %582 = vst.msk [vmem:[#allocation3 + $0xa0] sm:$0xff] %vm561, %v506
      %583 = vst.msk [vmem:[#allocation3 + $0xa8] sm:$0xff] %vm561, %v508
      %584 = vst.msk [vmem:[#allocation3 + $0xb0] sm:$0xff] %vm561, %v510
      %585 = vst.msk [vmem:[#allocation3 + $0xb8] sm:$0xff] %vm561, %v512
      %586 = vst.msk [vmem:[#allocation3 + $0xc0] sm:$0xff] %vm561, %v514
      %587 = vst.msk [vmem:[#allocation3 + $0xc8] sm:$0xff] %vm561, %v516
      %588 = vst.msk [vmem:[#allocation3 + $0xd0] sm:$0xff] %vm561, %v518
      %589 = vst.msk [vmem:[#allocation3 + $0xd8] sm:$0xff] %vm561, %v520
      %590 = vst.msk [vmem:[#allocation3 + $0xe0] sm:$0xff] %vm561, %v522
      %591 = vst.msk [vmem:[#allocation3 + $0xe8] sm:$0xff] %vm561, %v524
      %592 = vst.msk [vmem:[#allocation3 + $0xf0] sm:$0xff] %vm561, %v526
      %593 = vst.msk [vmem:[#allocation3 + $0xf8] sm:$0xff] %vm561, %v528
      %v594 = vld [vmem:[#allocation2 + $0x2] sm:$0xff]
      %v595 = vld [vmem:[#allocation2 + $0xa] sm:$0xff]
      %v596 = vld [vmem:[#allocation2 + $0x1a] sm:$0xff]
      %v597 = vld [vmem:[#allocation2 + $0x22] sm:$0xff]
      %v598 = vld [vmem:[#allocation2 + $0x32] sm:$0xff]
      %v599 = vld [vmem:[#allocation2 + $0x3a] sm:$0xff]
      %v600 = vld [vmem:[#allocation2 + $0x4a] sm:$0xff]
      %v601 = vld [vmem:[#allocation2 + $0x52] sm:$0xff]
      %v602 = vld [vmem:[#allocation2 + $0x62] sm:$0xff]
      %v603 = vld [vmem:[#allocation2 + $0x6a] sm:$0xff]
      %v604 = vld [vmem:[#allocation2 + $0x7a] sm:$0xff]
      %v605 = vld [vmem:[#allocation2 + $0x82] sm:$0xff]
      %v606 = vld [vmem:[#allocation2 + $0x92] sm:$0xff]
      %v607 = vld [vmem:[#allocation2 + $0x9a] sm:$0xff]
      %v608 = vld [vmem:[#allocation2 + $0xaa] sm:$0xff]
      %v609 = vld [vmem:[#allocation2 + $0xb2] sm:$0xff]
      %v610 = vld [vmem:[#allocation2 + $0xc2] sm:$0xff]
      %v611 = vld [vmem:[#allocation2 + $0xca] sm:$0xff]
      %v612 = vld [vmem:[#allocation2 + $0xda] sm:$0xff]
      %v613 = vld [vmem:[#allocation2 + $0xe2] sm:$0xff]
      %v614 = vld [vmem:[#allocation2 + $0xf2] sm:$0xff]
      %v615 = vld [vmem:[#allocation2 + $0xfa] sm:$0xff]
      %v616 = vld [vmem:[#allocation2 + $0x10a] sm:$0xff]
      %v617 = vld [vmem:[#allocation2 + $0x112] sm:$0xff]
      %v618 = vld [vmem:[#allocation2 + $0x122] sm:$0xff]
      %v619 = vld [vmem:[#allocation2 + $0x12a] sm:$0xff]
      %v620 = vld [vmem:[#allocation2 + $0x13a] sm:$0xff]
      %v621 = vld [vmem:[#allocation2 + $0x142] sm:$0xff]
      %v622 = vld [vmem:[#allocation2 + $0x152] sm:$0xff]
      %v623 = vld [vmem:[#allocation2 + $0x15a] sm:$0xff]
      %v624 = vld [vmem:[#allocation2 + $0x16a] sm:$0xff]
      %v625 = vld [vmem:[#allocation2 + $0x172] sm:$0xff]
      %658 = vrot.lane.b32.xlu0 %v594, 18
      %v659 = vpop.permute.xlu0 %658
      %660 = vrot.lane.b32.xlu0 %v595, 18
      %v661 = vpop.permute.xlu0 %660
      %662 = vrot.lane.b32.xlu0 %v596, 18
      %v663 = vpop.permute.xlu0 %662
      %664 = vrot.lane.b32.xlu0 %v597, 18
      %v665 = vpop.permute.xlu0 %664
      %666 = vrot.lane.b32.xlu0 %v598, 18
      %v667 = vpop.permute.xlu0 %666
      %668 = vrot.lane.b32.xlu0 %v599, 18
      %v669 = vpop.permute.xlu0 %668
      %670 = vrot.lane.b32.xlu0 %v600, 18
      %v671 = vpop.permute.xlu0 %670
      %672 = vrot.lane.b32.xlu0 %v601, 18
      %v673 = vpop.permute.xlu0 %672
      %674 = vrot.lane.b32.xlu0 %v602, 18
      %v675 = vpop.permute.xlu0 %674
      %676 = vrot.lane.b32.xlu0 %v603, 18
      %v677 = vpop.permute.xlu0 %676
      %678 = vrot.lane.b32.xlu0 %v604, 18
      %v679 = vpop.permute.xlu0 %678
      %680 = vrot.lane.b32.xlu0 %v605, 18
      %v681 = vpop.permute.xlu0 %680
      %682 = vrot.lane.b32.xlu0 %v606, 18
      %v683 = vpop.permute.xlu0 %682
      %684 = vrot.lane.b32.xlu0 %v607, 18
      %v685 = vpop.permute.xlu0 %684
      %686 = vrot.lane.b32.xlu0 %v608, 18
      %v687 = vpop.permute.xlu0 %686
      %688 = vrot.lane.b32.xlu0 %v609, 18
      %v689 = vpop.permute.xlu0 %688
      %690 = vrot.lane.b32.xlu0 %v610, 18
      %v691 = vpop.permute.xlu0 %690
      %692 = vrot.lane.b32.xlu0 %v611, 18
      %v693 = vpop.permute.xlu0 %692
      %694 = vrot.lane.b32.xlu0 %v612, 18
      %v695 = vpop.permute.xlu0 %694
      %696 = vrot.lane.b32.xlu0 %v613, 18
      %v697 = vpop.permute.xlu0 %696
      %698 = vrot.lane.b32.xlu0 %v614, 18
      %v699 = vpop.permute.xlu0 %698
      %700 = vrot.lane.b32.xlu0 %v615, 18
      %v701 = vpop.permute.xlu0 %700
      %702 = vrot.lane.b32.xlu0 %v616, 18
      %v703 = vpop.permute.xlu0 %702
      %704 = vrot.lane.b32.xlu0 %v617, 18
      %v705 = vpop.permute.xlu0 %704
      %706 = vrot.lane.b32.xlu0 %v618, 18
      %v707 = vpop.permute.xlu0 %706
      %708 = vrot.lane.b32.xlu0 %v619, 18
      %v709 = vpop.permute.xlu0 %708
      %710 = vrot.lane.b32.xlu0 %v620, 18
      %v711 = vpop.permute.xlu0 %710
      %712 = vrot.lane.b32.xlu0 %v621, 18
      %v713 = vpop.permute.xlu0 %712
      %714 = vrot.lane.b32.xlu0 %v622, 18
      %v715 = vpop.permute.xlu0 %714
      %716 = vrot.lane.b32.xlu0 %v623, 18
      %v717 = vpop.permute.xlu0 %716
      %718 = vrot.lane.b32.xlu0 %v624, 18
      %v719 = vpop.permute.xlu0 %718
      %720 = vrot.lane.b32.xlu0 %v625, 18
      %v721 = vpop.permute.xlu0 %720
      %vm754 = vcmask 220304
      %755 = vst.msk [vmem:[#allocation3] sm:$0xff] %vm754, %v659
      %756 = vst.msk [vmem:[#allocation3 + $0x8] sm:$0xff] %vm754, %v661
      %757 = vst.msk [vmem:[#allocation3 + $0x10] sm:$0xff] %vm754, %v663
      %758 = vst.msk [vmem:[#allocation3 + $0x18] sm:$0xff] %vm754, %v665
      %759 = vst.msk [vmem:[#allocation3 + $0x20] sm:$0xff] %vm754, %v667
      %760 = vst.msk [vmem:[#allocation3 + $0x28] sm:$0xff] %vm754, %v669
      %761 = vst.msk [vmem:[#allocation3 + $0x30] sm:$0xff] %vm754, %v671
      %762 = vst.msk [vmem:[#allocation3 + $0x38] sm:$0xff] %vm754, %v673
      %763 = vst.msk [vmem:[#allocation3 + $0x40] sm:$0xff] %vm754, %v675
      %764 = vst.msk [vmem:[#allocation3 + $0x48] sm:$0xff] %vm754, %v677
      %765 = vst.msk [vmem:[#allocation3 + $0x50] sm:$0xff] %vm754, %v679
      %766 = vst.msk [vmem:[#allocation3 + $0x58] sm:$0xff] %vm754, %v681
      %767 = vst.msk [vmem:[#allocation3 + $0x60] sm:$0xff] %vm754, %v683
      %768 = vst.msk [vmem:[#allocation3 + $0x68] sm:$0xff] %vm754, %v685
      %769 = vst.msk [vmem:[#allocation3 + $0x70] sm:$0xff] %vm754, %v687
      %770 = vst.msk [vmem:[#allocation3 + $0x78] sm:$0xff] %vm754, %v689
      %771 = vst.msk [vmem:[#allocation3 + $0x80] sm:$0xff] %vm754, %v691
      %772 = vst.msk [vmem:[#allocation3 + $0x88] sm:$0xff] %vm754, %v693
      %773 = vst.msk [vmem:[#allocation3 + $0x90] sm:$0xff] %vm754, %v695
      %774 = vst.msk [vmem:[#allocation3 + $0x98] sm:$0xff] %vm754, %v697
      %775 = vst.msk [vmem:[#allocation3 + $0xa0] sm:$0xff] %vm754, %v699
      %776 = vst.msk [vmem:[#allocation3 + $0xa8] sm:$0xff] %vm754, %v701
      %777 = vst.msk [vmem:[#allocation3 + $0xb0] sm:$0xff] %vm754, %v703
      %778 = vst.msk [vmem:[#allocation3 + $0xb8] sm:$0xff] %vm754, %v705
      %779 = vst.msk [vmem:[#allocation3 + $0xc0] sm:$0xff] %vm754, %v707
      %780 = vst.msk [vmem:[#allocation3 + $0xc8] sm:$0xff] %vm754, %v709
      %781 = vst.msk [vmem:[#allocation3 + $0xd0] sm:$0xff] %vm754, %v711
      %782 = vst.msk [vmem:[#allocation3 + $0xd8] sm:$0xff] %vm754, %v713
      %783 = vst.msk [vmem:[#allocation3 + $0xe0] sm:$0xff] %vm754, %v715
      %784 = vst.msk [vmem:[#allocation3 + $0xe8] sm:$0xff] %vm754, %v717
      %785 = vst.msk [vmem:[#allocation3 + $0xf0] sm:$0xff] %vm754, %v719
      %786 = vst.msk [vmem:[#allocation3 + $0xf8] sm:$0xff] %vm754, %v721
      %v787 = vld [vmem:[%s270] sm:$0xff]
      %v788 = vld [vmem:[%s270 + $0x8] sm:$0xff]
      %v789 = vld [vmem:[%s270 + $0x18] sm:$0xff]
      %v790 = vld [vmem:[%s270 + $0x20] sm:$0xff]
      %v791 = vld [vmem:[%s270 + $0x30] sm:$0xff]
      %v792 = vld [vmem:[%s270 + $0x38] sm:$0xff]
      %v793 = vld [vmem:[%s270 + $0x48] sm:$0xff]
      %v794 = vld [vmem:[%s270 + $0x50] sm:$0xff]
      %v795 = vld [vmem:[%s270 + $0x60] sm:$0xff]
      %v796 = vld [vmem:[%s270 + $0x68] sm:$0xff]
      %v797 = vld [vmem:[%s270 + $0x78] sm:$0xff]
      %v798 = vld [vmem:[%s270 + $0x80] sm:$0xff]
      %v799 = vld [vmem:[%s270 + $0x90] sm:$0xff]
      %v800 = vld [vmem:[%s270 + $0x98] sm:$0xff]
      %v801 = vld [vmem:[%s270 + $0xa8] sm:$0xff]
      %v802 = vld [vmem:[%s270 + $0xb0] sm:$0xff]
      %v803 = vld [vmem:[%s270 + $0xc0] sm:$0xff]
      %v804 = vld [vmem:[%s270 + $0xc8] sm:$0xff]
      %v805 = vld [vmem:[%s270 + $0xd8] sm:$0xff]
      %v806 = vld [vmem:[%s270 + $0xe0] sm:$0xff]
      %v807 = vld [vmem:[%s270 + $0xf0] sm:$0xff]
      %v808 = vld [vmem:[%s270 + $0xf8] sm:$0xff]
      %v809 = vld [vmem:[%s270 + $0x108] sm:$0xff]
      %v810 = vld [vmem:[%s270 + $0x110] sm:$0xff]
      %v811 = vld [vmem:[%s270 + $0x120] sm:$0xff]
      %v812 = vld [vmem:[%s270 + $0x128] sm:$0xff]
      %v813 = vld [vmem:[%s270 + $0x138] sm:$0xff]
      %v814 = vld [vmem:[%s270 + $0x140] sm:$0xff]
      %v815 = vld [vmem:[%s270 + $0x150] sm:$0xff]
      %v816 = vld [vmem:[%s270 + $0x158] sm:$0xff]
      %v817 = vld [vmem:[%s270 + $0x168] sm:$0xff]
      %v818 = vld [vmem:[%s270 + $0x170] sm:$0xff]
      %851 = vrot.lane.b32.xlu0 %v787, 27
      %v852 = vpop.permute.xlu0 %851
      %853 = vrot.lane.b32.xlu0 %v788, 27
      %v854 = vpop.permute.xlu0 %853
      %855 = vrot.lane.b32.xlu0 %v789, 27
      %v856 = vpop.permute.xlu0 %855
      %857 = vrot.lane.b32.xlu0 %v790, 27
      %v858 = vpop.permute.xlu0 %857
      %859 = vrot.lane.b32.xlu0 %v791, 27
      %v860 = vpop.permute.xlu0 %859
      %861 = vrot.lane.b32.xlu0 %v792, 27
      %v862 = vpop.permute.xlu0 %861
      %863 = vrot.lane.b32.xlu0 %v793, 27
      %v864 = vpop.permute.xlu0 %863
      %865 = vrot.lane.b32.xlu0 %v794, 27
      %v866 = vpop.permute.xlu0 %865
      %867 = vrot.lane.b32.xlu0 %v795, 27
      %v868 = vpop.permute.xlu0 %867
      %869 = vrot.lane.b32.xlu0 %v796, 27
      %v870 = vpop.permute.xlu0 %869
      %871 = vrot.lane.b32.xlu0 %v797, 27
      %v872 = vpop.permute.xlu0 %871
      %873 = vrot.lane.b32.xlu0 %v798, 27
      %v874 = vpop.permute.xlu0 %873
      %875 = vrot.lane.b32.xlu0 %v799, 27
      %v876 = vpop.permute.xlu0 %875
      %877 = vrot.lane.b32.xlu0 %v800, 27
      %v878 = vpop.permute.xlu0 %877
      %879 = vrot.lane.b32.xlu0 %v801, 27
      %v880 = vpop.permute.xlu0 %879
      %881 = vrot.lane.b32.xlu0 %v802, 27
      %v882 = vpop.permute.xlu0 %881
      %883 = vrot.lane.b32.xlu0 %v803, 27
      %v884 = vpop.permute.xlu0 %883
      %885 = vrot.lane.b32.xlu0 %v804, 27
      %v886 = vpop.permute.xlu0 %885
      %887 = vrot.lane.b32.xlu0 %v805, 27
      %v888 = vpop.permute.xlu0 %887
      %889 = vrot.lane.b32.xlu0 %v806, 27
      %v890 = vpop.permute.xlu0 %889
      %891 = vrot.lane.b32.xlu0 %v807, 27
      %v892 = vpop.permute.xlu0 %891
      %893 = vrot.lane.b32.xlu0 %v808, 27
      %v894 = vpop.permute.xlu0 %893
      %895 = vrot.lane.b32.xlu0 %v809, 27
      %v896 = vpop.permute.xlu0 %895
      %897 = vrot.lane.b32.xlu0 %v810, 27
      %v898 = vpop.permute.xlu0 %897
      %899 = vrot.lane.b32.xlu0 %v811, 27
      %v900 = vpop.permute.xlu0 %899
      %901 = vrot.lane.b32.xlu0 %v812, 27
      %v902 = vpop.permute.xlu0 %901
      %903 = vrot.lane.b32.xlu0 %v813, 27
      %v904 = vpop.permute.xlu0 %903
      %905 = vrot.lane.b32.xlu0 %v814, 27
      %v906 = vpop.permute.xlu0 %905
      %907 = vrot.lane.b32.xlu0 %v815, 27
      %v908 = vpop.permute.xlu0 %907
      %909 = vrot.lane.b32.xlu0 %v816, 27
      %v910 = vpop.permute.xlu0 %909
      %911 = vrot.lane.b32.xlu0 %v817, 27
      %v912 = vpop.permute.xlu0 %911
      %913 = vrot.lane.b32.xlu0 %v818, 27
      %v914 = vpop.permute.xlu0 %913
      %vm947 = vcmask 294104
      %948 = vst.msk [vmem:[#allocation3] sm:$0xff] %vm947, %v852
      %949 = vst.msk [vmem:[#allocation3 + $0x8] sm:$0xff] %vm947, %v854
      %950 = vst.msk [vmem:[#allocation3 + $0x10] sm:$0xff] %vm947, %v856
      %951 = vst.msk [vmem:[#allocation3 + $0x18] sm:$0xff] %vm947, %v858
      %952 = vst.msk [vmem:[#allocation3 + $0x20] sm:$0xff] %vm947, %v860
      %953 = vst.msk [vmem:[#allocation3 + $0x28] sm:$0xff] %vm947, %v862
      %954 = vst.msk [vmem:[#allocation3 + $0x30] sm:$0xff] %vm947, %v864
      %955 = vst.msk [vmem:[#allocation3 + $0x38] sm:$0xff] %vm947, %v866
      %956 = vst.msk [vmem:[#allocation3 + $0x40] sm:$0xff] %vm947, %v868
      %957 = vst.msk [vmem:[#allocation3 + $0x48] sm:$0xff] %vm947, %v870
      %958 = vst.msk [vmem:[#allocation3 + $0x50] sm:$0xff] %vm947, %v872
      %959 = vst.msk [vmem:[#allocation3 + $0x58] sm:$0xff] %vm947, %v874
      %960 = vst.msk [vmem:[#allocation3 + $0x60] sm:$0xff] %vm947, %v876
      %961 = vst.msk [vmem:[#allocation3 + $0x68] sm:$0xff] %vm947, %v878
      %962 = vst.msk [vmem:[#allocation3 + $0x70] sm:$0xff] %vm947, %v880
      %963 = vst.msk [vmem:[#allocation3 + $0x78] sm:$0xff] %vm947, %v882
      %964 = vst.msk [vmem:[#allocation3 + $0x80] sm:$0xff] %vm947, %v884
      %965 = vst.msk [vmem:[#allocation3 + $0x88] sm:$0xff] %vm947, %v886
      %966 = vst.msk [vmem:[#allocation3 + $0x90] sm:$0xff] %vm947, %v888
      %967 = vst.msk [vmem:[#allocation3 + $0x98] sm:$0xff] %vm947, %v890
      %968 = vst.msk [vmem:[#allocation3 + $0xa0] sm:$0xff] %vm947, %v892
      %969 = vst.msk [vmem:[#allocation3 + $0xa8] sm:$0xff] %vm947, %v894
      %970 = vst.msk [vmem:[#allocation3 + $0xb0] sm:$0xff] %vm947, %v896
      %971 = vst.msk [vmem:[#allocation3 + $0xb8] sm:$0xff] %vm947, %v898
      %972 = vst.msk [vmem:[#allocation3 + $0xc0] sm:$0xff] %vm947, %v900
      %973 = vst.msk [vmem:[#allocation3 + $0xc8] sm:$0xff] %vm947, %v902
      %974 = vst.msk [vmem:[#allocation3 + $0xd0] sm:$0xff] %vm947, %v904
      %975 = vst.msk [vmem:[#allocation3 + $0xd8] sm:$0xff] %vm947, %v906
      %976 = vst.msk [vmem:[#allocation3 + $0xe0] sm:$0xff] %vm947, %v908
      %977 = vst.msk [vmem:[#allocation3 + $0xe8] sm:$0xff] %vm947, %v910
      %978 = vst.msk [vmem:[#allocation3 + $0xf0] sm:$0xff] %vm947, %v912
      %979 = vst.msk [vmem:[#allocation3 + $0xf8] sm:$0xff] %vm947, %v914
      %v980 = vld [vmem:[%s270 + $0x1] sm:$0xff]
      %v981 = vld [vmem:[%s270 + $0x9] sm:$0xff]
      %v982 = vld [vmem:[%s270 + $0x19] sm:$0xff]
      %v983 = vld [vmem:[%s270 + $0x21] sm:$0xff]
      %v984 = vld [vmem:[%s270 + $0x31] sm:$0xff]
      %v985 = vld [vmem:[%s270 + $0x39] sm:$0xff]
      %v986 = vld [vmem:[%s270 + $0x49] sm:$0xff]
      %v987 = vld [vmem:[%s270 + $0x51] sm:$0xff]
      %v988 = vld [vmem:[%s270 + $0x61] sm:$0xff]
      %v989 = vld [vmem:[%s270 + $0x69] sm:$0xff]
      %v990 = vld [vmem:[%s270 + $0x79] sm:$0xff]
      %v991 = vld [vmem:[%s270 + $0x81] sm:$0xff]
      %v992 = vld [vmem:[%s270 + $0x91] sm:$0xff]
      %v993 = vld [vmem:[%s270 + $0x99] sm:$0xff]
      %v994 = vld [vmem:[%s270 + $0xa9] sm:$0xff]
      %v995 = vld [vmem:[%s270 + $0xb1] sm:$0xff]
      %v996 = vld [vmem:[%s270 + $0xc1] sm:$0xff]
      %v997 = vld [vmem:[%s270 + $0xc9] sm:$0xff]
      %v998 = vld [vmem:[%s270 + $0xd9] sm:$0xff]
      %v999 = vld [vmem:[%s270 + $0xe1] sm:$0xff]
      %v1000 = vld [vmem:[%s270 + $0xf1] sm:$0xff]
      %v1001 = vld [vmem:[%s270 + $0xf9] sm:$0xff]
      %v1002 = vld [vmem:[%s270 + $0x109] sm:$0xff]
      %v1003 = vld [vmem:[%s270 + $0x111] sm:$0xff]
      %v1004 = vld [vmem:[%s270 + $0x121] sm:$0xff]
      %v1005 = vld [vmem:[%s270 + $0x129] sm:$0xff]
      %v1006 = vld [vmem:[%s270 + $0x139] sm:$0xff]
      %v1007 = vld [vmem:[%s270 + $0x141] sm:$0xff]
      %v1008 = vld [vmem:[%s270 + $0x151] sm:$0xff]
      %v1009 = vld [vmem:[%s270 + $0x159] sm:$0xff]
      %v1010 = vld [vmem:[%s270 + $0x169] sm:$0xff]
      %v1011 = vld [vmem:[%s270 + $0x171] sm:$0xff]
      %1044 = vrot.lane.b32.xlu0 %v980, 36
      %v1045 = vpop.permute.xlu0 %1044
      %1046 = vrot.lane.b32.xlu0 %v981, 36
      %v1047 = vpop.permute.xlu0 %1046
      %1048 = vrot.lane.b32.xlu0 %v982, 36
      %v1049 = vpop.permute.xlu0 %1048
      %1050 = vrot.lane.b32.xlu0 %v983, 36
      %v1051 = vpop.permute.xlu0 %1050
      %1052 = vrot.lane.b32.xlu0 %v984, 36
      %v1053 = vpop.permute.xlu0 %1052
      %1054 = vrot.lane.b32.xlu0 %v985, 36
      %v1055 = vpop.permute.xlu0 %1054
      %1056 = vrot.lane.b32.xlu0 %v986, 36
      %v1057 = vpop.permute.xlu0 %1056
      %1058 = vrot.lane.b32.xlu0 %v987, 36
      %v1059 = vpop.permute.xlu0 %1058
      %1060 = vrot.lane.b32.xlu0 %v988, 36
      %v1061 = vpop.permute.xlu0 %1060
      %1062 = vrot.lane.b32.xlu0 %v989, 36
      %v1063 = vpop.permute.xlu0 %1062
      %1064 = vrot.lane.b32.xlu0 %v990, 36
      %v1065 = vpop.permute.xlu0 %1064
      %1066 = vrot.lane.b32.xlu0 %v991, 36
      %v1067 = vpop.permute.xlu0 %1066
      %1068 = vrot.lane.b32.xlu0 %v992, 36
      %v1069 = vpop.permute.xlu0 %1068
      %1070 = vrot.lane.b32.xlu0 %v993, 36
      %v1071 = vpop.permute.xlu0 %1070
      %1072 = vrot.lane.b32.xlu0 %v994, 36
      %v1073 = vpop.permute.xlu0 %1072
      %1074 = vrot.lane.b32.xlu0 %v995, 36
      %v1075 = vpop.permute.xlu0 %1074
      %1076 = vrot.lane.b32.xlu0 %v996, 36
      %v1077 = vpop.permute.xlu0 %1076
      %1078 = vrot.lane.b32.xlu0 %v997, 36
      %v1079 = vpop.permute.xlu0 %1078
      %1080 = vrot.lane.b32.xlu0 %v998, 36
      %v1081 = vpop.permute.xlu0 %1080
      %1082 = vrot.lane.b32.xlu0 %v999, 36
      %v1083 = vpop.permute.xlu0 %1082
      %1084 = vrot.lane.b32.xlu0 %v1000, 36
      %v1085 = vpop.permute.xlu0 %1084
      %1086 = vrot.lane.b32.xlu0 %v1001, 36
      %v1087 = vpop.permute.xlu0 %1086
      %1088 = vrot.lane.b32.xlu0 %v1002, 36
      %v1089 = vpop.permute.xlu0 %1088
      %1090 = vrot.lane.b32.xlu0 %v1003, 36
      %v1091 = vpop.permute.xlu0 %1090
      %1092 = vrot.lane.b32.xlu0 %v1004, 36
      %v1093 = vpop.permute.xlu0 %1092
      %1094 = vrot.lane.b32.xlu0 %v1005, 36
      %v1095 = vpop.permute.xlu0 %1094
      %1096 = vrot.lane.b32.xlu0 %v1006, 36
      %v1097 = vpop.permute.xlu0 %1096
      %1098 = vrot.lane.b32.xlu0 %v1007, 36
      %v1099 = vpop.permute.xlu0 %1098
      %1100 = vrot.lane.b32.xlu0 %v1008, 36
      %v1101 = vpop.permute.xlu0 %1100
      %1102 = vrot.lane.b32.xlu0 %v1009, 36
      %v1103 = vpop.permute.xlu0 %1102
      %1104 = vrot.lane.b32.xlu0 %v1010, 36
      %v1105 = vpop.permute.xlu0 %1104
      %1106 = vrot.lane.b32.xlu0 %v1011, 36
      %v1107 = vpop.permute.xlu0 %1106
      %vm1140 = vcmask 367904
      %1141 = vst.msk [vmem:[#allocation3] sm:$0xff] %vm1140, %v1045
      %1142 = vst.msk [vmem:[#allocation3 + $0x8] sm:$0xff] %vm1140, %v1047
      %1143 = vst.msk [vmem:[#allocation3 + $0x10] sm:$0xff] %vm1140, %v1049
      %1144 = vst.msk [vmem:[#allocation3 + $0x18] sm:$0xff] %vm1140, %v1051
      %1145 = vst.msk [vmem:[#allocation3 + $0x20] sm:$0xff] %vm1140, %v1053
      %1146 = vst.msk [vmem:[#allocation3 + $0x28] sm:$0xff] %vm1140, %v1055
      %1147 = vst.msk [vmem:[#allocation3 + $0x30] sm:$0xff] %vm1140, %v1057
      %1148 = vst.msk [vmem:[#allocation3 + $0x38] sm:$0xff] %vm1140, %v1059
      %1149 = vst.msk [vmem:[#allocation3 + $0x40] sm:$0xff] %vm1140, %v1061
      %1150 = vst.msk [vmem:[#allocation3 + $0x48] sm:$0xff] %vm1140, %v1063
      %1151 = vst.msk [vmem:[#allocation3 + $0x50] sm:$0xff] %vm1140, %v1065
      %1152 = vst.msk [vmem:[#allocation3 + $0x58] sm:$0xff] %vm1140, %v1067
      %1153 = vst.msk [vmem:[#allocation3 + $0x60] sm:$0xff] %vm1140, %v1069
      %1154 = vst.msk [vmem:[#allocation3 + $0x68] sm:$0xff] %vm1140, %v1071
      %1155 = vst.msk [vmem:[#allocation3 + $0x70] sm:$0xff] %vm1140, %v1073
      %1156 = vst.msk [vmem:[#allocation3 + $0x78] sm:$0xff] %vm1140, %v1075
      %1157 = vst.msk [vmem:[#allocation3 + $0x80] sm:$0xff] %vm1140, %v1077
      %1158 = vst.msk [vmem:[#allocation3 + $0x88] sm:$0xff] %vm1140, %v1079
      %1159 = vst.msk [vmem:[#allocation3 + $0x90] sm:$0xff] %vm1140, %v1081
      %1160 = vst.msk [vmem:[#allocation3 + $0x98] sm:$0xff] %vm1140, %v1083
      %1161 = vst.msk [vmem:[#allocation3 + $0xa0] sm:$0xff] %vm1140, %v1085
      %1162 = vst.msk [vmem:[#allocation3 + $0xa8] sm:$0xff] %vm1140, %v1087
      %1163 = vst.msk [vmem:[#allocation3 + $0xb0] sm:$0xff] %vm1140, %v1089
      %1164 = vst.msk [vmem:[#allocation3 + $0xb8] sm:$0xff] %vm1140, %v1091
      %1165 = vst.msk [vmem:[#allocation3 + $0xc0] sm:$0xff] %vm1140, %v1093
      %1166 = vst.msk [vmem:[#allocation3 + $0xc8] sm:$0xff] %vm1140, %v1095
      %1167 = vst.msk [vmem:[#allocation3 + $0xd0] sm:$0xff] %vm1140, %v1097
      %1168 = vst.msk [vmem:[#allocation3 + $0xd8] sm:$0xff] %vm1140, %v1099
      %1169 = vst.msk [vmem:[#allocation3 + $0xe0] sm:$0xff] %vm1140, %v1101
      %1170 = vst.msk [vmem:[#allocation3 + $0xe8] sm:$0xff] %vm1140, %v1103
      %1171 = vst.msk [vmem:[#allocation3 + $0xf0] sm:$0xff] %vm1140, %v1105
      %1172 = vst.msk [vmem:[#allocation3 + $0xf8] sm:$0xff] %vm1140, %v1107
      %v1173 = vld [vmem:[%s270 + $0x2] sm:$0xff]
      %v1174 = vld [vmem:[%s270 + $0xa] sm:$0xff]
      %v1175 = vld [vmem:[%s270 + $0x1a] sm:$0xff]
      %v1176 = vld [vmem:[%s270 + $0x22] sm:$0xff]
      %v1177 = vld [vmem:[%s270 + $0x32] sm:$0xff]
      %v1178 = vld [vmem:[%s270 + $0x3a] sm:$0xff]
      %v1179 = vld [vmem:[%s270 + $0x4a] sm:$0xff]
      %v1180 = vld [vmem:[%s270 + $0x52] sm:$0xff]
      %v1181 = vld [vmem:[%s270 + $0x62] sm:$0xff]
      %v1182 = vld [vmem:[%s270 + $0x6a] sm:$0xff]
      %v1183 = vld [vmem:[%s270 + $0x7a] sm:$0xff]
      %v1184 = vld [vmem:[%s270 + $0x82] sm:$0xff]
      %v1185 = vld [vmem:[%s270 + $0x92] sm:$0xff]
      %v1186 = vld [vmem:[%s270 + $0x9a] sm:$0xff]
      %v1187 = vld [vmem:[%s270 + $0xaa] sm:$0xff]
      %v1188 = vld [vmem:[%s270 + $0xb2] sm:$0xff]
      %v1189 = vld [vmem:[%s270 + $0xc2] sm:$0xff]
      %v1190 = vld [vmem:[%s270 + $0xca] sm:$0xff]
      %v1191 = vld [vmem:[%s270 + $0xda] sm:$0xff]
      %v1192 = vld [vmem:[%s270 + $0xe2] sm:$0xff]
      %v1193 = vld [vmem:[%s270 + $0xf2] sm:$0xff]
      %v1194 = vld [vmem:[%s270 + $0xfa] sm:$0xff]
      %v1195 = vld [vmem:[%s270 + $0x10a] sm:$0xff]
      %v1196 = vld [vmem:[%s270 + $0x112] sm:$0xff]
      %v1197 = vld [vmem:[%s270 + $0x122] sm:$0xff]
      %v1198 = vld [vmem:[%s270 + $0x12a] sm:$0xff]
      %v1199 = vld [vmem:[%s270 + $0x13a] sm:$0xff]
      %v1200 = vld [vmem:[%s270 + $0x142] sm:$0xff]
      %v1201 = vld [vmem:[%s270 + $0x152] sm:$0xff]
      %v1202 = vld [vmem:[%s270 + $0x15a] sm:$0xff]
      %v1203 = vld [vmem:[%s270 + $0x16a] sm:$0xff]
      %v1204 = vld [vmem:[%s270 + $0x172] sm:$0xff]
      %1237 = vrot.lane.b32.xlu0 %v1173, 45
      %v1238 = vpop.permute.xlu0 %1237
      %1239 = vrot.lane.b32.xlu0 %v1174, 45
      %v1240 = vpop.permute.xlu0 %1239
      %1241 = vrot.lane.b32.xlu0 %v1175, 45
      %v1242 = vpop.permute.xlu0 %1241
      %1243 = vrot.lane.b32.xlu0 %v1176, 45
      %v1244 = vpop.permute.xlu0 %1243
      %1245 = vrot.lane.b32.xlu0 %v1177, 45
      %v1246 = vpop.permute.xlu0 %1245
      %1247 = vrot.lane.b32.xlu0 %v1178, 45
      %v1248 = vpop.permute.xlu0 %1247
      %1249 = vrot.lane.b32.xlu0 %v1179, 45
      %v1250 = vpop.permute.xlu0 %1249
      %1251 = vrot.lane.b32.xlu0 %v1180, 45
      %v1252 = vpop.permute.xlu0 %1251
      %1253 = vrot.lane.b32.xlu0 %v1181, 45
      %v1254 = vpop.permute.xlu0 %1253
      %1255 = vrot.lane.b32.xlu0 %v1182, 45
      %v1256 = vpop.permute.xlu0 %1255
      %1257 = vrot.lane.b32.xlu0 %v1183, 45
      %v1258 = vpop.permute.xlu0 %1257
      %1259 = vrot.lane.b32.xlu0 %v1184, 45
      %v1260 = vpop.permute.xlu0 %1259
      %1261 = vrot.lane.b32.xlu0 %v1185, 45
      %v1262 = vpop.permute.xlu0 %1261
      %1263 = vrot.lane.b32.xlu0 %v1186, 45
      %v1264 = vpop.permute.xlu0 %1263
      %1265 = vrot.lane.b32.xlu0 %v1187, 45
      %v1266 = vpop.permute.xlu0 %1265
      %1267 = vrot.lane.b32.xlu0 %v1188, 45
      %v1268 = vpop.permute.xlu0 %1267
      %1269 = vrot.lane.b32.xlu0 %v1189, 45
      %v1270 = vpop.permute.xlu0 %1269
      %1271 = vrot.lane.b32.xlu0 %v1190, 45
      %v1272 = vpop.permute.xlu0 %1271
      %1273 = vrot.lane.b32.xlu0 %v1191, 45
      %v1274 = vpop.permute.xlu0 %1273
      %1275 = vrot.lane.b32.xlu0 %v1192, 45
      %v1276 = vpop.permute.xlu0 %1275
      %1277 = vrot.lane.b32.xlu0 %v1193, 45
      %v1278 = vpop.permute.xlu0 %1277
      %1279 = vrot.lane.b32.xlu0 %v1194, 45
      %v1280 = vpop.permute.xlu0 %1279
      %1281 = vrot.lane.b32.xlu0 %v1195, 45
      %v1282 = vpop.permute.xlu0 %1281
      %1283 = vrot.lane.b32.xlu0 %v1196, 45
      %v1284 = vpop.permute.xlu0 %1283
      %1285 = vrot.lane.b32.xlu0 %v1197, 45
      %v1286 = vpop.permute.xlu0 %1285
      %1287 = vrot.lane.b32.xlu0 %v1198, 45
      %v1288 = vpop.permute.xlu0 %1287
      %1289 = vrot.lane.b32.xlu0 %v1199, 45
      %v1290 = vpop.permute.xlu0 %1289
      %1291 = vrot.lane.b32.xlu0 %v1200, 45
      %v1292 = vpop.permute.xlu0 %1291
      %1293 = vrot.lane.b32.xlu0 %v1201, 45
      %v1294 = vpop.permute.xlu0 %1293
      %1295 = vrot.lane.b32.xlu0 %v1202, 45
      %v1296 = vpop.permute.xlu0 %1295
      %1297 = vrot.lane.b32.xlu0 %v1203, 45
      %v1298 = vpop.permute.xlu0 %1297
      %1299 = vrot.lane.b32.xlu0 %v1204, 45
      %v1300 = vpop.permute.xlu0 %1299
      %vm1333 = vcmask 441704
      %1334 = vst.msk [vmem:[#allocation3] sm:$0xff] %vm1333, %v1238
      %1335 = vst.msk [vmem:[#allocation3 + $0x8] sm:$0xff] %vm1333, %v1240
      %1336 = vst.msk [vmem:[#allocation3 + $0x10] sm:$0xff] %vm1333, %v1242
      %1337 = vst.msk [vmem:[#allocation3 + $0x18] sm:$0xff] %vm1333, %v1244
      %1338 = vst.msk [vmem:[#allocation3 + $0x20] sm:$0xff] %vm1333, %v1246
      %1339 = vst.msk [vmem:[#allocation3 + $0x28] sm:$0xff] %vm1333, %v1248
      %1340 = vst.msk [vmem:[#allocation3 + $0x30] sm:$0xff] %vm1333, %v1250
      %1341 = vst.msk [vmem:[#allocation3 + $0x38] sm:$0xff] %vm1333, %v1252
      %1342 = vst.msk [vmem:[#allocation3 + $0x40] sm:$0xff] %vm1333, %v1254
      %1343 = vst.msk [vmem:[#allocation3 + $0x48] sm:$0xff] %vm1333, %v1256
      %1344 = vst.msk [vmem:[#allocation3 + $0x50] sm:$0xff] %vm1333, %v1258
      %1345 = vst.msk [vmem:[#allocation3 + $0x58] sm:$0xff] %vm1333, %v1260
      %1346 = vst.msk [vmem:[#allocation3 + $0x60] sm:$0xff] %vm1333, %v1262
      %1347 = vst.msk [vmem:[#allocation3 + $0x68] sm:$0xff] %vm1333, %v1264
      %1348 = vst.msk [vmem:[#allocation3 + $0x70] sm:$0xff] %vm1333, %v1266
      %1349 = vst.msk [vmem:[#allocation3 + $0x78] sm:$0xff] %vm1333, %v1268
      %1350 = vst.msk [vmem:[#allocation3 + $0x80] sm:$0xff] %vm1333, %v1270
      %1351 = vst.msk [vmem:[#allocation3 + $0x88] sm:$0xff] %vm1333, %v1272
      %1352 = vst.msk [vmem:[#allocation3 + $0x90] sm:$0xff] %vm1333, %v1274
      %1353 = vst.msk [vmem:[#allocation3 + $0x98] sm:$0xff] %vm1333, %v1276
      %1354 = vst.msk [vmem:[#allocation3 + $0xa0] sm:$0xff] %vm1333, %v1278
      %1355 = vst.msk [vmem:[#allocation3 + $0xa8] sm:$0xff] %vm1333, %v1280
      %1356 = vst.msk [vmem:[#allocation3 + $0xb0] sm:$0xff] %vm1333, %v1282
      %1357 = vst.msk [vmem:[#allocation3 + $0xb8] sm:$0xff] %vm1333, %v1284
      %1358 = vst.msk [vmem:[#allocation3 + $0xc0] sm:$0xff] %vm1333, %v1286
      %1359 = vst.msk [vmem:[#allocation3 + $0xc8] sm:$0xff] %vm1333, %v1288
      %1360 = vst.msk [vmem:[#allocation3 + $0xd0] sm:$0xff] %vm1333, %v1290
      %1361 = vst.msk [vmem:[#allocation3 + $0xd8] sm:$0xff] %vm1333, %v1292
      %1362 = vst.msk [vmem:[#allocation3 + $0xe0] sm:$0xff] %vm1333, %v1294
      %1363 = vst.msk [vmem:[#allocation3 + $0xe8] sm:$0xff] %vm1333, %v1296
      %1364 = vst.msk [vmem:[#allocation3 + $0xf0] sm:$0xff] %vm1333, %v1298
      %1365 = vst.msk [vmem:[#allocation3 + $0xf8] sm:$0xff] %vm1333, %v1300
      %s1366 = scalar_lea.vmem [#allocation2], 48
      %v1367 = vld [vmem:[%s1366] sm:$0xff]
      %v1368 = vld [vmem:[%s1366 + $0x8] sm:$0xff]
      %v1369 = vld [vmem:[%s1366 + $0x18] sm:$0xff]
      %v1370 = vld [vmem:[%s1366 + $0x20] sm:$0xff]
      %v1371 = vld [vmem:[%s1366 + $0x30] sm:$0xff]
      %v1372 = vld [vmem:[%s1366 + $0x38] sm:$0xff]
      %v1373 = vld [vmem:[%s1366 + $0x48] sm:$0xff]
      %v1374 = vld [vmem:[%s1366 + $0x50] sm:$0xff]
      %v1375 = vld [vmem:[%s1366 + $0x60] sm:$0xff]
      %v1376 = vld [vmem:[%s1366 + $0x68] sm:$0xff]
      %v1377 = vld [vmem:[%s1366 + $0x78] sm:$0xff]
      %v1378 = vld [vmem:[%s1366 + $0x80] sm:$0xff]
      %v1379 = vld [vmem:[%s1366 + $0x90] sm:$0xff]
      %v1380 = vld [vmem:[%s1366 + $0x98] sm:$0xff]
      %v1381 = vld [vmem:[%s1366 + $0xa8] sm:$0xff]
      %v1382 = vld [vmem:[%s1366 + $0xb0] sm:$0xff]
      %v1383 = vld [vmem:[%s1366 + $0xc0] sm:$0xff]
      %v1384 = vld [vmem:[%s1366 + $0xc8] sm:$0xff]
      %v1385 = vld [vmem:[%s1366 + $0xd8] sm:$0xff]
      %v1386 = vld [vmem:[%s1366 + $0xe0] sm:$0xff]
      %v1387 = vld [vmem:[%s1366 + $0xf0] sm:$0xff]
      %v1388 = vld [vmem:[%s1366 + $0xf8] sm:$0xff]
      %v1389 = vld [vmem:[%s1366 + $0x108] sm:$0xff]
      %v1390 = vld [vmem:[%s1366 + $0x110] sm:$0xff]
      %v1391 = vld [vmem:[%s1366 + $0x120] sm:$0xff]
      %v1392 = vld [vmem:[%s1366 + $0x128] sm:$0xff]
      %v1393 = vld [vmem:[%s1366 + $0x138] sm:$0xff]
      %v1394 = vld [vmem:[%s1366 + $0x140] sm:$0xff]
      %v1395 = vld [vmem:[%s1366 + $0x150] sm:$0xff]
      %v1396 = vld [vmem:[%s1366 + $0x158] sm:$0xff]
      %v1397 = vld [vmem:[%s1366 + $0x168] sm:$0xff]
      %v1398 = vld [vmem:[%s1366 + $0x170] sm:$0xff]
      %1431 = vrot.lane.b32.xlu0 %v1367, 54
      %v1432 = vpop.permute.xlu0 %1431
      %1433 = vrot.lane.b32.xlu0 %v1368, 54
      %v1434 = vpop.permute.xlu0 %1433
      %1435 = vrot.lane.b32.xlu0 %v1369, 54
      %v1436 = vpop.permute.xlu0 %1435
      %1437 = vrot.lane.b32.xlu0 %v1370, 54
      %v1438 = vpop.permute.xlu0 %1437
      %1439 = vrot.lane.b32.xlu0 %v1371, 54
      %v1440 = vpop.permute.xlu0 %1439
      %1441 = vrot.lane.b32.xlu0 %v1372, 54
      %v1442 = vpop.permute.xlu0 %1441
      %1443 = vrot.lane.b32.xlu0 %v1373, 54
      %v1444 = vpop.permute.xlu0 %1443
      %1445 = vrot.lane.b32.xlu0 %v1374, 54
      %v1446 = vpop.permute.xlu0 %1445
      %1447 = vrot.lane.b32.xlu0 %v1375, 54
      %v1448 = vpop.permute.xlu0 %1447
      %1449 = vrot.lane.b32.xlu0 %v1376, 54
      %v1450 = vpop.permute.xlu0 %1449
      %1451 = vrot.lane.b32.xlu0 %v1377, 54
      %v1452 = vpop.permute.xlu0 %1451
      %1453 = vrot.lane.b32.xlu0 %v1378, 54
      %v1454 = vpop.permute.xlu0 %1453
      %1455 = vrot.lane.b32.xlu0 %v1379, 54
      %v1456 = vpop.permute.xlu0 %1455
      %1457 = vrot.lane.b32.xlu0 %v1380, 54
      %v1458 = vpop.permute.xlu0 %1457
      %1459 = vrot.lane.b32.xlu0 %v1381, 54
      %v1460 = vpop.permute.xlu0 %1459
      %1461 = vrot.lane.b32.xlu0 %v1382, 54
      %v1462 = vpop.permute.xlu0 %1461
      %1463 = vrot.lane.b32.xlu0 %v1383, 54
      %v1464 = vpop.permute.xlu0 %1463
      %1465 = vrot.lane.b32.xlu0 %v1384, 54
      %v1466 = vpop.permute.xlu0 %1465
      %1467 = vrot.lane.b32.xlu0 %v1385, 54
      %v1468 = vpop.permute.xlu0 %1467
      %1469 = vrot.lane.b32.xlu0 %v1386, 54
      %v1470 = vpop.permute.xlu0 %1469
      %1471 = vrot.lane.b32.xlu0 %v1387, 54
      %v1472 = vpop.permute.xlu0 %1471
      %1473 = vrot.lane.b32.xlu0 %v1388, 54
      %v1474 = vpop.permute.xlu0 %1473
      %1475 = vrot.lane.b32.xlu0 %v1389, 54
      %v1476 = vpop.permute.xlu0 %1475
      %1477 = vrot.lane.b32.xlu0 %v1390, 54
      %v1478 = vpop.permute.xlu0 %1477
      %1479 = vrot.lane.b32.xlu0 %v1391, 54
      %v1480 = vpop.permute.xlu0 %1479
      %1481 = vrot.lane.b32.xlu0 %v1392, 54
      %v1482 = vpop.permute.xlu0 %1481
      %1483 = vrot.lane.b32.xlu0 %v1393, 54
      %v1484 = vpop.permute.xlu0 %1483
      %1485 = vrot.lane.b32.xlu0 %v1394, 54
      %v1486 = vpop.permute.xlu0 %1485
      %1487 = vrot.lane.b32.xlu0 %v1395, 54
      %v1488 = vpop.permute.xlu0 %1487
      %1489 = vrot.lane.b32.xlu0 %v1396, 54
      %v1490 = vpop.permute.xlu0 %1489
      %1491 = vrot.lane.b32.xlu0 %v1397, 54
      %v1492 = vpop.permute.xlu0 %1491
      %1493 = vrot.lane.b32.xlu0 %v1398, 54
      %v1494 = vpop.permute.xlu0 %1493
      %vm1527 = vcmask 515504
      %1528 = vst.msk [vmem:[#allocation3] sm:$0xff] %vm1527, %v1432
      %1529 = vst.msk [vmem:[#allocation3 + $0x8] sm:$0xff] %vm1527, %v1434
      %1530 = vst.msk [vmem:[#allocation3 + $0x10] sm:$0xff] %vm1527, %v1436
      %1531 = vst.msk [vmem:[#allocation3 + $0x18] sm:$0xff] %vm1527, %v1438
      %1532 = vst.msk [vmem:[#allocation3 + $0x20] sm:$0xff] %vm1527, %v1440
      %1533 = vst.msk [vmem:[#allocation3 + $0x28] sm:$0xff] %vm1527, %v1442
      %1534 = vst.msk [vmem:[#allocation3 + $0x30] sm:$0xff] %vm1527, %v1444
      %1535 = vst.msk [vmem:[#allocation3 + $0x38] sm:$0xff] %vm1527, %v1446
      %1536 = vst.msk [vmem:[#allocation3 + $0x40] sm:$0xff] %vm1527, %v1448
      %1537 = vst.msk [vmem:[#allocation3 + $0x48] sm:$0xff] %vm1527, %v1450
      %1538 = vst.msk [vmem:[#allocation3 + $0x50] sm:$0xff] %vm1527, %v1452
      %1539 = vst.msk [vmem:[#allocation3 + $0x58] sm:$0xff] %vm1527, %v1454
      %1540 = vst.msk [vmem:[#allocation3 + $0x60] sm:$0xff] %vm1527, %v1456
      %1541 = vst.msk [vmem:[#allocation3 + $0x68] sm:$0xff] %vm1527, %v1458
      %1542 = vst.msk [vmem:[#allocation3 + $0x70] sm:$0xff] %vm1527, %v1460
      %1543 = vst.msk [vmem:[#allocation3 + $0x78] sm:$0xff] %vm1527, %v1462
      %1544 = vst.msk [vmem:[#allocation3 + $0x80] sm:$0xff] %vm1527, %v1464
      %1545 = vst.msk [vmem:[#allocation3 + $0x88] sm:$0xff] %vm1527, %v1466
      %1546 = vst.msk [vmem:[#allocation3 + $0x90] sm:$0xff] %vm1527, %v1468
      %1547 = vst.msk [vmem:[#allocation3 + $0x98] sm:$0xff] %vm1527, %v1470
      %1548 = vst.msk [vmem:[#allocation3 + $0xa0] sm:$0xff] %vm1527, %v1472
      %1549 = vst.msk [vmem:[#allocation3 + $0xa8] sm:$0xff] %vm1527, %v1474
      %1550 = vst.msk [vmem:[#allocation3 + $0xb0] sm:$0xff] %vm1527, %v1476
      %1551 = vst.msk [vmem:[#allocation3 + $0xb8] sm:$0xff] %vm1527, %v1478
      %1552 = vst.msk [vmem:[#allocation3 + $0xc0] sm:$0xff] %vm1527, %v1480
      %1553 = vst.msk [vmem:[#allocation3 + $0xc8] sm:$0xff] %vm1527, %v1482
      %1554 = vst.msk [vmem:[#allocation3 + $0xd0] sm:$0xff] %vm1527, %v1484
      %1555 = vst.msk [vmem:[#allocation3 + $0xd8] sm:$0xff] %vm1527, %v1486
      %1556 = vst.msk [vmem:[#allocation3 + $0xe0] sm:$0xff] %vm1527, %v1488
      %1557 = vst.msk [vmem:[#allocation3 + $0xe8] sm:$0xff] %vm1527, %v1490
      %1558 = vst.msk [vmem:[#allocation3 + $0xf0] sm:$0xff] %vm1527, %v1492
      %1559 = vst.msk [vmem:[#allocation3 + $0xf8] sm:$0xff] %vm1527, %v1494
      %v1560 = vld [vmem:[%s1366 + $0x1] sm:$0xff]
      %v1561 = vld [vmem:[%s1366 + $0x9] sm:$0xff]
      %v1562 = vld [vmem:[%s1366 + $0x19] sm:$0xff]
      %v1563 = vld [vmem:[%s1366 + $0x21] sm:$0xff]
      %v1564 = vld [vmem:[%s1366 + $0x31] sm:$0xff]
      %v1565 = vld [vmem:[%s1366 + $0x39] sm:$0xff]
      %v1566 = vld [vmem:[%s1366 + $0x49] sm:$0xff]
      %v1567 = vld [vmem:[%s1366 + $0x51] sm:$0xff]
      %v1568 = vld [vmem:[%s1366 + $0x61] sm:$0xff]
      %v1569 = vld [vmem:[%s1366 + $0x69] sm:$0xff]
      %v1570 = vld [vmem:[%s1366 + $0x79] sm:$0xff]
      %v1571 = vld [vmem:[%s1366 + $0x81] sm:$0xff]
      %v1572 = vld [vmem:[%s1366 + $0x91] sm:$0xff]
      %v1573 = vld [vmem:[%s1366 + $0x99] sm:$0xff]
      %v1574 = vld [vmem:[%s1366 + $0xa9] sm:$0xff]
      %v1575 = vld [vmem:[%s1366 + $0xb1] sm:$0xff]
      %v1576 = vld [vmem:[%s1366 + $0xc1] sm:$0xff]
      %v1577 = vld [vmem:[%s1366 + $0xc9] sm:$0xff]
      %v1578 = vld [vmem:[%s1366 + $0xd9] sm:$0xff]
      %v1579 = vld [vmem:[%s1366 + $0xe1] sm:$0xff]
      %v1580 = vld [vmem:[%s1366 + $0xf1] sm:$0xff]
      %v1581 = vld [vmem:[%s1366 + $0xf9] sm:$0xff]
      %v1582 = vld [vmem:[%s1366 + $0x109] sm:$0xff]
      %v1583 = vld [vmem:[%s1366 + $0x111] sm:$0xff]
      %v1584 = vld [vmem:[%s1366 + $0x121] sm:$0xff]
      %v1585 = vld [vmem:[%s1366 + $0x129] sm:$0xff]
      %v1586 = vld [vmem:[%s1366 + $0x139] sm:$0xff]
      %v1587 = vld [vmem:[%s1366 + $0x141] sm:$0xff]
      %v1588 = vld [vmem:[%s1366 + $0x151] sm:$0xff]
      %v1589 = vld [vmem:[%s1366 + $0x159] sm:$0xff]
      %v1590 = vld [vmem:[%s1366 + $0x169] sm:$0xff]
      %v1591 = vld [vmem:[%s1366 + $0x171] sm:$0xff]
      %1624 = vrot.lane.b32.xlu0 %v1560, 63
      %v1625 = vpop.permute.xlu0 %1624
      %1626 = vrot.lane.b32.xlu0 %v1561, 63
      %v1627 = vpop.permute.xlu0 %1626
      %1628 = vrot.lane.b32.xlu0 %v1562, 63
      %v1629 = vpop.permute.xlu0 %1628
      %1630 = vrot.lane.b32.xlu0 %v1563, 63
      %v1631 = vpop.permute.xlu0 %1630
      %1632 = vrot.lane.b32.xlu0 %v1564, 63
      %v1633 = vpop.permute.xlu0 %1632
      %1634 = vrot.lane.b32.xlu0 %v1565, 63
      %v1635 = vpop.permute.xlu0 %1634
      %1636 = vrot.lane.b32.xlu0 %v1566, 63
      %v1637 = vpop.permute.xlu0 %1636
      %1638 = vrot.lane.b32.xlu0 %v1567, 63
      %v1639 = vpop.permute.xlu0 %1638
      %1640 = vrot.lane.b32.xlu0 %v1568, 63
      %v1641 = vpop.permute.xlu0 %1640
      %1642 = vrot.lane.b32.xlu0 %v1569, 63
      %v1643 = vpop.permute.xlu0 %1642
      %1644 = vrot.lane.b32.xlu0 %v1570, 63
      %v1645 = vpop.permute.xlu0 %1644
      %1646 = vrot.lane.b32.xlu0 %v1571, 63
      %v1647 = vpop.permute.xlu0 %1646
      %1648 = vrot.lane.b32.xlu0 %v1572, 63
      %v1649 = vpop.permute.xlu0 %1648
      %1650 = vrot.lane.b32.xlu0 %v1573, 63
      %v1651 = vpop.permute.xlu0 %1650
      %1652 = vrot.lane.b32.xlu0 %v1574, 63
      %v1653 = vpop.permute.xlu0 %1652
      %1654 = vrot.lane.b32.xlu0 %v1575, 63
      %v1655 = vpop.permute.xlu0 %1654
      %1656 = vrot.lane.b32.xlu0 %v1576, 63
      %v1657 = vpop.permute.xlu0 %1656
      %1658 = vrot.lane.b32.xlu0 %v1577, 63
      %v1659 = vpop.permute.xlu0 %1658
      %1660 = vrot.lane.b32.xlu0 %v1578, 63
      %v1661 = vpop.permute.xlu0 %1660
      %1662 = vrot.lane.b32.xlu0 %v1579, 63
      %v1663 = vpop.permute.xlu0 %1662
      %1664 = vrot.lane.b32.xlu0 %v1580, 63
      %v1665 = vpop.permute.xlu0 %1664
      %1666 = vrot.lane.b32.xlu0 %v1581, 63
      %v1667 = vpop.permute.xlu0 %1666
      %1668 = vrot.lane.b32.xlu0 %v1582, 63
      %v1669 = vpop.permute.xlu0 %1668
      %1670 = vrot.lane.b32.xlu0 %v1583, 63
      %v1671 = vpop.permute.xlu0 %1670
      %1672 = vrot.lane.b32.xlu0 %v1584, 63
      %v1673 = vpop.permute.xlu0 %1672
      %1674 = vrot.lane.b32.xlu0 %v1585, 63
      %v1675 = vpop.permute.xlu0 %1674
      %1676 = vrot.lane.b32.xlu0 %v1586, 63
      %v1677 = vpop.permute.xlu0 %1676
      %1678 = vrot.lane.b32.xlu0 %v1587, 63
      %v1679 = vpop.permute.xlu0 %1678
      %1680 = vrot.lane.b32.xlu0 %v1588, 63
      %v1681 = vpop.permute.xlu0 %1680
      %1682 = vrot.lane.b32.xlu0 %v1589, 63
      %v1683 = vpop.permute.xlu0 %1682
      %1684 = vrot.lane.b32.xlu0 %v1590, 63
      %v1685 = vpop.permute.xlu0 %1684
      %1686 = vrot.lane.b32.xlu0 %v1591, 63
      %v1687 = vpop.permute.xlu0 %1686
      %vm1720 = vcmask 589304
      %1721 = vst.msk [vmem:[#allocation3] sm:$0xff] %vm1720, %v1625
      %1722 = vst.msk [vmem:[#allocation3 + $0x8] sm:$0xff] %vm1720, %v1627
      %1723 = vst.msk [vmem:[#allocation3 + $0x10] sm:$0xff] %vm1720, %v1629
      %1724 = vst.msk [vmem:[#allocation3 + $0x18] sm:$0xff] %vm1720, %v1631
      %1725 = vst.msk [vmem:[#allocation3 + $0x20] sm:$0xff] %vm1720, %v1633
      %1726 = vst.msk [vmem:[#allocation3 + $0x28] sm:$0xff] %vm1720, %v1635
      %1727 = vst.msk [vmem:[#allocation3 + $0x30] sm:$0xff] %vm1720, %v1637
      %1728 = vst.msk [vmem:[#allocation3 + $0x38] sm:$0xff] %vm1720, %v1639
      %1729 = vst.msk [vmem:[#allocation3 + $0x40] sm:$0xff] %vm1720, %v1641
      %1730 = vst.msk [vmem:[#allocation3 + $0x48] sm:$0xff] %vm1720, %v1643
      %1731 = vst.msk [vmem:[#allocation3 + $0x50] sm:$0xff] %vm1720, %v1645
      %1732 = vst.msk [vmem:[#allocation3 + $0x58] sm:$0xff] %vm1720, %v1647
      %1733 = vst.msk [vmem:[#allocation3 + $0x60] sm:$0xff] %vm1720, %v1649
      %1734 = vst.msk [vmem:[#allocation3 + $0x68] sm:$0xff] %vm1720, %v1651
      %1735 = vst.msk [vmem:[#allocation3 + $0x70] sm:$0xff] %vm1720, %v1653
      %1736 = vst.msk [vmem:[#allocation3 + $0x78] sm:$0xff] %vm1720, %v1655
      %1737 = vst.msk [vmem:[#allocation3 + $0x80] sm:$0xff] %vm1720, %v1657
      %1738 = vst.msk [vmem:[#allocation3 + $0x88] sm:$0xff] %vm1720, %v1659
      %1739 = vst.msk [vmem:[#allocation3 + $0x90] sm:$0xff] %vm1720, %v1661
      %1740 = vst.msk [vmem:[#allocation3 + $0x98] sm:$0xff] %vm1720, %v1663
      %1741 = vst.msk [vmem:[#allocation3 + $0xa0] sm:$0xff] %vm1720, %v1665
      %1742 = vst.msk [vmem:[#allocation3 + $0xa8] sm:$0xff] %vm1720, %v1667
      %1743 = vst.msk [vmem:[#allocation3 + $0xb0] sm:$0xff] %vm1720, %v1669
      %1744 = vst.msk [vmem:[#allocation3 + $0xb8] sm:$0xff] %vm1720, %v1671
      %1745 = vst.msk [vmem:[#allocation3 + $0xc0] sm:$0xff] %vm1720, %v1673
      %1746 = vst.msk [vmem:[#allocation3 + $0xc8] sm:$0xff] %vm1720, %v1675
      %1747 = vst.msk [vmem:[#allocation3 + $0xd0] sm:$0xff] %vm1720, %v1677
      %1748 = vst.msk [vmem:[#allocation3 + $0xd8] sm:$0xff] %vm1720, %v1679
      %1749 = vst.msk [vmem:[#allocation3 + $0xe0] sm:$0xff] %vm1720, %v1681
      %1750 = vst.msk [vmem:[#allocation3 + $0xe8] sm:$0xff] %vm1720, %v1683
      %1751 = vst.msk [vmem:[#allocation3 + $0xf0] sm:$0xff] %vm1720, %v1685
      %1752 = vst.msk [vmem:[#allocation3 + $0xf8] sm:$0xff] %vm1720, %v1687
      %v1753 = vld [vmem:[%s1366 + $0x2] sm:$0xff]
      %v1754 = vld [vmem:[%s1366 + $0xa] sm:$0xff]
      %v1755 = vld [vmem:[%s1366 + $0x1a] sm:$0xff]
      %v1756 = vld [vmem:[%s1366 + $0x22] sm:$0xff]
      %v1757 = vld [vmem:[%s1366 + $0x32] sm:$0xff]
      %v1758 = vld [vmem:[%s1366 + $0x3a] sm:$0xff]
      %v1759 = vld [vmem:[%s1366 + $0x4a] sm:$0xff]
      %v1760 = vld [vmem:[%s1366 + $0x52] sm:$0xff]
      %v1761 = vld [vmem:[%s1366 + $0x62] sm:$0xff]
      %v1762 = vld [vmem:[%s1366 + $0x6a] sm:$0xff]
      %v1763 = vld [vmem:[%s1366 + $0x7a] sm:$0xff]
      %v1764 = vld [vmem:[%s1366 + $0x82] sm:$0xff]
      %v1765 = vld [vmem:[%s1366 + $0x92] sm:$0xff]
      %v1766 = vld [vmem:[%s1366 + $0x9a] sm:$0xff]
      %v1767 = vld [vmem:[%s1366 + $0xaa] sm:$0xff]
      %v1768 = vld [vmem:[%s1366 + $0xb2] sm:$0xff]
      %v1769 = vld [vmem:[%s1366 + $0xc2] sm:$0xff]
      %v1770 = vld [vmem:[%s1366 + $0xca] sm:$0xff]
      %v1771 = vld [vmem:[%s1366 + $0xda] sm:$0xff]
      %v1772 = vld [vmem:[%s1366 + $0xe2] sm:$0xff]
      %v1773 = vld [vmem:[%s1366 + $0xf2] sm:$0xff]
      %v1774 = vld [vmem:[%s1366 + $0xfa] sm:$0xff]
      %v1775 = vld [vmem:[%s1366 + $0x10a] sm:$0xff]
      %v1776 = vld [vmem:[%s1366 + $0x112] sm:$0xff]
      %v1777 = vld [vmem:[%s1366 + $0x122] sm:$0xff]
      %v1778 = vld [vmem:[%s1366 + $0x12a] sm:$0xff]
      %v1779 = vld [vmem:[%s1366 + $0x13a] sm:$0xff]
      %v1780 = vld [vmem:[%s1366 + $0x142] sm:$0xff]
      %v1781 = vld [vmem:[%s1366 + $0x152] sm:$0xff]
      %v1782 = vld [vmem:[%s1366 + $0x15a] sm:$0xff]
      %v1783 = vld [vmem:[%s1366 + $0x16a] sm:$0xff]
      %v1784 = vld [vmem:[%s1366 + $0x172] sm:$0xff]
      %1817 = vrot.lane.b32.xlu0 %v1753, 72
      %v1818 = vpop.permute.xlu0 %1817
      %1819 = vrot.lane.b32.xlu0 %v1754, 72
      %v1820 = vpop.permute.xlu0 %1819
      %1821 = vrot.lane.b32.xlu0 %v1755, 72
      %v1822 = vpop.permute.xlu0 %1821
      %1823 = vrot.lane.b32.xlu0 %v1756, 72
      %v1824 = vpop.permute.xlu0 %1823
      %1825 = vrot.lane.b32.xlu0 %v1757, 72
      %v1826 = vpop.permute.xlu0 %1825
      %1827 = vrot.lane.b32.xlu0 %v1758, 72
      %v1828 = vpop.permute.xlu0 %1827
      %1829 = vrot.lane.b32.xlu0 %v1759, 72
      %v1830 = vpop.permute.xlu0 %1829
      %1831 = vrot.lane.b32.xlu0 %v1760, 72
      %v1832 = vpop.permute.xlu0 %1831
      %1833 = vrot.lane.b32.xlu0 %v1761, 72
      %v1834 = vpop.permute.xlu0 %1833
      %1835 = vrot.lane.b32.xlu0 %v1762, 72
      %v1836 = vpop.permute.xlu0 %1835
      %1837 = vrot.lane.b32.xlu0 %v1763, 72
      %v1838 = vpop.permute.xlu0 %1837
      %1839 = vrot.lane.b32.xlu0 %v1764, 72
      %v1840 = vpop.permute.xlu0 %1839
      %1841 = vrot.lane.b32.xlu0 %v1765, 72
      %v1842 = vpop.permute.xlu0 %1841
      %1843 = vrot.lane.b32.xlu0 %v1766, 72
      %v1844 = vpop.permute.xlu0 %1843
      %1845 = vrot.lane.b32.xlu0 %v1767, 72
      %v1846 = vpop.permute.xlu0 %1845
      %1847 = vrot.lane.b32.xlu0 %v1768, 72
      %v1848 = vpop.permute.xlu0 %1847
      %1849 = vrot.lane.b32.xlu0 %v1769, 72
      %v1850 = vpop.permute.xlu0 %1849
      %1851 = vrot.lane.b32.xlu0 %v1770, 72
      %v1852 = vpop.permute.xlu0 %1851
      %1853 = vrot.lane.b32.xlu0 %v1771, 72
      %v1854 = vpop.permute.xlu0 %1853
      %1855 = vrot.lane.b32.xlu0 %v1772, 72
      %v1856 = vpop.permute.xlu0 %1855
      %1857 = vrot.lane.b32.xlu0 %v1773, 72
      %v1858 = vpop.permute.xlu0 %1857
      %1859 = vrot.lane.b32.xlu0 %v1774, 72
      %v1860 = vpop.permute.xlu0 %1859
      %1861 = vrot.lane.b32.xlu0 %v1775, 72
      %v1862 = vpop.permute.xlu0 %1861
      %1863 = vrot.lane.b32.xlu0 %v1776, 72
      %v1864 = vpop.permute.xlu0 %1863
      %1865 = vrot.lane.b32.xlu0 %v1777, 72
      %v1866 = vpop.permute.xlu0 %1865
      %1867 = vrot.lane.b32.xlu0 %v1778, 72
      %v1868 = vpop.permute.xlu0 %1867
      %1869 = vrot.lane.b32.xlu0 %v1779, 72
      %v1870 = vpop.permute.xlu0 %1869
      %1871 = vrot.lane.b32.xlu0 %v1780, 72
      %v1872 = vpop.permute.xlu0 %1871
      %1873 = vrot.lane.b32.xlu0 %v1781, 72
      %v1874 = vpop.permute.xlu0 %1873
      %1875 = vrot.lane.b32.xlu0 %v1782, 72
      %v1876 = vpop.permute.xlu0 %1875
      %1877 = vrot.lane.b32.xlu0 %v1783, 72
      %v1878 = vpop.permute.xlu0 %1877
      %1879 = vrot.lane.b32.xlu0 %v1784, 72
      %v1880 = vpop.permute.xlu0 %1879
      %vm1913 = vcmask 663104
      %1914 = vst.msk [vmem:[#allocation3] sm:$0xff] %vm1913, %v1818
      %1915 = vst.msk [vmem:[#allocation3 + $0x8] sm:$0xff] %vm1913, %v1820
      %1916 = vst.msk [vmem:[#allocation3 + $0x10] sm:$0xff] %vm1913, %v1822
      %1917 = vst.msk [vmem:[#allocation3 + $0x18] sm:$0xff] %vm1913, %v1824
      %1918 = vst.msk [vmem:[#allocation3 + $0x20] sm:$0xff] %vm1913, %v1826
      %1919 = vst.msk [vmem:[#allocation3 + $0x28] sm:$0xff] %vm1913, %v1828
      %1920 = vst.msk [vmem:[#allocation3 + $0x30] sm:$0xff] %vm1913, %v1830
      %1921 = vst.msk [vmem:[#allocation3 + $0x38] sm:$0xff] %vm1913, %v1832
      %1922 = vst.msk [vmem:[#allocation3 + $0x40] sm:$0xff] %vm1913, %v1834
      %1923 = vst.msk [vmem:[#allocation3 + $0x48] sm:$0xff] %vm1913, %v1836
      %1924 = vst.msk [vmem:[#allocation3 + $0x50] sm:$0xff] %vm1913, %v1838
      %1925 = vst.msk [vmem:[#allocation3 + $0x58] sm:$0xff] %vm1913, %v1840
      %1926 = vst.msk [vmem:[#allocation3 + $0x60] sm:$0xff] %vm1913, %v1842
      %1927 = vst.msk [vmem:[#allocation3 + $0x68] sm:$0xff] %vm1913, %v1844
      %1928 = vst.msk [vmem:[#allocation3 + $0x70] sm:$0xff] %vm1913, %v1846
      %1929 = vst.msk [vmem:[#allocation3 + $0x78] sm:$0xff] %vm1913, %v1848
      %1930 = vst.msk [vmem:[#allocation3 + $0x80] sm:$0xff] %vm1913, %v1850
      %1931 = vst.msk [vmem:[#allocation3 + $0x88] sm:$0xff] %vm1913, %v1852
      %1932 = vst.msk [vmem:[#allocation3 + $0x90] sm:$0xff] %vm1913, %v1854
      %1933 = vst.msk [vmem:[#allocation3 + $0x98] sm:$0xff] %vm1913, %v1856
      %1934 = vst.msk [vmem:[#allocation3 + $0xa0] sm:$0xff] %vm1913, %v1858
      %1935 = vst.msk [vmem:[#allocation3 + $0xa8] sm:$0xff] %vm1913, %v1860
      %1936 = vst.msk [vmem:[#allocation3 + $0xb0] sm:$0xff] %vm1913, %v1862
      %1937 = vst.msk [vmem:[#allocation3 + $0xb8] sm:$0xff] %vm1913, %v1864
      %1938 = vst.msk [vmem:[#allocation3 + $0xc0] sm:$0xff] %vm1913, %v1866
      %1939 = vst.msk [vmem:[#allocation3 + $0xc8] sm:$0xff] %vm1913, %v1868
      %1940 = vst.msk [vmem:[#allocation3 + $0xd0] sm:$0xff] %vm1913, %v1870
      %1941 = vst.msk [vmem:[#allocation3 + $0xd8] sm:$0xff] %vm1913, %v1872
      %1942 = vst.msk [vmem:[#allocation3 + $0xe0] sm:$0xff] %vm1913, %v1874
      %1943 = vst.msk [vmem:[#allocation3 + $0xe8] sm:$0xff] %vm1913, %v1876
      %1944 = vst.msk [vmem:[#allocation3 + $0xf0] sm:$0xff] %vm1913, %v1878
      %1945 = vst.msk [vmem:[#allocation3 + $0xf8] sm:$0xff] %vm1913, %v1880
      %v1946 = vld [vmem:[#allocation3] sm:$0xff]
      %v1947 = vld [vmem:[#allocation3 + $0x8] sm:$0xff]
      %v1948 = vld [vmem:[#allocation3 + $0x10] sm:$0xff]
      %v1949 = vld [vmem:[#allocation3 + $0x18] sm:$0xff]
      %v1950 = vld [vmem:[#allocation3 + $0x20] sm:$0xff]
      %v1951 = vld [vmem:[#allocation3 + $0x28] sm:$0xff]
      %v1952 = vld [vmem:[#allocation3 + $0x30] sm:$0xff]
      %v1953 = vld [vmem:[#allocation3 + $0x38] sm:$0xff]
      %v1954 = vld [vmem:[#allocation3 + $0x40] sm:$0xff]
      %v1955 = vld [vmem:[#allocation3 + $0x48] sm:$0xff]
      %v1956 = vld [vmem:[#allocation3 + $0x50] sm:$0xff]
      %v1957 = vld [vmem:[#allocation3 + $0x58] sm:$0xff]
      %v1958 = vld [vmem:[#allocation3 + $0x60] sm:$0xff]
      %v1959 = vld [vmem:[#allocation3 + $0x68] sm:$0xff]
      %v1960 = vld [vmem:[#allocation3 + $0x70] sm:$0xff]
      %v1961 = vld [vmem:[#allocation3 + $0x78] sm:$0xff]
      %v1962 = vld [vmem:[#allocation3 + $0x80] sm:$0xff]
      %v1963 = vld [vmem:[#allocation3 + $0x88] sm:$0xff]
      %v1964 = vld [vmem:[#allocation3 + $0x90] sm:$0xff]
      %v1965 = vld [vmem:[#allocation3 + $0x98] sm:$0xff]
      %v1966 = vld [vmem:[#allocation3 + $0xa0] sm:$0xff]
      %v1967 = vld [vmem:[#allocation3 + $0xa8] sm:$0xff]
      %v1968 = vld [vmem:[#allocation3 + $0xb0] sm:$0xff]
      %v1969 = vld [vmem:[#allocation3 + $0xb8] sm:$0xff]
      %v1970 = vld [vmem:[#allocation3 + $0xc0] sm:$0xff]
      %v1971 = vld [vmem:[#allocation3 + $0xc8] sm:$0xff]
      %v1972 = vld [vmem:[#allocation3 + $0xd0] sm:$0xff]
      %v1973 = vld [vmem:[#allocation3 + $0xd8] sm:$0xff]
      %v1974 = vld [vmem:[#allocation3 + $0xe0] sm:$0xff]
      %v1975 = vld [vmem:[#allocation3 + $0xe8] sm:$0xff]
      %v1976 = vld [vmem:[#allocation3 + $0xf0] sm:$0xff]
      %v1977 = vld [vmem:[#allocation3 + $0xf8] sm:$0xff]
      %v1978 = vld [vmem:[%s1] sm:$0xff]
      %v1979 = vld [vmem:[%s1 + $0x8] sm:$0xff]
      %v1980 = vld [vmem:[%s1 + $0x10] sm:$0xff]
      %v1981 = vld [vmem:[%s1 + $0x18] sm:$0xff]
      %v1982 = vld [vmem:[%s1 + $0x20] sm:$0xff]
      %v1983 = vld [vmem:[%s1 + $0x28] sm:$0xff]
      %v1984 = vld [vmem:[%s1 + $0x30] sm:$0xff]
      %v1985 = vld [vmem:[%s1 + $0x38] sm:$0xff]
      %v1986 = vld [vmem:[%s1 + $0x40] sm:$0xff]
      %v1987 = vld [vmem:[%s1 + $0x48] sm:$0xff]
      %v1988 = vld [vmem:[%s1 + $0x50] sm:$0x1]
      %vm1989 = vcmask 662528
      %v1991 = vsel %vm1989, %v1946, 0
      %v1994 = vsel %vm1989, %v1947, 0
      %v1997 = vsel %vm1989, %v1948, 0
      %v2000 = vsel %vm1989, %v1949, 0
      %v2003 = vsel %vm1989, %v1950, 0
      %v2006 = vsel %vm1989, %v1951, 0
      %v2009 = vsel %vm1989, %v1952, 0
      %v2012 = vsel %vm1989, %v1953, 0
      %v2015 = vsel %vm1989, %v1954, 0
      %v2018 = vsel %vm1989, %v1955, 0
      %v2021 = vsel %vm1989, %v1956, 0
      %v2024 = vsel %vm1989, %v1957, 0
      %v2027 = vsel %vm1989, %v1958, 0
      %v2030 = vsel %vm1989, %v1959, 0
      %v2033 = vsel %vm1989, %v1960, 0
      %v2036 = vsel %vm1989, %v1961, 0
      %v2039 = vsel %vm1989, %v1962, 0
      %v2042 = vsel %vm1989, %v1963, 0
      %v2045 = vsel %vm1989, %v1964, 0
      %v2048 = vsel %vm1989, %v1965, 0
      %v2051 = vsel %vm1989, %v1966, 0
      %v2054 = vsel %vm1989, %v1967, 0
      %v2057 = vsel %vm1989, %v1968, 0
      %v2060 = vsel %vm1989, %v1969, 0
      %v2063 = vsel %vm1989, %v1970, 0
      %v2066 = vsel %vm1989, %v1971, 0
      %v2069 = vsel %vm1989, %v1972, 0
      %v2072 = vsel %vm1989, %v1973, 0
      %v2075 = vsel %vm1989, %v1974, 0
      %v2078 = vsel %vm1989, %v1975, 0
      %v2081 = vsel %vm1989, %v1976, 0
      %v2084 = vsel %vm1989, %v1977, 0
      %vm2086 = vcmask 1040384
      %v2088 = vsel %vm2086, %v1988, 0
      %2090 = vmatprep.subr.mxu0 0.0
      %2091 = vmatpush1.msra.mxu0 0.0
      %2092 = vmatprep.subr.mxu0 0.0
      %2093 = vmatpush1.msra.mxu0 0.0
      %2094 = vmatprep.subr.mxu0 0.0
      %2095 = vmatpush1.msra.mxu0 0.0
      %2096 = vmatprep.subr.mxu0 0.0
      %2097 = vmatpush1.msra.mxu0 0.0
      %2098 = vmatprep.subr.mxu0 0.0
      %2099 = vmatpush1.msra.mxu0 0.0
      %2100 = vmatprep.subr.mxu0 0.0
      %2101 = vmatpush1.msra.mxu0 %v2088
      %2102 = vmatprep.subr.mxu0 0.0
      %2103 = vmatpush1.msra.mxu0 %v1987
      %2104 = vmatprep.subr.mxu0 0.0
      %2105 = vmatpush1.msra.mxu0 %v1986
      %2106 = vmatprep.subr.mxu0 0.0
      %2107 = vmatpush1.msra.mxu0 %v1985
      %2108 = vmatprep.subr.mxu0 0.0
      %2109 = vmatpush1.msra.mxu0 %v1984
      %2110 = vmatprep.subr.mxu0 0.0
      %2111 = vmatpush1.msra.mxu0 %v1983
      %2112 = vmatprep.subr.mxu0 0.0
      %2113 = vmatpush1.msra.mxu0 %v1982
      %2114 = vmatprep.subr.mxu0 0.0
      %2115 = vmatpush1.msra.mxu0 %v1981
      %2116 = vmatprep.subr.mxu0 0.0
      %2117 = vmatpush1.msra.mxu0 %v1980
      %2118 = vmatprep.subr.mxu0 0.0
      %2119 = vmatpush1.msra.mxu0 %v1979
      %2120 = vmatprep.subr.mxu0 0.0
      %2121 = vmatpush1.msra.mxu0 %v1978
      %2122 = vmatprep.subr.mxu0 0.0
      %2123 = vmatpush2.msra.mxu0 0.0
      %2124 = vmatprep.subr.mxu0 0.0
      %2125 = vmatpush2.msra.mxu0 0.0
      %2126 = vmatprep.subr.mxu0 0.0
      %2127 = vmatpush2.msra.mxu0 0.0
      %2128 = vmatprep.subr.mxu0 0.0
      %2129 = vmatpush2.msra.mxu0 0.0
      %2130 = vmatprep.subr.mxu0 0.0
      %2131 = vmatpush2.msra.mxu0 0.0
      %2132 = vmatprep.subr.mxu0 0.0
      %2133 = vmatpush2.msra.mxu0 0.0
      %2134 = vmatprep.subr.mxu0 0.0
      %2135 = vmatpush2.msra.mxu0 0.0
      %2136 = vmatprep.subr.mxu0 0.0
      %2137 = vmatpush2.msra.mxu0 0.0
      %2138 = vmatprep.subr.mxu0 0.0
      %2139 = vmatpush2.msra.mxu0 0.0
      %2140 = vmatprep.subr.mxu0 0.0
      %2141 = vmatpush2.msra.mxu0 0.0
      %2142 = vmatprep.subr.mxu0 0.0
      %2143 = vmatpush2.msra.mxu0 0.0
      %2144 = vmatprep.subr.mxu0 0.0
      %2145 = vmatpush2.msra.mxu0 0.0
      %2146 = vmatprep.subr.mxu0 0.0
      %2147 = vmatpush2.msra.mxu0 0.0
      %2148 = vmatprep.subr.mxu0 0.0
      %2149 = vmatpush2.msra.mxu0 0.0
      %2150 = vmatprep.subr.mxu0 0.0
      %2151 = vmatpush2.msra.mxu0 0.0
      %2152 = vmatprep.subr.mxu0 0.0
      %2153 = vmatpush2.msra.mxu0 0.0
      %2154 = vmatprep.mubr.f32.mxu0 0.0
      %2155 = vmatmul.mubr.f32.gmra.mxu0 %v1991
      %v2156 = vpop.f32.mrf.mxu0
      %v2157 = vadd.f32 0.0, %v2156
      %v2158 = vpop.f32.mrf.mxu0
      %2159 = vmatprep.mubr.f32.mxu0 0.0
      %2160 = vmatmul.mubr.f32.gmra.mxu0 %v1994
      %v2161 = vpop.f32.mrf.mxu0
      %v2162 = vadd.f32 0.0, %v2161
      %v2163 = vpop.f32.mrf.mxu0
      %2164 = vmatprep.mubr.f32.mxu0 0.0
      %2165 = vmatmul.mubr.f32.gmra.mxu0 %v1997
      %v2166 = vpop.f32.mrf.mxu0
      %v2167 = vadd.f32 0.0, %v2166
      %v2168 = vpop.f32.mrf.mxu0
      %2169 = vmatprep.mubr.f32.mxu0 0.0
      %2170 = vmatmul.mubr.f32.gmra.mxu0 %v2000
      %v2171 = vpop.f32.mrf.mxu0
      %v2172 = vadd.f32 0.0, %v2171
      %v2173 = vpop.f32.mrf.mxu0
      %2174 = vmatprep.mubr.f32.mxu0 0.0
      %2175 = vmatmul.mubr.f32.gmra.mxu0 %v2003
      %v2176 = vpop.f32.mrf.mxu0
      %v2177 = vadd.f32 0.0, %v2176
      %v2178 = vpop.f32.mrf.mxu0
      %2179 = vmatprep.mubr.f32.mxu0 0.0
      %2180 = vmatmul.mubr.f32.gmra.mxu0 %v2006
      %v2181 = vpop.f32.mrf.mxu0
      %v2182 = vadd.f32 0.0, %v2181
      %v2183 = vpop.f32.mrf.mxu0
      %2184 = vmatprep.mubr.f32.mxu0 0.0
      %2185 = vmatmul.mubr.f32.gmra.mxu0 %v2009
      %v2186 = vpop.f32.mrf.mxu0
      %v2187 = vadd.f32 0.0, %v2186
      %v2188 = vpop.f32.mrf.mxu0
      %2189 = vmatprep.mubr.f32.mxu0 0.0
      %2190 = vmatmul.mubr.f32.gmra.mxu0 %v2012
      %v2191 = vpop.f32.mrf.mxu0
      %v2192 = vadd.f32 0.0, %v2191
      %v2193 = vpop.f32.mrf.mxu0
      %2194 = vmatprep.mubr.f32.mxu0 0.0
      %2195 = vmatmul.mubr.f32.gmra.mxu0 %v2015
      %v2196 = vpop.f32.mrf.mxu0
      %v2197 = vadd.f32 0.0, %v2196
      %v2198 = vpop.f32.mrf.mxu0
      %2199 = vmatprep.mubr.f32.mxu0 0.0
      %2200 = vmatmul.mubr.f32.gmra.mxu0 %v2018
      %v2201 = vpop.f32.mrf.mxu0
      %v2202 = vadd.f32 0.0, %v2201
      %v2203 = vpop.f32.mrf.mxu0
      %2204 = vmatprep.mubr.f32.mxu0 0.0
      %2205 = vmatmul.mubr.f32.gmra.mxu0 %v2021
      %v2206 = vpop.f32.mrf.mxu0
      %v2207 = vadd.f32 0.0, %v2206
      %v2208 = vpop.f32.mrf.mxu0
      %2209 = vmatprep.mubr.f32.mxu0 0.0
      %2210 = vmatmul.mubr.f32.gmra.mxu0 %v2024
      %v2211 = vpop.f32.mrf.mxu0
      %v2212 = vadd.f32 0.0, %v2211
      %v2213 = vpop.f32.mrf.mxu0
      %2214 = vmatprep.mubr.f32.mxu0 0.0
      %2215 = vmatmul.mubr.f32.gmra.mxu0 %v2027
      %v2216 = vpop.f32.mrf.mxu0
      %v2217 = vadd.f32 0.0, %v2216
      %v2218 = vpop.f32.mrf.mxu0
      %2219 = vmatprep.mubr.f32.mxu0 0.0
      %2220 = vmatmul.mubr.f32.gmra.mxu0 %v2030
      %v2221 = vpop.f32.mrf.mxu0
      %v2222 = vadd.f32 0.0, %v2221
      %v2223 = vpop.f32.mrf.mxu0
      %2224 = vmatprep.mubr.f32.mxu0 0.0
      %2225 = vmatmul.mubr.f32.gmra.mxu0 %v2033
      %v2226 = vpop.f32.mrf.mxu0
      %v2227 = vadd.f32 0.0, %v2226
      %v2228 = vpop.f32.mrf.mxu0
      %2229 = vmatprep.mubr.f32.mxu0 0.0
      %2230 = vmatmul.mubr.f32.gmra.mxu0 %v2036
      %v2231 = vpop.f32.mrf.mxu0
      %v2232 = vadd.f32 0.0, %v2231
      %v2233 = vpop.f32.mrf.mxu0
      %2234 = vmatprep.mubr.f32.mxu0 0.0
      %2235 = vmatmul.mubr.f32.gmra.mxu0 %v2039
      %v2236 = vpop.f32.mrf.mxu0
      %v2237 = vadd.f32 0.0, %v2236
      %v2238 = vpop.f32.mrf.mxu0
      %2239 = vmatprep.mubr.f32.mxu0 0.0
      %2240 = vmatmul.mubr.f32.gmra.mxu0 %v2042
      %v2241 = vpop.f32.mrf.mxu0
      %v2242 = vadd.f32 0.0, %v2241
      %v2243 = vpop.f32.mrf.mxu0
      %2244 = vmatprep.mubr.f32.mxu0 0.0
      %2245 = vmatmul.mubr.f32.gmra.mxu0 %v2045
      %v2246 = vpop.f32.mrf.mxu0
      %v2247 = vadd.f32 0.0, %v2246
      %v2248 = vpop.f32.mrf.mxu0
      %2249 = vmatprep.mubr.f32.mxu0 0.0
      %2250 = vmatmul.mubr.f32.gmra.mxu0 %v2048
      %v2251 = vpop.f32.mrf.mxu0
      %v2252 = vadd.f32 0.0, %v2251
      %v2253 = vpop.f32.mrf.mxu0
      %2254 = vmatprep.mubr.f32.mxu0 0.0
      %2255 = vmatmul.mubr.f32.gmra.mxu0 %v2051
      %v2256 = vpop.f32.mrf.mxu0
      %v2257 = vadd.f32 0.0, %v2256
      %v2258 = vpop.f32.mrf.mxu0
      %2259 = vmatprep.mubr.f32.mxu0 0.0
      %2260 = vmatmul.mubr.f32.gmra.mxu0 %v2054
      %v2261 = vpop.f32.mrf.mxu0
      %v2262 = vadd.f32 0.0, %v2261
      %v2263 = vpop.f32.mrf.mxu0
      %2264 = vmatprep.mubr.f32.mxu0 0.0
      %2265 = vmatmul.mubr.f32.gmra.mxu0 %v2057
      %v2266 = vpop.f32.mrf.mxu0
      %v2267 = vadd.f32 0.0, %v2266
      %v2268 = vpop.f32.mrf.mxu0
      %2269 = vmatprep.mubr.f32.mxu0 0.0
      %2270 = vmatmul.mubr.f32.gmra.mxu0 %v2060
      %v2271 = vpop.f32.mrf.mxu0
      %v2272 = vadd.f32 0.0, %v2271
      %v2273 = vpop.f32.mrf.mxu0
      %2274 = vmatprep.mubr.f32.mxu0 0.0
      %2275 = vmatmul.mubr.f32.gmra.mxu0 %v2063
      %v2276 = vpop.f32.mrf.mxu0
      %v2277 = vadd.f32 0.0, %v2276
      %v2278 = vpop.f32.mrf.mxu0
      %2279 = vmatprep.mubr.f32.mxu0 0.0
      %2280 = vmatmul.mubr.f32.gmra.mxu0 %v2066
      %v2281 = vpop.f32.mrf.mxu0
      %v2282 = vadd.f32 0.0, %v2281
      %v2283 = vpop.f32.mrf.mxu0
      %2284 = vmatprep.mubr.f32.mxu0 0.0
      %2285 = vmatmul.mubr.f32.gmra.mxu0 %v2069
      %v2286 = vpop.f32.mrf.mxu0
      %v2287 = vadd.f32 0.0, %v2286
      %v2288 = vpop.f32.mrf.mxu0
      %2289 = vmatprep.mubr.f32.mxu0 0.0
      %2290 = vmatmul.mubr.f32.gmra.mxu0 %v2072
      %v2291 = vpop.f32.mrf.mxu0
      %v2292 = vadd.f32 0.0, %v2291
      %v2293 = vpop.f32.mrf.mxu0
      %2294 = vmatprep.mubr.f32.mxu0 0.0
      %2295 = vmatmul.mubr.f32.gmra.mxu0 %v2075
      %v2296 = vpop.f32.mrf.mxu0
      %v2297 = vadd.f32 0.0, %v2296
      %v2298 = vpop.f32.mrf.mxu0
      %2299 = vmatprep.mubr.f32.mxu0 0.0
      %2300 = vmatmul.mubr.f32.gmra.mxu0 %v2078
      %v2301 = vpop.f32.mrf.mxu0
      %v2302 = vadd.f32 0.0, %v2301
      %v2303 = vpop.f32.mrf.mxu0
      %2304 = vmatprep.mubr.f32.mxu0 0.0
      %2305 = vmatmul.mubr.f32.gmra.mxu0 %v2081
      %v2306 = vpop.f32.mrf.mxu0
      %v2307 = vadd.f32 0.0, %v2306
      %v2308 = vpop.f32.mrf.mxu0
      %2309 = vmatprep.mubr.f32.mxu0 0.0
      %2310 = vmatmul.mubr.f32.gmra.mxu0 %v2084
      %v2311 = vpop.f32.mrf.mxu0
      %v2312 = vadd.f32 0.0, %v2311
      %v2313 = vpop.f32.mrf.mxu0
      %2314 = vdwg.mxu0
      %vm2315 = vcmask 130048
      %2316 = vst.msk [vmem:[%s177] sm:$0xff] %vm2315, %v2157
      %2317 = vst.msk [vmem:[%s177 + $0x8] sm:$0xff] %vm2315, %v2162
      %2318 = vst.msk [vmem:[%s177 + $0x10] sm:$0xff] %vm2315, %v2167
      %2319 = vst.msk [vmem:[%s177 + $0x18] sm:$0xff] %vm2315, %v2172
      %2320 = vst.msk [vmem:[%s177 + $0x20] sm:$0xff] %vm2315, %v2177
      %2321 = vst.msk [vmem:[%s177 + $0x28] sm:$0xff] %vm2315, %v2182
      %2322 = vst.msk [vmem:[%s177 + $0x30] sm:$0xff] %vm2315, %v2187
      %2323 = vst.msk [vmem:[%s177 + $0x38] sm:$0xff] %vm2315, %v2192
      %2324 = vst.msk [vmem:[%s177 + $0x40] sm:$0xff] %vm2315, %v2197
      %2325 = vst.msk [vmem:[%s177 + $0x48] sm:$0xff] %vm2315, %v2202
      %2326 = vst.msk [vmem:[%s177 + $0x50] sm:$0xff] %vm2315, %v2207
      %2327 = vst.msk [vmem:[%s177 + $0x58] sm:$0xff] %vm2315, %v2212
      %2328 = vst.msk [vmem:[%s177 + $0x60] sm:$0xff] %vm2315, %v2217
      %2329 = vst.msk [vmem:[%s177 + $0x68] sm:$0xff] %vm2315, %v2222
      %2330 = vst.msk [vmem:[%s177 + $0x70] sm:$0xff] %vm2315, %v2227
      %2331 = vst.msk [vmem:[%s177 + $0x78] sm:$0xff] %vm2315, %v2232
      %2332 = vst.msk [vmem:[%s177 + $0x80] sm:$0xff] %vm2315, %v2237
      %2333 = vst.msk [vmem:[%s177 + $0x88] sm:$0xff] %vm2315, %v2242
      %2334 = vst.msk [vmem:[%s177 + $0x90] sm:$0xff] %vm2315, %v2247
      %2335 = vst.msk [vmem:[%s177 + $0x98] sm:$0xff] %vm2315, %v2252
      %2336 = vst.msk [vmem:[%s177 + $0xa0] sm:$0xff] %vm2315, %v2257
      %2337 = vst.msk [vmem:[%s177 + $0xa8] sm:$0xff] %vm2315, %v2262
      %2338 = vst.msk [vmem:[%s177 + $0xb0] sm:$0xff] %vm2315, %v2267
      %2339 = vst.msk [vmem:[%s177 + $0xb8] sm:$0xff] %vm2315, %v2272
      %2340 = vst.msk [vmem:[%s177 + $0xc0] sm:$0xff] %vm2315, %v2277
      %2341 = vst.msk [vmem:[%s177 + $0xc8] sm:$0xff] %vm2315, %v2282
      %2342 = vst.msk [vmem:[%s177 + $0xd0] sm:$0xff] %vm2315, %v2287
      %2343 = vst.msk [vmem:[%s177 + $0xd8] sm:$0xff] %vm2315, %v2292
      %2344 = vst.msk [vmem:[%s177 + $0xe0] sm:$0xff] %vm2315, %v2297
      %2345 = vst.msk [vmem:[%s177 + $0xe8] sm:$0xff] %vm2315, %v2302
      %2346 = vst.msk [vmem:[%s177 + $0xf0] sm:$0xff] %vm2315, %v2307
      %2347 = vst.msk [vmem:[%s177 + $0xf8] sm:$0xff] %vm2315, %v2312
      %v2348 = vsel %vm2315, %v2157, 0.0
      %v2349 = vsel %vm2315, %v2162, 0.0
      %v2350 = vadd.f32 %v2348, %v2349
      %v2351 = vsel %vm2315, %v2167, 0.0
      %v2352 = vadd.f32 %v2350, %v2351
      %v2353 = vsel %vm2315, %v2172, 0.0
      %v2354 = vadd.f32 %v2352, %v2353
      %v2355 = vsel %vm2315, %v2177, 0.0
      %v2356 = vadd.f32 %v2354, %v2355
      %v2357 = vsel %vm2315, %v2182, 0.0
      %v2358 = vadd.f32 %v2356, %v2357
      %v2359 = vsel %vm2315, %v2187, 0.0
      %v2360 = vadd.f32 %v2358, %v2359
      %v2361 = vsel %vm2315, %v2192, 0.0
      %v2362 = vadd.f32 %v2360, %v2361
      %v2363 = vsel %vm2315, %v2197, 0.0
      %v2364 = vadd.f32 %v2362, %v2363
      %v2365 = vsel %vm2315, %v2202, 0.0
      %v2366 = vadd.f32 %v2364, %v2365
      %v2367 = vsel %vm2315, %v2207, 0.0
      %v2368 = vadd.f32 %v2366, %v2367
      %v2369 = vsel %vm2315, %v2212, 0.0
      %v2370 = vadd.f32 %v2368, %v2369
      %v2371 = vsel %vm2315, %v2217, 0.0
      %v2372 = vadd.f32 %v2370, %v2371
      %v2373 = vsel %vm2315, %v2222, 0.0
      %v2374 = vadd.f32 %v2372, %v2373
      %v2375 = vsel %vm2315, %v2227, 0.0
      %v2376 = vadd.f32 %v2374, %v2375
      %v2377 = vsel %vm2315, %v2232, 0.0
      %v2378 = vadd.f32 %v2376, %v2377
      %v2379 = vsel %vm2315, %v2237, 0.0
      %v2380 = vadd.f32 %v2378, %v2379
      %v2381 = vsel %vm2315, %v2242, 0.0
      %v2382 = vadd.f32 %v2380, %v2381
      %v2383 = vsel %vm2315, %v2247, 0.0
      %v2384 = vadd.f32 %v2382, %v2383
      %v2385 = vsel %vm2315, %v2252, 0.0
      %v2386 = vadd.f32 %v2384, %v2385
      %v2387 = vsel %vm2315, %v2257, 0.0
      %v2388 = vadd.f32 %v2386, %v2387
      %v2389 = vsel %vm2315, %v2262, 0.0
      %v2390 = vadd.f32 %v2388, %v2389
      %v2391 = vsel %vm2315, %v2267, 0.0
      %v2392 = vadd.f32 %v2390, %v2391
      %v2393 = vsel %vm2315, %v2272, 0.0
      %v2394 = vadd.f32 %v2392, %v2393
      %v2395 = vsel %vm2315, %v2277, 0.0
      %v2396 = vadd.f32 %v2394, %v2395
      %v2397 = vsel %vm2315, %v2282, 0.0
      %v2398 = vadd.f32 %v2396, %v2397
      %v2399 = vsel %vm2315, %v2287, 0.0
      %v2400 = vadd.f32 %v2398, %v2399
      %v2401 = vsel %vm2315, %v2292, 0.0
      %v2402 = vadd.f32 %v2400, %v2401
      %v2403 = vsel %vm2315, %v2297, 0.0
      %v2404 = vadd.f32 %v2402, %v2403
      %v2405 = vsel %vm2315, %v2302, 0.0
      %v2406 = vadd.f32 %v2404, %v2405
      %v2407 = vsel %vm2315, %v2307, 0.0
      %v2408 = vadd.f32 %v2406, %v2407
      %v2409 = vsel %vm2315, %v2312, 0.0
      %v2410 = vadd.f32 %v2408, %v2409
      %v2411 = vrot.slane %v2410, 4
      %v2412 = vadd.f32 %v2410, %v2411
      %v2413 = vrot.slane %v2412, 2
      %v2414 = vadd.f32 %v2412, %v2413
      %v2415 = vrot.slane %v2414, 1
      %v2416 = vadd.f32 %v2414, %v2415
      %v2417 = vmul.f32 %v2157, %v2157
      %v2418 = vmul.f32 %v2162, %v2162
      %v2419 = vmul.f32 %v2167, %v2167
      %v2420 = vmul.f32 %v2172, %v2172
      %v2421 = vmul.f32 %v2177, %v2177
      %v2422 = vmul.f32 %v2182, %v2182
      %v2423 = vmul.f32 %v2187, %v2187
      %v2424 = vmul.f32 %v2192, %v2192
      %v2425 = vmul.f32 %v2197, %v2197
      %v2426 = vmul.f32 %v2202, %v2202
      %v2427 = vmul.f32 %v2207, %v2207
      %v2428 = vmul.f32 %v2212, %v2212
      %v2429 = vmul.f32 %v2217, %v2217
      %v2430 = vmul.f32 %v2222, %v2222
      %v2431 = vmul.f32 %v2227, %v2227
      %v2432 = vmul.f32 %v2232, %v2232
      %v2433 = vmul.f32 %v2237, %v2237
      %v2434 = vmul.f32 %v2242, %v2242
      %v2435 = vmul.f32 %v2247, %v2247
      %v2436 = vmul.f32 %v2252, %v2252
      %v2437 = vmul.f32 %v2257, %v2257
      %v2438 = vmul.f32 %v2262, %v2262
      %v2439 = vmul.f32 %v2267, %v2267
      %v2440 = vmul.f32 %v2272, %v2272
      %v2441 = vmul.f32 %v2277, %v2277
      %v2442 = vmul.f32 %v2282, %v2282
      %v2443 = vmul.f32 %v2287, %v2287
      %v2444 = vmul.f32 %v2292, %v2292
      %v2445 = vmul.f32 %v2297, %v2297
      %v2446 = vmul.f32 %v2302, %v2302
      %v2447 = vmul.f32 %v2307, %v2307
      %v2448 = vmul.f32 %v2312, %v2312
      %v2449 = vsel %vm2315, %v2417, 0.0
      %v2450 = vsel %vm2315, %v2418, 0.0
      %v2451 = vadd.f32 %v2449, %v2450
      %v2452 = vsel %vm2315, %v2419, 0.0
      %v2453 = vadd.f32 %v2451, %v2452
      %v2454 = vsel %vm2315, %v2420, 0.0
      %v2455 = vadd.f32 %v2453, %v2454
      %v2456 = vsel %vm2315, %v2421, 0.0
      %v2457 = vadd.f32 %v2455, %v2456
      %v2458 = vsel %vm2315, %v2422, 0.0
      %v2459 = vadd.f32 %v2457, %v2458
      %v2460 = vsel %vm2315, %v2423, 0.0
      %v2461 = vadd.f32 %v2459, %v2460
      %v2462 = vsel %vm2315, %v2424, 0.0
      %v2463 = vadd.f32 %v2461, %v2462
      %v2464 = vsel %vm2315, %v2425, 0.0
      %v2465 = vadd.f32 %v2463, %v2464
      %v2466 = vsel %vm2315, %v2426, 0.0
      %v2467 = vadd.f32 %v2465, %v2466
      %v2468 = vsel %vm2315, %v2427, 0.0
      %v2469 = vadd.f32 %v2467, %v2468
      %v2470 = vsel %vm2315, %v2428, 0.0
      %v2471 = vadd.f32 %v2469, %v2470
      %v2472 = vsel %vm2315, %v2429, 0.0
      %v2473 = vadd.f32 %v2471, %v2472
      %v2474 = vsel %vm2315, %v2430, 0.0
      %v2475 = vadd.f32 %v2473, %v2474
      %v2476 = vsel %vm2315, %v2431, 0.0
      %v2477 = vadd.f32 %v2475, %v2476
      %v2478 = vsel %vm2315, %v2432, 0.0
      %v2479 = vadd.f32 %v2477, %v2478
      %v2480 = vsel %vm2315, %v2433, 0.0
      %v2481 = vadd.f32 %v2479, %v2480
      %v2482 = vsel %vm2315, %v2434, 0.0
      %v2483 = vadd.f32 %v2481, %v2482
      %v2484 = vsel %vm2315, %v2435, 0.0
      %v2485 = vadd.f32 %v2483, %v2484
      %v2486 = vsel %vm2315, %v2436, 0.0
      %v2487 = vadd.f32 %v2485, %v2486
      %v2488 = vsel %vm2315, %v2437, 0.0
      %v2489 = vadd.f32 %v2487, %v2488
      %v2490 = vsel %vm2315, %v2438, 0.0
      %v2491 = vadd.f32 %v2489, %v2490
      %v2492 = vsel %vm2315, %v2439, 0.0
      %v2493 = vadd.f32 %v2491, %v2492
      %v2494 = vsel %vm2315, %v2440, 0.0
      %v2495 = vadd.f32 %v2493, %v2494
      %v2496 = vsel %vm2315, %v2441, 0.0
      %v2497 = vadd.f32 %v2495, %v2496
      %v2498 = vsel %vm2315, %v2442, 0.0
      %v2499 = vadd.f32 %v2497, %v2498
      %v2500 = vsel %vm2315, %v2443, 0.0
      %v2501 = vadd.f32 %v2499, %v2500
      %v2502 = vsel %vm2315, %v2444, 0.0
      %v2503 = vadd.f32 %v2501, %v2502
      %v2504 = vsel %vm2315, %v2445, 0.0
      %v2505 = vadd.f32 %v2503, %v2504
      %v2506 = vsel %vm2315, %v2446, 0.0
      %v2507 = vadd.f32 %v2505, %v2506
      %v2508 = vsel %vm2315, %v2447, 0.0
      %v2509 = vadd.f32 %v2507, %v2508
      %v2510 = vsel %vm2315, %v2448, 0.0
      %v2511 = vadd.f32 %v2509, %v2510
      %v2512 = vrot.slane %v2511, 4
      %v2513 = vadd.f32 %v2511, %v2512
      %v2514 = vrot.slane %v2513, 2
      %v2515 = vadd.f32 %v2513, %v2514
      %v2516 = vrot.slane %v2515, 1
      %v2517 = vadd.f32 %v2515, %v2516
      %v2518 = vsel %vm2086, %v2416, %v2517
      %vm2519 = vcmask 123904
      %2520 = vst.msk [vmem:[%s181] sm:$0x3] %vm2519, %v2518
      %p2521 = scmp.lt.s32.totalorder %s15, 1
      %s2522 = scalar_select %p2521, %s15, 1
      %s2523 = smul.addr %s2522, 32
      %s2524 = smul.addr %s2523, 8
      %s2525 = scalar_lea.vmem %s2, %s2524
      %p2526 = scmp.lt.s32.totalorder %s15, 1
      %s2527 = scalar_select %p2526, %s15, 1
      %s2528 = smul.addr %s2527, 2
      %s2529 = scalar_lea.vmem %s3, %s2528
      // Predicated region
      $region29: #{stack_decoder_forward.3} parent=27 // pred_check
        %p2530 = pneg %p80
      $region30: #{stack_decoder_forward.3} parent=27 // pred_check_branch
        %2532 = sbr.rel (%p2530) target = $region32
      $region31: #{stack_decoder_forward.3} parent=27 // pred_region
        _
      $region32: #{stack_decoder_forward.3} parent=27 // pred_fallthru
        _
      // Predicated region
      $region33: #{stack_decoder_forward.3} parent=27 // pred_check
        %p2533 = pneg %p106
      $region34: #{stack_decoder_forward.3} parent=27 // pred_check_branch
        %2535 = sbr.rel (%p2533) target = $region36
      $region35: #{stack_decoder_forward.3} parent=27 // pred_region
        _
      $region36: #{stack_decoder_forward.3} parent=27 // pred_fallthru
        _
    $region28: #{stack_decoder_forward.3} parent=5 // pred_fallthru
      _
    %p2536 = scmp.le.s32.totalorder 2, %s10
    // Predicated region
    $region37: #{stack_decoder_forward.3} parent=5 // pred_check
      %p2537 = pneg %p2536
    $region38: #{stack_decoder_forward.3} parent=5 // pred_check_branch
      %2539 = sbr.rel (%p2537) target = $region40
    $region39: #{stack_decoder_forward.3} parent=5 // pred_region
      %s2540 = ssub.s32 %s10, 2
      // Predicated region
      $region41: #{stack_decoder_forward.3} parent=39 // pred_check
        %p2541 = pneg %p86
      $region42: #{stack_decoder_forward.3} parent=39 // pred_check_branch
        %2543 = sbr.rel (%p2541) target = $region44
      $region43: #{stack_decoder_forward.3} parent=39 // pred_region
        %p2544 = scmp.lt.s32.totalorder %s16, 1
        %s2545 = scalar_select %p2544, %s16, 1
        %s2546 = smul.addr %s2545, 32
        %s2547 = smul.addr %s2546, 8
        %s2548 = scalar_lea.vmem %s2, %s2547
      $region44: #{stack_decoder_forward.3} parent=39 // pred_fallthru
        _
      // Predicated region
      $region45: #{stack_decoder_forward.3} parent=39 // pred_check
        %p2549 = pneg %p112
      $region46: #{stack_decoder_forward.3} parent=39 // pred_check_branch
        %2551 = sbr.rel (%p2549) target = $region48
      $region47: #{stack_decoder_forward.3} parent=39 // pred_region
        %p2552 = scmp.lt.s32.totalorder %s16, 1
        %s2553 = scalar_select %p2552, %s16, 1
        %s2554 = smul.addr %s2553, 2
        %s2555 = scalar_lea.vmem %s3, %s2554
      $region48: #{stack_decoder_forward.3} parent=39 // pred_fallthru
        _
    $region40: #{stack_decoder_forward.3} parent=5 // pred_fallthru
      _
  $region6: #{stack_decoder_forward.3} parent=0 // loop_footer
    %s14 = sadd.s32 1, %s10
  $region7: #{stack_decoder_forward.3} parent=0 // loop_footer_branch
    %9 = sbr.rel target = $region3
  $region8: #{stack_decoder_forward.3} parent=0 // loop_exit
    _

// kernel: stack_decoder_forward.4
$region0: #{stack_decoder_forward.4}
  #allocation0 [shape = 'u32[]', space=smem, size = 0x4, offset = 0x4, fixed_abs, tag = 'smem constant byte address 0x4 - core index']
  #allocation1 [shape = 'u32[144,128]{1,0:T(1,128)}', space=vmem, size = 0x12000, scoped, tag = 'internal scratch']
  #allocation2 [shape = 'f32[4,18,18,4]{3,2,1,0:T(8,128)}', space=vmem, size = 0xd8000, scoped, tag = 'scratch operand']
  #allocation3 [shape = 'f32[256,64]{1,0:T(8,128)}', space=vmem, size = 0x20000, scoped, tag = 'scratch operand']
  %s0 = inlined_call_operand.vmem [shape: f32[2,256,16], index: 0, kind: input, shape index: {}]
  %s1 = inlined_call_operand.vmem [shape: f32[1,16], index: 1, kind: input, shape index: {}]
  %s2 = inlined_call_operand.vmem [shape: f32[1,16], index: 2, kind: input, shape index: {}]
  %s3 = inlined_call_operand.vmem [shape: f32[64,16], index: 3, kind: input, shape index: {}]
  %s4 = inlined_call_operand.vmem [shape: f32[2,256,16], index: 4, kind: output, shape index: {0}]
  %s5 = inlined_call_operand.vmem [shape: f32[2,2,16], index: 5, kind: output, shape index: {1}]
  %6 = xla_tuple %s4, %s5
  %s7 = sld [smem:[#allocation0]]
  $region57: #{stack_decoder_forward.4} parent=0
    _
  %s9 = ssub.s32 1, %s7
  %s10 = scalar_select 0, %s9, %s7
  loop: start=0, step=1, limit=4
  $region2: #{stack_decoder_forward.4} parent=0 // loop_pre_header
    _
  $region3: #{stack_decoder_forward.4} parent=0 // loop_header
    %s12 = sphi 0, %s16
    %p13 = scmp.ge.s32.totalorder %s12, 4
    %s22 = sphi 0, %s24
    %s25 = sphi 0, %s22
    %s26 = sphi 0, %s25
    %s42 = sphi 0, %s26
    %s46 = sphi 0, %s46
    %s48 = sphi 0, %s46
    %s49 = sphi 0, %s48
    %s63 = sphi 0, %s49
    %s67 = sphi 0, %s67
    %s69 = sphi 0, %s67
    %s70 = sphi 0, %s69
    %s84 = sphi 0, %s70
    %s88 = sphi 0, %s88
    %s90 = sphi 0, %s88
    %s91 = sphi 0, %s90
    %s105 = sphi 0, %s91
    %s111 = sphi 0, %s113
    %s114 = sphi 0, %s111
    %s115 = sphi 0, %s114
    %s131 = sphi 0, %s115
    %s137 = sphi 0, %s139
    %s140 = sphi 0, %s137
    %s141 = sphi 0, %s140
    %s157 = sphi 0, %s141
  $region4: #{stack_decoder_forward.4} parent=0 // loop_header_branch
    %15 = sbr.rel (%p13) target = $region8
  $region5: #{stack_decoder_forward.4} parent=0 // loop_body
    %s17 = ssub.s32 %s12, 1
    %s18 = ssub.s32 %s12, 2
    %s19 = sadd.s32 %s12, 1
    %s20 = ssub.s32 %s12, %s19
    %p21 = scmp.eq.s32.totalorder %s20, 0
    %s23 = sadd.s32 %s22, 1
    %s24 = scalar_select %p21, %s22, %s23
    %p27 = pneg %p21
    %p28 = scmp.eq.s32.totalorder %s12, 1
    %p29 = por %p27, %p28
    %p30 = scmp.ne.s32.totalorder %s22, %s25
    %p31 = scmp.eq.s32.totalorder %s12, 0
    %p32 = por %p30, %p31
    %p33 = scmp.ne.s32.totalorder %s22, %s25
    %p34 = scmp.eq.s32.totalorder %s17, 1
    %p35 = por %p33, %p34
    %p36 = scmp.ne.s32.totalorder %s25, %s26
    %p37 = scmp.eq.s32.totalorder %s17, 0
    %p38 = por %p36, %p37
    %p39 = scmp.ne.s32.totalorder %s25, %s26
    %p40 = scmp.eq.s32.totalorder %s18, 1
    %p41 = por %p39, %p40
    %p43 = scmp.ne.s32.totalorder %s26, %s42
    %p44 = scmp.eq.s32.totalorder %s18, 0
    %p45 = por %p43, %p44
    %s47 = sadd.s32 %s46, 1
    %p50 = scmp.eq.s32.totalorder %s12, 1
    %p51 = scmp.ne.s32.totalorder %s46, %s48
    %p52 = scmp.eq.s32.totalorder %s12, 0
    %p53 = por %p51, %p52
    %p54 = scmp.ne.s32.totalorder %s46, %s48
    %p55 = scmp.eq.s32.totalorder %s17, 1
    %p56 = por %p54, %p55
    %p57 = scmp.ne.s32.totalorder %s48, %s49
    %p58 = scmp.eq.s32.totalorder %s17, 0
    %p59 = por %p57, %p58
    %p60 = scmp.ne.s32.totalorder %s48, %s49
    %p61 = scmp.eq.s32.totalorder %s18, 1
    %p62 = por %p60, %p61
    %p64 = scmp.ne.s32.totalorder %s49, %s63
    %p65 = scmp.eq.s32.totalorder %s18, 0
    %p66 = por %p64, %p65
    %s68 = sadd.s32 %s67, 1
    %p71 = scmp.eq.s32.totalorder %s12, 1
    %p72 = scmp.ne.s32.totalorder %s67, %s69
    %p73 = scmp.eq.s32.totalorder %s12, 0
    %p74 = por %p72, %p73
    %p75 = scmp.ne.s32.totalorder %s67, %s69
    %p76 = scmp.eq.s32.totalorder %s17, 1
    %p77 = por %p75, %p76
    %p78 = scmp.ne.s32.totalorder %s69, %s70
    %p79 = scmp.eq.s32.totalorder %s17, 0
    %p80 = por %p78, %p79
    %p81 = scmp.ne.s32.totalorder %s69, %s70
    %p82 = scmp.eq.s32.totalorder %s18, 1
    %p83 = por %p81, %p82
    %p85 = scmp.ne.s32.totalorder %s70, %s84
    %p86 = scmp.eq.s32.totalorder %s18, 0
    %p87 = por %p85, %p86
    %s89 = sadd.s32 %s88, 1
    %p92 = scmp.eq.s32.totalorder %s12, 1
    %p93 = scmp.ne.s32.totalorder %s88, %s90
    %p94 = scmp.eq.s32.totalorder %s12, 0
    %p95 = por %p93, %p94
    %p96 = scmp.ne.s32.totalorder %s88, %s90
    %p97 = scmp.eq.s32.totalorder %s17, 1
    %p98 = por %p96, %p97
    %p99 = scmp.ne.s32.totalorder %s90, %s91
    %p100 = scmp.eq.s32.totalorder %s17, 0
    %p101 = por %p99, %p100
    %p102 = scmp.ne.s32.totalorder %s90, %s91
    %p103 = scmp.eq.s32.totalorder %s18, 1
    %p104 = por %p102, %p103
    %p106 = scmp.ne.s32.totalorder %s91, %s105
    %p107 = scmp.eq.s32.totalorder %s18, 0
    %p108 = por %p106, %p107
    %s109 = ssub.s32 %s12, %s19
    %p110 = scmp.eq.s32.totalorder %s109, 0
    %s112 = sadd.s32 %s111, 1
    %s113 = scalar_select %p110, %s111, %s112
    %p116 = pneg %p110
    %p117 = scmp.eq.s32.totalorder %s12, 1
    %p118 = por %p116, %p117
    %p119 = scmp.ne.s32.totalorder %s111, %s114
    %p120 = scmp.eq.s32.totalorder %s12, 0
    %p121 = por %p119, %p120
    %p122 = scmp.ne.s32.totalorder %s111, %s114
    %p123 = scmp.eq.s32.totalorder %s17, 1
    %p124 = por %p122, %p123
    %p125 = scmp.ne.s32.totalorder %s114, %s115
    %p126 = scmp.eq.s32.totalorder %s17, 0
    %p127 = por %p125, %p126
    %p128 = scmp.ne.s32.totalorder %s114, %s115
    %p129 = scmp.eq.s32.totalorder %s18, 1
    %p130 = por %p128, %p129
    %p132 = scmp.ne.s32.totalorder %s115, %s131
    %p133 = scmp.eq.s32.totalorder %s18, 0
    %p134 = por %p132, %p133
    %s135 = ssub.s32 %s12, %s19
    %p136 = scmp.eq.s32.totalorder %s135, 0
    %s138 = sadd.s32 %s137, 1
    %s139 = scalar_select %p136, %s137, %s138
    %p142 = pneg %p136
    %p143 = scmp.eq.s32.totalorder %s12, 1
    %p144 = por %p142, %p143
    %p145 = scmp.ne.s32.totalorder %s137, %s140
    %p146 = scmp.eq.s32.totalorder %s12, 0
    %p147 = por %p145, %p146
    %p148 = scmp.ne.s32.totalorder %s137, %s140
    %p149 = scmp.eq.s32.totalorder %s17, 1
    %p150 = por %p148, %p149
    %p151 = scmp.ne.s32.totalorder %s140, %s141
    %p152 = scmp.eq.s32.totalorder %s17, 0
    %p153 = por %p151, %p152
    %p154 = scmp.ne.s32.totalorder %s140, %s141
    %p155 = scmp.eq.s32.totalorder %s18, 1
    %p156 = por %p154, %p155
    %p158 = scmp.ne.s32.totalorder %s141, %s157
    %p159 = scmp.eq.s32.totalorder %s18, 0
    %p160 = por %p158, %p159
    %p161 = scmp.le.s32.totalorder 1, %s12
    %p162 = scmp.lt.s32.totalorder %s12, 3
    %p163 = pnand %p161, %p162
    %p164 = pneg %p163
    // Predicated region
    $region9: #{stack_decoder_forward.4} parent=5 // pred_check
      _
    $region10: #{stack_decoder_forward.4} parent=5 // pred_check_branch
      %166 = sbr.rel (%p163) target = $region12
    $region11: #{stack_decoder_forward.4} parent=5 // pred_region
      %s167 = ssub.s32 %s12, 1
      // Predicated region
      $region13: #{stack_decoder_forward.4} parent=11 // pred_check
        %p168 = pneg %p59
      $region14: #{stack_decoder_forward.4} parent=11 // pred_check_branch
        %170 = sbr.rel (%p168) target = $region16
      $region15: #{stack_decoder_forward.4} parent=11 // pred_region
        _
      $region16: #{stack_decoder_forward.4} parent=11 // pred_fallthru
        _
      // Predicated region
      $region17: #{stack_decoder_forward.4} parent=11 // pred_check
        %p171 = pneg %p80
      $region18: #{stack_decoder_forward.4} parent=11 // pred_check_branch
        %173 = sbr.rel (%p171) target = $region20
      $region19: #{stack_decoder_forward.4} parent=11 // pred_region
        _
      $region20: #{stack_decoder_forward.4} parent=11 // pred_fallthru
        _
      // Predicated region
      $region21: #{stack_decoder_forward.4} parent=11 // pred_check
        %p174 = pneg %p101
      $region22: #{stack_decoder_forward.4} parent=11 // pred_check_branch
        %176 = sbr.rel (%p174) target = $region24
      $region23: #{stack_decoder_forward.4} parent=11 // pred_region
        _
      $region24: #{stack_decoder_forward.4} parent=11 // pred_fallthru
        _
    $region12: #{stack_decoder_forward.4} parent=5 // pred_fallthru
      _
    %p177 = scmp.lt.s32.totalorder %s12, 2
    // Predicated region
    $region25: #{stack_decoder_forward.4} parent=5 // pred_check
      %p178 = pneg %p177
    $region26: #{stack_decoder_forward.4} parent=5 // pred_check_branch
      %180 = sbr.rel (%p178) target = $region28
    $region27: #{stack_decoder_forward.4} parent=5 // pred_region
      // Predicated region
      $region29: #{stack_decoder_forward.4} parent=27 // pred_check
        %p181 = pneg %p32
      $region30: #{stack_decoder_forward.4} parent=27 // pred_check_branch
        %183 = sbr.rel (%p181) target = $region32
      $region31: #{stack_decoder_forward.4} parent=27 // pred_region
        %p184 = scmp.lt.s32.totalorder %s12, 1
        %s185 = scalar_select %p184, %s12, 1
        %s186 = smul.addr %s185, 32
        %s187 = smul.addr %s186, 8
        %s188 = scalar_lea.vmem %s0, %s187
      $region32: #{stack_decoder_forward.4} parent=27 // pred_fallthru
        _
    $region28: #{stack_decoder_forward.4} parent=5 // pred_fallthru
      _
    %p189 = scmp.le.s32.totalorder 1, %s12
    %p190 = scmp.lt.s32.totalorder %s12, 3
    %p191 = pnand %p189, %p190
    %p192 = pneg %p191
    // Predicated region
    $region33: #{stack_decoder_forward.4} parent=5 // pred_check
      _
    $region34: #{stack_decoder_forward.4} parent=5 // pred_check_branch
      %194 = sbr.rel (%p191) target = $region36
    $region35: #{stack_decoder_forward.4} parent=5 // pred_region
      %s195 = ssub.s32 %s12, 1
      %p196 = scmp.lt.s32.totalorder %s17, 1
      %s197 = scalar_select %p196, %s17, 1
      %s198 = smul.addr %s197, 32
      %s199 = smul.addr %s198, 8
      %s200 = scalar_lea.vmem %s0, %s199
      %p201 = pneg %p38
      %p202 = pneg %p35
      %p203 = pneg %p59
      %p204 = pneg %p56
      %p205 = pneg %p80
      %p206 = pneg %p77
      %p207 = pneg %p101
      %p208 = pneg %p98
      %p209 = pneg %p127
      %p210 = pneg %p124
      %p211 = scmp.lt.s32.totalorder %s17, 1
      %s212 = scalar_select %p211, %s17, 1
      %s213 = smul.addr %s212, 32
      %s214 = smul.addr %s213, 8
      %s215 = scalar_lea.vmem %s4, %s214
      %p216 = pneg %p153
      %p217 = pneg %p150
      %p218 = scmp.lt.s32.totalorder %s17, 1
      %s219 = scalar_select %p218, %s17, 1
      %s220 = smul.addr %s219, 2
      %s221 = scalar_lea.vmem %s5, %s220
      %p222 = scmp.lt.s32.totalorder %s17, 1
      %s223 = scalar_select %p222, %s17, 1
      %s224 = smul.addr %s223, 32
      %s225 = smul.addr %s224, 8
      %s226 = scalar_lea.vmem %s0, %s225
      %p227 = scmp.lt.s32.totalorder %s17, 1
      %s228 = scalar_select %p227, %s17, 1
      %s229 = smul.addr %s228, 32
      %s230 = smul.addr %s229, 8
      %s231 = scalar_lea.vmem %s4, %s230
      %p232 = scmp.lt.s32.totalorder %s17, 1
      %s233 = scalar_select %p232, %s17, 1
      %s234 = smul.addr %s233, 2
      %s235 = scalar_lea.vmem %s5, %s234
      %v236 = vld [vmem:[%s226] sm:$0xff]
      %v237 = vld [vmem:[%s226 + $0x8] sm:$0xff]
      %v238 = vld [vmem:[%s226 + $0x10] sm:$0xff]
      %v239 = vld [vmem:[%s226 + $0x18] sm:$0xff]
      %v240 = vld [vmem:[%s226 + $0x20] sm:$0xff]
      %v241 = vld [vmem:[%s226 + $0x28] sm:$0xff]
      %v242 = vld [vmem:[%s226 + $0x30] sm:$0xff]
      %v243 = vld [vmem:[%s226 + $0x38] sm:$0xff]
      %v244 = vld [vmem:[%s226 + $0x40] sm:$0xff]
      %v245 = vld [vmem:[%s226 + $0x48] sm:$0xff]
      %v246 = vld [vmem:[%s226 + $0x50] sm:$0xff]
      %v247 = vld [vmem:[%s226 + $0x58] sm:$0xff]
      %v248 = vld [vmem:[%s226 + $0x60] sm:$0xff]
      %v249 = vld [vmem:[%s226 + $0x68] sm:$0xff]
      %v250 = vld [vmem:[%s226 + $0x70] sm:$0xff]
      %v251 = vld [vmem:[%s226 + $0x78] sm:$0xff]
      %v252 = vld [vmem:[%s226 + $0x80] sm:$0xff]
      %v253 = vld [vmem:[%s226 + $0x88] sm:$0xff]
      %v254 = vld [vmem:[%s226 + $0x90] sm:$0xff]
      %v255 = vld [vmem:[%s226 + $0x98] sm:$0xff]
      %v256 = vld [vmem:[%s226 + $0xa0] sm:$0xff]
      %v257 = vld [vmem:[%s226 + $0xa8] sm:$0xff]
      %v258 = vld [vmem:[%s226 + $0xb0] sm:$0xff]
      %v259 = vld [vmem:[%s226 + $0xb8] sm:$0xff]
      %v260 = vld [vmem:[%s226 + $0xc0] sm:$0xff]
      %v261 = vld [vmem:[%s226 + $0xc8] sm:$0xff]
      %v262 = vld [vmem:[%s226 + $0xd0] sm:$0xff]
      %v263 = vld [vmem:[%s226 + $0xd8] sm:$0xff]
      %v264 = vld [vmem:[%s226 + $0xe0] sm:$0xff]
      %v265 = vld [vmem:[%s226 + $0xe8] sm:$0xff]
      %v266 = vld [vmem:[%s226 + $0xf0] sm:$0xff]
      %v267 = vld [vmem:[%s226 + $0xf8] sm:$0xff]
      %v268 = vld [vmem:[%s1] sm:$0x1]
      %v270 = vlaneseq
      %v271 = vshrl.u32 %v270, 7
      %v272 = vsub.s32 0, %v271
      %v273 = vrot.slane %v268, %v272
      %v275 = vmul.f32 %v236, %v273
      %v276 = vmul.f32 %v237, %v273
      %v277 = vmul.f32 %v238, %v273
      %v278 = vmul.f32 %v239, %v273
      %v279 = vmul.f32 %v240, %v273
      %v280 = vmul.f32 %v241, %v273
      %v281 = vmul.f32 %v242, %v273
      %v282 = vmul.f32 %v243, %v273
      %v283 = vmul.f32 %v244, %v273
      %v284 = vmul.f32 %v245, %v273
      %v285 = vmul.f32 %v246, %v273
      %v286 = vmul.f32 %v247, %v273
      %v287 = vmul.f32 %v248, %v273
      %v288 = vmul.f32 %v249, %v273
      %v289 = vmul.f32 %v250, %v273
      %v290 = vmul.f32 %v251, %v273
      %v291 = vmul.f32 %v252, %v273
      %v292 = vmul.f32 %v253, %v273
      %v293 = vmul.f32 %v254, %v273
      %v294 = vmul.f32 %v255, %v273
      %v295 = vmul.f32 %v256, %v273
      %v296 = vmul.f32 %v257, %v273
      %v297 = vmul.f32 %v258, %v273
      %v298 = vmul.f32 %v259, %v273
      %v299 = vmul.f32 %v260, %v273
      %v300 = vmul.f32 %v261, %v273
      %v301 = vmul.f32 %v262, %v273
      %v302 = vmul.f32 %v263, %v273
      %v303 = vmul.f32 %v264, %v273
      %v304 = vmul.f32 %v265, %v273
      %v305 = vmul.f32 %v266, %v273
      %v306 = vmul.f32 %v267, %v273
      %v307 = vld [vmem:[%s2] sm:$0x1]
      %v309 = vlaneseq
      %v310 = vshrl.u32 %v309, 7
      %v311 = vsub.s32 0, %v310
      %v312 = vrot.slane %v307, %v311
      %v314 = vadd.f32 %v275, %v312
      %v315 = vadd.f32 %v276, %v312
      %v316 = vadd.f32 %v277, %v312
      %v317 = vadd.f32 %v278, %v312
      %v318 = vadd.f32 %v279, %v312
      %v319 = vadd.f32 %v280, %v312
      %v320 = vadd.f32 %v281, %v312
      %v321 = vadd.f32 %v282, %v312
      %v322 = vadd.f32 %v283, %v312
      %v323 = vadd.f32 %v284, %v312
      %v324 = vadd.f32 %v285, %v312
      %v325 = vadd.f32 %v286, %v312
      %v326 = vadd.f32 %v287, %v312
      %v327 = vadd.f32 %v288, %v312
      %v328 = vadd.f32 %v289, %v312
      %v329 = vadd.f32 %v290, %v312
      %v330 = vadd.f32 %v291, %v312
      %v331 = vadd.f32 %v292, %v312
      %v332 = vadd.f32 %v293, %v312
      %v333 = vadd.f32 %v294, %v312
      %v334 = vadd.f32 %v295, %v312
      %v335 = vadd.f32 %v296, %v312
      %v336 = vadd.f32 %v297, %v312
      %v337 = vadd.f32 %v298, %v312
      %v338 = vadd.f32 %v299, %v312
      %v339 = vadd.f32 %v300, %v312
      %v340 = vadd.f32 %v301, %v312
      %v341 = vadd.f32 %v302, %v312
      %v342 = vadd.f32 %v303, %v312
      %v343 = vadd.f32 %v304, %v312
      %v344 = vadd.f32 %v305, %v312
      %v345 = vadd.f32 %v306, %v312
      %v346 = vmax.f32 %v314, 0.0
      %v347 = vmax.f32 %v315, 0.0
      %v348 = vmax.f32 %v316, 0.0
      %v349 = vmax.f32 %v317, 0.0
      %v350 = vmax.f32 %v318, 0.0
      %v351 = vmax.f32 %v319, 0.0
      %v352 = vmax.f32 %v320, 0.0
      %v353 = vmax.f32 %v321, 0.0
      %v354 = vmax.f32 %v322, 0.0
      %v355 = vmax.f32 %v323, 0.0
      %v356 = vmax.f32 %v324, 0.0
      %v357 = vmax.f32 %v325, 0.0
      %v358 = vmax.f32 %v326, 0.0
      %v359 = vmax.f32 %v327, 0.0
      %v360 = vmax.f32 %v328, 0.0
      %v361 = vmax.f32 %v329, 0.0
      %v362 = vmax.f32 %v330, 0.0
      %v363 = vmax.f32 %v331, 0.0
      %v364 = vmax.f32 %v332, 0.0
      %v365 = vmax.f32 %v333, 0.0
      %v366 = vmax.f32 %v334, 0.0
      %v367 = vmax.f32 %v335, 0.0
      %v368 = vmax.f32 %v336, 0.0
      %v369 = vmax.f32 %v337, 0.0
      %v370 = vmax.f32 %v338, 0.0
      %v371 = vmax.f32 %v339, 0.0
      %v372 = vmax.f32 %v340, 0.0
      %v373 = vmax.f32 %v341, 0.0
      %v374 = vmax.f32 %v342, 0.0
      %v375 = vmax.f32 %v343, 0.0
      %v376 = vmax.f32 %v344, 0.0
      %v377 = vmax.f32 %v345, 0.0
      %vm378 = vcmask 31744
      %379 = vst.msk [vmem:[#allocation2] sm:$0xff] %vm378, 0.0
      %380 = vst.msk [vmem:[#allocation2 + $0x8] sm:$0xff] %vm378, 0.0
      %vm381 = vcmask 25600
      %382 = vst.msk [vmem:[#allocation2 + $0x10] sm:$0x3] %vm381, 0.0
      %383 = vst.msk [vmem:[#allocation2 + $0x18] sm:$0xff] %vm378, 0.0
      %384 = vst.msk [vmem:[#allocation2 + $0x20] sm:$0xff] %vm378, 0.0
      %385 = vst.msk [vmem:[#allocation2 + $0x28] sm:$0x3] %vm381, 0.0
      %386 = vst.msk [vmem:[#allocation2 + $0x30] sm:$0xff] %vm378, 0.0
      %387 = vst.msk [vmem:[#allocation2 + $0x38] sm:$0xff] %vm378, 0.0
      %388 = vst.msk [vmem:[#allocation2 + $0x40] sm:$0x3] %vm381, 0.0
      %389 = vst.msk [vmem:[#allocation2 + $0x48] sm:$0xff] %vm378, 0.0
      %390 = vst.msk [vmem:[#allocation2 + $0x50] sm:$0xff] %vm378, 0.0
      %391 = vst.msk [vmem:[#allocation2 + $0x58] sm:$0x3] %vm381, 0.0
      %392 = vst.msk [vmem:[#allocation2 + $0x60] sm:$0xff] %vm378, 0.0
      %393 = vst.msk [vmem:[#allocation2 + $0x68] sm:$0xff] %vm378, 0.0
      %394 = vst.msk [vmem:[#allocation2 + $0x70] sm:$0x3] %vm381, 0.0
      %395 = vst.msk [vmem:[#allocation2 + $0x78] sm:$0xff] %vm378, 0.0
      %396 = vst.msk [vmem:[#allocation2 + $0x80] sm:$0xff] %vm378, 0.0
      %397 = vst.msk [vmem:[#allocation2 + $0x88] sm:$0x3] %vm381, 0.0
      %398 = vst.msk [vmem:[#allocation2 + $0x90] sm:$0xff] %vm378, 0.0
      %399 = vst.msk [vmem:[#allocation2 + $0x98] sm:$0xff] %vm378, 0.0
      %400 = vst.msk [vmem:[#allocation2 + $0xa0] sm:$0x3] %vm381, 0.0
      %401 = vst.msk [vmem:[#allocation2 + $0xa8] sm:$0xff] %vm378, 0.0
      %402 = vst.msk [vmem:[#allocation2 + $0xb0] sm:$0xff] %vm378, 0.0
      %403 = vst.msk [vmem:[#allocation2 + $0xb8] sm:$0x3] %vm381, 0.0
      %404 = vst.msk [vmem:[#allocation2 + $0xc0] sm:$0xff] %vm378, 0.0
      %405 = vst.msk [vmem:[#allocation2 + $0xc8] sm:$0xff] %vm378, 0.0
      %406 = vst.msk [vmem:[#allocation2 + $0xd0] sm:$0x3] %vm381, 0.0
      %407 = vst.msk [vmem:[#allocation2 + $0xd8] sm:$0xff] %vm378, 0.0
      %408 = vst.msk [vmem:[#allocation2 + $0xe0] sm:$0xff] %vm378, 0.0
      %409 = vst.msk [vmem:[#allocation2 + $0xe8] sm:$0x3] %vm381, 0.0
      %410 = vst.msk [vmem:[#allocation2 + $0xf0] sm:$0xff] %vm378, 0.0
      %411 = vst.msk [vmem:[#allocation2 + $0xf8] sm:$0xff] %vm378, 0.0
      %412 = vst.msk [vmem:[#allocation2 + $0x100] sm:$0x3] %vm381, 0.0
      %413 = vst.msk [vmem:[#allocation2 + $0x108] sm:$0xff] %vm378, 0.0
      %414 = vst.msk [vmem:[#allocation2 + $0x110] sm:$0xff] %vm378, 0.0
      %415 = vst.msk [vmem:[#allocation2 + $0x118] sm:$0x3] %vm381, 0.0
      %416 = vst.msk [vmem:[#allocation2 + $0x120] sm:$0xff] %vm378, 0.0
      %417 = vst.msk [vmem:[#allocation2 + $0x128] sm:$0xff] %vm378, 0.0
      %418 = vst.msk [vmem:[#allocation2 + $0x130] sm:$0x3] %vm381, 0.0
      %419 = vst.msk [vmem:[#allocation2 + $0x138] sm:$0xff] %vm378, 0.0
      %420 = vst.msk [vmem:[#allocation2 + $0x140] sm:$0xff] %vm378, 0.0
      %421 = vst.msk [vmem:[#allocation2 + $0x148] sm:$0x3] %vm381, 0.0
      %422 = vst.msk [vmem:[#allocation2 + $0x150] sm:$0xff] %vm378, 0.0
      %423 = vst.msk [vmem:[#allocation2 + $0x158] sm:$0xff] %vm378, 0.0
      %424 = vst.msk [vmem:[#allocation2 + $0x160] sm:$0x3] %vm381, 0.0
      %425 = vst.msk [vmem:[#allocation2 + $0x168] sm:$0xff] %vm378, 0.0
      %426 = vst.msk [vmem:[#allocation2 + $0x170] sm:$0xff] %vm378, 0.0
      %427 = vst.msk [vmem:[#allocation2 + $0x178] sm:$0x3] %vm381, 0.0
      %428 = vst.msk [vmem:[#allocation2 + $0x180] sm:$0xff] %vm378, 0.0
      %429 = vst.msk [vmem:[#allocation2 + $0x188] sm:$0xff] %vm378, 0.0
      %430 = vst.msk [vmem:[#allocation2 + $0x190] sm:$0x3] %vm381, 0.0
      %431 = vst.msk [vmem:[#allocation2 + $0x198] sm:$0xff] %vm378, 0.0
      %432 = vst.msk [vmem:[#allocation2 + $0x1a0] sm:$0xff] %vm378, 0.0
      %433 = vst.msk [vmem:[#allocation2 + $0x1a8] sm:$0x3] %vm381, 0.0
      %434 = vst.msk [vmem:[#allocation2 + $0x1b0] sm:$0xff] %vm378, 0.0
      %435 = vst.msk [vmem:[#allocation2 + $0x1b8] sm:$0xff] %vm378, 0.0
      %436 = vst.msk [vmem:[#allocation2 + $0x1c0] sm:$0x3] %vm381, 0.0
      %437 = vst.msk [vmem:[#allocation2 + $0x1c8] sm:$0xff] %vm378, 0.0
      %438 = vst.msk [vmem:[#allocation2 + $0x1d0] sm:$0xff] %vm378, 0.0
      %439 = vst.msk [vmem:[#allocation2 + $0x1d8] sm:$0x3] %vm381, 0.0
      %440 = vst.msk [vmem:[#allocation2 + $0x1e0] sm:$0xff] %vm378, 0.0
      %441 = vst.msk [vmem:[#allocation2 + $0x1e8] sm:$0xff] %vm378, 0.0
      %442 = vst.msk [vmem:[#allocation2 + $0x1f0] sm:$0x3] %vm381, 0.0
      %443 = vst.msk [vmem:[#allocation2 + $0x1f8] sm:$0xff] %vm378, 0.0
      %444 = vst.msk [vmem:[#allocation2 + $0x200] sm:$0xff] %vm378, 0.0
      %445 = vst.msk [vmem:[#allocation2 + $0x208] sm:$0x3] %vm381, 0.0
      %446 = vst.msk [vmem:[#allocation2 + $0x210] sm:$0xff] %vm378, 0.0
      %447 = vst.msk [vmem:[#allocation2 + $0x218] sm:$0xff] %vm378, 0.0
      %448 = vst.msk [vmem:[#allocation2 + $0x220] sm:$0x3] %vm381, 0.0
      %449 = vst.msk [vmem:[#allocation2 + $0x228] sm:$0xff] %vm378, 0.0
      %450 = vst.msk [vmem:[#allocation2 + $0x230] sm:$0xff] %vm378, 0.0
      %451 = vst.msk [vmem:[#allocation2 + $0x238] sm:$0x3] %vm381, 0.0
      %452 = vst.msk [vmem:[#allocation2 + $0x240] sm:$0xff] %vm378, 0.0
      %453 = vst.msk [vmem:[#allocation2 + $0x248] sm:$0xff] %vm378, 0.0
      %454 = vst.msk [vmem:[#allocation2 + $0x250] sm:$0x3] %vm381, 0.0
      %455 = vst.msk [vmem:[#allocation2 + $0x258] sm:$0xff] %vm378, 0.0
      %456 = vst.msk [vmem:[#allocation2 + $0x260] sm:$0xff] %vm378, 0.0
      %457 = vst.msk [vmem:[#allocation2 + $0x268] sm:$0x3] %vm381, 0.0
      %458 = vst.msk [vmem:[#allocation2 + $0x270] sm:$0xff] %vm378, 0.0
      %459 = vst.msk [vmem:[#allocation2 + $0x278] sm:$0xff] %vm378, 0.0
      %460 = vst.msk [vmem:[#allocation2 + $0x280] sm:$0x3] %vm381, 0.0
      %461 = vst.msk [vmem:[#allocation2 + $0x288] sm:$0xff] %vm378, 0.0
      %462 = vst.msk [vmem:[#allocation2 + $0x290] sm:$0xff] %vm378, 0.0
      %463 = vst.msk [vmem:[#allocation2 + $0x298] sm:$0x3] %vm381, 0.0
      %464 = vst.msk [vmem:[#allocation2 + $0x2a0] sm:$0xff] %vm378, 0.0
      %465 = vst.msk [vmem:[#allocation2 + $0x2a8] sm:$0xff] %vm378, 0.0
      %466 = vst.msk [vmem:[#allocation2 + $0x2b0] sm:$0x3] %vm381, 0.0
      %467 = vst.msk [vmem:[#allocation2 + $0x2b8] sm:$0xff] %vm378, 0.0
      %468 = vst.msk [vmem:[#allocation2 + $0x2c0] sm:$0xff] %vm378, 0.0
      %469 = vst.msk [vmem:[#allocation2 + $0x2c8] sm:$0x3] %vm381, 0.0
      %470 = vst.msk [vmem:[#allocation2 + $0x2d0] sm:$0xff] %vm378, 0.0
      %471 = vst.msk [vmem:[#allocation2 + $0x2d8] sm:$0xff] %vm378, 0.0
      %472 = vst.msk [vmem:[#allocation2 + $0x2e0] sm:$0x3] %vm381, 0.0
      %473 = vst.msk [vmem:[#allocation2 + $0x2e8] sm:$0xff] %vm378, 0.0
      %474 = vst.msk [vmem:[#allocation2 + $0x2f0] sm:$0xff] %vm378, 0.0
      %475 = vst.msk [vmem:[#allocation2 + $0x2f8] sm:$0x3] %vm381, 0.0
      %476 = vst.msk [vmem:[#allocation2 + $0x300] sm:$0xff] %vm378, 0.0
      %477 = vst.msk [vmem:[#allocation2 + $0x308] sm:$0xff] %vm378, 0.0
      %478 = vst.msk [vmem:[#allocation2 + $0x310] sm:$0x3] %vm381, 0.0
      %479 = vst.msk [vmem:[#allocation2 + $0x318] sm:$0xff] %vm378, 0.0
      %480 = vst.msk [vmem:[#allocation2 + $0x320] sm:$0xff] %vm378, 0.0
      %481 = vst.msk [vmem:[#allocation2 + $0x328] sm:$0x3] %vm381, 0.0
      %482 = vst.msk [vmem:[#allocation2 + $0x330] sm:$0xff] %vm378, 0.0
      %483 = vst.msk [vmem:[#allocation2 + $0x338] sm:$0xff] %vm378, 0.0
      %484 = vst.msk [vmem:[#allocation2 + $0x340] sm:$0x3] %vm381, 0.0
      %485 = vst.msk [vmem:[#allocation2 + $0x348] sm:$0xff] %vm378, 0.0
      %486 = vst.msk [vmem:[#allocation2 + $0x350] sm:$0xff] %vm378, 0.0
      %487 = vst.msk [vmem:[#allocation2 + $0x358] sm:$0x3] %vm381, 0.0
      %488 = vst.msk [vmem:[#allocation2 + $0x360] sm:$0xff] %vm378, 0.0
      %489 = vst.msk [vmem:[#allocation2 + $0x368] sm:$0xff] %vm378, 0.0
      %490 = vst.msk [vmem:[#allocation2 + $0x370] sm:$0x3] %vm381, 0.0
      %491 = vst.msk [vmem:[#allocation2 + $0x378] sm:$0xff] %vm378, 0.0
      %492 = vst.msk [vmem:[#allocation2 + $0x380] sm:$0xff] %vm378, 0.0
      %493 = vst.msk [vmem:[#allocation2 + $0x388] sm:$0x3] %vm381, 0.0
      %494 = vst.msk [vmem:[#allocation2 + $0x390] sm:$0xff] %vm378, 0.0
      %495 = vst.msk [vmem:[#allocation2 + $0x398] sm:$0xff] %vm378, 0.0
      %496 = vst.msk [vmem:[#allocation2 + $0x3a0] sm:$0x3] %vm381, 0.0
      %497 = vst.msk [vmem:[#allocation2 + $0x3a8] sm:$0xff] %vm378, 0.0
      %498 = vst.msk [vmem:[#allocation2 + $0x3b0] sm:$0xff] %vm378, 0.0
      %499 = vst.msk [vmem:[#allocation2 + $0x3b8] sm:$0x3] %vm381, 0.0
      %500 = vst.msk [vmem:[#allocation2 + $0x3c0] sm:$0xff] %vm378, 0.0
      %501 = vst.msk [vmem:[#allocation2 + $0x3c8] sm:$0xff] %vm378, 0.0
      %502 = vst.msk [vmem:[#allocation2 + $0x3d0] sm:$0x3] %vm381, 0.0
      %503 = vst.msk [vmem:[#allocation2 + $0x3d8] sm:$0xff] %vm378, 0.0
      %504 = vst.msk [vmem:[#allocation2 + $0x3e0] sm:$0xff] %vm378, 0.0
      %505 = vst.msk [vmem:[#allocation2 + $0x3e8] sm:$0x3] %vm381, 0.0
      %506 = vst.msk [vmem:[#allocation2 + $0x3f0] sm:$0xff] %vm378, 0.0
      %507 = vst.msk [vmem:[#allocation2 + $0x3f8] sm:$0xff] %vm378, 0.0
      %508 = vst.msk [vmem:[#allocation2 + $0x400] sm:$0x3] %vm381, 0.0
      %509 = vst.msk [vmem:[#allocation2 + $0x408] sm:$0xff] %vm378, 0.0
      %510 = vst.msk [vmem:[#allocation2 + $0x410] sm:$0xff] %vm378, 0.0
      %511 = vst.msk [vmem:[#allocation2 + $0x418] sm:$0x3] %vm381, 0.0
      %512 = vst.msk [vmem:[#allocation2 + $0x420] sm:$0xff] %vm378, 0.0
      %513 = vst.msk [vmem:[#allocation2 + $0x428] sm:$0xff] %vm378, 0.0
      %514 = vst.msk [vmem:[#allocation2 + $0x430] sm:$0x3] %vm381, 0.0
      %515 = vst.msk [vmem:[#allocation2 + $0x438] sm:$0xff] %vm378, 0.0
      %516 = vst.msk [vmem:[#allocation2 + $0x440] sm:$0xff] %vm378, 0.0
      %517 = vst.msk [vmem:[#allocation2 + $0x448] sm:$0x3] %vm381, 0.0
      %518 = vst.msk [vmem:[#allocation2 + $0x450] sm:$0xff] %vm378, 0.0
      %519 = vst.msk [vmem:[#allocation2 + $0x458] sm:$0xff] %vm378, 0.0
      %520 = vst.msk [vmem:[#allocation2 + $0x460] sm:$0x3] %vm381, 0.0
      %521 = vst.msk [vmem:[#allocation2 + $0x468] sm:$0xff] %vm378, 0.0
      %522 = vst.msk [vmem:[#allocation2 + $0x470] sm:$0xff] %vm378, 0.0
      %523 = vst.msk [vmem:[#allocation2 + $0x478] sm:$0x3] %vm381, 0.0
      %524 = vst.msk [vmem:[#allocation2 + $0x480] sm:$0xff] %vm378, 0.0
      %525 = vst.msk [vmem:[#allocation2 + $0x488] sm:$0xff] %vm378, 0.0
      %526 = vst.msk [vmem:[#allocation2 + $0x490] sm:$0x3] %vm381, 0.0
      %527 = vst.msk [vmem:[#allocation2 + $0x498] sm:$0xff] %vm378, 0.0
      %528 = vst.msk [vmem:[#allocation2 + $0x4a0] sm:$0xff] %vm378, 0.0
      %529 = vst.msk [vmem:[#allocation2 + $0x4a8] sm:$0x3] %vm381, 0.0
      %530 = vst.msk [vmem:[#allocation2 + $0x4b0] sm:$0xff] %vm378, 0.0
      %531 = vst.msk [vmem:[#allocation2 + $0x4b8] sm:$0xff] %vm378, 0.0
      %532 = vst.msk [vmem:[#allocation2 + $0x4c0] sm:$0x3] %vm381, 0.0
      %533 = vst.msk [vmem:[#allocation2 + $0x4c8] sm:$0xff] %vm378, 0.0
      %534 = vst.msk [vmem:[#allocation2 + $0x4d0] sm:$0xff] %vm378, 0.0
      %535 = vst.msk [vmem:[#allocation2 + $0x4d8] sm:$0x3] %vm381, 0.0
      %536 = vst.msk [vmem:[#allocation2 + $0x4e0] sm:$0xff] %vm378, 0.0
      %537 = vst.msk [vmem:[#allocation2 + $0x4e8] sm:$0xff] %vm378, 0.0
      %538 = vst.msk [vmem:[#allocation2 + $0x4f0] sm:$0x3] %vm381, 0.0
      %539 = vst.msk [vmem:[#allocation2 + $0x4f8] sm:$0xff] %vm378, 0.0
      %540 = vst.msk [vmem:[#allocation2 + $0x500] sm:$0xff] %vm378, 0.0
      %541 = vst.msk [vmem:[#allocation2 + $0x508] sm:$0x3] %vm381, 0.0
      %542 = vst.msk [vmem:[#allocation2 + $0x510] sm:$0xff] %vm378, 0.0
      %543 = vst.msk [vmem:[#allocation2 + $0x518] sm:$0xff] %vm378, 0.0
      %544 = vst.msk [vmem:[#allocation2 + $0x520] sm:$0x3] %vm381, 0.0
      %545 = vst.msk [vmem:[#allocation2 + $0x528] sm:$0xff] %vm378, 0.0
      %546 = vst.msk [vmem:[#allocation2 + $0x530] sm:$0xff] %vm378, 0.0
      %547 = vst.msk [vmem:[#allocation2 + $0x538] sm:$0x3] %vm381, 0.0
      %548 = vst.msk [vmem:[#allocation2 + $0x540] sm:$0xff] %vm378, 0.0
      %549 = vst.msk [vmem:[#allocation2 + $0x548] sm:$0xff] %vm378, 0.0
      %550 = vst.msk [vmem:[#allocation2 + $0x550] sm:$0x3] %vm381, 0.0
      %551 = vst.msk [vmem:[#allocation2 + $0x558] sm:$0xff] %vm378, 0.0
      %552 = vst.msk [vmem:[#allocation2 + $0x560] sm:$0xff] %vm378, 0.0
      %553 = vst.msk [vmem:[#allocation2 + $0x568] sm:$0x3] %vm381, 0.0
      %554 = vst.msk [vmem:[#allocation2 + $0x570] sm:$0xff] %vm378, 0.0
      %555 = vst.msk [vmem:[#allocation2 + $0x578] sm:$0xff] %vm378, 0.0
      %556 = vst.msk [vmem:[#allocation2 + $0x580] sm:$0x3] %vm381, 0.0
      %557 = vst.msk [vmem:[#allocation2 + $0x588] sm:$0xff] %vm378, 0.0
      %558 = vst.msk [vmem:[#allocation2 + $0x590] sm:$0xff] %vm378, 0.0
      %559 = vst.msk [vmem:[#allocation2 + $0x598] sm:$0x3] %vm381, 0.0
      %560 = vst.msk [vmem:[#allocation2 + $0x5a0] sm:$0xff] %vm378, 0.0
      %561 = vst.msk [vmem:[#allocation2 + $0x5a8] sm:$0xff] %vm378, 0.0
      %562 = vst.msk [vmem:[#allocation2 + $0x5b0] sm:$0x3] %vm381, 0.0
      %563 = vst.msk [vmem:[#allocation2 + $0x5b8] sm:$0xff] %vm378, 0.0
      %564 = vst.msk [vmem:[#allocation2 + $0x5c0] sm:$0xff] %vm378, 0.0
      %565 = vst.msk [vmem:[#allocation2 + $0x5c8] sm:$0x3] %vm381, 0.0
      %566 = vst.msk [vmem:[#allocation2 + $0x5d0] sm:$0xff] %vm378, 0.0
      %567 = vst.msk [vmem:[#allocation2 + $0x5d8] sm:$0xff] %vm378, 0.0
      %568 = vst.msk [vmem:[#allocation2 + $0x5e0] sm:$0x3] %vm381, 0.0
      %569 = vst.msk [vmem:[#allocation2 + $0x5e8] sm:$0xff] %vm378, 0.0
      %570 = vst.msk [vmem:[#allocation2 + $0x5f0] sm:$0xff] %vm378, 0.0
      %571 = vst.msk [vmem:[#allocation2 + $0x5f8] sm:$0x3] %vm381, 0.0
      %572 = vst.msk [vmem:[#allocation2 + $0x600] sm:$0xff] %vm378, 0.0
      %573 = vst.msk [vmem:[#allocation2 + $0x608] sm:$0xff] %vm378, 0.0
      %574 = vst.msk [vmem:[#allocation2 + $0x610] sm:$0x3] %vm381, 0.0
      %575 = vst.msk [vmem:[#allocation2 + $0x618] sm:$0xff] %vm378, 0.0
      %576 = vst.msk [vmem:[#allocation2 + $0x620] sm:$0xff] %vm378, 0.0
      %577 = vst.msk [vmem:[#allocation2 + $0x628] sm:$0x3] %vm381, 0.0
      %578 = vst.msk [vmem:[#allocation2 + $0x630] sm:$0xff] %vm378, 0.0
      %579 = vst.msk [vmem:[#allocation2 + $0x638] sm:$0xff] %vm378, 0.0
      %580 = vst.msk [vmem:[#allocation2 + $0x640] sm:$0x3] %vm381, 0.0
      %581 = vst.msk [vmem:[#allocation2 + $0x648] sm:$0xff] %vm378, 0.0
      %582 = vst.msk [vmem:[#allocation2 + $0x650] sm:$0xff] %vm378, 0.0
      %583 = vst.msk [vmem:[#allocation2 + $0x658] sm:$0x3] %vm381, 0.0
      %584 = vst.msk [vmem:[#allocation2 + $0x660] sm:$0xff] %vm378, 0.0
      %585 = vst.msk [vmem:[#allocation2 + $0x668] sm:$0xff] %vm378, 0.0
      %586 = vst.msk [vmem:[#allocation2 + $0x670] sm:$0x3] %vm381, 0.0
      %587 = vst.msk [vmem:[#allocation2 + $0x678] sm:$0xff] %vm378, 0.0
      %588 = vst.msk [vmem:[#allocation2 + $0x680] sm:$0xff] %vm378, 0.0
      %589 = vst.msk [vmem:[#allocation2 + $0x688] sm:$0x3] %vm381, 0.0
      %590 = vst.msk [vmem:[#allocation2 + $0x690] sm:$0xff] %vm378, 0.0
      %591 = vst.msk [vmem:[#allocation2 + $0x698] sm:$0xff] %vm378, 0.0
      %592 = vst.msk [vmem:[#allocation2 + $0x6a0] sm:$0x3] %vm381, 0.0
      %593 = vst.msk [vmem:[#allocation2 + $0x6a8] sm:$0xff] %vm378, 0.0
      %594 = vst.msk [vmem:[#allocation2 + $0x6b0] sm:$0xff] %vm378, 0.0
      %595 = vst.msk [vmem:[#allocation2 + $0x6b8] sm:$0x3] %vm381, 0.0
      %s596 = scalar_lea.vmem [#allocation2], 24
      %597 = vst.msk [vmem:[%s596 + $0x1] sm:$0xff] %vm378, %v346
      %598 = vst.msk [vmem:[%s596 + $0x9] sm:$0xff] %vm378, %v347
      %599 = vst.msk [vmem:[%s596 + $0x19] sm:$0xff] %vm378, %v348
      %600 = vst.msk [vmem:[%s596 + $0x21] sm:$0xff] %vm378, %v349
      %601 = vst.msk [vmem:[%s596 + $0x31] sm:$0xff] %vm378, %v350
      %602 = vst.msk [vmem:[%s596 + $0x39] sm:$0xff] %vm378, %v351
      %603 = vst.msk [vmem:[%s596 + $0x49] sm:$0xff] %vm378, %v352
      %604 = vst.msk [vmem:[%s596 + $0x51] sm:$0xff] %vm378, %v353
      %605 = vst.msk [vmem:[%s596 + $0x61] sm:$0xff] %vm378, %v354
      %606 = vst.msk [vmem:[%s596 + $0x69] sm:$0xff] %vm378, %v355
      %607 = vst.msk [vmem:[%s596 + $0x79] sm:$0xff] %vm378, %v356
      %608 = vst.msk [vmem:[%s596 + $0x81] sm:$0xff] %vm378, %v357
      %609 = vst.msk [vmem:[%s596 + $0x91] sm:$0xff] %vm378, %v358
      %610 = vst.msk [vmem:[%s596 + $0x99] sm:$0xff] %vm378, %v359
      %611 = vst.msk [vmem:[%s596 + $0xa9] sm:$0xff] %vm378, %v360
      %612 = vst.msk [vmem:[%s596 + $0xb1] sm:$0xff] %vm378, %v361
      %613 = vst.msk [vmem:[%s596 + $0xc1] sm:$0xff] %vm378, %v362
      %614 = vst.msk [vmem:[%s596 + $0xc9] sm:$0xff] %vm378, %v363
      %615 = vst.msk [vmem:[%s596 + $0xd9] sm:$0xff] %vm378, %v364
      %616 = vst.msk [vmem:[%s596 + $0xe1] sm:$0xff] %vm378, %v365
      %617 = vst.msk [vmem:[%s596 + $0xf1] sm:$0xff] %vm378, %v366
      %618 = vst.msk [vmem:[%s596 + $0xf9] sm:$0xff] %vm378, %v367
      %619 = vst.msk [vmem:[%s596 + $0x109] sm:$0xff] %vm378, %v368
      %620 = vst.msk [vmem:[%s596 + $0x111] sm:$0xff] %vm378, %v369
      %621 = vst.msk [vmem:[%s596 + $0x121] sm:$0xff] %vm378, %v370
      %622 = vst.msk [vmem:[%s596 + $0x129] sm:$0xff] %vm378, %v371
      %623 = vst.msk [vmem:[%s596 + $0x139] sm:$0xff] %vm378, %v372
      %624 = vst.msk [vmem:[%s596 + $0x141] sm:$0xff] %vm378, %v373
      %625 = vst.msk [vmem:[%s596 + $0x151] sm:$0xff] %vm378, %v374
      %626 = vst.msk [vmem:[%s596 + $0x159] sm:$0xff] %vm378, %v375
      %627 = vst.msk [vmem:[%s596 + $0x169] sm:$0xff] %vm378, %v376
      %628 = vst.msk [vmem:[%s596 + $0x171] sm:$0xff] %vm378, %v377
      %661 = vrot.lane.b32.xlu0 %v346, 124
      %v662 = vpop.permute.xlu0 %661
      %663 = vrot.lane.b32.xlu0 %v347, 124
      %v664 = vpop.permute.xlu0 %663
      %665 = vrot.lane.b32.xlu0 %v348, 124
      %v666 = vpop.permute.xlu0 %665
      %667 = vrot.lane.b32.xlu0 %v349, 124
      %v668 = vpop.permute.xlu0 %667
      %669 = vrot.lane.b32.xlu0 %v350, 124
      %v670 = vpop.permute.xlu0 %669
      %671 = vrot.lane.b32.xlu0 %v351, 124
      %v672 = vpop.permute.xlu0 %671
      %673 = vrot.lane.b32.xlu0 %v352, 124
      %v674 = vpop.permute.xlu0 %673
      %675 = vrot.lane.b32.xlu0 %v353, 124
      %v676 = vpop.permute.xlu0 %675
      %677 = vrot.lane.b32.xlu0 %v354, 124
      %v678 = vpop.permute.xlu0 %677
      %679 = vrot.lane.b32.xlu0 %v355, 124
      %v680 = vpop.permute.xlu0 %679
      %681 = vrot.lane.b32.xlu0 %v356, 124
      %v682 = vpop.permute.xlu0 %681
      %683 = vrot.lane.b32.xlu0 %v357, 124
      %v684 = vpop.permute.xlu0 %683
      %685 = vrot.lane.b32.xlu0 %v358, 124
      %v686 = vpop.permute.xlu0 %685
      %687 = vrot.lane.b32.xlu0 %v359, 124
      %v688 = vpop.permute.xlu0 %687
      %689 = vrot.lane.b32.xlu0 %v360, 124
      %v690 = vpop.permute.xlu0 %689
      %691 = vrot.lane.b32.xlu0 %v361, 124
      %v692 = vpop.permute.xlu0 %691
      %693 = vrot.lane.b32.xlu0 %v362, 124
      %v694 = vpop.permute.xlu0 %693
      %695 = vrot.lane.b32.xlu0 %v363, 124
      %v696 = vpop.permute.xlu0 %695
      %697 = vrot.lane.b32.xlu0 %v364, 124
      %v698 = vpop.permute.xlu0 %697
      %699 = vrot.lane.b32.xlu0 %v365, 124
      %v700 = vpop.permute.xlu0 %699
      %701 = vrot.lane.b32.xlu0 %v366, 124
      %v702 = vpop.permute.xlu0 %701
      %703 = vrot.lane.b32.xlu0 %v367, 124
      %v704 = vpop.permute.xlu0 %703
      %705 = vrot.lane.b32.xlu0 %v368, 124
      %v706 = vpop.permute.xlu0 %705
      %707 = vrot.lane.b32.xlu0 %v369, 124
      %v708 = vpop.permute.xlu0 %707
      %709 = vrot.lane.b32.xlu0 %v370, 124
      %v710 = vpop.permute.xlu0 %709
      %711 = vrot.lane.b32.xlu0 %v371, 124
      %v712 = vpop.permute.xlu0 %711
      %713 = vrot.lane.b32.xlu0 %v372, 124
      %v714 = vpop.permute.xlu0 %713
      %715 = vrot.lane.b32.xlu0 %v373, 124
      %v716 = vpop.permute.xlu0 %715
      %717 = vrot.lane.b32.xlu0 %v374, 124
      %v718 = vpop.permute.xlu0 %717
      %719 = vrot.lane.b32.xlu0 %v375, 124
      %v720 = vpop.permute.xlu0 %719
      %721 = vrot.lane.b32.xlu0 %v376, 124
      %v722 = vpop.permute.xlu0 %721
      %723 = vrot.lane.b32.xlu0 %v377, 124
      %v724 = vpop.permute.xlu0 %723
      %s757 = scalar_lea.vmem [#allocation2], 456
      %758 = vst.msk [vmem:[%s757 + $0x1] sm:$0xff] %vm378, %v662
      %759 = vst.msk [vmem:[%s757 + $0x9] sm:$0xff] %vm378, %v664
      %760 = vst.msk [vmem:[%s757 + $0x19] sm:$0xff] %vm378, %v666
      %761 = vst.msk [vmem:[%s757 + $0x21] sm:$0xff] %vm378, %v668
      %762 = vst.msk [vmem:[%s757 + $0x31] sm:$0xff] %vm378, %v670
      %763 = vst.msk [vmem:[%s757 + $0x39] sm:$0xff] %vm378, %v672
      %764 = vst.msk [vmem:[%s757 + $0x49] sm:$0xff] %vm378, %v674
      %765 = vst.msk [vmem:[%s757 + $0x51] sm:$0xff] %vm378, %v676
      %766 = vst.msk [vmem:[%s757 + $0x61] sm:$0xff] %vm378, %v678
      %767 = vst.msk [vmem:[%s757 + $0x69] sm:$0xff] %vm378, %v680
      %768 = vst.msk [vmem:[%s757 + $0x79] sm:$0xff] %vm378, %v682
      %769 = vst.msk [vmem:[%s757 + $0x81] sm:$0xff] %vm378, %v684
      %770 = vst.msk [vmem:[%s757 + $0x91] sm:$0xff] %vm378, %v686
      %771 = vst.msk [vmem:[%s757 + $0x99] sm:$0xff] %vm378, %v688
      %772 = vst.msk [vmem:[%s757 + $0xa9] sm:$0xff] %vm378, %v690
      %773 = vst.msk [vmem:[%s757 + $0xb1] sm:$0xff] %vm378, %v692
      %774 = vst.msk [vmem:[%s757 + $0xc1] sm:$0xff] %vm378, %v694
      %775 = vst.msk [vmem:[%s757 + $0xc9] sm:$0xff] %vm378, %v696
      %776 = vst.msk [vmem:[%s757 + $0xd9] sm:$0xff] %vm378, %v698
      %777 = vst.msk [vmem:[%s757 + $0xe1] sm:$0xff] %vm378, %v700
      %778 = vst.msk [vmem:[%s757 + $0xf1] sm:$0xff] %vm378, %v702
      %779 = vst.msk [vmem:[%s757 + $0xf9] sm:$0xff] %vm378, %v704
      %780 = vst.msk [vmem:[%s757 + $0x109] sm:$0xff] %vm378, %v706
      %781 = vst.msk [vmem:[%s757 + $0x111] sm:$0xff] %vm378, %v708
      %782 = vst.msk [vmem:[%s757 + $0x121] sm:$0xff] %vm378, %v710
      %783 = vst.msk [vmem:[%s757 + $0x129] sm:$0xff] %vm378, %v712
      %784 = vst.msk [vmem:[%s757 + $0x139] sm:$0xff] %vm378, %v714
      %785 = vst.msk [vmem:[%s757 + $0x141] sm:$0xff] %vm378, %v716
      %786 = vst.msk [vmem:[%s757 + $0x151] sm:$0xff] %vm378, %v718
      %787 = vst.msk [vmem:[%s757 + $0x159] sm:$0xff] %vm378, %v720
      %788 = vst.msk [vmem:[%s757 + $0x169] sm:$0xff] %vm378, %v722
      %789 = vst.msk [vmem:[%s757 + $0x171] sm:$0xff] %vm378, %v724
      %790 = vrot.lane.b32.xlu0 %v346, 120
      %v791 = vpop.permute.xlu0 %790
      %792 = vrot.lane.b32.xlu0 %v347, 120
      %v793 = vpop.permute.xlu0 %792
      %794 = vrot.lane.b32.xlu0 %v348, 120
      %v795 = vpop.permute.xlu0 %794
      %796 = vrot.lane.b32.xlu0 %v349, 120
      %v797 = vpop.permute.xlu0 %796
      %798 = vrot.lane.b32.xlu0 %v350, 120
      %v799 = vpop.permute.xlu0 %798
      %800 = vrot.lane.b32.xlu0 %v351, 120
      %v801 = vpop.permute.xlu0 %800
      %802 = vrot.lane.b32.xlu0 %v352, 120
      %v803 = vpop.permute.xlu0 %802
      %804 = vrot.lane.b32.xlu0 %v353, 120
      %v805 = vpop.permute.xlu0 %804
      %806 = vrot.lane.b32.xlu0 %v354, 120
      %v807 = vpop.permute.xlu0 %806
      %808 = vrot.lane.b32.xlu0 %v355, 120
      %v809 = vpop.permute.xlu0 %808
      %810 = vrot.lane.b32.xlu0 %v356, 120
      %v811 = vpop.permute.xlu0 %810
      %812 = vrot.lane.b32.xlu0 %v357, 120
      %v813 = vpop.permute.xlu0 %812
      %814 = vrot.lane.b32.xlu0 %v358, 120
      %v815 = vpop.permute.xlu0 %814
      %816 = vrot.lane.b32.xlu0 %v359, 120
      %v817 = vpop.permute.xlu0 %816
      %818 = vrot.lane.b32.xlu0 %v360, 120
      %v819 = vpop.permute.xlu0 %818
      %820 = vrot.lane.b32.xlu0 %v361, 120
      %v821 = vpop.permute.xlu0 %820
      %822 = vrot.lane.b32.xlu0 %v362, 120
      %v823 = vpop.permute.xlu0 %822
      %824 = vrot.lane.b32.xlu0 %v363, 120
      %v825 = vpop.permute.xlu0 %824
      %826 = vrot.lane.b32.xlu0 %v364, 120
      %v827 = vpop.permute.xlu0 %826
      %828 = vrot.lane.b32.xlu0 %v365, 120
      %v829 = vpop.permute.xlu0 %828
      %830 = vrot.lane.b32.xlu0 %v366, 120
      %v831 = vpop.permute.xlu0 %830
      %832 = vrot.lane.b32.xlu0 %v367, 120
      %v833 = vpop.permute.xlu0 %832
      %834 = vrot.lane.b32.xlu0 %v368, 120
      %v835 = vpop.permute.xlu0 %834
      %836 = vrot.lane.b32.xlu0 %v369, 120
      %v837 = vpop.permute.xlu0 %836
      %838 = vrot.lane.b32.xlu0 %v370, 120
      %v839 = vpop.permute.xlu0 %838
      %840 = vrot.lane.b32.xlu0 %v371, 120
      %v841 = vpop.permute.xlu0 %840
      %842 = vrot.lane.b32.xlu0 %v372, 120
      %v843 = vpop.permute.xlu0 %842
      %844 = vrot.lane.b32.xlu0 %v373, 120
      %v845 = vpop.permute.xlu0 %844
      %846 = vrot.lane.b32.xlu0 %v374, 120
      %v847 = vpop.permute.xlu0 %846
      %848 = vrot.lane.b32.xlu0 %v375, 120
      %v849 = vpop.permute.xlu0 %848
      %850 = vrot.lane.b32.xlu0 %v376, 120
      %v851 = vpop.permute.xlu0 %850
      %852 = vrot.lane.b32.xlu0 %v377, 120
      %v853 = vpop.permute.xlu0 %852
      %s886 = scalar_lea.vmem [#allocation2], 888
      %887 = vst.msk [vmem:[%s886 + $0x1] sm:$0xff] %vm378, %v791
      %888 = vst.msk [vmem:[%s886 + $0x9] sm:$0xff] %vm378, %v793
      %889 = vst.msk [vmem:[%s886 + $0x19] sm:$0xff] %vm378, %v795
      %890 = vst.msk [vmem:[%s886 + $0x21] sm:$0xff] %vm378, %v797
      %891 = vst.msk [vmem:[%s886 + $0x31] sm:$0xff] %vm378, %v799
      %892 = vst.msk [vmem:[%s886 + $0x39] sm:$0xff] %vm378, %v801
      %893 = vst.msk [vmem:[%s886 + $0x49] sm:$0xff] %vm378, %v803
      %894 = vst.msk [vmem:[%s886 + $0x51] sm:$0xff] %vm378, %v805
      %895 = vst.msk [vmem:[%s886 + $0x61] sm:$0xff] %vm378, %v807
      %896 = vst.msk [vmem:[%s886 + $0x69] sm:$0xff] %vm378, %v809
      %897 = vst.msk [vmem:[%s886 + $0x79] sm:$0xff] %vm378, %v811
      %898 = vst.msk [vmem:[%s886 + $0x81] sm:$0xff] %vm378, %v813
      %899 = vst.msk [vmem:[%s886 + $0x91] sm:$0xff] %vm378, %v815
      %900 = vst.msk [vmem:[%s886 + $0x99] sm:$0xff] %vm378, %v817
      %901 = vst.msk [vmem:[%s886 + $0xa9] sm:$0xff] %vm378, %v819
      %902 = vst.msk [vmem:[%s886 + $0xb1] sm:$0xff] %vm378, %v821
      %903 = vst.msk [vmem:[%s886 + $0xc1] sm:$0xff] %vm378, %v823
      %904 = vst.msk [vmem:[%s886 + $0xc9] sm:$0xff] %vm378, %v825
      %905 = vst.msk [vmem:[%s886 + $0xd9] sm:$0xff] %vm378, %v827
      %906 = vst.msk [vmem:[%s886 + $0xe1] sm:$0xff] %vm378, %v829
      %907 = vst.msk [vmem:[%s886 + $0xf1] sm:$0xff] %vm378, %v831
      %908 = vst.msk [vmem:[%s886 + $0xf9] sm:$0xff] %vm378, %v833
      %909 = vst.msk [vmem:[%s886 + $0x109] sm:$0xff] %vm378, %v835
      %910 = vst.msk [vmem:[%s886 + $0x111] sm:$0xff] %vm378, %v837
      %911 = vst.msk [vmem:[%s886 + $0x121] sm:$0xff] %vm378, %v839
      %912 = vst.msk [vmem:[%s886 + $0x129] sm:$0xff] %vm378, %v841
      %913 = vst.msk [vmem:[%s886 + $0x139] sm:$0xff] %vm378, %v843
      %914 = vst.msk [vmem:[%s886 + $0x141] sm:$0xff] %vm378, %v845
      %915 = vst.msk [vmem:[%s886 + $0x151] sm:$0xff] %vm378, %v847
      %916 = vst.msk [vmem:[%s886 + $0x159] sm:$0xff] %vm378, %v849
      %917 = vst.msk [vmem:[%s886 + $0x169] sm:$0xff] %vm378, %v851
      %918 = vst.msk [vmem:[%s886 + $0x171] sm:$0xff] %vm378, %v853
      %919 = vrot.lane.b32.xlu0 %v346, 116
      %v920 = vpop.permute.xlu0 %919
      %921 = vrot.lane.b32.xlu0 %v347, 116
      %v922 = vpop.permute.xlu0 %921
      %923 = vrot.lane.b32.xlu0 %v348, 116
      %v924 = vpop.permute.xlu0 %923
      %925 = vrot.lane.b32.xlu0 %v349, 116
      %v926 = vpop.permute.xlu0 %925
      %927 = vrot.lane.b32.xlu0 %v350, 116
      %v928 = vpop.permute.xlu0 %927
      %929 = vrot.lane.b32.xlu0 %v351, 116
      %v930 = vpop.permute.xlu0 %929
      %931 = vrot.lane.b32.xlu0 %v352, 116
      %v932 = vpop.permute.xlu0 %931
      %933 = vrot.lane.b32.xlu0 %v353, 116
      %v934 = vpop.permute.xlu0 %933
      %935 = vrot.lane.b32.xlu0 %v354, 116
      %v936 = vpop.permute.xlu0 %935
      %937 = vrot.lane.b32.xlu0 %v355, 116
      %v938 = vpop.permute.xlu0 %937
      %939 = vrot.lane.b32.xlu0 %v356, 116
      %v940 = vpop.permute.xlu0 %939
      %941 = vrot.lane.b32.xlu0 %v357, 116
      %v942 = vpop.permute.xlu0 %941
      %943 = vrot.lane.b32.xlu0 %v358, 116
      %v944 = vpop.permute.xlu0 %943
      %945 = vrot.lane.b32.xlu0 %v359, 116
      %v946 = vpop.permute.xlu0 %945
      %947 = vrot.lane.b32.xlu0 %v360, 116
      %v948 = vpop.permute.xlu0 %947
      %949 = vrot.lane.b32.xlu0 %v361, 116
      %v950 = vpop.permute.xlu0 %949
      %951 = vrot.lane.b32.xlu0 %v362, 116
      %v952 = vpop.permute.xlu0 %951
      %953 = vrot.lane.b32.xlu0 %v363, 116
      %v954 = vpop.permute.xlu0 %953
      %955 = vrot.lane.b32.xlu0 %v364, 116
      %v956 = vpop.permute.xlu0 %955
      %957 = vrot.lane.b32.xlu0 %v365, 116
      %v958 = vpop.permute.xlu0 %957
      %959 = vrot.lane.b32.xlu0 %v366, 116
      %v960 = vpop.permute.xlu0 %959
      %961 = vrot.lane.b32.xlu0 %v367, 116
      %v962 = vpop.permute.xlu0 %961
      %963 = vrot.lane.b32.xlu0 %v368, 116
      %v964 = vpop.permute.xlu0 %963
      %965 = vrot.lane.b32.xlu0 %v369, 116
      %v966 = vpop.permute.xlu0 %965
      %967 = vrot.lane.b32.xlu0 %v370, 116
      %v968 = vpop.permute.xlu0 %967
      %969 = vrot.lane.b32.xlu0 %v371, 116
      %v970 = vpop.permute.xlu0 %969
      %971 = vrot.lane.b32.xlu0 %v372, 116
      %v972 = vpop.permute.xlu0 %971
      %973 = vrot.lane.b32.xlu0 %v373, 116
      %v974 = vpop.permute.xlu0 %973
      %975 = vrot.lane.b32.xlu0 %v374, 116
      %v976 = vpop.permute.xlu0 %975
      %977 = vrot.lane.b32.xlu0 %v375, 116
      %v978 = vpop.permute.xlu0 %977
      %979 = vrot.lane.b32.xlu0 %v376, 116
      %v980 = vpop.permute.xlu0 %979
      %981 = vrot.lane.b32.xlu0 %v377, 116
      %v982 = vpop.permute.xlu0 %981
      %s1015 = scalar_lea.vmem [#allocation2], 1320
      %1016 = vst.msk [vmem:[%s1015 + $0x1] sm:$0xff] %vm378, %v920
      %1017 = vst.msk [vmem:[%s1015 + $0x9] sm:$0xff] %vm378, %v922
      %1018 = vst.msk [vmem:[%s1015 + $0x19] sm:$0xff] %vm378, %v924
      %1019 = vst.msk [vmem:[%s1015 + $0x21] sm:$0xff] %vm378, %v926
      %1020 = vst.msk [vmem:[%s1015 + $0x31] sm:$0xff] %vm378, %v928
      %1021 = vst.msk [vmem:[%s1015 + $0x39] sm:$0xff] %vm378, %v930
      %1022 = vst.msk [vmem:[%s1015 + $0x49] sm:$0xff] %vm378, %v932
      %1023 = vst.msk [vmem:[%s1015 + $0x51] sm:$0xff] %vm378, %v934
      %1024 = vst.msk [vmem:[%s1015 + $0x61] sm:$0xff] %vm378, %v936
      %1025 = vst.msk [vmem:[%s1015 + $0x69] sm:$0xff] %vm378, %v938
      %1026 = vst.msk [vmem:[%s1015 + $0x79] sm:$0xff] %vm378, %v940
      %1027 = vst.msk [vmem:[%s1015 + $0x81] sm:$0xff] %vm378, %v942
      %1028 = vst.msk [vmem:[%s1015 + $0x91] sm:$0xff] %vm378, %v944
      %1029 = vst.msk [vmem:[%s1015 + $0x99] sm:$0xff] %vm378, %v946
      %1030 = vst.msk [vmem:[%s1015 + $0xa9] sm:$0xff] %vm378, %v948
      %1031 = vst.msk [vmem:[%s1015 + $0xb1] sm:$0xff] %vm378, %v950
      %1032 = vst.msk [vmem:[%s1015 + $0xc1] sm:$0xff] %vm378, %v952
      %1033 = vst.msk [vmem:[%s1015 + $0xc9] sm:$0xff] %vm378, %v954
      %1034 = vst.msk [vmem:[%s1015 + $0xd9] sm:$0xff] %vm378, %v956
      %1035 = vst.msk [vmem:[%s1015 + $0xe1] sm:$0xff] %vm378, %v958
      %1036 = vst.msk [vmem:[%s1015 + $0xf1] sm:$0xff] %vm378, %v960
      %1037 = vst.msk [vmem:[%s1015 + $0xf9] sm:$0xff] %vm378, %v962
      %1038 = vst.msk [vmem:[%s1015 + $0x109] sm:$0xff] %vm378, %v964
      %1039 = vst.msk [vmem:[%s1015 + $0x111] sm:$0xff] %vm378, %v966
      %1040 = vst.msk [vmem:[%s1015 + $0x121] sm:$0xff] %vm378, %v968
      %1041 = vst.msk [vmem:[%s1015 + $0x129] sm:$0xff] %vm378, %v970
      %1042 = vst.msk [vmem:[%s1015 + $0x139] sm:$0xff] %vm378, %v972
      %1043 = vst.msk [vmem:[%s1015 + $0x141] sm:$0xff] %vm378, %v974
      %1044 = vst.msk [vmem:[%s1015 + $0x151] sm:$0xff] %vm378, %v976
      %1045 = vst.msk [vmem:[%s1015 + $0x159] sm:$0xff] %vm378, %v978
      %1046 = vst.msk [vmem:[%s1015 + $0x169] sm:$0xff] %vm378, %v980
      %1047 = vst.msk [vmem:[%s1015 + $0x171] sm:$0xff] %vm378, %v982
      %s1048 = scalar_lea.vmem [#allocation2], 1296
      %v1049 = vld [vmem:[%s1048] sm:$0xff]
      %v1050 = vld [vmem:[%s1048 + $0x8] sm:$0xff]
      %v1051 = vld [vmem:[%s1048 + $0x18] sm:$0xff]
      %v1052 = vld [vmem:[%s1048 + $0x20] sm:$0xff]
      %v1053 = vld [vmem:[%s1048 + $0x30] sm:$0xff]
      %v1054 = vld [vmem:[%s1048 + $0x38] sm:$0xff]
      %v1055 = vld [vmem:[%s1048 + $0x48] sm:$0xff]
      %v1056 = vld [vmem:[%s1048 + $0x50] sm:$0xff]
      %v1057 = vld [vmem:[%s1048 + $0x60] sm:$0xff]
      %v1058 = vld [vmem:[%s1048 + $0x68] sm:$0xff]
      %v1059 = vld [vmem:[%s1048 + $0x78] sm:$0xff]
      %v1060 = vld [vmem:[%s1048 + $0x80] sm:$0xff]
      %v1061 = vld [vmem:[%s1048 + $0x90] sm:$0xff]
      %v1062 = vld [vmem:[%s1048 + $0x98] sm:$0xff]
      %v1063 = vld [vmem:[%s1048 + $0xa8] sm:$0xff]
      %v1064 = vld [vmem:[%s1048 + $0xb0] sm:$0xff]
      %v1065 = vld [vmem:[%s1048 + $0xc0] sm:$0xff]
      %v1066 = vld [vmem:[%s1048 + $0xc8] sm:$0xff]
      %v1067 = vld [vmem:[%s1048 + $0xd8] sm:$0xff]
      %v1068 = vld [vmem:[%s1048 + $0xe0] sm:$0xff]
      %v1069 = vld [vmem:[%s1048 + $0xf0] sm:$0xff]
      %v1070 = vld [vmem:[%s1048 + $0xf8] sm:$0xff]
      %v1071 = vld [vmem:[%s1048 + $0x108] sm:$0xff]
      %v1072 = vld [vmem:[%s1048 + $0x110] sm:$0xff]
      %v1073 = vld [vmem:[%s1048 + $0x120] sm:$0xff]
      %v1074 = vld [vmem:[%s1048 + $0x128] sm:$0xff]
      %v1075 = vld [vmem:[%s1048 + $0x138] sm:$0xff]
      %v1076 = vld [vmem:[%s1048 + $0x140] sm:$0xff]
      %v1077 = vld [vmem:[%s1048 + $0x150] sm:$0xff]
      %v1078 = vld [vmem:[%s1048 + $0x158] sm:$0xff]
      %v1079 = vld [vmem:[%s1048 + $0x168] sm:$0xff]
      %v1080 = vld [vmem:[%s1048 + $0x170] sm:$0xff]
      %1081 = vst.msk [vmem:[#allocation3] sm:$0xff] %vm378, %v1049
      %1082 = vst.msk [vmem:[#allocation3 + $0x8] sm:$0xff] %vm378, %v1050
      %1083 = vst.msk [vmem:[#allocation3 + $0x10] sm:$0xff] %vm378, %v1051
      %1084 = vst.msk [vmem:[#allocation3 + $0x18] sm:$0xff] %vm378, %v1052
      %1085 = vst.msk [vmem:[#allocation3 + $0x20] sm:$0xff] %vm378, %v1053
      %1086 = vst.msk [vmem:[#allocation3 + $0x28] sm:$0xff] %vm378, %v1054
      %1087 = vst.msk [vmem:[#allocation3 + $0x30] sm:$0xff] %vm378, %v1055
      %1088 = vst.msk [vmem:[#allocation3 + $0x38] sm:$0xff] %vm378, %v1056
      %1089 = vst.msk [vmem:[#allocation3 + $0x40] sm:$0xff] %vm378, %v1057
      %1090 = vst.msk [vmem:[#allocation3 + $0x48] sm:$0xff] %vm378, %v1058
      %1091 = vst.msk [vmem:[#allocation3 + $0x50] sm:$0xff] %vm378, %v1059
      %1092 = vst.msk [vmem:[#allocation3 + $0x58] sm:$0xff] %vm378, %v1060
      %1093 = vst.msk [vmem:[#allocation3 + $0x60] sm:$0xff] %vm378, %v1061
      %1094 = vst.msk [vmem:[#allocation3 + $0x68] sm:$0xff] %vm378, %v1062
      %1095 = vst.msk [vmem:[#allocation3 + $0x70] sm:$0xff] %vm378, %v1063
      %1096 = vst.msk [vmem:[#allocation3 + $0x78] sm:$0xff] %vm378, %v1064
      %1097 = vst.msk [vmem:[#allocation3 + $0x80] sm:$0xff] %vm378, %v1065
      %1098 = vst.msk [vmem:[#allocation3 + $0x88] sm:$0xff] %vm378, %v1066
      %1099 = vst.msk [vmem:[#allocation3 + $0x90] sm:$0xff] %vm378, %v1067
      %1100 = vst.msk [vmem:[#allocation3 + $0x98] sm:$0xff] %vm378, %v1068
      %1101 = vst.msk [vmem:[#allocation3 + $0xa0] sm:$0xff] %vm378, %v1069
      %1102 = vst.msk [vmem:[#allocation3 + $0xa8] sm:$0xff] %vm378, %v1070
      %1103 = vst.msk [vmem:[#allocation3 + $0xb0] sm:$0xff] %vm378, %v1071
      %1104 = vst.msk [vmem:[#allocation3 + $0xb8] sm:$0xff] %vm378, %v1072
      %1105 = vst.msk [vmem:[#allocation3 + $0xc0] sm:$0xff] %vm378, %v1073
      %1106 = vst.msk [vmem:[#allocation3 + $0xc8] sm:$0xff] %vm378, %v1074
      %1107 = vst.msk [vmem:[#allocation3 + $0xd0] sm:$0xff] %vm378, %v1075
      %1108 = vst.msk [vmem:[#allocation3 + $0xd8] sm:$0xff] %vm378, %v1076
      %1109 = vst.msk [vmem:[#allocation3 + $0xe0] sm:$0xff] %vm378, %v1077
      %1110 = vst.msk [vmem:[#allocation3 + $0xe8] sm:$0xff] %vm378, %v1078
      %1111 = vst.msk [vmem:[#allocation3 + $0xf0] sm:$0xff] %vm378, %v1079
      %1112 = vst.msk [vmem:[#allocation3 + $0xf8] sm:$0xff] %vm378, %v1080
      %s1113 = scalar_lea.vmem [#allocation2], 864
      %v1114 = vld [vmem:[%s1113 + $0x1] sm:$0xff]
      %v1115 = vld [vmem:[%s1113 + $0x9] sm:$0xff]
      %v1116 = vld [vmem:[%s1113 + $0x19] sm:$0xff]
      %v1117 = vld [vmem:[%s1113 + $0x21] sm:$0xff]
      %v1118 = vld [vmem:[%s1113 + $0x31] sm:$0xff]
      %v1119 = vld [vmem:[%s1113 + $0x39] sm:$0xff]
      %v1120 = vld [vmem:[%s1113 + $0x49] sm:$0xff]
      %v1121 = vld [vmem:[%s1113 + $0x51] sm:$0xff]
      %v1122 = vld [vmem:[%s1113 + $0x61] sm:$0xff]
      %v1123 = vld [vmem:[%s1113 + $0x69] sm:$0xff]
      %v1124 = vld [vmem:[%s1113 + $0x79] sm:$0xff]
      %v1125 = vld [vmem:[%s1113 + $0x81] sm:$0xff]
      %v1126 = vld [vmem:[%s1113 + $0x91] sm:$0xff]
      %v1127 = vld [vmem:[%s1113 + $0x99] sm:$0xff]
      %v1128 = vld [vmem:[%s1113 + $0xa9] sm:$0xff]
      %v1129 = vld [vmem:[%s1113 + $0xb1] sm:$0xff]
      %v1130 = vld [vmem:[%s1113 + $0xc1] sm:$0xff]
      %v1131 = vld [vmem:[%s1113 + $0xc9] sm:$0xff]
      %v1132 = vld [vmem:[%s1113 + $0xd9] sm:$0xff]
      %v1133 = vld [vmem:[%s1113 + $0xe1] sm:$0xff]
      %v1134 = vld [vmem:[%s1113 + $0xf1] sm:$0xff]
      %v1135 = vld [vmem:[%s1113 + $0xf9] sm:$0xff]
      %v1136 = vld [vmem:[%s1113 + $0x109] sm:$0xff]
      %v1137 = vld [vmem:[%s1113 + $0x111] sm:$0xff]
      %v1138 = vld [vmem:[%s1113 + $0x121] sm:$0xff]
      %v1139 = vld [vmem:[%s1113 + $0x129] sm:$0xff]
      %v1140 = vld [vmem:[%s1113 + $0x139] sm:$0xff]
      %v1141 = vld [vmem:[%s1113 + $0x141] sm:$0xff]
      %v1142 = vld [vmem:[%s1113 + $0x151] sm:$0xff]
      %v1143 = vld [vmem:[%s1113 + $0x159] sm:$0xff]
      %v1144 = vld [vmem:[%s1113 + $0x169] sm:$0xff]
      %v1145 = vld [vmem:[%s1113 + $0x171] sm:$0xff]
      %1178 = vrot.lane.b32.xlu0 %v1114, 4
      %v1179 = vpop.permute.xlu0 %1178
      %1180 = vrot.lane.b32.xlu0 %v1115, 4
      %v1181 = vpop.permute.xlu0 %1180
      %1182 = vrot.lane.b32.xlu0 %v1116, 4
      %v1183 = vpop.permute.xlu0 %1182
      %1184 = vrot.lane.b32.xlu0 %v1117, 4
      %v1185 = vpop.permute.xlu0 %1184
      %1186 = vrot.lane.b32.xlu0 %v1118, 4
      %v1187 = vpop.permute.xlu0 %1186
      %1188 = vrot.lane.b32.xlu0 %v1119, 4
      %v1189 = vpop.permute.xlu0 %1188
      %1190 = vrot.lane.b32.xlu0 %v1120, 4
      %v1191 = vpop.permute.xlu0 %1190
      %1192 = vrot.lane.b32.xlu0 %v1121, 4
      %v1193 = vpop.permute.xlu0 %1192
      %1194 = vrot.lane.b32.xlu0 %v1122, 4
      %v1195 = vpop.permute.xlu0 %1194
      %1196 = vrot.lane.b32.xlu0 %v1123, 4
      %v1197 = vpop.permute.xlu0 %1196
      %1198 = vrot.lane.b32.xlu0 %v1124, 4
      %v1199 = vpop.permute.xlu0 %1198
      %1200 = vrot.lane.b32.xlu0 %v1125, 4
      %v1201 = vpop.permute.xlu0 %1200
      %1202 = vrot.lane.b32.xlu0 %v1126, 4
      %v1203 = vpop.permute.xlu0 %1202
      %1204 = vrot.lane.b32.xlu0 %v1127, 4
      %v1205 = vpop.permute.xlu0 %1204
      %1206 = vrot.lane.b32.xlu0 %v1128, 4
      %v1207 = vpop.permute.xlu0 %1206
      %1208 = vrot.lane.b32.xlu0 %v1129, 4
      %v1209 = vpop.permute.xlu0 %1208
      %1210 = vrot.lane.b32.xlu0 %v1130, 4
      %v1211 = vpop.permute.xlu0 %1210
      %1212 = vrot.lane.b32.xlu0 %v1131, 4
      %v1213 = vpop.permute.xlu0 %1212
      %1214 = vrot.lane.b32.xlu0 %v1132, 4
      %v1215 = vpop.permute.xlu0 %1214
      %1216 = vrot.lane.b32.xlu0 %v1133, 4
      %v1217 = vpop.permute.xlu0 %1216
      %1218 = vrot.lane.b32.xlu0 %v1134, 4
      %v1219 = vpop.permute.xlu0 %1218
      %1220 = vrot.lane.b32.xlu0 %v1135, 4
      %v1221 = vpop.permute.xlu0 %1220
      %1222 = vrot.lane.b32.xlu0 %v1136, 4
      %v1223 = vpop.permute.xlu0 %1222
      %1224 = vrot.lane.b32.xlu0 %v1137, 4
      %v1225 = vpop.permute.xlu0 %1224
      %1226 = vrot.lane.b32.xlu0 %v1138, 4
      %v1227 = vpop.permute.xlu0 %1226
      %1228 = vrot.lane.b32.xlu0 %v1139, 4
      %v1229 = vpop.permute.xlu0 %1228
      %1230 = vrot.lane.b32.xlu0 %v1140, 4
      %v1231 = vpop.permute.xlu0 %1230
      %1232 = vrot.lane.b32.xlu0 %v1141, 4
      %v1233 = vpop.permute.xlu0 %1232
      %1234 = vrot.lane.b32.xlu0 %v1142, 4
      %v1235 = vpop.permute.xlu0 %1234
      %1236 = vrot.lane.b32.xlu0 %v1143, 4
      %v1237 = vpop.permute.xlu0 %1236
      %1238 = vrot.lane.b32.xlu0 %v1144, 4
      %v1239 = vpop.permute.xlu0 %1238
      %1240 = vrot.lane.b32.xlu0 %v1145, 4
      %v1241 = vpop.permute.xlu0 %1240
      %vm1274 = vcmask 64544
      %1275 = vst.msk [vmem:[#allocation3] sm:$0xff] %vm1274, %v1179
      %1276 = vst.msk [vmem:[#allocation3 + $0x8] sm:$0xff] %vm1274, %v1181
      %1277 = vst.msk [vmem:[#allocation3 + $0x10] sm:$0xff] %vm1274, %v1183
      %1278 = vst.msk [vmem:[#allocation3 + $0x18] sm:$0xff] %vm1274, %v1185
      %1279 = vst.msk [vmem:[#allocation3 + $0x20] sm:$0xff] %vm1274, %v1187
      %1280 = vst.msk [vmem:[#allocation3 + $0x28] sm:$0xff] %vm1274, %v1189
      %1281 = vst.msk [vmem:[#allocation3 + $0x30] sm:$0xff] %vm1274, %v1191
      %1282 = vst.msk [vmem:[#allocation3 + $0x38] sm:$0xff] %vm1274, %v1193
      %1283 = vst.msk [vmem:[#allocation3 + $0x40] sm:$0xff] %vm1274, %v1195
      %1284 = vst.msk [vmem:[#allocation3 + $0x48] sm:$0xff] %vm1274, %v1197
      %1285 = vst.msk [vmem:[#allocation3 + $0x50] sm:$0xff] %vm1274, %v1199
      %1286 = vst.msk [vmem:[#allocation3 + $0x58] sm:$0xff] %vm1274, %v1201
      %1287 = vst.msk [vmem:[#allocation3 + $0x60] sm:$0xff] %vm1274, %v1203
      %1288 = vst.msk [vmem:[#allocation3 + $0x68] sm:$0xff] %vm1274, %v1205
      %1289 = vst.msk [vmem:[#allocation3 + $0x70] sm:$0xff] %vm1274, %v1207
      %1290 = vst.msk [vmem:[#allocation3 + $0x78] sm:$0xff] %vm1274, %v1209
      %1291 = vst.msk [vmem:[#allocation3 + $0x80] sm:$0xff] %vm1274, %v1211
      %1292 = vst.msk [vmem:[#allocation3 + $0x88] sm:$0xff] %vm1274, %v1213
      %1293 = vst.msk [vmem:[#allocation3 + $0x90] sm:$0xff] %vm1274, %v1215
      %1294 = vst.msk [vmem:[#allocation3 + $0x98] sm:$0xff] %vm1274, %v1217
      %1295 = vst.msk [vmem:[#allocation3 + $0xa0] sm:$0xff] %vm1274, %v1219
      %1296 = vst.msk [vmem:[#allocation3 + $0xa8] sm:$0xff] %vm1274, %v1221
      %1297 = vst.msk [vmem:[#allocation3 + $0xb0] sm:$0xff] %vm1274, %v1223
      %1298 = vst.msk [vmem:[#allocation3 + $0xb8] sm:$0xff] %vm1274, %v1225
      %1299 = vst.msk [vmem:[#allocation3 + $0xc0] sm:$0xff] %vm1274, %v1227
      %1300 = vst.msk [vmem:[#allocation3 + $0xc8] sm:$0xff] %vm1274, %v1229
      %1301 = vst.msk [vmem:[#allocation3 + $0xd0] sm:$0xff] %vm1274, %v1231
      %1302 = vst.msk [vmem:[#allocation3 + $0xd8] sm:$0xff] %vm1274, %v1233
      %1303 = vst.msk [vmem:[#allocation3 + $0xe0] sm:$0xff] %vm1274, %v1235
      %1304 = vst.msk [vmem:[#allocation3 + $0xe8] sm:$0xff] %vm1274, %v1237
      %1305 = vst.msk [vmem:[#allocation3 + $0xf0] sm:$0xff] %vm1274, %v1239
      %1306 = vst.msk [vmem:[#allocation3 + $0xf8] sm:$0xff] %vm1274, %v1241
      %v1307 = vld [vmem:[%s1048 + $0x1] sm:$0xff]
      %v1308 = vld [vmem:[%s1048 + $0x9] sm:$0xff]
      %v1309 = vld [vmem:[%s1048 + $0x19] sm:$0xff]
      %v1310 = vld [vmem:[%s1048 + $0x21] sm:$0xff]
      %v1311 = vld [vmem:[%s1048 + $0x31] sm:$0xff]
      %v1312 = vld [vmem:[%s1048 + $0x39] sm:$0xff]
      %v1313 = vld [vmem:[%s1048 + $0x49] sm:$0xff]
      %v1314 = vld [vmem:[%s1048 + $0x51] sm:$0xff]
      %v1315 = vld [vmem:[%s1048 + $0x61] sm:$0xff]
      %v1316 = vld [vmem:[%s1048 + $0x69] sm:$0xff]
      %v1317 = vld [vmem:[%s1048 + $0x79] sm:$0xff]
      %v1318 = vld [vmem:[%s1048 + $0x81] sm:$0xff]
      %v1319 = vld [vmem:[%s1048 + $0x91] sm:$0xff]
      %v1320 = vld [vmem:[%s1048 + $0x99] sm:$0xff]
      %v1321 = vld [vmem:[%s1048 + $0xa9] sm:$0xff]
      %v1322 = vld [vmem:[%s1048 + $0xb1] sm:$0xff]
      %v1323 = vld [vmem:[%s1048 + $0xc1] sm:$0xff]
      %v1324 = vld [vmem:[%s1048 + $0xc9] sm:$0xff]
      %v1325 = vld [vmem:[%s1048 + $0xd9] sm:$0xff]
      %v1326 = vld [vmem:[%s1048 + $0xe1] sm:$0xff]
      %v1327 = vld [vmem:[%s1048 + $0xf1] sm:$0xff]
      %v1328 = vld [vmem:[%s1048 + $0xf9] sm:$0xff]
      %v1329 = vld [vmem:[%s1048 + $0x109] sm:$0xff]
      %v1330 = vld [vmem:[%s1048 + $0x111] sm:$0xff]
      %v1331 = vld [vmem:[%s1048 + $0x121] sm:$0xff]
      %v1332 = vld [vmem:[%s1048 + $0x129] sm:$0xff]
      %v1333 = vld [vmem:[%s1048 + $0x139] sm:$0xff]
      %v1334 = vld [vmem:[%s1048 + $0x141] sm:$0xff]
      %v1335 = vld [vmem:[%s1048 + $0x151] sm:$0xff]
      %v1336 = vld [vmem:[%s1048 + $0x159] sm:$0xff]
      %v1337 = vld [vmem:[%s1048 + $0x169] sm:$0xff]
      %v1338 = vld [vmem:[%s1048 + $0x171] sm:$0xff]
      %1371 = vrot.lane.b32.xlu0 %v1307, 8
      %v1372 = vpop.permute.xlu0 %1371
      %1373 = vrot.lane.b32.xlu0 %v1308, 8
      %v1374 = vpop.permute.xlu0 %1373
      %1375 = vrot.lane.b32.xlu0 %v1309, 8
      %v1376 = vpop.permute.xlu0 %1375
      %1377 = vrot.lane.b32.xlu0 %v1310, 8
      %v1378 = vpop.permute.xlu0 %1377
      %1379 = vrot.lane.b32.xlu0 %v1311, 8
      %v1380 = vpop.permute.xlu0 %1379
      %1381 = vrot.lane.b32.xlu0 %v1312, 8
      %v1382 = vpop.permute.xlu0 %1381
      %1383 = vrot.lane.b32.xlu0 %v1313, 8
      %v1384 = vpop.permute.xlu0 %1383
      %1385 = vrot.lane.b32.xlu0 %v1314, 8
      %v1386 = vpop.permute.xlu0 %1385
      %1387 = vrot.lane.b32.xlu0 %v1315, 8
      %v1388 = vpop.permute.xlu0 %1387
      %1389 = vrot.lane.b32.xlu0 %v1316, 8
      %v1390 = vpop.permute.xlu0 %1389
      %1391 = vrot.lane.b32.xlu0 %v1317, 8
      %v1392 = vpop.permute.xlu0 %1391
      %1393 = vrot.lane.b32.xlu0 %v1318, 8
      %v1394 = vpop.permute.xlu0 %1393
      %1395 = vrot.lane.b32.xlu0 %v1319, 8
      %v1396 = vpop.permute.xlu0 %1395
      %1397 = vrot.lane.b32.xlu0 %v1320, 8
      %v1398 = vpop.permute.xlu0 %1397
      %1399 = vrot.lane.b32.xlu0 %v1321, 8
      %v1400 = vpop.permute.xlu0 %1399
      %1401 = vrot.lane.b32.xlu0 %v1322, 8
      %v1402 = vpop.permute.xlu0 %1401
      %1403 = vrot.lane.b32.xlu0 %v1323, 8
      %v1404 = vpop.permute.xlu0 %1403
      %1405 = vrot.lane.b32.xlu0 %v1324, 8
      %v1406 = vpop.permute.xlu0 %1405
      %1407 = vrot.lane.b32.xlu0 %v1325, 8
      %v1408 = vpop.permute.xlu0 %1407
      %1409 = vrot.lane.b32.xlu0 %v1326, 8
      %v1410 = vpop.permute.xlu0 %1409
      %1411 = vrot.lane.b32.xlu0 %v1327, 8
      %v1412 = vpop.permute.xlu0 %1411
      %1413 = vrot.lane.b32.xlu0 %v1328, 8
      %v1414 = vpop.permute.xlu0 %1413
      %1415 = vrot.lane.b32.xlu0 %v1329, 8
      %v1416 = vpop.permute.xlu0 %1415
      %1417 = vrot.lane.b32.xlu0 %v1330, 8
      %v1418 = vpop.permute.xlu0 %1417
      %1419 = vrot.lane.b32.xlu0 %v1331, 8
      %v1420 = vpop.permute.xlu0 %1419
      %1421 = vrot.lane.b32.xlu0 %v1332, 8
      %v1422 = vpop.permute.xlu0 %1421
      %1423 = vrot.lane.b32.xlu0 %v1333, 8
      %v1424 = vpop.permute.xlu0 %1423
      %1425 = vrot.lane.b32.xlu0 %v1334, 8
      %v1426 = vpop.permute.xlu0 %1425
      %1427 = vrot.lane.b32.xlu0 %v1335, 8
      %v1428 = vpop.permute.xlu0 %1427
      %1429 = vrot.lane.b32.xlu0 %v1336, 8
      %v1430 = vpop.permute.xlu0 %1429
      %1431 = vrot.lane.b32.xlu0 %v1337, 8
      %v1432 = vpop.permute.xlu0 %1431
      %1433 = vrot.lane.b32.xlu0 %v1338, 8
      %v1434 = vpop.permute.xlu0 %1433
      %vm1467 = vcmask 97344
      %1468 = vst.msk [vmem:[#allocation3] sm:$0xff] %vm1467, %v1372
      %1469 = vst.msk [vmem:[#allocation3 + $0x8] sm:$0xff] %vm1467, %v1374
      %1470 = vst.msk [vmem:[#allocation3 + $0x10] sm:$0xff] %vm1467, %v1376
      %1471 = vst.msk [vmem:[#allocation3 + $0x18] sm:$0xff] %vm1467, %v1378
      %1472 = vst.msk [vmem:[#allocation3 + $0x20] sm:$0xff] %vm1467, %v1380
      %1473 = vst.msk [vmem:[#allocation3 + $0x28] sm:$0xff] %vm1467, %v1382
      %1474 = vst.msk [vmem:[#allocation3 + $0x30] sm:$0xff] %vm1467, %v1384
      %1475 = vst.msk [vmem:[#allocation3 + $0x38] sm:$0xff] %vm1467, %v1386
      %1476 = vst.msk [vmem:[#allocation3 + $0x40] sm:$0xff] %vm1467, %v1388
      %1477 = vst.msk [vmem:[#allocation3 + $0x48] sm:$0xff] %vm1467, %v1390
      %1478 = vst.msk [vmem:[#allocation3 + $0x50] sm:$0xff] %vm1467, %v1392
      %1479 = vst.msk [vmem:[#allocation3 + $0x58] sm:$0xff] %vm1467, %v1394
      %1480 = vst.msk [vmem:[#allocation3 + $0x60] sm:$0xff] %vm1467, %v1396
      %1481 = vst.msk [vmem:[#allocation3 + $0x68] sm:$0xff] %vm1467, %v1398
      %1482 = vst.msk [vmem:[#allocation3 + $0x70] sm:$0xff] %vm1467, %v1400
      %1483 = vst.msk [vmem:[#allocation3 + $0x78] sm:$0xff] %vm1467, %v1402
      %1484 = vst.msk [vmem:[#allocation3 + $0x80] sm:$0xff] %vm1467, %v1404
      %1485 = vst.msk [vmem:[#allocation3 + $0x88] sm:$0xff] %vm1467, %v1406
      %1486 = vst.msk [vmem:[#allocation3 + $0x90] sm:$0xff] %vm1467, %v1408
      %1487 = vst.msk [vmem:[#allocation3 + $0x98] sm:$0xff] %vm1467, %v1410
      %1488 = vst.msk [vmem:[#allocation3 + $0xa0] sm:$0xff] %vm1467, %v1412
      %1489 = vst.msk [vmem:[#allocation3 + $0xa8] sm:$0xff] %vm1467, %v1414
      %1490 = vst.msk [vmem:[#allocation3 + $0xb0] sm:$0xff] %vm1467, %v1416
      %1491 = vst.msk [vmem:[#allocation3 + $0xb8] sm:$0xff] %vm1467, %v1418
      %1492 = vst.msk [vmem:[#allocation3 + $0xc0] sm:$0xff] %vm1467, %v1420
      %1493 = vst.msk [vmem:[#allocation3 + $0xc8] sm:$0xff] %vm1467, %v1422
      %1494 = vst.msk [vmem:[#allocation3 + $0xd0] sm:$0xff] %vm1467, %v1424
      %1495 = vst.msk [vmem:[#allocation3 + $0xd8] sm:$0xff] %vm1467, %v1426
      %1496 = vst.msk [vmem:[#allocation3 + $0xe0] sm:$0xff] %vm1467, %v1428
      %1497 = vst.msk [vmem:[#allocation3 + $0xe8] sm:$0xff] %vm1467, %v1430
      %1498 = vst.msk [vmem:[#allocation3 + $0xf0] sm:$0xff] %vm1467, %v1432
      %1499 = vst.msk [vmem:[#allocation3 + $0xf8] sm:$0xff] %vm1467, %v1434
      %v1500 = vld [vmem:[%s1113 + $0x2] sm:$0xff]
      %v1501 = vld [vmem:[%s1113 + $0xa] sm:$0xff]
      %v1502 = vld [vmem:[%s1113 + $0x1a] sm:$0xff]
      %v1503 = vld [vmem:[%s1113 + $0x22] sm:$0xff]
      %v1504 = vld [vmem:[%s1113 + $0x32] sm:$0xff]
      %v1505 = vld [vmem:[%s1113 + $0x3a] sm:$0xff]
      %v1506 = vld [vmem:[%s1113 + $0x4a] sm:$0xff]
      %v1507 = vld [vmem:[%s1113 + $0x52] sm:$0xff]
      %v1508 = vld [vmem:[%s1113 + $0x62] sm:$0xff]
      %v1509 = vld [vmem:[%s1113 + $0x6a] sm:$0xff]
      %v1510 = vld [vmem:[%s1113 + $0x7a] sm:$0xff]
      %v1511 = vld [vmem:[%s1113 + $0x82] sm:$0xff]
      %v1512 = vld [vmem:[%s1113 + $0x92] sm:$0xff]
      %v1513 = vld [vmem:[%s1113 + $0x9a] sm:$0xff]
      %v1514 = vld [vmem:[%s1113 + $0xaa] sm:$0xff]
      %v1515 = vld [vmem:[%s1113 + $0xb2] sm:$0xff]
      %v1516 = vld [vmem:[%s1113 + $0xc2] sm:$0xff]
      %v1517 = vld [vmem:[%s1113 + $0xca] sm:$0xff]
      %v1518 = vld [vmem:[%s1113 + $0xda] sm:$0xff]
      %v1519 = vld [vmem:[%s1113 + $0xe2] sm:$0xff]
      %v1520 = vld [vmem:[%s1113 + $0xf2] sm:$0xff]
      %v1521 = vld [vmem:[%s1113 + $0xfa] sm:$0xff]
      %v1522 = vld [vmem:[%s1113 + $0x10a] sm:$0xff]
      %v1523 = vld [vmem:[%s1113 + $0x112] sm:$0xff]
      %v1524 = vld [vmem:[%s1113 + $0x122] sm:$0xff]
      %v1525 = vld [vmem:[%s1113 + $0x12a] sm:$0xff]
      %v1526 = vld [vmem:[%s1113 + $0x13a] sm:$0xff]
      %v1527 = vld [vmem:[%s1113 + $0x142] sm:$0xff]
      %v1528 = vld [vmem:[%s1113 + $0x152] sm:$0xff]
      %v1529 = vld [vmem:[%s1113 + $0x15a] sm:$0xff]
      %v1530 = vld [vmem:[%s1113 + $0x16a] sm:$0xff]
      %v1531 = vld [vmem:[%s1113 + $0x172] sm:$0xff]
      %1564 = vrot.lane.b32.xlu0 %v1500, 12
      %v1565 = vpop.permute.xlu0 %1564
      %1566 = vrot.lane.b32.xlu0 %v1501, 12
      %v1567 = vpop.permute.xlu0 %1566
      %1568 = vrot.lane.b32.xlu0 %v1502, 12
      %v1569 = vpop.permute.xlu0 %1568
      %1570 = vrot.lane.b32.xlu0 %v1503, 12
      %v1571 = vpop.permute.xlu0 %1570
      %1572 = vrot.lane.b32.xlu0 %v1504, 12
      %v1573 = vpop.permute.xlu0 %1572
      %1574 = vrot.lane.b32.xlu0 %v1505, 12
      %v1575 = vpop.permute.xlu0 %1574
      %1576 = vrot.lane.b32.xlu0 %v1506, 12
      %v1577 = vpop.permute.xlu0 %1576
      %1578 = vrot.lane.b32.xlu0 %v1507, 12
      %v1579 = vpop.permute.xlu0 %1578
      %1580 = vrot.lane.b32.xlu0 %v1508, 12
      %v1581 = vpop.permute.xlu0 %1580
      %1582 = vrot.lane.b32.xlu0 %v1509, 12
      %v1583 = vpop.permute.xlu0 %1582
      %1584 = vrot.lane.b32.xlu0 %v1510, 12
      %v1585 = vpop.permute.xlu0 %1584
      %1586 = vrot.lane.b32.xlu0 %v1511, 12
      %v1587 = vpop.permute.xlu0 %1586
      %1588 = vrot.lane.b32.xlu0 %v1512, 12
      %v1589 = vpop.permute.xlu0 %1588
      %1590 = vrot.lane.b32.xlu0 %v1513, 12
      %v1591 = vpop.permute.xlu0 %1590
      %1592 = vrot.lane.b32.xlu0 %v1514, 12
      %v1593 = vpop.permute.xlu0 %1592
      %1594 = vrot.lane.b32.xlu0 %v1515, 12
      %v1595 = vpop.permute.xlu0 %1594
      %1596 = vrot.lane.b32.xlu0 %v1516, 12
      %v1597 = vpop.permute.xlu0 %1596
      %1598 = vrot.lane.b32.xlu0 %v1517, 12
      %v1599 = vpop.permute.xlu0 %1598
      %1600 = vrot.lane.b32.xlu0 %v1518, 12
      %v1601 = vpop.permute.xlu0 %1600
      %1602 = vrot.lane.b32.xlu0 %v1519, 12
      %v1603 = vpop.permute.xlu0 %1602
      %1604 = vrot.lane.b32.xlu0 %v1520, 12
      %v1605 = vpop.permute.xlu0 %1604
      %1606 = vrot.lane.b32.xlu0 %v1521, 12
      %v1607 = vpop.permute.xlu0 %1606
      %1608 = vrot.lane.b32.xlu0 %v1522, 12
      %v1609 = vpop.permute.xlu0 %1608
      %1610 = vrot.lane.b32.xlu0 %v1523, 12
      %v1611 = vpop.permute.xlu0 %1610
      %1612 = vrot.lane.b32.xlu0 %v1524, 12
      %v1613 = vpop.permute.xlu0 %1612
      %1614 = vrot.lane.b32.xlu0 %v1525, 12
      %v1615 = vpop.permute.xlu0 %1614
      %1616 = vrot.lane.b32.xlu0 %v1526, 12
      %v1617 = vpop.permute.xlu0 %1616
      %1618 = vrot.lane.b32.xlu0 %v1527, 12
      %v1619 = vpop.permute.xlu0 %1618
      %1620 = vrot.lane.b32.xlu0 %v1528, 12
      %v1621 = vpop.permute.xlu0 %1620
      %1622 = vrot.lane.b32.xlu0 %v1529, 12
      %v1623 = vpop.permute.xlu0 %1622
      %1624 = vrot.lane.b32.xlu0 %v1530, 12
      %v1625 = vpop.permute.xlu0 %1624
      %1626 = vrot.lane.b32.xlu0 %v1531, 12
      %v1627 = vpop.permute.xlu0 %1626
      %vm1660 = vcmask 130144
      %1661 = vst.msk [vmem:[#allocation3] sm:$0xff] %vm1660, %v1565
      %1662 = vst.msk [vmem:[#allocation3 + $0x8] sm:$0xff] %vm1660, %v1567
      %1663 = vst.msk [vmem:[#allocation3 + $0x10] sm:$0xff] %vm1660, %v1569
      %1664 = vst.msk [vmem:[#allocation3 + $0x18] sm:$0xff] %vm1660, %v1571
      %1665 = vst.msk [vmem:[#allocation3 + $0x20] sm:$0xff] %vm1660, %v1573
      %1666 = vst.msk [vmem:[#allocation3 + $0x28] sm:$0xff] %vm1660, %v1575
      %1667 = vst.msk [vmem:[#allocation3 + $0x30] sm:$0xff] %vm1660, %v1577
      %1668 = vst.msk [vmem:[#allocation3 + $0x38] sm:$0xff] %vm1660, %v1579
      %1669 = vst.msk [vmem:[#allocation3 + $0x40] sm:$0xff] %vm1660, %v1581
      %1670 = vst.msk [vmem:[#allocation3 + $0x48] sm:$0xff] %vm1660, %v1583
      %1671 = vst.msk [vmem:[#allocation3 + $0x50] sm:$0xff] %vm1660, %v1585
      %1672 = vst.msk [vmem:[#allocation3 + $0x58] sm:$0xff] %vm1660, %v1587
      %1673 = vst.msk [vmem:[#allocation3 + $0x60] sm:$0xff] %vm1660, %v1589
      %1674 = vst.msk [vmem:[#allocation3 + $0x68] sm:$0xff] %vm1660, %v1591
      %1675 = vst.msk [vmem:[#allocation3 + $0x70] sm:$0xff] %vm1660, %v1593
      %1676 = vst.msk [vmem:[#allocation3 + $0x78] sm:$0xff] %vm1660, %v1595
      %1677 = vst.msk [vmem:[#allocation3 + $0x80] sm:$0xff] %vm1660, %v1597
      %1678 = vst.msk [vmem:[#allocation3 + $0x88] sm:$0xff] %vm1660, %v1599
      %1679 = vst.msk [vmem:[#allocation3 + $0x90] sm:$0xff] %vm1660, %v1601
      %1680 = vst.msk [vmem:[#allocation3 + $0x98] sm:$0xff] %vm1660, %v1603
      %1681 = vst.msk [vmem:[#allocation3 + $0xa0] sm:$0xff] %vm1660, %v1605
      %1682 = vst.msk [vmem:[#allocation3 + $0xa8] sm:$0xff] %vm1660, %v1607
      %1683 = vst.msk [vmem:[#allocation3 + $0xb0] sm:$0xff] %vm1660, %v1609
      %1684 = vst.msk [vmem:[#allocation3 + $0xb8] sm:$0xff] %vm1660, %v1611
      %1685 = vst.msk [vmem:[#allocation3 + $0xc0] sm:$0xff] %vm1660, %v1613
      %1686 = vst.msk [vmem:[#allocation3 + $0xc8] sm:$0xff] %vm1660, %v1615
      %1687 = vst.msk [vmem:[#allocation3 + $0xd0] sm:$0xff] %vm1660, %v1617
      %1688 = vst.msk [vmem:[#allocation3 + $0xd8] sm:$0xff] %vm1660, %v1619
      %1689 = vst.msk [vmem:[#allocation3 + $0xe0] sm:$0xff] %vm1660, %v1621
      %1690 = vst.msk [vmem:[#allocation3 + $0xe8] sm:$0xff] %vm1660, %v1623
      %1691 = vst.msk [vmem:[#allocation3 + $0xf0] sm:$0xff] %vm1660, %v1625
      %1692 = vst.msk [vmem:[#allocation3 + $0xf8] sm:$0xff] %vm1660, %v1627
      %v1693 = vld [vmem:[%s757] sm:$0xff]
      %v1694 = vld [vmem:[%s757 + $0x8] sm:$0xff]
      %v1695 = vld [vmem:[%s757 + $0x18] sm:$0xff]
      %v1696 = vld [vmem:[%s757 + $0x20] sm:$0xff]
      %v1697 = vld [vmem:[%s757 + $0x30] sm:$0xff]
      %v1698 = vld [vmem:[%s757 + $0x38] sm:$0xff]
      %v1699 = vld [vmem:[%s757 + $0x48] sm:$0xff]
      %v1700 = vld [vmem:[%s757 + $0x50] sm:$0xff]
      %v1701 = vld [vmem:[%s757 + $0x60] sm:$0xff]
      %v1702 = vld [vmem:[%s757 + $0x68] sm:$0xff]
      %v1703 = vld [vmem:[%s757 + $0x78] sm:$0xff]
      %v1704 = vld [vmem:[%s757 + $0x80] sm:$0xff]
      %v1705 = vld [vmem:[%s757 + $0x90] sm:$0xff]
      %v1706 = vld [vmem:[%s757 + $0x98] sm:$0xff]
      %v1707 = vld [vmem:[%s757 + $0xa8] sm:$0xff]
      %v1708 = vld [vmem:[%s757 + $0xb0] sm:$0xff]
      %v1709 = vld [vmem:[%s757 + $0xc0] sm:$0xff]
      %v1710 = vld [vmem:[%s757 + $0xc8] sm:$0xff]
      %v1711 = vld [vmem:[%s757 + $0xd8] sm:$0xff]
      %v1712 = vld [vmem:[%s757 + $0xe0] sm:$0xff]
      %v1713 = vld [vmem:[%s757 + $0xf0] sm:$0xff]
      %v1714 = vld [vmem:[%s757 + $0xf8] sm:$0xff]
      %v1715 = vld [vmem:[%s757 + $0x108] sm:$0xff]
      %v1716 = vld [vmem:[%s757 + $0x110] sm:$0xff]
      %v1717 = vld [vmem:[%s757 + $0x120] sm:$0xff]
      %v1718 = vld [vmem:[%s757 + $0x128] sm:$0xff]
      %v1719 = vld [vmem:[%s757 + $0x138] sm:$0xff]
      %v1720 = vld [vmem:[%s757 + $0x140] sm:$0xff]
      %v1721 = vld [vmem:[%s757 + $0x150] sm:$0xff]
      %v1722 = vld [vmem:[%s757 + $0x158] sm:$0xff]
      %v1723 = vld [vmem:[%s757 + $0x168] sm:$0xff]
      %v1724 = vld [vmem:[%s757 + $0x170] sm:$0xff]
      %1757 = vrot.lane.b32.xlu0 %v1693, 16
      %v1758 = vpop.permute.xlu0 %1757
      %1759 = vrot.lane.b32.xlu0 %v1694, 16
      %v1760 = vpop.permute.xlu0 %1759
      %1761 = vrot.lane.b32.xlu0 %v1695, 16
      %v1762 = vpop.permute.xlu0 %1761
      %1763 = vrot.lane.b32.xlu0 %v1696, 16
      %v1764 = vpop.permute.xlu0 %1763
      %1765 = vrot.lane.b32.xlu0 %v1697, 16
      %v1766 = vpop.permute.xlu0 %1765
      %1767 = vrot.lane.b32.xlu0 %v1698, 16
      %v1768 = vpop.permute.xlu0 %1767
      %1769 = vrot.lane.b32.xlu0 %v1699, 16
      %v1770 = vpop.permute.xlu0 %1769
      %1771 = vrot.lane.b32.xlu0 %v1700, 16
      %v1772 = vpop.permute.xlu0 %1771
      %1773 = vrot.lane.b32.xlu0 %v1701, 16
      %v1774 = vpop.permute.xlu0 %1773
      %1775 = vrot.lane.b32.xlu0 %v1702, 16
      %v1776 = vpop.permute.xlu0 %1775
      %1777 = vrot.lane.b32.xlu0 %v1703, 16
      %v1778 = vpop.permute.xlu0 %1777
      %1779 = vrot.lane.b32.xlu0 %v1704, 16
      %v1780 = vpop.permute.xlu0 %1779
      %1781 = vrot.lane.b32.xlu0 %v1705, 16
      %v1782 = vpop.permute.xlu0 %1781
      %1783 = vrot.lane.b32.xlu0 %v1706, 16
      %v1784 = vpop.permute.xlu0 %1783
      %1785 = vrot.lane.b32.xlu0 %v1707, 16
      %v1786 = vpop.permute.xlu0 %1785
      %1787 = vrot.lane.b32.xlu0 %v1708, 16
      %v1788 = vpop.permute.xlu0 %1787
      %1789 = vrot.lane.b32.xlu0 %v1709, 16
      %v1790 = vpop.permute.xlu0 %1789
      %1791 = vrot.lane.b32.xlu0 %v1710, 16
      %v1792 = vpop.permute.xlu0 %1791
      %1793 = vrot.lane.b32.xlu0 %v1711, 16
      %v1794 = vpop.permute.xlu0 %1793
      %1795 = vrot.lane.b32.xlu0 %v1712, 16
      %v1796 = vpop.permute.xlu0 %1795
      %1797 = vrot.lane.b32.xlu0 %v1713, 16
      %v1798 = vpop.permute.xlu0 %1797
      %1799 = vrot.lane.b32.xlu0 %v1714, 16
      %v1800 = vpop.permute.xlu0 %1799
      %1801 = vrot.lane.b32.xlu0 %v1715, 16
      %v1802 = vpop.permute.xlu0 %1801
      %1803 = vrot.lane.b32.xlu0 %v1716, 16
      %v1804 = vpop.permute.xlu0 %1803
      %1805 = vrot.lane.b32.xlu0 %v1717, 16
      %v1806 = vpop.permute.xlu0 %1805
      %1807 = vrot.lane.b32.xlu0 %v1718, 16
      %v1808 = vpop.permute.xlu0 %1807
      %1809 = vrot.lane.b32.xlu0 %v1719, 16
      %v1810 = vpop.permute.xlu0 %1809
      %1811 = vrot.lane.b32.xlu0 %v1720, 16
      %v1812 = vpop.permute.xlu0 %1811
      %1813 = vrot.lane.b32.xlu0 %v1721, 16
      %v1814 = vpop.permute.xlu0 %1813
      %1815 = vrot.lane.b32.xlu0 %v1722, 16
      %v1816 = vpop.permute.xlu0 %1815
      %1817 = vrot.lane.b32.xlu0 %v1723, 16
      %v1818 = vpop.permute.xlu0 %1817
      %1819 = vrot.lane.b32.xlu0 %v1724, 16
      %v1820 = vpop.permute.xlu0 %1819
      %vm1853 = vcmask 162944
      %1854 = vst.msk [vmem:[#allocation3] sm:$0xff] %vm1853, %v1758
      %1855 = vst.msk [vmem:[#allocation3 + $0x8] sm:$0xff] %vm1853, %v1760
      %1856 = vst.msk [vmem:[#allocation3 + $0x10] sm:$0xff] %vm1853, %v1762
      %1857 = vst.msk [vmem:[#allocation3 + $0x18] sm:$0xff] %vm1853, %v1764
      %1858 = vst.msk [vmem:[#allocation3 + $0x20] sm:$0xff] %vm1853, %v1766
      %1859 = vst.msk [vmem:[#allocation3 + $0x28] sm:$0xff] %vm1853, %v1768
      %1860 = vst.msk [vmem:[#allocation3 + $0x30] sm:$0xff] %vm1853, %v1770
      %1861 = vst.msk [vmem:[#allocation3 + $0x38] sm:$0xff] %vm1853, %v1772
      %1862 = vst.msk [vmem:[#allocation3 + $0x40] sm:$0xff] %vm1853, %v1774
      %1863 = vst.msk [vmem:[#allocation3 + $0x48] sm:$0xff] %vm1853, %v1776
      %1864 = vst.msk [vmem:[#allocation3 + $0x50] sm:$0xff] %vm1853, %v1778
      %1865 = vst.msk [vmem:[#allocation3 + $0x58] sm:$0xff] %vm1853, %v1780
      %1866 = vst.msk [vmem:[#allocation3 + $0x60] sm:$0xff] %vm1853, %v1782
      %1867 = vst.msk [vmem:[#allocation3 + $0x68] sm:$0xff] %vm1853, %v1784
      %1868 = vst.msk [vmem:[#allocation3 + $0x70] sm:$0xff] %vm1853, %v1786
      %1869 = vst.msk [vmem:[#allocation3 + $0x78] sm:$0xff] %vm1853, %v1788
      %1870 = vst.msk [vmem:[#allocation3 + $0x80] sm:$0xff] %vm1853, %v1790
      %1871 = vst.msk [vmem:[#allocation3 + $0x88] sm:$0xff] %vm1853, %v1792
      %1872 = vst.msk [vmem:[#allocation3 + $0x90] sm:$0xff] %vm1853, %v1794
      %1873 = vst.msk [vmem:[#allocation3 + $0x98] sm:$0xff] %vm1853, %v1796
      %1874 = vst.msk [vmem:[#allocation3 + $0xa0] sm:$0xff] %vm1853, %v1798
      %1875 = vst.msk [vmem:[#allocation3 + $0xa8] sm:$0xff] %vm1853, %v1800
      %1876 = vst.msk [vmem:[#allocation3 + $0xb0] sm:$0xff] %vm1853, %v1802
      %1877 = vst.msk [vmem:[#allocation3 + $0xb8] sm:$0xff] %vm1853, %v1804
      %1878 = vst.msk [vmem:[#allocation3 + $0xc0] sm:$0xff] %vm1853, %v1806
      %1879 = vst.msk [vmem:[#allocation3 + $0xc8] sm:$0xff] %vm1853, %v1808
      %1880 = vst.msk [vmem:[#allocation3 + $0xd0] sm:$0xff] %vm1853, %v1810
      %1881 = vst.msk [vmem:[#allocation3 + $0xd8] sm:$0xff] %vm1853, %v1812
      %1882 = vst.msk [vmem:[#allocation3 + $0xe0] sm:$0xff] %vm1853, %v1814
      %1883 = vst.msk [vmem:[#allocation3 + $0xe8] sm:$0xff] %vm1853, %v1816
      %1884 = vst.msk [vmem:[#allocation3 + $0xf0] sm:$0xff] %vm1853, %v1818
      %1885 = vst.msk [vmem:[#allocation3 + $0xf8] sm:$0xff] %vm1853, %v1820
      %v1886 = vld [vmem:[%s596 + $0x1] sm:$0xff]
      %v1887 = vld [vmem:[%s596 + $0x9] sm:$0xff]
      %v1888 = vld [vmem:[%s596 + $0x19] sm:$0xff]
      %v1889 = vld [vmem:[%s596 + $0x21] sm:$0xff]
      %v1890 = vld [vmem:[%s596 + $0x31] sm:$0xff]
      %v1891 = vld [vmem:[%s596 + $0x39] sm:$0xff]
      %v1892 = vld [vmem:[%s596 + $0x49] sm:$0xff]
      %v1893 = vld [vmem:[%s596 + $0x51] sm:$0xff]
      %v1894 = vld [vmem:[%s596 + $0x61] sm:$0xff]
      %v1895 = vld [vmem:[%s596 + $0x69] sm:$0xff]
      %v1896 = vld [vmem:[%s596 + $0x79] sm:$0xff]
      %v1897 = vld [vmem:[%s596 + $0x81] sm:$0xff]
      %v1898 = vld [vmem:[%s596 + $0x91] sm:$0xff]
      %v1899 = vld [vmem:[%s596 + $0x99] sm:$0xff]
      %v1900 = vld [vmem:[%s596 + $0xa9] sm:$0xff]
      %v1901 = vld [vmem:[%s596 + $0xb1] sm:$0xff]
      %v1902 = vld [vmem:[%s596 + $0xc1] sm:$0xff]
      %v1903 = vld [vmem:[%s596 + $0xc9] sm:$0xff]
      %v1904 = vld [vmem:[%s596 + $0xd9] sm:$0xff]
      %v1905 = vld [vmem:[%s596 + $0xe1] sm:$0xff]
      %v1906 = vld [vmem:[%s596 + $0xf1] sm:$0xff]
      %v1907 = vld [vmem:[%s596 + $0xf9] sm:$0xff]
      %v1908 = vld [vmem:[%s596 + $0x109] sm:$0xff]
      %v1909 = vld [vmem:[%s596 + $0x111] sm:$0xff]
      %v1910 = vld [vmem:[%s596 + $0x121] sm:$0xff]
      %v1911 = vld [vmem:[%s596 + $0x129] sm:$0xff]
      %v1912 = vld [vmem:[%s596 + $0x139] sm:$0xff]
      %v1913 = vld [vmem:[%s596 + $0x141] sm:$0xff]
      %v1914 = vld [vmem:[%s596 + $0x151] sm:$0xff]
      %v1915 = vld [vmem:[%s596 + $0x159] sm:$0xff]
      %v1916 = vld [vmem:[%s596 + $0x169] sm:$0xff]
      %v1917 = vld [vmem:[%s596 + $0x171] sm:$0xff]
      %1950 = vrot.lane.b32.xlu0 %v1886, 20
      %v1951 = vpop.permute.xlu0 %1950
      %1952 = vrot.lane.b32.xlu0 %v1887, 20
      %v1953 = vpop.permute.xlu0 %1952
      %1954 = vrot.lane.b32.xlu0 %v1888, 20
      %v1955 = vpop.permute.xlu0 %1954
      %1956 = vrot.lane.b32.xlu0 %v1889, 20
      %v1957 = vpop.permute.xlu0 %1956
      %1958 = vrot.lane.b32.xlu0 %v1890, 20
      %v1959 = vpop.permute.xlu0 %1958
      %1960 = vrot.lane.b32.xlu0 %v1891, 20
      %v1961 = vpop.permute.xlu0 %1960
      %1962 = vrot.lane.b32.xlu0 %v1892, 20
      %v1963 = vpop.permute.xlu0 %1962
      %1964 = vrot.lane.b32.xlu0 %v1893, 20
      %v1965 = vpop.permute.xlu0 %1964
      %1966 = vrot.lane.b32.xlu0 %v1894, 20
      %v1967 = vpop.permute.xlu0 %1966
      %1968 = vrot.lane.b32.xlu0 %v1895, 20
      %v1969 = vpop.permute.xlu0 %1968
      %1970 = vrot.lane.b32.xlu0 %v1896, 20
      %v1971 = vpop.permute.xlu0 %1970
      %1972 = vrot.lane.b32.xlu0 %v1897, 20
      %v1973 = vpop.permute.xlu0 %1972
      %1974 = vrot.lane.b32.xlu0 %v1898, 20
      %v1975 = vpop.permute.xlu0 %1974
      %1976 = vrot.lane.b32.xlu0 %v1899, 20
      %v1977 = vpop.permute.xlu0 %1976
      %1978 = vrot.lane.b32.xlu0 %v1900, 20
      %v1979 = vpop.permute.xlu0 %1978
      %1980 = vrot.lane.b32.xlu0 %v1901, 20
      %v1981 = vpop.permute.xlu0 %1980
      %1982 = vrot.lane.b32.xlu0 %v1902, 20
      %v1983 = vpop.permute.xlu0 %1982
      %1984 = vrot.lane.b32.xlu0 %v1903, 20
      %v1985 = vpop.permute.xlu0 %1984
      %1986 = vrot.lane.b32.xlu0 %v1904, 20
      %v1987 = vpop.permute.xlu0 %1986
      %1988 = vrot.lane.b32.xlu0 %v1905, 20
      %v1989 = vpop.permute.xlu0 %1988
      %1990 = vrot.lane.b32.xlu0 %v1906, 20
      %v1991 = vpop.permute.xlu0 %1990
      %1992 = vrot.lane.b32.xlu0 %v1907, 20
      %v1993 = vpop.permute.xlu0 %1992
      %1994 = vrot.lane.b32.xlu0 %v1908, 20
      %v1995 = vpop.permute.xlu0 %1994
      %1996 = vrot.lane.b32.xlu0 %v1909, 20
      %v1997 = vpop.permute.xlu0 %1996
      %1998 = vrot.lane.b32.xlu0 %v1910, 20
      %v1999 = vpop.permute.xlu0 %1998
      %2000 = vrot.lane.b32.xlu0 %v1911, 20
      %v2001 = vpop.permute.xlu0 %2000
      %2002 = vrot.lane.b32.xlu0 %v1912, 20
      %v2003 = vpop.permute.xlu0 %2002
      %2004 = vrot.lane.b32.xlu0 %v1913, 20
      %v2005 = vpop.permute.xlu0 %2004
      %2006 = vrot.lane.b32.xlu0 %v1914, 20
      %v2007 = vpop.permute.xlu0 %2006
      %2008 = vrot.lane.b32.xlu0 %v1915, 20
      %v2009 = vpop.permute.xlu0 %2008
      %2010 = vrot.lane.b32.xlu0 %v1916, 20
      %v2011 = vpop.permute.xlu0 %2010
      %2012 = vrot.lane.b32.xlu0 %v1917, 20
      %v2013 = vpop.permute.xlu0 %2012
      %vm2046 = vcmask 195744
      %2047 = vst.msk [vmem:[#allocation3] sm:$0xff] %vm2046, %v1951
      %2048 = vst.msk [vmem:[#allocation3 + $0x8] sm:$0xff] %vm2046, %v1953
      %2049 = vst.msk [vmem:[#allocation3 + $0x10] sm:$0xff] %vm2046, %v1955
      %2050 = vst.msk [vmem:[#allocation3 + $0x18] sm:$0xff] %vm2046, %v1957
      %2051 = vst.msk [vmem:[#allocation3 + $0x20] sm:$0xff] %vm2046, %v1959
      %2052 = vst.msk [vmem:[#allocation3 + $0x28] sm:$0xff] %vm2046, %v1961
      %2053 = vst.msk [vmem:[#allocation3 + $0x30] sm:$0xff] %vm2046, %v1963
      %2054 = vst.msk [vmem:[#allocation3 + $0x38] sm:$0xff] %vm2046, %v1965
      %2055 = vst.msk [vmem:[#allocation3 + $0x40] sm:$0xff] %vm2046, %v1967
      %2056 = vst.msk [vmem:[#allocation3 + $0x48] sm:$0xff] %vm2046, %v1969
      %2057 = vst.msk [vmem:[#allocation3 + $0x50] sm:$0xff] %vm2046, %v1971
      %2058 = vst.msk [vmem:[#allocation3 + $0x58] sm:$0xff] %vm2046, %v1973
      %2059 = vst.msk [vmem:[#allocation3 + $0x60] sm:$0xff] %vm2046, %v1975
      %2060 = vst.msk [vmem:[#allocation3 + $0x68] sm:$0xff] %vm2046, %v1977
      %2061 = vst.msk [vmem:[#allocation3 + $0x70] sm:$0xff] %vm2046, %v1979
      %2062 = vst.msk [vmem:[#allocation3 + $0x78] sm:$0xff] %vm2046, %v1981
      %2063 = vst.msk [vmem:[#allocation3 + $0x80] sm:$0xff] %vm2046, %v1983
      %2064 = vst.msk [vmem:[#allocation3 + $0x88] sm:$0xff] %vm2046, %v1985
      %2065 = vst.msk [vmem:[#allocation3 + $0x90] sm:$0xff] %vm2046, %v1987
      %2066 = vst.msk [vmem:[#allocation3 + $0x98] sm:$0xff] %vm2046, %v1989
      %2067 = vst.msk [vmem:[#allocation3 + $0xa0] sm:$0xff] %vm2046, %v1991
      %2068 = vst.msk [vmem:[#allocation3 + $0xa8] sm:$0xff] %vm2046, %v1993
      %2069 = vst.msk [vmem:[#allocation3 + $0xb0] sm:$0xff] %vm2046, %v1995
      %2070 = vst.msk [vmem:[#allocation3 + $0xb8] sm:$0xff] %vm2046, %v1997
      %2071 = vst.msk [vmem:[#allocation3 + $0xc0] sm:$0xff] %vm2046, %v1999
      %2072 = vst.msk [vmem:[#allocation3 + $0xc8] sm:$0xff] %vm2046, %v2001
      %2073 = vst.msk [vmem:[#allocation3 + $0xd0] sm:$0xff] %vm2046, %v2003
      %2074 = vst.msk [vmem:[#allocation3 + $0xd8] sm:$0xff] %vm2046, %v2005
      %2075 = vst.msk [vmem:[#allocation3 + $0xe0] sm:$0xff] %vm2046, %v2007
      %2076 = vst.msk [vmem:[#allocation3 + $0xe8] sm:$0xff] %vm2046, %v2009
      %2077 = vst.msk [vmem:[#allocation3 + $0xf0] sm:$0xff] %vm2046, %v2011
      %2078 = vst.msk [vmem:[#allocation3 + $0xf8] sm:$0xff] %vm2046, %v2013
      %v2079 = vld [vmem:[%s757 + $0x1] sm:$0xff]
      %v2080 = vld [vmem:[%s757 + $0x9] sm:$0xff]
      %v2081 = vld [vmem:[%s757 + $0x19] sm:$0xff]
      %v2082 = vld [vmem:[%s757 + $0x21] sm:$0xff]
      %v2083 = vld [vmem:[%s757 + $0x31] sm:$0xff]
      %v2084 = vld [vmem:[%s757 + $0x39] sm:$0xff]
      %v2085 = vld [vmem:[%s757 + $0x49] sm:$0xff]
      %v2086 = vld [vmem:[%s757 + $0x51] sm:$0xff]
      %v2087 = vld [vmem:[%s757 + $0x61] sm:$0xff]
      %v2088 = vld [vmem:[%s757 + $0x69] sm:$0xff]
      %v2089 = vld [vmem:[%s757 + $0x79] sm:$0xff]
      %v2090 = vld [vmem:[%s757 + $0x81] sm:$0xff]
      %v2091 = vld [vmem:[%s757 + $0x91] sm:$0xff]
      %v2092 = vld [vmem:[%s757 + $0x99] sm:$0xff]
      %v2093 = vld [vmem:[%s757 + $0xa9] sm:$0xff]
      %v2094 = vld [vmem:[%s757 + $0xb1] sm:$0xff]
      %v2095 = vld [vmem:[%s757 + $0xc1] sm:$0xff]
      %v2096 = vld [vmem:[%s757 + $0xc9] sm:$0xff]
      %v2097 = vld [vmem:[%s757 + $0xd9] sm:$0xff]
      %v2098 = vld [vmem:[%s757 + $0xe1] sm:$0xff]
      %v2099 = vld [vmem:[%s757 + $0xf1] sm:$0xff]
      %v2100 = vld [vmem:[%s757 + $0xf9] sm:$0xff]
      %v2101 = vld [vmem:[%s757 + $0x109] sm:$0xff]
      %v2102 = vld [vmem:[%s757 + $0x111] sm:$0xff]
      %v2103 = vld [vmem:[%s757 + $0x121] sm:$0xff]
      %v2104 = vld [vmem:[%s757 + $0x129] sm:$0xff]
      %v2105 = vld [vmem:[%s757 + $0x139] sm:$0xff]
      %v2106 = vld [vmem:[%s757 + $0x141] sm:$0xff]
      %v2107 = vld [vmem:[%s757 + $0x151] sm:$0xff]
      %v2108 = vld [vmem:[%s757 + $0x159] sm:$0xff]
      %v2109 = vld [vmem:[%s757 + $0x169] sm:$0xff]
      %v2110 = vld [vmem:[%s757 + $0x171] sm:$0xff]
      %2143 = vrot.lane.b32.xlu0 %v2079, 24
      %v2144 = vpop.permute.xlu0 %2143
      %2145 = vrot.lane.b32.xlu0 %v2080, 24
      %v2146 = vpop.permute.xlu0 %2145
      %2147 = vrot.lane.b32.xlu0 %v2081, 24
      %v2148 = vpop.permute.xlu0 %2147
      %2149 = vrot.lane.b32.xlu0 %v2082, 24
      %v2150 = vpop.permute.xlu0 %2149
      %2151 = vrot.lane.b32.xlu0 %v2083, 24
      %v2152 = vpop.permute.xlu0 %2151
      %2153 = vrot.lane.b32.xlu0 %v2084, 24
      %v2154 = vpop.permute.xlu0 %2153
      %2155 = vrot.lane.b32.xlu0 %v2085, 24
      %v2156 = vpop.permute.xlu0 %2155
      %2157 = vrot.lane.b32.xlu0 %v2086, 24
      %v2158 = vpop.permute.xlu0 %2157
      %2159 = vrot.lane.b32.xlu0 %v2087, 24
      %v2160 = vpop.permute.xlu0 %2159
      %2161 = vrot.lane.b32.xlu0 %v2088, 24
      %v2162 = vpop.permute.xlu0 %2161
      %2163 = vrot.lane.b32.xlu0 %v2089, 24
      %v2164 = vpop.permute.xlu0 %2163
      %2165 = vrot.lane.b32.xlu0 %v2090, 24
      %v2166 = vpop.permute.xlu0 %2165
      %2167 = vrot.lane.b32.xlu0 %v2091, 24
      %v2168 = vpop.permute.xlu0 %2167
      %2169 = vrot.lane.b32.xlu0 %v2092, 24
      %v2170 = vpop.permute.xlu0 %2169
      %2171 = vrot.lane.b32.xlu0 %v2093, 24
      %v2172 = vpop.permute.xlu0 %2171
      %2173 = vrot.lane.b32.xlu0 %v2094, 24
      %v2174 = vpop.permute.xlu0 %2173
      %2175 = vrot.lane.b32.xlu0 %v2095, 24
      %v2176 = vpop.permute.xlu0 %2175
      %2177 = vrot.lane.b32.xlu0 %v2096, 24
      %v2178 = vpop.permute.xlu0 %2177
      %2179 = vrot.lane.b32.xlu0 %v2097, 24
      %v2180 = vpop.permute.xlu0 %2179
      %2181 = vrot.lane.b32.xlu0 %v2098, 24
      %v2182 = vpop.permute.xlu0 %2181
      %2183 = vrot.lane.b32.xlu0 %v2099, 24
      %v2184 = vpop.permute.xlu0 %2183
      %2185 = vrot.lane.b32.xlu0 %v2100, 24
      %v2186 = vpop.permute.xlu0 %2185
      %2187 = vrot.lane.b32.xlu0 %v2101, 24
      %v2188 = vpop.permute.xlu0 %2187
      %2189 = vrot.lane.b32.xlu0 %v2102, 24
      %v2190 = vpop.permute.xlu0 %2189
      %2191 = vrot.lane.b32.xlu0 %v2103, 24
      %v2192 = vpop.permute.xlu0 %2191
      %2193 = vrot.lane.b32.xlu0 %v2104, 24
      %v2194 = vpop.permute.xlu0 %2193
      %2195 = vrot.lane.b32.xlu0 %v2105, 24
      %v2196 = vpop.permute.xlu0 %2195
      %2197 = vrot.lane.b32.xlu0 %v2106, 24
      %v2198 = vpop.permute.xlu0 %2197
      %2199 = vrot.lane.b32.xlu0 %v2107, 24
      %v2200 = vpop.permute.xlu0 %2199
      %2201 = vrot.lane.b32.xlu0 %v2108, 24
      %v2202 = vpop.permute.xlu0 %2201
      %2203 = vrot.lane.b32.xlu0 %v2109, 24
      %v2204 = vpop.permute.xlu0 %2203
      %2205 = vrot.lane.b32.xlu0 %v2110, 24
      %v2206 = vpop.permute.xlu0 %2205
      %vm2239 = vcmask 228544
      %2240 = vst.msk [vmem:[#allocation3] sm:$0xff] %vm2239, %v2144
      %2241 = vst.msk [vmem:[#allocation3 + $0x8] sm:$0xff] %vm2239, %v2146
      %2242 = vst.msk [vmem:[#allocation3 + $0x10] sm:$0xff] %vm2239, %v2148
      %2243 = vst.msk [vmem:[#allocation3 + $0x18] sm:$0xff] %vm2239, %v2150
      %2244 = vst.msk [vmem:[#allocation3 + $0x20] sm:$0xff] %vm2239, %v2152
      %2245 = vst.msk [vmem:[#allocation3 + $0x28] sm:$0xff] %vm2239, %v2154
      %2246 = vst.msk [vmem:[#allocation3 + $0x30] sm:$0xff] %vm2239, %v2156
      %2247 = vst.msk [vmem:[#allocation3 + $0x38] sm:$0xff] %vm2239, %v2158
      %2248 = vst.msk [vmem:[#allocation3 + $0x40] sm:$0xff] %vm2239, %v2160
      %2249 = vst.msk [vmem:[#allocation3 + $0x48] sm:$0xff] %vm2239, %v2162
      %2250 = vst.msk [vmem:[#allocation3 + $0x50] sm:$0xff] %vm2239, %v2164
      %2251 = vst.msk [vmem:[#allocation3 + $0x58] sm:$0xff] %vm2239, %v2166
      %2252 = vst.msk [vmem:[#allocation3 + $0x60] sm:$0xff] %vm2239, %v2168
      %2253 = vst.msk [vmem:[#allocation3 + $0x68] sm:$0xff] %vm2239, %v2170
      %2254 = vst.msk [vmem:[#allocation3 + $0x70] sm:$0xff] %vm2239, %v2172
      %2255 = vst.msk [vmem:[#allocation3 + $0x78] sm:$0xff] %vm2239, %v2174
      %2256 = vst.msk [vmem:[#allocation3 + $0x80] sm:$0xff] %vm2239, %v2176
      %2257 = vst.msk [vmem:[#allocation3 + $0x88] sm:$0xff] %vm2239, %v2178
      %2258 = vst.msk [vmem:[#allocation3 + $0x90] sm:$0xff] %vm2239, %v2180
      %2259 = vst.msk [vmem:[#allocation3 + $0x98] sm:$0xff] %vm2239, %v2182
      %2260 = vst.msk [vmem:[#allocation3 + $0xa0] sm:$0xff] %vm2239, %v2184
      %2261 = vst.msk [vmem:[#allocation3 + $0xa8] sm:$0xff] %vm2239, %v2186
      %2262 = vst.msk [vmem:[#allocation3 + $0xb0] sm:$0xff] %vm2239, %v2188
      %2263 = vst.msk [vmem:[#allocation3 + $0xb8] sm:$0xff] %vm2239, %v2190
      %2264 = vst.msk [vmem:[#allocation3 + $0xc0] sm:$0xff] %vm2239, %v2192
      %2265 = vst.msk [vmem:[#allocation3 + $0xc8] sm:$0xff] %vm2239, %v2194
      %2266 = vst.msk [vmem:[#allocation3 + $0xd0] sm:$0xff] %vm2239, %v2196
      %2267 = vst.msk [vmem:[#allocation3 + $0xd8] sm:$0xff] %vm2239, %v2198
      %2268 = vst.msk [vmem:[#allocation3 + $0xe0] sm:$0xff] %vm2239, %v2200
      %2269 = vst.msk [vmem:[#allocation3 + $0xe8] sm:$0xff] %vm2239, %v2202
      %2270 = vst.msk [vmem:[#allocation3 + $0xf0] sm:$0xff] %vm2239, %v2204
      %2271 = vst.msk [vmem:[#allocation3 + $0xf8] sm:$0xff] %vm2239, %v2206
      %v2272 = vld [vmem:[%s596 + $0x2] sm:$0xff]
      %v2273 = vld [vmem:[%s596 + $0xa] sm:$0xff]
      %v2274 = vld [vmem:[%s596 + $0x1a] sm:$0xff]
      %v2275 = vld [vmem:[%s596 + $0x22] sm:$0xff]
      %v2276 = vld [vmem:[%s596 + $0x32] sm:$0xff]
      %v2277 = vld [vmem:[%s596 + $0x3a] sm:$0xff]
      %v2278 = vld [vmem:[%s596 + $0x4a] sm:$0xff]
      %v2279 = vld [vmem:[%s596 + $0x52] sm:$0xff]
      %v2280 = vld [vmem:[%s596 + $0x62] sm:$0xff]
      %v2281 = vld [vmem:[%s596 + $0x6a] sm:$0xff]
      %v2282 = vld [vmem:[%s596 + $0x7a] sm:$0xff]
      %v2283 = vld [vmem:[%s596 + $0x82] sm:$0xff]
      %v2284 = vld [vmem:[%s596 + $0x92] sm:$0xff]
      %v2285 = vld [vmem:[%s596 + $0x9a] sm:$0xff]
      %v2286 = vld [vmem:[%s596 + $0xaa] sm:$0xff]
      %v2287 = vld [vmem:[%s596 + $0xb2] sm:$0xff]
      %v2288 = vld [vmem:[%s596 + $0xc2] sm:$0xff]
      %v2289 = vld [vmem:[%s596 + $0xca] sm:$0xff]
      %v2290 = vld [vmem:[%s596 + $0xda] sm:$0xff]
      %v2291 = vld [vmem:[%s596 + $0xe2] sm:$0xff]
      %v2292 = vld [vmem:[%s596 + $0xf2] sm:$0xff]
      %v2293 = vld [vmem:[%s596 + $0xfa] sm:$0xff]
      %v2294 = vld [vmem:[%s596 + $0x10a] sm:$0xff]
      %v2295 = vld [vmem:[%s596 + $0x112] sm:$0xff]
      %v2296 = vld [vmem:[%s596 + $0x122] sm:$0xff]
      %v2297 = vld [vmem:[%s596 + $0x12a] sm:$0xff]
      %v2298 = vld [vmem:[%s596 + $0x13a] sm:$0xff]
      %v2299 = vld [vmem:[%s596 + $0x142] sm:$0xff]
      %v2300 = vld [vmem:[%s596 + $0x152] sm:$0xff]
      %v2301 = vld [vmem:[%s596 + $0x15a] sm:$0xff]
      %v2302 = vld [vmem:[%s596 + $0x16a] sm:$0xff]
      %v2303 = vld [vmem:[%s596 + $0x172] sm:$0xff]
      %2336 = vrot.lane.b32.xlu0 %v2272, 28
      %v2337 = vpop.permute.xlu0 %2336
      %2338 = vrot.lane.b32.xlu0 %v2273, 28
      %v2339 = vpop.permute.xlu0 %2338
      %2340 = vrot.lane.b32.xlu0 %v2274, 28
      %v2341 = vpop.permute.xlu0 %2340
      %2342 = vrot.lane.b32.xlu0 %v2275, 28
      %v2343 = vpop.permute.xlu0 %2342
      %2344 = vrot.lane.b32.xlu0 %v2276, 28
      %v2345 = vpop.permute.xlu0 %2344
      %2346 = vrot.lane.b32.xlu0 %v2277, 28
      %v2347 = vpop.permute.xlu0 %2346
      %2348 = vrot.lane.b32.xlu0 %v2278, 28
      %v2349 = vpop.permute.xlu0 %2348
      %2350 = vrot.lane.b32.xlu0 %v2279, 28
      %v2351 = vpop.permute.xlu0 %2350
      %2352 = vrot.lane.b32.xlu0 %v2280, 28
      %v2353 = vpop.permute.xlu0 %2352
      %2354 = vrot.lane.b32.xlu0 %v2281, 28
      %v2355 = vpop.permute.xlu0 %2354
      %2356 = vrot.lane.b32.xlu0 %v2282, 28
      %v2357 = vpop.permute.xlu0 %2356
      %2358 = vrot.lane.b32.xlu0 %v2283, 28
      %v2359 = vpop.permute.xlu0 %2358
      %2360 = vrot.lane.b32.xlu0 %v2284, 28
      %v2361 = vpop.permute.xlu0 %2360
      %2362 = vrot.lane.b32.xlu0 %v2285, 28
      %v2363 = vpop.permute.xlu0 %2362
      %2364 = vrot.lane.b32.xlu0 %v2286, 28
      %v2365 = vpop.permute.xlu0 %2364
      %2366 = vrot.lane.b32.xlu0 %v2287, 28
      %v2367 = vpop.permute.xlu0 %2366
      %2368 = vrot.lane.b32.xlu0 %v2288, 28
      %v2369 = vpop.permute.xlu0 %2368
      %2370 = vrot.lane.b32.xlu0 %v2289, 28
      %v2371 = vpop.permute.xlu0 %2370
      %2372 = vrot.lane.b32.xlu0 %v2290, 28
      %v2373 = vpop.permute.xlu0 %2372
      %2374 = vrot.lane.b32.xlu0 %v2291, 28
      %v2375 = vpop.permute.xlu0 %2374
      %2376 = vrot.lane.b32.xlu0 %v2292, 28
      %v2377 = vpop.permute.xlu0 %2376
      %2378 = vrot.lane.b32.xlu0 %v2293, 28
      %v2379 = vpop.permute.xlu0 %2378
      %2380 = vrot.lane.b32.xlu0 %v2294, 28
      %v2381 = vpop.permute.xlu0 %2380
      %2382 = vrot.lane.b32.xlu0 %v2295, 28
      %v2383 = vpop.permute.xlu0 %2382
      %2384 = vrot.lane.b32.xlu0 %v2296, 28
      %v2385 = vpop.permute.xlu0 %2384
      %2386 = vrot.lane.b32.xlu0 %v2297, 28
      %v2387 = vpop.permute.xlu0 %2386
      %2388 = vrot.lane.b32.xlu0 %v2298, 28
      %v2389 = vpop.permute.xlu0 %2388
      %2390 = vrot.lane.b32.xlu0 %v2299, 28
      %v2391 = vpop.permute.xlu0 %2390
      %2392 = vrot.lane.b32.xlu0 %v2300, 28
      %v2393 = vpop.permute.xlu0 %2392
      %2394 = vrot.lane.b32.xlu0 %v2301, 28
      %v2395 = vpop.permute.xlu0 %2394
      %2396 = vrot.lane.b32.xlu0 %v2302, 28
      %v2397 = vpop.permute.xlu0 %2396
      %2398 = vrot.lane.b32.xlu0 %v2303, 28
      %v2399 = vpop.permute.xlu0 %2398
      %vm2432 = vcmask 261344
      %2433 = vst.msk [vmem:[#allocation3] sm:$0xff] %vm2432, %v2337
      %2434 = vst.msk [vmem:[#allocation3 + $0x8] sm:$0xff] %vm2432, %v2339
      %2435 = vst.msk [vmem:[#allocation3 + $0x10] sm:$0xff] %vm2432, %v2341
      %2436 = vst.msk [vmem:[#allocation3 + $0x18] sm:$0xff] %vm2432, %v2343
      %2437 = vst.msk [vmem:[#allocation3 + $0x20] sm:$0xff] %vm2432, %v2345
      %2438 = vst.msk [vmem:[#allocation3 + $0x28] sm:$0xff] %vm2432, %v2347
      %2439 = vst.msk [vmem:[#allocation3 + $0x30] sm:$0xff] %vm2432, %v2349
      %2440 = vst.msk [vmem:[#allocation3 + $0x38] sm:$0xff] %vm2432, %v2351
      %2441 = vst.msk [vmem:[#allocation3 + $0x40] sm:$0xff] %vm2432, %v2353
      %2442 = vst.msk [vmem:[#allocation3 + $0x48] sm:$0xff] %vm2432, %v2355
      %2443 = vst.msk [vmem:[#allocation3 + $0x50] sm:$0xff] %vm2432, %v2357
      %2444 = vst.msk [vmem:[#allocation3 + $0x58] sm:$0xff] %vm2432, %v2359
      %2445 = vst.msk [vmem:[#allocation3 + $0x60] sm:$0xff] %vm2432, %v2361
      %2446 = vst.msk [vmem:[#allocation3 + $0x68] sm:$0xff] %vm2432, %v2363
      %2447 = vst.msk [vmem:[#allocation3 + $0x70] sm:$0xff] %vm2432, %v2365
      %2448 = vst.msk [vmem:[#allocation3 + $0x78] sm:$0xff] %vm2432, %v2367
      %2449 = vst.msk [vmem:[#allocation3 + $0x80] sm:$0xff] %vm2432, %v2369
      %2450 = vst.msk [vmem:[#allocation3 + $0x88] sm:$0xff] %vm2432, %v2371
      %2451 = vst.msk [vmem:[#allocation3 + $0x90] sm:$0xff] %vm2432, %v2373
      %2452 = vst.msk [vmem:[#allocation3 + $0x98] sm:$0xff] %vm2432, %v2375
      %2453 = vst.msk [vmem:[#allocation3 + $0xa0] sm:$0xff] %vm2432, %v2377
      %2454 = vst.msk [vmem:[#allocation3 + $0xa8] sm:$0xff] %vm2432, %v2379
      %2455 = vst.msk [vmem:[#allocation3 + $0xb0] sm:$0xff] %vm2432, %v2381
      %2456 = vst.msk [vmem:[#allocation3 + $0xb8] sm:$0xff] %vm2432, %v2383
      %2457 = vst.msk [vmem:[#allocation3 + $0xc0] sm:$0xff] %vm2432, %v2385
      %2458 = vst.msk [vmem:[#allocation3 + $0xc8] sm:$0xff] %vm2432, %v2387
      %2459 = vst.msk [vmem:[#allocation3 + $0xd0] sm:$0xff] %vm2432, %v2389
      %2460 = vst.msk [vmem:[#allocation3 + $0xd8] sm:$0xff] %vm2432, %v2391
      %2461 = vst.msk [vmem:[#allocation3 + $0xe0] sm:$0xff] %vm2432, %v2393
      %2462 = vst.msk [vmem:[#allocation3 + $0xe8] sm:$0xff] %vm2432, %v2395
      %2463 = vst.msk [vmem:[#allocation3 + $0xf0] sm:$0xff] %vm2432, %v2397
      %2464 = vst.msk [vmem:[#allocation3 + $0xf8] sm:$0xff] %vm2432, %v2399
      %v2465 = vld [vmem:[%s1015] sm:$0xff]
      %v2466 = vld [vmem:[%s1015 + $0x8] sm:$0xff]
      %v2467 = vld [vmem:[%s1015 + $0x18] sm:$0xff]
      %v2468 = vld [vmem:[%s1015 + $0x20] sm:$0xff]
      %v2469 = vld [vmem:[%s1015 + $0x30] sm:$0xff]
      %v2470 = vld [vmem:[%s1015 + $0x38] sm:$0xff]
      %v2471 = vld [vmem:[%s1015 + $0x48] sm:$0xff]
      %v2472 = vld [vmem:[%s1015 + $0x50] sm:$0xff]
      %v2473 = vld [vmem:[%s1015 + $0x60] sm:$0xff]
      %v2474 = vld [vmem:[%s1015 + $0x68] sm:$0xff]
      %v2475 = vld [vmem:[%s1015 + $0x78] sm:$0xff]
      %v2476 = vld [vmem:[%s1015 + $0x80] sm:$0xff]
      %v2477 = vld [vmem:[%s1015 + $0x90] sm:$0xff]
      %v2478 = vld [vmem:[%s1015 + $0x98] sm:$0xff]
      %v2479 = vld [vmem:[%s1015 + $0xa8] sm:$0xff]
      %v2480 = vld [vmem:[%s1015 + $0xb0] sm:$0xff]
      %v2481 = vld [vmem:[%s1015 + $0xc0] sm:$0xff]
      %v2482 = vld [vmem:[%s1015 + $0xc8] sm:$0xff]
      %v2483 = vld [vmem:[%s1015 + $0xd8] sm:$0xff]
      %v2484 = vld [vmem:[%s1015 + $0xe0] sm:$0xff]
      %v2485 = vld [vmem:[%s1015 + $0xf0] sm:$0xff]
      %v2486 = vld [vmem:[%s1015 + $0xf8] sm:$0xff]
      %v2487 = vld [vmem:[%s1015 + $0x108] sm:$0xff]
      %v2488 = vld [vmem:[%s1015 + $0x110] sm:$0xff]
      %v2489 = vld [vmem:[%s1015 + $0x120] sm:$0xff]
      %v2490 = vld [vmem:[%s1015 + $0x128] sm:$0xff]
      %v2491 = vld [vmem:[%s1015 + $0x138] sm:$0xff]
      %v2492 = vld [vmem:[%s1015 + $0x140] sm:$0xff]
      %v2493 = vld [vmem:[%s1015 + $0x150] sm:$0xff]
      %v2494 = vld [vmem:[%s1015 + $0x158] sm:$0xff]
      %v2495 = vld [vmem:[%s1015 + $0x168] sm:$0xff]
      %v2496 = vld [vmem:[%s1015 + $0x170] sm:$0xff]
      %2529 = vrot.lane.b32.xlu0 %v2465, 32
      %v2530 = vpop.permute.xlu0 %2529
      %2531 = vrot.lane.b32.xlu0 %v2466, 32
      %v2532 = vpop.permute.xlu0 %2531
      %2533 = vrot.lane.b32.xlu0 %v2467, 32
      %v2534 = vpop.permute.xlu0 %2533
      %2535 = vrot.lane.b32.xlu0 %v2468, 32
      %v2536 = vpop.permute.xlu0 %2535
      %2537 = vrot.lane.b32.xlu0 %v2469, 32
      %v2538 = vpop.permute.xlu0 %2537
      %2539 = vrot.lane.b32.xlu0 %v2470, 32
      %v2540 = vpop.permute.xlu0 %2539
      %2541 = vrot.lane.b32.xlu0 %v2471, 32
      %v2542 = vpop.permute.xlu0 %2541
      %2543 = vrot.lane.b32.xlu0 %v2472, 32
      %v2544 = vpop.permute.xlu0 %2543
      %2545 = vrot.lane.b32.xlu0 %v2473, 32
      %v2546 = vpop.permute.xlu0 %2545
      %2547 = vrot.lane.b32.xlu0 %v2474, 32
      %v2548 = vpop.permute.xlu0 %2547
      %2549 = vrot.lane.b32.xlu0 %v2475, 32
      %v2550 = vpop.permute.xlu0 %2549
      %2551 = vrot.lane.b32.xlu0 %v2476, 32
      %v2552 = vpop.permute.xlu0 %2551
      %2553 = vrot.lane.b32.xlu0 %v2477, 32
      %v2554 = vpop.permute.xlu0 %2553
      %2555 = vrot.lane.b32.xlu0 %v2478, 32
      %v2556 = vpop.permute.xlu0 %2555
      %2557 = vrot.lane.b32.xlu0 %v2479, 32
      %v2558 = vpop.permute.xlu0 %2557
      %2559 = vrot.lane.b32.xlu0 %v2480, 32
      %v2560 = vpop.permute.xlu0 %2559
      %2561 = vrot.lane.b32.xlu0 %v2481, 32
      %v2562 = vpop.permute.xlu0 %2561
      %2563 = vrot.lane.b32.xlu0 %v2482, 32
      %v2564 = vpop.permute.xlu0 %2563
      %2565 = vrot.lane.b32.xlu0 %v2483, 32
      %v2566 = vpop.permute.xlu0 %2565
      %2567 = vrot.lane.b32.xlu0 %v2484, 32
      %v2568 = vpop.permute.xlu0 %2567
      %2569 = vrot.lane.b32.xlu0 %v2485, 32
      %v2570 = vpop.permute.xlu0 %2569
      %2571 = vrot.lane.b32.xlu0 %v2486, 32
      %v2572 = vpop.permute.xlu0 %2571
      %2573 = vrot.lane.b32.xlu0 %v2487, 32
      %v2574 = vpop.permute.xlu0 %2573
      %2575 = vrot.lane.b32.xlu0 %v2488, 32
      %v2576 = vpop.permute.xlu0 %2575
      %2577 = vrot.lane.b32.xlu0 %v2489, 32
      %v2578 = vpop.permute.xlu0 %2577
      %2579 = vrot.lane.b32.xlu0 %v2490, 32
      %v2580 = vpop.permute.xlu0 %2579
      %2581 = vrot.lane.b32.xlu0 %v2491, 32
      %v2582 = vpop.permute.xlu0 %2581
      %2583 = vrot.lane.b32.xlu0 %v2492, 32
      %v2584 = vpop.permute.xlu0 %2583
      %2585 = vrot.lane.b32.xlu0 %v2493, 32
      %v2586 = vpop.permute.xlu0 %2585
      %2587 = vrot.lane.b32.xlu0 %v2494, 32
      %v2588 = vpop.permute.xlu0 %2587
      %2589 = vrot.lane.b32.xlu0 %v2495, 32
      %v2590 = vpop.permute.xlu0 %2589
      %2591 = vrot.lane.b32.xlu0 %v2496, 32
      %v2592 = vpop.permute.xlu0 %2591
      %vm2625 = vcmask 294144
      %2626 = vst.msk [vmem:[#allocation3] sm:$0xff] %vm2625, %v2530
      %2627 = vst.msk [vmem:[#allocation3 + $0x8] sm:$0xff] %vm2625, %v2532
      %2628 = vst.msk [vmem:[#allocation3 + $0x10] sm:$0xff] %vm2625, %v2534
      %2629 = vst.msk [vmem:[#allocation3 + $0x18] sm:$0xff] %vm2625, %v2536
      %2630 = vst.msk [vmem:[#allocation3 + $0x20] sm:$0xff] %vm2625, %v2538
      %2631 = vst.msk [vmem:[#allocation3 + $0x28] sm:$0xff] %vm2625, %v2540
      %2632 = vst.msk [vmem:[#allocation3 + $0x30] sm:$0xff] %vm2625, %v2542
      %2633 = vst.msk [vmem:[#allocation3 + $0x38] sm:$0xff] %vm2625, %v2544
      %2634 = vst.msk [vmem:[#allocation3 + $0x40] sm:$0xff] %vm2625, %v2546
      %2635 = vst.msk [vmem:[#allocation3 + $0x48] sm:$0xff] %vm2625, %v2548
      %2636 = vst.msk [vmem:[#allocation3 + $0x50] sm:$0xff] %vm2625, %v2550
      %2637 = vst.msk [vmem:[#allocation3 + $0x58] sm:$0xff] %vm2625, %v2552
      %2638 = vst.msk [vmem:[#allocation3 + $0x60] sm:$0xff] %vm2625, %v2554
      %2639 = vst.msk [vmem:[#allocation3 + $0x68] sm:$0xff] %vm2625, %v2556
      %2640 = vst.msk [vmem:[#allocation3 + $0x70] sm:$0xff] %vm2625, %v2558
      %2641 = vst.msk [vmem:[#allocation3 + $0x78] sm:$0xff] %vm2625, %v2560
      %2642 = vst.msk [vmem:[#allocation3 + $0x80] sm:$0xff] %vm2625, %v2562
      %2643 = vst.msk [vmem:[#allocation3 + $0x88] sm:$0xff] %vm2625, %v2564
      %2644 = vst.msk [vmem:[#allocation3 + $0x90] sm:$0xff] %vm2625, %v2566
      %2645 = vst.msk [vmem:[#allocation3 + $0x98] sm:$0xff] %vm2625, %v2568
      %2646 = vst.msk [vmem:[#allocation3 + $0xa0] sm:$0xff] %vm2625, %v2570
      %2647 = vst.msk [vmem:[#allocation3 + $0xa8] sm:$0xff] %vm2625, %v2572
      %2648 = vst.msk [vmem:[#allocation3 + $0xb0] sm:$0xff] %vm2625, %v2574
      %2649 = vst.msk [vmem:[#allocation3 + $0xb8] sm:$0xff] %vm2625, %v2576
      %2650 = vst.msk [vmem:[#allocation3 + $0xc0] sm:$0xff] %vm2625, %v2578
      %2651 = vst.msk [vmem:[#allocation3 + $0xc8] sm:$0xff] %vm2625, %v2580
      %2652 = vst.msk [vmem:[#allocation3 + $0xd0] sm:$0xff] %vm2625, %v2582
      %2653 = vst.msk [vmem:[#allocation3 + $0xd8] sm:$0xff] %vm2625, %v2584
      %2654 = vst.msk [vmem:[#allocation3 + $0xe0] sm:$0xff] %vm2625, %v2586
      %2655 = vst.msk [vmem:[#allocation3 + $0xe8] sm:$0xff] %vm2625, %v2588
      %2656 = vst.msk [vmem:[#allocation3 + $0xf0] sm:$0xff] %vm2625, %v2590
      %2657 = vst.msk [vmem:[#allocation3 + $0xf8] sm:$0xff] %vm2625, %v2592
      %v2658 = vld [vmem:[%s886 + $0x1] sm:$0xff]
      %v2659 = vld [vmem:[%s886 + $0x9] sm:$0xff]
      %v2660 = vld [vmem:[%s886 + $0x19] sm:$0xff]
      %v2661 = vld [vmem:[%s886 + $0x21] sm:$0xff]
      %v2662 = vld [vmem:[%s886 + $0x31] sm:$0xff]
      %v2663 = vld [vmem:[%s886 + $0x39] sm:$0xff]
      %v2664 = vld [vmem:[%s886 + $0x49] sm:$0xff]
      %v2665 = vld [vmem:[%s886 + $0x51] sm:$0xff]
      %v2666 = vld [vmem:[%s886 + $0x61] sm:$0xff]
      %v2667 = vld [vmem:[%s886 + $0x69] sm:$0xff]
      %v2668 = vld [vmem:[%s886 + $0x79] sm:$0xff]
      %v2669 = vld [vmem:[%s886 + $0x81] sm:$0xff]
      %v2670 = vld [vmem:[%s886 + $0x91] sm:$0xff]
      %v2671 = vld [vmem:[%s886 + $0x99] sm:$0xff]
      %v2672 = vld [vmem:[%s886 + $0xa9] sm:$0xff]
      %v2673 = vld [vmem:[%s886 + $0xb1] sm:$0xff]
      %v2674 = vld [vmem:[%s886 + $0xc1] sm:$0xff]
      %v2675 = vld [vmem:[%s886 + $0xc9] sm:$0xff]
      %v2676 = vld [vmem:[%s886 + $0xd9] sm:$0xff]
      %v2677 = vld [vmem:[%s886 + $0xe1] sm:$0xff]
      %v2678 = vld [vmem:[%s886 + $0xf1] sm:$0xff]
      %v2679 = vld [vmem:[%s886 + $0xf9] sm:$0xff]
      %v2680 = vld [vmem:[%s886 + $0x109] sm:$0xff]
      %v2681 = vld [vmem:[%s886 + $0x111] sm:$0xff]
      %v2682 = vld [vmem:[%s886 + $0x121] sm:$0xff]
      %v2683 = vld [vmem:[%s886 + $0x129] sm:$0xff]
      %v2684 = vld [vmem:[%s886 + $0x139] sm:$0xff]
      %v2685 = vld [vmem:[%s886 + $0x141] sm:$0xff]
      %v2686 = vld [vmem:[%s886 + $0x151] sm:$0xff]
      %v2687 = vld [vmem:[%s886 + $0x159] sm:$0xff]
      %v2688 = vld [vmem:[%s886 + $0x169] sm:$0xff]
      %v2689 = vld [vmem:[%s886 + $0x171] sm:$0xff]
      %2722 = vrot.lane.b32.xlu0 %v2658, 36
      %v2723 = vpop.permute.xlu0 %2722
      %2724 = vrot.lane.b32.xlu0 %v2659, 36
      %v2725 = vpop.permute.xlu0 %2724
      %2726 = vrot.lane.b32.xlu0 %v2660, 36
      %v2727 = vpop.permute.xlu0 %2726
      %2728 = vrot.lane.b32.xlu0 %v2661, 36
      %v2729 = vpop.permute.xlu0 %2728
      %2730 = vrot.lane.b32.xlu0 %v2662, 36
      %v2731 = vpop.permute.xlu0 %2730
      %2732 = vrot.lane.b32.xlu0 %v2663, 36
      %v2733 = vpop.permute.xlu0 %2732
      %2734 = vrot.lane.b32.xlu0 %v2664, 36
      %v2735 = vpop.permute.xlu0 %2734
      %2736 = vrot.lane.b32.xlu0 %v2665, 36
      %v2737 = vpop.permute.xlu0 %2736
      %2738 = vrot.lane.b32.xlu0 %v2666, 36
      %v2739 = vpop.permute.xlu0 %2738
      %2740 = vrot.lane.b32.xlu0 %v2667, 36
      %v2741 = vpop.permute.xlu0 %2740
      %2742 = vrot.lane.b32.xlu0 %v2668, 36
      %v2743 = vpop.permute.xlu0 %2742
      %2744 = vrot.lane.b32.xlu0 %v2669, 36
      %v2745 = vpop.permute.xlu0 %2744
      %2746 = vrot.lane.b32.xlu0 %v2670, 36
      %v2747 = vpop.permute.xlu0 %2746
      %2748 = vrot.lane.b32.xlu0 %v2671, 36
      %v2749 = vpop.permute.xlu0 %2748
      %2750 = vrot.lane.b32.xlu0 %v2672, 36
      %v2751 = vpop.permute.xlu0 %2750
      %2752 = vrot.lane.b32.xlu0 %v2673, 36
      %v2753 = vpop.permute.xlu0 %2752
      %2754 = vrot.lane.b32.xlu0 %v2674, 36
      %v2755 = vpop.permute.xlu0 %2754
      %2756 = vrot.lane.b32.xlu0 %v2675, 36
      %v2757 = vpop.permute.xlu0 %2756
      %2758 = vrot.lane.b32.xlu0 %v2676, 36
      %v2759 = vpop.permute.xlu0 %2758
      %2760 = vrot.lane.b32.xlu0 %v2677, 36
      %v2761 = vpop.permute.xlu0 %2760
      %2762 = vrot.lane.b32.xlu0 %v2678, 36
      %v2763 = vpop.permute.xlu0 %2762
      %2764 = vrot.lane.b32.xlu0 %v2679, 36
      %v2765 = vpop.permute.xlu0 %2764
      %2766 = vrot.lane.b32.xlu0 %v2680, 36
      %v2767 = vpop.permute.xlu0 %2766
      %2768 = vrot.lane.b32.xlu0 %v2681, 36
      %v2769 = vpop.permute.xlu0 %2768
      %2770 = vrot.lane.b32.xlu0 %v2682, 36
      %v2771 = vpop.permute.xlu0 %2770
      %2772 = vrot.lane.b32.xlu0 %v2683, 36
      %v2773 = vpop.permute.xlu0 %2772
      %2774 = vrot.lane.b32.xlu0 %v2684, 36
      %v2775 = vpop.permute.xlu0 %2774
      %2776 = vrot.lane.b32.xlu0 %v2685, 36
      %v2777 = vpop.permute.xlu0 %2776
      %2778 = vrot.lane.b32.xlu0 %v2686, 36
      %v2779 = vpop.permute.xlu0 %2778
      %2780 = vrot.lane.b32.xlu0 %v2687, 36
      %v2781 = vpop.permute.xlu0 %2780
      %2782 = vrot.lane.b32.xlu0 %v2688, 36
      %v2783 = vpop.permute.xlu0 %2782
      %2784 = vrot.lane.b32.xlu0 %v2689, 36
      %v2785 = vpop.permute.xlu0 %2784
      %vm2818 = vcmask 326944
      %2819 = vst.msk [vmem:[#allocation3] sm:$0xff] %vm2818, %v2723
      %2820 = vst.msk [vmem:[#allocation3 + $0x8] sm:$0xff] %vm2818, %v2725
      %2821 = vst.msk [vmem:[#allocation3 + $0x10] sm:$0xff] %vm2818, %v2727
      %2822 = vst.msk [vmem:[#allocation3 + $0x18] sm:$0xff] %vm2818, %v2729
      %2823 = vst.msk [vmem:[#allocation3 + $0x20] sm:$0xff] %vm2818, %v2731
      %2824 = vst.msk [vmem:[#allocation3 + $0x28] sm:$0xff] %vm2818, %v2733
      %2825 = vst.msk [vmem:[#allocation3 + $0x30] sm:$0xff] %vm2818, %v2735
      %2826 = vst.msk [vmem:[#allocation3 + $0x38] sm:$0xff] %vm2818, %v2737
      %2827 = vst.msk [vmem:[#allocation3 + $0x40] sm:$0xff] %vm2818, %v2739
      %2828 = vst.msk [vmem:[#allocation3 + $0x48] sm:$0xff] %vm2818, %v2741
      %2829 = vst.msk [vmem:[#allocation3 + $0x50] sm:$0xff] %vm2818, %v2743
      %2830 = vst.msk [vmem:[#allocation3 + $0x58] sm:$0xff] %vm2818, %v2745
      %2831 = vst.msk [vmem:[#allocation3 + $0x60] sm:$0xff] %vm2818, %v2747
      %2832 = vst.msk [vmem:[#allocation3 + $0x68] sm:$0xff] %vm2818, %v2749
      %2833 = vst.msk [vmem:[#allocation3 + $0x70] sm:$0xff] %vm2818, %v2751
      %2834 = vst.msk [vmem:[#allocation3 + $0x78] sm:$0xff] %vm2818, %v2753
      %2835 = vst.msk [vmem:[#allocation3 + $0x80] sm:$0xff] %vm2818, %v2755
      %2836 = vst.msk [vmem:[#allocation3 + $0x88] sm:$0xff] %vm2818, %v2757
      %2837 = vst.msk [vmem:[#allocation3 + $0x90] sm:$0xff] %vm2818, %v2759
      %2838 = vst.msk [vmem:[#allocation3 + $0x98] sm:$0xff] %vm2818, %v2761
      %2839 = vst.msk [vmem:[#allocation3 + $0xa0] sm:$0xff] %vm2818, %v2763
      %2840 = vst.msk [vmem:[#allocation3 + $0xa8] sm:$0xff] %vm2818, %v2765
      %2841 = vst.msk [vmem:[#allocation3 + $0xb0] sm:$0xff] %vm2818, %v2767
      %2842 = vst.msk [vmem:[#allocation3 + $0xb8] sm:$0xff] %vm2818, %v2769
      %2843 = vst.msk [vmem:[#allocation3 + $0xc0] sm:$0xff] %vm2818, %v2771
      %2844 = vst.msk [vmem:[#allocation3 + $0xc8] sm:$0xff] %vm2818, %v2773
      %2845 = vst.msk [vmem:[#allocation3 + $0xd0] sm:$0xff] %vm2818, %v2775
      %2846 = vst.msk [vmem:[#allocation3 + $0xd8] sm:$0xff] %vm2818, %v2777
      %2847 = vst.msk [vmem:[#allocation3 + $0xe0] sm:$0xff] %vm2818, %v2779
      %2848 = vst.msk [vmem:[#allocation3 + $0xe8] sm:$0xff] %vm2818, %v2781
      %2849 = vst.msk [vmem:[#allocation3 + $0xf0] sm:$0xff] %vm2818, %v2783
      %2850 = vst.msk [vmem:[#allocation3 + $0xf8] sm:$0xff] %vm2818, %v2785
      %v2851 = vld [vmem:[%s1015 + $0x1] sm:$0xff]
      %v2852 = vld [vmem:[%s1015 + $0x9] sm:$0xff]
      %v2853 = vld [vmem:[%s1015 + $0x19] sm:$0xff]
      %v2854 = vld [vmem:[%s1015 + $0x21] sm:$0xff]
      %v2855 = vld [vmem:[%s1015 + $0x31] sm:$0xff]
      %v2856 = vld [vmem:[%s1015 + $0x39] sm:$0xff]
      %v2857 = vld [vmem:[%s1015 + $0x49] sm:$0xff]
      %v2858 = vld [vmem:[%s1015 + $0x51] sm:$0xff]
      %v2859 = vld [vmem:[%s1015 + $0x61] sm:$0xff]
      %v2860 = vld [vmem:[%s1015 + $0x69] sm:$0xff]
      %v2861 = vld [vmem:[%s1015 + $0x79] sm:$0xff]
      %v2862 = vld [vmem:[%s1015 + $0x81] sm:$0xff]
      %v2863 = vld [vmem:[%s1015 + $0x91] sm:$0xff]
      %v2864 = vld [vmem:[%s1015 + $0x99] sm:$0xff]
      %v2865 = vld [vmem:[%s1015 + $0xa9] sm:$0xff]
      %v2866 = vld [vmem:[%s1015 + $0xb1] sm:$0xff]
      %v2867 = vld [vmem:[%s1015 + $0xc1] sm:$0xff]
      %v2868 = vld [vmem:[%s1015 + $0xc9] sm:$0xff]
      %v2869 = vld [vmem:[%s1015 + $0xd9] sm:$0xff]
      %v2870 = vld [vmem:[%s1015 + $0xe1] sm:$0xff]
      %v2871 = vld [vmem:[%s1015 + $0xf1] sm:$0xff]
      %v2872 = vld [vmem:[%s1015 + $0xf9] sm:$0xff]
      %v2873 = vld [vmem:[%s1015 + $0x109] sm:$0xff]
      %v2874 = vld [vmem:[%s1015 + $0x111] sm:$0xff]
      %v2875 = vld [vmem:[%s1015 + $0x121] sm:$0xff]
      %v2876 = vld [vmem:[%s1015 + $0x129] sm:$0xff]
      %v2877 = vld [vmem:[%s1015 + $0x139] sm:$0xff]
      %v2878 = vld [vmem:[%s1015 + $0x141] sm:$0xff]
      %v2879 = vld [vmem:[%s1015 + $0x151] sm:$0xff]
      %v2880 = vld [vmem:[%s1015 + $0x159] sm:$0xff]
      %v2881 = vld [vmem:[%s1015 + $0x169] sm:$0xff]
      %v2882 = vld [vmem:[%s1015 + $0x171] sm:$0xff]
      %2915 = vrot.lane.b32.xlu0 %v2851, 40
      %v2916 = vpop.permute.xlu0 %2915
      %2917 = vrot.lane.b32.xlu0 %v2852, 40
      %v2918 = vpop.permute.xlu0 %2917
      %2919 = vrot.lane.b32.xlu0 %v2853, 40
      %v2920 = vpop.permute.xlu0 %2919
      %2921 = vrot.lane.b32.xlu0 %v2854, 40
      %v2922 = vpop.permute.xlu0 %2921
      %2923 = vrot.lane.b32.xlu0 %v2855, 40
      %v2924 = vpop.permute.xlu0 %2923
      %2925 = vrot.lane.b32.xlu0 %v2856, 40
      %v2926 = vpop.permute.xlu0 %2925
      %2927 = vrot.lane.b32.xlu0 %v2857, 40
      %v2928 = vpop.permute.xlu0 %2927
      %2929 = vrot.lane.b32.xlu0 %v2858, 40
      %v2930 = vpop.permute.xlu0 %2929
      %2931 = vrot.lane.b32.xlu0 %v2859, 40
      %v2932 = vpop.permute.xlu0 %2931
      %2933 = vrot.lane.b32.xlu0 %v2860, 40
      %v2934 = vpop.permute.xlu0 %2933
      %2935 = vrot.lane.b32.xlu0 %v2861, 40
      %v2936 = vpop.permute.xlu0 %2935
      %2937 = vrot.lane.b32.xlu0 %v2862, 40
      %v2938 = vpop.permute.xlu0 %2937
      %2939 = vrot.lane.b32.xlu0 %v2863, 40
      %v2940 = vpop.permute.xlu0 %2939
      %2941 = vrot.lane.b32.xlu0 %v2864, 40
      %v2942 = vpop.permute.xlu0 %2941
      %2943 = vrot.lane.b32.xlu0 %v2865, 40
      %v2944 = vpop.permute.xlu0 %2943
      %2945 = vrot.lane.b32.xlu0 %v2866, 40
      %v2946 = vpop.permute.xlu0 %2945
      %2947 = vrot.lane.b32.xlu0 %v2867, 40
      %v2948 = vpop.permute.xlu0 %2947
      %2949 = vrot.lane.b32.xlu0 %v2868, 40
      %v2950 = vpop.permute.xlu0 %2949
      %2951 = vrot.lane.b32.xlu0 %v2869, 40
      %v2952 = vpop.permute.xlu0 %2951
      %2953 = vrot.lane.b32.xlu0 %v2870, 40
      %v2954 = vpop.permute.xlu0 %2953
      %2955 = vrot.lane.b32.xlu0 %v2871, 40
      %v2956 = vpop.permute.xlu0 %2955
      %2957 = vrot.lane.b32.xlu0 %v2872, 40
      %v2958 = vpop.permute.xlu0 %2957
      %2959 = vrot.lane.b32.xlu0 %v2873, 40
      %v2960 = vpop.permute.xlu0 %2959
      %2961 = vrot.lane.b32.xlu0 %v2874, 40
      %v2962 = vpop.permute.xlu0 %2961
      %2963 = vrot.lane.b32.xlu0 %v2875, 40
      %v2964 = vpop.permute.xlu0 %2963
      %2965 = vrot.lane.b32.xlu0 %v2876, 40
      %v2966 = vpop.permute.xlu0 %2965
      %2967 = vrot.lane.b32.xlu0 %v2877, 40
      %v2968 = vpop.permute.xlu0 %2967
      %2969 = vrot.lane.b32.xlu0 %v2878, 40
      %v2970 = vpop.permute.xlu0 %2969
      %2971 = vrot.lane.b32.xlu0 %v2879, 40
      %v2972 = vpop.permute.xlu0 %2971
      %2973 = vrot.lane.b32.xlu0 %v2880, 40
      %v2974 = vpop.permute.xlu0 %2973
      %2975 = vrot.lane.b32.xlu0 %v2881, 40
      %v2976 = vpop.permute.xlu0 %2975
      %2977 = vrot.lane.b32.xlu0 %v2882, 40
      %v2978 = vpop.permute.xlu0 %2977
      %vm3011 = vcmask 359744
      %3012 = vst.msk [vmem:[#allocation3] sm:$0xff] %vm3011, %v2916
      %3013 = vst.msk [vmem:[#allocation3 + $0x8] sm:$0xff] %vm3011, %v2918
      %3014 = vst.msk [vmem:[#allocation3 + $0x10] sm:$0xff] %vm3011, %v2920
      %3015 = vst.msk [vmem:[#allocation3 + $0x18] sm:$0xff] %vm3011, %v2922
      %3016 = vst.msk [vmem:[#allocation3 + $0x20] sm:$0xff] %vm3011, %v2924
      %3017 = vst.msk [vmem:[#allocation3 + $0x28] sm:$0xff] %vm3011, %v2926
      %3018 = vst.msk [vmem:[#allocation3 + $0x30] sm:$0xff] %vm3011, %v2928
      %3019 = vst.msk [vmem:[#allocation3 + $0x38] sm:$0xff] %vm3011, %v2930
      %3020 = vst.msk [vmem:[#allocation3 + $0x40] sm:$0xff] %vm3011, %v2932
      %3021 = vst.msk [vmem:[#allocation3 + $0x48] sm:$0xff] %vm3011, %v2934
      %3022 = vst.msk [vmem:[#allocation3 + $0x50] sm:$0xff] %vm3011, %v2936
      %3023 = vst.msk [vmem:[#allocation3 + $0x58] sm:$0xff] %vm3011, %v2938
      %3024 = vst.msk [vmem:[#allocation3 + $0x60] sm:$0xff] %vm3011, %v2940
      %3025 = vst.msk [vmem:[#allocation3 + $0x68] sm:$0xff] %vm3011, %v2942
      %3026 = vst.msk [vmem:[#allocation3 + $0x70] sm:$0xff] %vm3011, %v2944
      %3027 = vst.msk [vmem:[#allocation3 + $0x78] sm:$0xff] %vm3011, %v2946
      %3028 = vst.msk [vmem:[#allocation3 + $0x80] sm:$0xff] %vm3011, %v2948
      %3029 = vst.msk [vmem:[#allocation3 + $0x88] sm:$0xff] %vm3011, %v2950
      %3030 = vst.msk [vmem:[#allocation3 + $0x90] sm:$0xff] %vm3011, %v2952
      %3031 = vst.msk [vmem:[#allocation3 + $0x98] sm:$0xff] %vm3011, %v2954
      %3032 = vst.msk [vmem:[#allocation3 + $0xa0] sm:$0xff] %vm3011, %v2956
      %3033 = vst.msk [vmem:[#allocation3 + $0xa8] sm:$0xff] %vm3011, %v2958
      %3034 = vst.msk [vmem:[#allocation3 + $0xb0] sm:$0xff] %vm3011, %v2960
      %3035 = vst.msk [vmem:[#allocation3 + $0xb8] sm:$0xff] %vm3011, %v2962
      %3036 = vst.msk [vmem:[#allocation3 + $0xc0] sm:$0xff] %vm3011, %v2964
      %3037 = vst.msk [vmem:[#allocation3 + $0xc8] sm:$0xff] %vm3011, %v2966
      %3038 = vst.msk [vmem:[#allocation3 + $0xd0] sm:$0xff] %vm3011, %v2968
      %3039 = vst.msk [vmem:[#allocation3 + $0xd8] sm:$0xff] %vm3011, %v2970
      %3040 = vst.msk [vmem:[#allocation3 + $0xe0] sm:$0xff] %vm3011, %v2972
      %3041 = vst.msk [vmem:[#allocation3 + $0xe8] sm:$0xff] %vm3011, %v2974
      %3042 = vst.msk [vmem:[#allocation3 + $0xf0] sm:$0xff] %vm3011, %v2976
      %3043 = vst.msk [vmem:[#allocation3 + $0xf8] sm:$0xff] %vm3011, %v2978
      %v3044 = vld [vmem:[%s886 + $0x2] sm:$0xff]
      %v3045 = vld [vmem:[%s886 + $0xa] sm:$0xff]
      %v3046 = vld [vmem:[%s886 + $0x1a] sm:$0xff]
      %v3047 = vld [vmem:[%s886 + $0x22] sm:$0xff]
      %v3048 = vld [vmem:[%s886 + $0x32] sm:$0xff]
      %v3049 = vld [vmem:[%s886 + $0x3a] sm:$0xff]
      %v3050 = vld [vmem:[%s886 + $0x4a] sm:$0xff]
      %v3051 = vld [vmem:[%s886 + $0x52] sm:$0xff]
      %v3052 = vld [vmem:[%s886 + $0x62] sm:$0xff]
      %v3053 = vld [vmem:[%s886 + $0x6a] sm:$0xff]
      %v3054 = vld [vmem:[%s886 + $0x7a] sm:$0xff]
      %v3055 = vld [vmem:[%s886 + $0x82] sm:$0xff]
      %v3056 = vld [vmem:[%s886 + $0x92] sm:$0xff]
      %v3057 = vld [vmem:[%s886 + $0x9a] sm:$0xff]
      %v3058 = vld [vmem:[%s886 + $0xaa] sm:$0xff]
      %v3059 = vld [vmem:[%s886 + $0xb2] sm:$0xff]
      %v3060 = vld [vmem:[%s886 + $0xc2] sm:$0xff]
      %v3061 = vld [vmem:[%s886 + $0xca] sm:$0xff]
      %v3062 = vld [vmem:[%s886 + $0xda] sm:$0xff]
      %v3063 = vld [vmem:[%s886 + $0xe2] sm:$0xff]
      %v3064 = vld [vmem:[%s886 + $0xf2] sm:$0xff]
      %v3065 = vld [vmem:[%s886 + $0xfa] sm:$0xff]
      %v3066 = vld [vmem:[%s886 + $0x10a] sm:$0xff]
      %v3067 = vld [vmem:[%s886 + $0x112] sm:$0xff]
      %v3068 = vld [vmem:[%s886 + $0x122] sm:$0xff]
      %v3069 = vld [vmem:[%s886 + $0x12a] sm:$0xff]
      %v3070 = vld [vmem:[%s886 + $0x13a] sm:$0xff]
      %v3071 = vld [vmem:[%s886 + $0x142] sm:$0xff]
      %v3072 = vld [vmem:[%s886 + $0x152] sm:$0xff]
      %v3073 = vld [vmem:[%s886 + $0x15a] sm:$0xff]
      %v3074 = vld [vmem:[%s886 + $0x16a] sm:$0xff]
      %v3075 = vld [vmem:[%s886 + $0x172] sm:$0xff]
      %3108 = vrot.lane.b32.xlu0 %v3044, 44
      %v3109 = vpop.permute.xlu0 %3108
      %3110 = vrot.lane.b32.xlu0 %v3045, 44
      %v3111 = vpop.permute.xlu0 %3110
      %3112 = vrot.lane.b32.xlu0 %v3046, 44
      %v3113 = vpop.permute.xlu0 %3112
      %3114 = vrot.lane.b32.xlu0 %v3047, 44
      %v3115 = vpop.permute.xlu0 %3114
      %3116 = vrot.lane.b32.xlu0 %v3048, 44
      %v3117 = vpop.permute.xlu0 %3116
      %3118 = vrot.lane.b32.xlu0 %v3049, 44
      %v3119 = vpop.permute.xlu0 %3118
      %3120 = vrot.lane.b32.xlu0 %v3050, 44
      %v3121 = vpop.permute.xlu0 %3120
      %3122 = vrot.lane.b32.xlu0 %v3051, 44
      %v3123 = vpop.permute.xlu0 %3122
      %3124 = vrot.lane.b32.xlu0 %v3052, 44
      %v3125 = vpop.permute.xlu0 %3124
      %3126 = vrot.lane.b32.xlu0 %v3053, 44
      %v3127 = vpop.permute.xlu0 %3126
      %3128 = vrot.lane.b32.xlu0 %v3054, 44
      %v3129 = vpop.permute.xlu0 %3128
      %3130 = vrot.lane.b32.xlu0 %v3055, 44
      %v3131 = vpop.permute.xlu0 %3130
      %3132 = vrot.lane.b32.xlu0 %v3056, 44
      %v3133 = vpop.permute.xlu0 %3132
      %3134 = vrot.lane.b32.xlu0 %v3057, 44
      %v3135 = vpop.permute.xlu0 %3134
      %3136 = vrot.lane.b32.xlu0 %v3058, 44
      %v3137 = vpop.permute.xlu0 %3136
      %3138 = vrot.lane.b32.xlu0 %v3059, 44
      %v3139 = vpop.permute.xlu0 %3138
      %3140 = vrot.lane.b32.xlu0 %v3060, 44
      %v3141 = vpop.permute.xlu0 %3140
      %3142 = vrot.lane.b32.xlu0 %v3061, 44
      %v3143 = vpop.permute.xlu0 %3142
      %3144 = vrot.lane.b32.xlu0 %v3062, 44
      %v3145 = vpop.permute.xlu0 %3144
      %3146 = vrot.lane.b32.xlu0 %v3063, 44
      %v3147 = vpop.permute.xlu0 %3146
      %3148 = vrot.lane.b32.xlu0 %v3064, 44
      %v3149 = vpop.permute.xlu0 %3148
      %3150 = vrot.lane.b32.xlu0 %v3065, 44
      %v3151 = vpop.permute.xlu0 %3150
      %3152 = vrot.lane.b32.xlu0 %v3066, 44
      %v3153 = vpop.permute.xlu0 %3152
      %3154 = vrot.lane.b32.xlu0 %v3067, 44
      %v3155 = vpop.permute.xlu0 %3154
      %3156 = vrot.lane.b32.xlu0 %v3068, 44
      %v3157 = vpop.permute.xlu0 %3156
      %3158 = vrot.lane.b32.xlu0 %v3069, 44
      %v3159 = vpop.permute.xlu0 %3158
      %3160 = vrot.lane.b32.xlu0 %v3070, 44
      %v3161 = vpop.permute.xlu0 %3160
      %3162 = vrot.lane.b32.xlu0 %v3071, 44
      %v3163 = vpop.permute.xlu0 %3162
      %3164 = vrot.lane.b32.xlu0 %v3072, 44
      %v3165 = vpop.permute.xlu0 %3164
      %3166 = vrot.lane.b32.xlu0 %v3073, 44
      %v3167 = vpop.permute.xlu0 %3166
      %3168 = vrot.lane.b32.xlu0 %v3074, 44
      %v3169 = vpop.permute.xlu0 %3168
      %3170 = vrot.lane.b32.xlu0 %v3075, 44
      %v3171 = vpop.permute.xlu0 %3170
      %vm3204 = vcmask 392544
      %3205 = vst.msk [vmem:[#allocation3] sm:$0xff] %vm3204, %v3109
      %3206 = vst.msk [vmem:[#allocation3 + $0x8] sm:$0xff] %vm3204, %v3111
      %3207 = vst.msk [vmem:[#allocation3 + $0x10] sm:$0xff] %vm3204, %v3113
      %3208 = vst.msk [vmem:[#allocation3 + $0x18] sm:$0xff] %vm3204, %v3115
      %3209 = vst.msk [vmem:[#allocation3 + $0x20] sm:$0xff] %vm3204, %v3117
      %3210 = vst.msk [vmem:[#allocation3 + $0x28] sm:$0xff] %vm3204, %v3119
      %3211 = vst.msk [vmem:[#allocation3 + $0x30] sm:$0xff] %vm3204, %v3121
      %3212 = vst.msk [vmem:[#allocation3 + $0x38] sm:$0xff] %vm3204, %v3123
      %3213 = vst.msk [vmem:[#allocation3 + $0x40] sm:$0xff] %vm3204, %v3125
      %3214 = vst.msk [vmem:[#allocation3 + $0x48] sm:$0xff] %vm3204, %v3127
      %3215 = vst.msk [vmem:[#allocation3 + $0x50] sm:$0xff] %vm3204, %v3129
      %3216 = vst.msk [vmem:[#allocation3 + $0x58] sm:$0xff] %vm3204, %v3131
      %3217 = vst.msk [vmem:[#allocation3 + $0x60] sm:$0xff] %vm3204, %v3133
      %3218 = vst.msk [vmem:[#allocation3 + $0x68] sm:$0xff] %vm3204, %v3135
      %3219 = vst.msk [vmem:[#allocation3 + $0x70] sm:$0xff] %vm3204, %v3137
      %3220 = vst.msk [vmem:[#allocation3 + $0x78] sm:$0xff] %vm3204, %v3139
      %3221 = vst.msk [vmem:[#allocation3 + $0x80] sm:$0xff] %vm3204, %v3141
      %3222 = vst.msk [vmem:[#allocation3 + $0x88] sm:$0xff] %vm3204, %v3143
      %3223 = vst.msk [vmem:[#allocation3 + $0x90] sm:$0xff] %vm3204, %v3145
      %3224 = vst.msk [vmem:[#allocation3 + $0x98] sm:$0xff] %vm3204, %v3147
      %3225 = vst.msk [vmem:[#allocation3 + $0xa0] sm:$0xff] %vm3204, %v3149
      %3226 = vst.msk [vmem:[#allocation3 + $0xa8] sm:$0xff] %vm3204, %v3151
      %3227 = vst.msk [vmem:[#allocation3 + $0xb0] sm:$0xff] %vm3204, %v3153
      %3228 = vst.msk [vmem:[#allocation3 + $0xb8] sm:$0xff] %vm3204, %v3155
      %3229 = vst.msk [vmem:[#allocation3 + $0xc0] sm:$0xff] %vm3204, %v3157
      %3230 = vst.msk [vmem:[#allocation3 + $0xc8] sm:$0xff] %vm3204, %v3159
      %3231 = vst.msk [vmem:[#allocation3 + $0xd0] sm:$0xff] %vm3204, %v3161
      %3232 = vst.msk [vmem:[#allocation3 + $0xd8] sm:$0xff] %vm3204, %v3163
      %3233 = vst.msk [vmem:[#allocation3 + $0xe0] sm:$0xff] %vm3204, %v3165
      %3234 = vst.msk [vmem:[#allocation3 + $0xe8] sm:$0xff] %vm3204, %v3167
      %3235 = vst.msk [vmem:[#allocation3 + $0xf0] sm:$0xff] %vm3204, %v3169
      %3236 = vst.msk [vmem:[#allocation3 + $0xf8] sm:$0xff] %vm3204, %v3171
      %s3237 = scalar_lea.vmem [#allocation2], 480
      %v3238 = vld [vmem:[%s3237] sm:$0xff]
      %v3239 = vld [vmem:[%s3237 + $0x8] sm:$0xff]
      %v3240 = vld [vmem:[%s3237 + $0x18] sm:$0xff]
      %v3241 = vld [vmem:[%s3237 + $0x20] sm:$0xff]
      %v3242 = vld [vmem:[%s3237 + $0x30] sm:$0xff]
      %v3243 = vld [vmem:[%s3237 + $0x38] sm:$0xff]
      %v3244 = vld [vmem:[%s3237 + $0x48] sm:$0xff]
      %v3245 = vld [vmem:[%s3237 + $0x50] sm:$0xff]
      %v3246 = vld [vmem:[%s3237 + $0x60] sm:$0xff]
      %v3247 = vld [vmem:[%s3237 + $0x68] sm:$0xff]
      %v3248 = vld [vmem:[%s3237 + $0x78] sm:$0xff]
      %v3249 = vld [vmem:[%s3237 + $0x80] sm:$0xff]
      %v3250 = vld [vmem:[%s3237 + $0x90] sm:$0xff]
      %v3251 = vld [vmem:[%s3237 + $0x98] sm:$0xff]
      %v3252 = vld [vmem:[%s3237 + $0xa8] sm:$0xff]
      %v3253 = vld [vmem:[%s3237 + $0xb0] sm:$0xff]
      %v3254 = vld [vmem:[%s3237 + $0xc0] sm:$0xff]
      %v3255 = vld [vmem:[%s3237 + $0xc8] sm:$0xff]
      %v3256 = vld [vmem:[%s3237 + $0xd8] sm:$0xff]
      %v3257 = vld [vmem:[%s3237 + $0xe0] sm:$0xff]
      %v3258 = vld [vmem:[%s3237 + $0xf0] sm:$0xff]
      %v3259 = vld [vmem:[%s3237 + $0xf8] sm:$0xff]
      %v3260 = vld [vmem:[%s3237 + $0x108] sm:$0xff]
      %v3261 = vld [vmem:[%s3237 + $0x110] sm:$0xff]
      %v3262 = vld [vmem:[%s3237 + $0x120] sm:$0xff]
      %v3263 = vld [vmem:[%s3237 + $0x128] sm:$0xff]
      %v3264 = vld [vmem:[%s3237 + $0x138] sm:$0xff]
      %v3265 = vld [vmem:[%s3237 + $0x140] sm:$0xff]
      %v3266 = vld [vmem:[%s3237 + $0x150] sm:$0xff]
      %v3267 = vld [vmem:[%s3237 + $0x158] sm:$0xff]
      %v3268 = vld [vmem:[%s3237 + $0x168] sm:$0xff]
      %v3269 = vld [vmem:[%s3237 + $0x170] sm:$0xff]
      %3302 = vrot.lane.b32.xlu0 %v3238, 48
      %v3303 = vpop.permute.xlu0 %3302
      %3304 = vrot.lane.b32.xlu0 %v3239, 48
      %v3305 = vpop.permute.xlu0 %3304
      %3306 = vrot.lane.b32.xlu0 %v3240, 48
      %v3307 = vpop.permute.xlu0 %3306
      %3308 = vrot.lane.b32.xlu0 %v3241, 48
      %v3309 = vpop.permute.xlu0 %3308
      %3310 = vrot.lane.b32.xlu0 %v3242, 48
      %v3311 = vpop.permute.xlu0 %3310
      %3312 = vrot.lane.b32.xlu0 %v3243, 48
      %v3313 = vpop.permute.xlu0 %3312
      %3314 = vrot.lane.b32.xlu0 %v3244, 48
      %v3315 = vpop.permute.xlu0 %3314
      %3316 = vrot.lane.b32.xlu0 %v3245, 48
      %v3317 = vpop.permute.xlu0 %3316
      %3318 = vrot.lane.b32.xlu0 %v3246, 48
      %v3319 = vpop.permute.xlu0 %3318
      %3320 = vrot.lane.b32.xlu0 %v3247, 48
      %v3321 = vpop.permute.xlu0 %3320
      %3322 = vrot.lane.b32.xlu0 %v3248, 48
      %v3323 = vpop.permute.xlu0 %3322
      %3324 = vrot.lane.b32.xlu0 %v3249, 48
      %v3325 = vpop.permute.xlu0 %3324
      %3326 = vrot.lane.b32.xlu0 %v3250, 48
      %v3327 = vpop.permute.xlu0 %3326
      %3328 = vrot.lane.b32.xlu0 %v3251, 48
      %v3329 = vpop.permute.xlu0 %3328
      %3330 = vrot.lane.b32.xlu0 %v3252, 48
      %v3331 = vpop.permute.xlu0 %3330
      %3332 = vrot.lane.b32.xlu0 %v3253, 48
      %v3333 = vpop.permute.xlu0 %3332
      %3334 = vrot.lane.b32.xlu0 %v3254, 48
      %v3335 = vpop.permute.xlu0 %3334
      %3336 = vrot.lane.b32.xlu0 %v3255, 48
      %v3337 = vpop.permute.xlu0 %3336
      %3338 = vrot.lane.b32.xlu0 %v3256, 48
      %v3339 = vpop.permute.xlu0 %3338
      %3340 = vrot.lane.b32.xlu0 %v3257, 48
      %v3341 = vpop.permute.xlu0 %3340
      %3342 = vrot.lane.b32.xlu0 %v3258, 48
      %v3343 = vpop.permute.xlu0 %3342
      %3344 = vrot.lane.b32.xlu0 %v3259, 48
      %v3345 = vpop.permute.xlu0 %3344
      %3346 = vrot.lane.b32.xlu0 %v3260, 48
      %v3347 = vpop.permute.xlu0 %3346
      %3348 = vrot.lane.b32.xlu0 %v3261, 48
      %v3349 = vpop.permute.xlu0 %3348
      %3350 = vrot.lane.b32.xlu0 %v3262, 48
      %v3351 = vpop.permute.xlu0 %3350
      %3352 = vrot.lane.b32.xlu0 %v3263, 48
      %v3353 = vpop.permute.xlu0 %3352
      %3354 = vrot.lane.b32.xlu0 %v3264, 48
      %v3355 = vpop.permute.xlu0 %3354
      %3356 = vrot.lane.b32.xlu0 %v3265, 48
      %v3357 = vpop.permute.xlu0 %3356
      %3358 = vrot.lane.b32.xlu0 %v3266, 48
      %v3359 = vpop.permute.xlu0 %3358
      %3360 = vrot.lane.b32.xlu0 %v3267, 48
      %v3361 = vpop.permute.xlu0 %3360
      %3362 = vrot.lane.b32.xlu0 %v3268, 48
      %v3363 = vpop.permute.xlu0 %3362
      %3364 = vrot.lane.b32.xlu0 %v3269, 48
      %v3365 = vpop.permute.xlu0 %3364
      %vm3398 = vcmask 425344
      %3399 = vst.msk [vmem:[#allocation3] sm:$0xff] %vm3398, %v3303
      %3400 = vst.msk [vmem:[#allocation3 + $0x8] sm:$0xff] %vm3398, %v3305
      %3401 = vst.msk [vmem:[#allocation3 + $0x10] sm:$0xff] %vm3398, %v3307
      %3402 = vst.msk [vmem:[#allocation3 + $0x18] sm:$0xff] %vm3398, %v3309
      %3403 = vst.msk [vmem:[#allocation3 + $0x20] sm:$0xff] %vm3398, %v3311
      %3404 = vst.msk [vmem:[#allocation3 + $0x28] sm:$0xff] %vm3398, %v3313
      %3405 = vst.msk [vmem:[#allocation3 + $0x30] sm:$0xff] %vm3398, %v3315
      %3406 = vst.msk [vmem:[#allocation3 + $0x38] sm:$0xff] %vm3398, %v3317
      %3407 = vst.msk [vmem:[#allocation3 + $0x40] sm:$0xff] %vm3398, %v3319
      %3408 = vst.msk [vmem:[#allocation3 + $0x48] sm:$0xff] %vm3398, %v3321
      %3409 = vst.msk [vmem:[#allocation3 + $0x50] sm:$0xff] %vm3398, %v3323
      %3410 = vst.msk [vmem:[#allocation3 + $0x58] sm:$0xff] %vm3398, %v3325
      %3411 = vst.msk [vmem:[#allocation3 + $0x60] sm:$0xff] %vm3398, %v3327
      %3412 = vst.msk [vmem:[#allocation3 + $0x68] sm:$0xff] %vm3398, %v3329
      %3413 = vst.msk [vmem:[#allocation3 + $0x70] sm:$0xff] %vm3398, %v3331
      %3414 = vst.msk [vmem:[#allocation3 + $0x78] sm:$0xff] %vm3398, %v3333
      %3415 = vst.msk [vmem:[#allocation3 + $0x80] sm:$0xff] %vm3398, %v3335
      %3416 = vst.msk [vmem:[#allocation3 + $0x88] sm:$0xff] %vm3398, %v3337
      %3417 = vst.msk [vmem:[#allocation3 + $0x90] sm:$0xff] %vm3398, %v3339
      %3418 = vst.msk [vmem:[#allocation3 + $0x98] sm:$0xff] %vm3398, %v3341
      %3419 = vst.msk [vmem:[#allocation3 + $0xa0] sm:$0xff] %vm3398, %v3343
      %3420 = vst.msk [vmem:[#allocation3 + $0xa8] sm:$0xff] %vm3398, %v3345
      %3421 = vst.msk [vmem:[#allocation3 + $0xb0] sm:$0xff] %vm3398, %v3347
      %3422 = vst.msk [vmem:[#allocation3 + $0xb8] sm:$0xff] %vm3398, %v3349
      %3423 = vst.msk [vmem:[#allocation3 + $0xc0] sm:$0xff] %vm3398, %v3351
      %3424 = vst.msk [vmem:[#allocation3 + $0xc8] sm:$0xff] %vm3398, %v3353
      %3425 = vst.msk [vmem:[#allocation3 + $0xd0] sm:$0xff] %vm3398, %v3355
      %3426 = vst.msk [vmem:[#allocation3 + $0xd8] sm:$0xff] %vm3398, %v3357
      %3427 = vst.msk [vmem:[#allocation3 + $0xe0] sm:$0xff] %vm3398, %v3359
      %3428 = vst.msk [vmem:[#allocation3 + $0xe8] sm:$0xff] %vm3398, %v3361
      %3429 = vst.msk [vmem:[#allocation3 + $0xf0] sm:$0xff] %vm3398, %v3363
      %3430 = vst.msk [vmem:[#allocation3 + $0xf8] sm:$0xff] %vm3398, %v3365
      %s3431 = scalar_lea.vmem [#allocation2], 48
      %v3432 = vld [vmem:[%s3431 + $0x1] sm:$0xff]
      %v3433 = vld [vmem:[%s3431 + $0x9] sm:$0xff]
      %v3434 = vld [vmem:[%s3431 + $0x19] sm:$0xff]
      %v3435 = vld [vmem:[%s3431 + $0x21] sm:$0xff]
      %v3436 = vld [vmem:[%s3431 + $0x31] sm:$0xff]
      %v3437 = vld [vmem:[%s3431 + $0x39] sm:$0xff]
      %v3438 = vld [vmem:[%s3431 + $0x49] sm:$0xff]
      %v3439 = vld [vmem:[%s3431 + $0x51] sm:$0xff]
      %v3440 = vld [vmem:[%s3431 + $0x61] sm:$0xff]
      %v3441 = vld [vmem:[%s3431 + $0x69] sm:$0xff]
      %v3442 = vld [vmem:[%s3431 + $0x79] sm:$0xff]
      %v3443 = vld [vmem:[%s3431 + $0x81] sm:$0xff]
      %v3444 = vld [vmem:[%s3431 + $0x91] sm:$0xff]
      %v3445 = vld [vmem:[%s3431 + $0x99] sm:$0xff]
      %v3446 = vld [vmem:[%s3431 + $0xa9] sm:$0xff]
      %v3447 = vld [vmem:[%s3431 + $0xb1] sm:$0xff]
      %v3448 = vld [vmem:[%s3431 + $0xc1] sm:$0xff]
      %v3449 = vld [vmem:[%s3431 + $0xc9] sm:$0xff]
      %v3450 = vld [vmem:[%s3431 + $0xd9] sm:$0xff]
      %v3451 = vld [vmem:[%s3431 + $0xe1] sm:$0xff]
      %v3452 = vld [vmem:[%s3431 + $0xf1] sm:$0xff]
      %v3453 = vld [vmem:[%s3431 + $0xf9] sm:$0xff]
      %v3454 = vld [vmem:[%s3431 + $0x109] sm:$0xff]
      %v3455 = vld [vmem:[%s3431 + $0x111] sm:$0xff]
      %v3456 = vld [vmem:[%s3431 + $0x121] sm:$0xff]
      %v3457 = vld [vmem:[%s3431 + $0x129] sm:$0xff]
      %v3458 = vld [vmem:[%s3431 + $0x139] sm:$0xff]
      %v3459 = vld [vmem:[%s3431 + $0x141] sm:$0xff]
      %v3460 = vld [vmem:[%s3431 + $0x151] sm:$0xff]
      %v3461 = vld [vmem:[%s3431 + $0x159] sm:$0xff]
      %v3462 = vld [vmem:[%s3431 + $0x169] sm:$0xff]
      %v3463 = vld [vmem:[%s3431 + $0x171] sm:$0xff]
      %3496 = vrot.lane.b32.xlu0 %v3432, 52
      %v3497 = vpop.permute.xlu0 %3496
      %3498 = vrot.lane.b32.xlu0 %v3433, 52
      %v3499 = vpop.permute.xlu0 %3498
      %3500 = vrot.lane.b32.xlu0 %v3434, 52
      %v3501 = vpop.permute.xlu0 %3500
      %3502 = vrot.lane.b32.xlu0 %v3435, 52
      %v3503 = vpop.permute.xlu0 %3502
      %3504 = vrot.lane.b32.xlu0 %v3436, 52
      %v3505 = vpop.permute.xlu0 %3504
      %3506 = vrot.lane.b32.xlu0 %v3437, 52
      %v3507 = vpop.permute.xlu0 %3506
      %3508 = vrot.lane.b32.xlu0 %v3438, 52
      %v3509 = vpop.permute.xlu0 %3508
      %3510 = vrot.lane.b32.xlu0 %v3439, 52
      %v3511 = vpop.permute.xlu0 %3510
      %3512 = vrot.lane.b32.xlu0 %v3440, 52
      %v3513 = vpop.permute.xlu0 %3512
      %3514 = vrot.lane.b32.xlu0 %v3441, 52
      %v3515 = vpop.permute.xlu0 %3514
      %3516 = vrot.lane.b32.xlu0 %v3442, 52
      %v3517 = vpop.permute.xlu0 %3516
      %3518 = vrot.lane.b32.xlu0 %v3443, 52
      %v3519 = vpop.permute.xlu0 %3518
      %3520 = vrot.lane.b32.xlu0 %v3444, 52
      %v3521 = vpop.permute.xlu0 %3520
      %3522 = vrot.lane.b32.xlu0 %v3445, 52
      %v3523 = vpop.permute.xlu0 %3522
      %3524 = vrot.lane.b32.xlu0 %v3446, 52
      %v3525 = vpop.permute.xlu0 %3524
      %3526 = vrot.lane.b32.xlu0 %v3447, 52
      %v3527 = vpop.permute.xlu0 %3526
      %3528 = vrot.lane.b32.xlu0 %v3448, 52
      %v3529 = vpop.permute.xlu0 %3528
      %3530 = vrot.lane.b32.xlu0 %v3449, 52
      %v3531 = vpop.permute.xlu0 %3530
      %3532 = vrot.lane.b32.xlu0 %v3450, 52
      %v3533 = vpop.permute.xlu0 %3532
      %3534 = vrot.lane.b32.xlu0 %v3451, 52
      %v3535 = vpop.permute.xlu0 %3534
      %3536 = vrot.lane.b32.xlu0 %v3452, 52
      %v3537 = vpop.permute.xlu0 %3536
      %3538 = vrot.lane.b32.xlu0 %v3453, 52
      %v3539 = vpop.permute.xlu0 %3538
      %3540 = vrot.lane.b32.xlu0 %v3454, 52
      %v3541 = vpop.permute.xlu0 %3540
      %3542 = vrot.lane.b32.xlu0 %v3455, 52
      %v3543 = vpop.permute.xlu0 %3542
      %3544 = vrot.lane.b32.xlu0 %v3456, 52
      %v3545 = vpop.permute.xlu0 %3544
      %3546 = vrot.lane.b32.xlu0 %v3457, 52
      %v3547 = vpop.permute.xlu0 %3546
      %3548 = vrot.lane.b32.xlu0 %v3458, 52
      %v3549 = vpop.permute.xlu0 %3548
      %3550 = vrot.lane.b32.xlu0 %v3459, 52
      %v3551 = vpop.permute.xlu0 %3550
      %3552 = vrot.lane.b32.xlu0 %v3460, 52
      %v3553 = vpop.permute.xlu0 %3552
      %3554 = vrot.lane.b32.xlu0 %v3461, 52
      %v3555 = vpop.permute.xlu0 %3554
      %3556 = vrot.lane.b32.xlu0 %v3462, 52
      %v3557 = vpop.permute.xlu0 %3556
      %3558 = vrot.lane.b32.xlu0 %v3463, 52
      %v3559 = vpop.permute.xlu0 %3558
      %vm3592 = vcmask 458144
      %3593 = vst.msk [vmem:[#allocation3] sm:$0xff] %vm3592, %v3497
      %3594 = vst.msk [vmem:[#allocation3 + $0x8] sm:$0xff] %vm3592, %v3499
      %3595 = vst.msk [vmem:[#allocation3 + $0x10] sm:$0xff] %vm3592, %v3501
      %3596 = vst.msk [vmem:[#allocation3 + $0x18] sm:$0xff] %vm3592, %v3503
      %3597 = vst.msk [vmem:[#allocation3 + $0x20] sm:$0xff] %vm3592, %v3505
      %3598 = vst.msk [vmem:[#allocation3 + $0x28] sm:$0xff] %vm3592, %v3507
      %3599 = vst.msk [vmem:[#allocation3 + $0x30] sm:$0xff] %vm3592, %v3509
      %3600 = vst.msk [vmem:[#allocation3 + $0x38] sm:$0xff] %vm3592, %v3511
      %3601 = vst.msk [vmem:[#allocation3 + $0x40] sm:$0xff] %vm3592, %v3513
      %3602 = vst.msk [vmem:[#allocation3 + $0x48] sm:$0xff] %vm3592, %v3515
      %3603 = vst.msk [vmem:[#allocation3 + $0x50] sm:$0xff] %vm3592, %v3517
      %3604 = vst.msk [vmem:[#allocation3 + $0x58] sm:$0xff] %vm3592, %v3519
      %3605 = vst.msk [vmem:[#allocation3 + $0x60] sm:$0xff] %vm3592, %v3521
      %3606 = vst.msk [vmem:[#allocation3 + $0x68] sm:$0xff] %vm3592, %v3523
      %3607 = vst.msk [vmem:[#allocation3 + $0x70] sm:$0xff] %vm3592, %v3525
      %3608 = vst.msk [vmem:[#allocation3 + $0x78] sm:$0xff] %vm3592, %v3527
      %3609 = vst.msk [vmem:[#allocation3 + $0x80] sm:$0xff] %vm3592, %v3529
      %3610 = vst.msk [vmem:[#allocation3 + $0x88] sm:$0xff] %vm3592, %v3531
      %3611 = vst.msk [vmem:[#allocation3 + $0x90] sm:$0xff] %vm3592, %v3533
      %3612 = vst.msk [vmem:[#allocation3 + $0x98] sm:$0xff] %vm3592, %v3535
      %3613 = vst.msk [vmem:[#allocation3 + $0xa0] sm:$0xff] %vm3592, %v3537
      %3614 = vst.msk [vmem:[#allocation3 + $0xa8] sm:$0xff] %vm3592, %v3539
      %3615 = vst.msk [vmem:[#allocation3 + $0xb0] sm:$0xff] %vm3592, %v3541
      %3616 = vst.msk [vmem:[#allocation3 + $0xb8] sm:$0xff] %vm3592, %v3543
      %3617 = vst.msk [vmem:[#allocation3 + $0xc0] sm:$0xff] %vm3592, %v3545
      %3618 = vst.msk [vmem:[#allocation3 + $0xc8] sm:$0xff] %vm3592, %v3547
      %3619 = vst.msk [vmem:[#allocation3 + $0xd0] sm:$0xff] %vm3592, %v3549
      %3620 = vst.msk [vmem:[#allocation3 + $0xd8] sm:$0xff] %vm3592, %v3551
      %3621 = vst.msk [vmem:[#allocation3 + $0xe0] sm:$0xff] %vm3592, %v3553
      %3622 = vst.msk [vmem:[#allocation3 + $0xe8] sm:$0xff] %vm3592, %v3555
      %3623 = vst.msk [vmem:[#allocation3 + $0xf0] sm:$0xff] %vm3592, %v3557
      %3624 = vst.msk [vmem:[#allocation3 + $0xf8] sm:$0xff] %vm3592, %v3559
      %v3625 = vld [vmem:[%s3237 + $0x1] sm:$0xff]
      %v3626 = vld [vmem:[%s3237 + $0x9] sm:$0xff]
      %v3627 = vld [vmem:[%s3237 + $0x19] sm:$0xff]
      %v3628 = vld [vmem:[%s3237 + $0x21] sm:$0xff]
      %v3629 = vld [vmem:[%s3237 + $0x31] sm:$0xff]
      %v3630 = vld [vmem:[%s3237 + $0x39] sm:$0xff]
      %v3631 = vld [vmem:[%s3237 + $0x49] sm:$0xff]
      %v3632 = vld [vmem:[%s3237 + $0x51] sm:$0xff]
      %v3633 = vld [vmem:[%s3237 + $0x61] sm:$0xff]
      %v3634 = vld [vmem:[%s3237 + $0x69] sm:$0xff]
      %v3635 = vld [vmem:[%s3237 + $0x79] sm:$0xff]
      %v3636 = vld [vmem:[%s3237 + $0x81] sm:$0xff]
      %v3637 = vld [vmem:[%s3237 + $0x91] sm:$0xff]
      %v3638 = vld [vmem:[%s3237 + $0x99] sm:$0xff]
      %v3639 = vld [vmem:[%s3237 + $0xa9] sm:$0xff]
      %v3640 = vld [vmem:[%s3237 + $0xb1] sm:$0xff]
      %v3641 = vld [vmem:[%s3237 + $0xc1] sm:$0xff]
      %v3642 = vld [vmem:[%s3237 + $0xc9] sm:$0xff]
      %v3643 = vld [vmem:[%s3237 + $0xd9] sm:$0xff]
      %v3644 = vld [vmem:[%s3237 + $0xe1] sm:$0xff]
      %v3645 = vld [vmem:[%s3237 + $0xf1] sm:$0xff]
      %v3646 = vld [vmem:[%s3237 + $0xf9] sm:$0xff]
      %v3647 = vld [vmem:[%s3237 + $0x109] sm:$0xff]
      %v3648 = vld [vmem:[%s3237 + $0x111] sm:$0xff]
      %v3649 = vld [vmem:[%s3237 + $0x121] sm:$0xff]
      %v3650 = vld [vmem:[%s3237 + $0x129] sm:$0xff]
      %v3651 = vld [vmem:[%s3237 + $0x139] sm:$0xff]
      %v3652 = vld [vmem:[%s3237 + $0x141] sm:$0xff]
      %v3653 = vld [vmem:[%s3237 + $0x151] sm:$0xff]
      %v3654 = vld [vmem:[%s3237 + $0x159] sm:$0xff]
      %v3655 = vld [vmem:[%s3237 + $0x169] sm:$0xff]
      %v3656 = vld [vmem:[%s3237 + $0x171] sm:$0xff]
      %3689 = vrot.lane.b32.xlu0 %v3625, 56
      %v3690 = vpop.permute.xlu0 %3689
      %3691 = vrot.lane.b32.xlu0 %v3626, 56
      %v3692 = vpop.permute.xlu0 %3691
      %3693 = vrot.lane.b32.xlu0 %v3627, 56
      %v3694 = vpop.permute.xlu0 %3693
      %3695 = vrot.lane.b32.xlu0 %v3628, 56
      %v3696 = vpop.permute.xlu0 %3695
      %3697 = vrot.lane.b32.xlu0 %v3629, 56
      %v3698 = vpop.permute.xlu0 %3697
      %3699 = vrot.lane.b32.xlu0 %v3630, 56
      %v3700 = vpop.permute.xlu0 %3699
      %3701 = vrot.lane.b32.xlu0 %v3631, 56
      %v3702 = vpop.permute.xlu0 %3701
      %3703 = vrot.lane.b32.xlu0 %v3632, 56
      %v3704 = vpop.permute.xlu0 %3703
      %3705 = vrot.lane.b32.xlu0 %v3633, 56
      %v3706 = vpop.permute.xlu0 %3705
      %3707 = vrot.lane.b32.xlu0 %v3634, 56
      %v3708 = vpop.permute.xlu0 %3707
      %3709 = vrot.lane.b32.xlu0 %v3635, 56
      %v3710 = vpop.permute.xlu0 %3709
      %3711 = vrot.lane.b32.xlu0 %v3636, 56
      %v3712 = vpop.permute.xlu0 %3711
      %3713 = vrot.lane.b32.xlu0 %v3637, 56
      %v3714 = vpop.permute.xlu0 %3713
      %3715 = vrot.lane.b32.xlu0 %v3638, 56
      %v3716 = vpop.permute.xlu0 %3715
      %3717 = vrot.lane.b32.xlu0 %v3639, 56
      %v3718 = vpop.permute.xlu0 %3717
      %3719 = vrot.lane.b32.xlu0 %v3640, 56
      %v3720 = vpop.permute.xlu0 %3719
      %3721 = vrot.lane.b32.xlu0 %v3641, 56
      %v3722 = vpop.permute.xlu0 %3721
      %3723 = vrot.lane.b32.xlu0 %v3642, 56
      %v3724 = vpop.permute.xlu0 %3723
      %3725 = vrot.lane.b32.xlu0 %v3643, 56
      %v3726 = vpop.permute.xlu0 %3725
      %3727 = vrot.lane.b32.xlu0 %v3644, 56
      %v3728 = vpop.permute.xlu0 %3727
      %3729 = vrot.lane.b32.xlu0 %v3645, 56
      %v3730 = vpop.permute.xlu0 %3729
      %3731 = vrot.lane.b32.xlu0 %v3646, 56
      %v3732 = vpop.permute.xlu0 %3731
      %3733 = vrot.lane.b32.xlu0 %v3647, 56
      %v3734 = vpop.permute.xlu0 %3733
      %3735 = vrot.lane.b32.xlu0 %v3648, 56
      %v3736 = vpop.permute.xlu0 %3735
      %3737 = vrot.lane.b32.xlu0 %v3649, 56
      %v3738 = vpop.permute.xlu0 %3737
      %3739 = vrot.lane.b32.xlu0 %v3650, 56
      %v3740 = vpop.permute.xlu0 %3739
      %3741 = vrot.lane.b32.xlu0 %v3651, 56
      %v3742 = vpop.permute.xlu0 %3741
      %3743 = vrot.lane.b32.xlu0 %v3652, 56
      %v3744 = vpop.permute.xlu0 %3743
      %3745 = vrot.lane.b32.xlu0 %v3653, 56
      %v3746 = vpop.permute.xlu0 %3745
      %3747 = vrot.lane.b32.xlu0 %v3654, 56
      %v3748 = vpop.permute.xlu0 %3747
      %3749 = vrot.lane.b32.xlu0 %v3655, 56
      %v3750 = vpop.permute.xlu0 %3749
      %3751 = vrot.lane.b32.xlu0 %v3656, 56
      %v3752 = vpop.permute.xlu0 %3751
      %vm3785 = vcmask 490944
      %3786 = vst.msk [vmem:[#allocation3] sm:$0xff] %vm3785, %v3690
      %3787 = vst.msk [vmem:[#allocation3 + $0x8] sm:$0xff] %vm3785, %v3692
      %3788 = vst.msk [vmem:[#allocation3 + $0x10] sm:$0xff] %vm3785, %v3694
      %3789 = vst.msk [vmem:[#allocation3 + $0x18] sm:$0xff] %vm3785, %v3696
      %3790 = vst.msk [vmem:[#allocation3 + $0x20] sm:$0xff] %vm3785, %v3698
      %3791 = vst.msk [vmem:[#allocation3 + $0x28] sm:$0xff] %vm3785, %v3700
      %3792 = vst.msk [vmem:[#allocation3 + $0x30] sm:$0xff] %vm3785, %v3702
      %3793 = vst.msk [vmem:[#allocation3 + $0x38] sm:$0xff] %vm3785, %v3704
      %3794 = vst.msk [vmem:[#allocation3 + $0x40] sm:$0xff] %vm3785, %v3706
      %3795 = vst.msk [vmem:[#allocation3 + $0x48] sm:$0xff] %vm3785, %v3708
      %3796 = vst.msk [vmem:[#allocation3 + $0x50] sm:$0xff] %vm3785, %v3710
      %3797 = vst.msk [vmem:[#allocation3 + $0x58] sm:$0xff] %vm3785, %v3712
      %3798 = vst.msk [vmem:[#allocation3 + $0x60] sm:$0xff] %vm3785, %v3714
      %3799 = vst.msk [vmem:[#allocation3 + $0x68] sm:$0xff] %vm3785, %v3716
      %3800 = vst.msk [vmem:[#allocation3 + $0x70] sm:$0xff] %vm3785, %v3718
      %3801 = vst.msk [vmem:[#allocation3 + $0x78] sm:$0xff] %vm3785, %v3720
      %3802 = vst.msk [vmem:[#allocation3 + $0x80] sm:$0xff] %vm3785, %v3722
      %3803 = vst.msk [vmem:[#allocation3 + $0x88] sm:$0xff] %vm3785, %v3724
      %3804 = vst.msk [vmem:[#allocation3 + $0x90] sm:$0xff] %vm3785, %v3726
      %3805 = vst.msk [vmem:[#allocation3 + $0x98] sm:$0xff] %vm3785, %v3728
      %3806 = vst.msk [vmem:[#allocation3 + $0xa0] sm:$0xff] %vm3785, %v3730
      %3807 = vst.msk [vmem:[#allocation3 + $0xa8] sm:$0xff] %vm3785, %v3732
      %3808 = vst.msk [vmem:[#allocation3 + $0xb0] sm:$0xff] %vm3785, %v3734
      %3809 = vst.msk [vmem:[#allocation3 + $0xb8] sm:$0xff] %vm3785, %v3736
      %3810 = vst.msk [vmem:[#allocation3 + $0xc0] sm:$0xff] %vm3785, %v3738
      %3811 = vst.msk [vmem:[#allocation3 + $0xc8] sm:$0xff] %vm3785, %v3740
      %3812 = vst.msk [vmem:[#allocation3 + $0xd0] sm:$0xff] %vm3785, %v3742
      %3813 = vst.msk [vmem:[#allocation3 + $0xd8] sm:$0xff] %vm3785, %v3744
      %3814 = vst.msk [vmem:[#allocation3 + $0xe0] sm:$0xff] %vm3785, %v3746
      %3815 = vst.msk [vmem:[#allocation3 + $0xe8] sm:$0xff] %vm3785, %v3748
      %3816 = vst.msk [vmem:[#allocation3 + $0xf0] sm:$0xff] %vm3785, %v3750
      %3817 = vst.msk [vmem:[#allocation3 + $0xf8] sm:$0xff] %vm3785, %v3752
      %v3818 = vld [vmem:[%s3431 + $0x2] sm:$0xff]
      %v3819 = vld [vmem:[%s3431 + $0xa] sm:$0xff]
      %v3820 = vld [vmem:[%s3431 + $0x1a] sm:$0xff]
      %v3821 = vld [vmem:[%s3431 + $0x22] sm:$0xff]
      %v3822 = vld [vmem:[%s3431 + $0x32] sm:$0xff]
      %v3823 = vld [vmem:[%s3431 + $0x3a] sm:$0xff]
      %v3824 = vld [vmem:[%s3431 + $0x4a] sm:$0xff]
      %v3825 = vld [vmem:[%s3431 + $0x52] sm:$0xff]
      %v3826 = vld [vmem:[%s3431 + $0x62] sm:$0xff]
      %v3827 = vld [vmem:[%s3431 + $0x6a] sm:$0xff]
      %v3828 = vld [vmem:[%s3431 + $0x7a] sm:$0xff]
      %v3829 = vld [vmem:[%s3431 + $0x82] sm:$0xff]
      %v3830 = vld [vmem:[%s3431 + $0x92] sm:$0xff]
      %v3831 = vld [vmem:[%s3431 + $0x9a] sm:$0xff]
      %v3832 = vld [vmem:[%s3431 + $0xaa] sm:$0xff]
      %v3833 = vld [vmem:[%s3431 + $0xb2] sm:$0xff]
      %v3834 = vld [vmem:[%s3431 + $0xc2] sm:$0xff]
      %v3835 = vld [vmem:[%s3431 + $0xca] sm:$0xff]
      %v3836 = vld [vmem:[%s3431 + $0xda] sm:$0xff]
      %v3837 = vld [vmem:[%s3431 + $0xe2] sm:$0xff]
      %v3838 = vld [vmem:[%s3431 + $0xf2] sm:$0xff]
      %v3839 = vld [vmem:[%s3431 + $0xfa] sm:$0xff]
      %v3840 = vld [vmem:[%s3431 + $0x10a] sm:$0xff]
      %v3841 = vld [vmem:[%s3431 + $0x112] sm:$0xff]
      %v3842 = vld [vmem:[%s3431 + $0x122] sm:$0xff]
      %v3843 = vld [vmem:[%s3431 + $0x12a] sm:$0xff]
      %v3844 = vld [vmem:[%s3431 + $0x13a] sm:$0xff]
      %v3845 = vld [vmem:[%s3431 + $0x142] sm:$0xff]
      %v3846 = vld [vmem:[%s3431 + $0x152] sm:$0xff]
      %v3847 = vld [vmem:[%s3431 + $0x15a] sm:$0xff]
      %v3848 = vld [vmem:[%s3431 + $0x16a] sm:$0xff]
      %v3849 = vld [vmem:[%s3431 + $0x172] sm:$0xff]
      %3882 = vrot.lane.b32.xlu0 %v3818, 60
      %v3883 = vpop.permute.xlu0 %3882
      %3884 = vrot.lane.b32.xlu0 %v3819, 60
      %v3885 = vpop.permute.xlu0 %3884
      %3886 = vrot.lane.b32.xlu0 %v3820, 60
      %v3887 = vpop.permute.xlu0 %3886
      %3888 = vrot.lane.b32.xlu0 %v3821, 60
      %v3889 = vpop.permute.xlu0 %3888
      %3890 = vrot.lane.b32.xlu0 %v3822, 60
      %v3891 = vpop.permute.xlu0 %3890
      %3892 = vrot.lane.b32.xlu0 %v3823, 60
      %v3893 = vpop.permute.xlu0 %3892
      %3894 = vrot.lane.b32.xlu0 %v3824, 60
      %v3895 = vpop.permute.xlu0 %3894
      %3896 = vrot.lane.b32.xlu0 %v3825, 60
      %v3897 = vpop.permute.xlu0 %3896
      %3898 = vrot.lane.b32.xlu0 %v3826, 60
      %v3899 = vpop.permute.xlu0 %3898
      %3900 = vrot.lane.b32.xlu0 %v3827, 60
      %v3901 = vpop.permute.xlu0 %3900
      %3902 = vrot.lane.b32.xlu0 %v3828, 60
      %v3903 = vpop.permute.xlu0 %3902
      %3904 = vrot.lane.b32.xlu0 %v3829, 60
      %v3905 = vpop.permute.xlu0 %3904
      %3906 = vrot.lane.b32.xlu0 %v3830, 60
      %v3907 = vpop.permute.xlu0 %3906
      %3908 = vrot.lane.b32.xlu0 %v3831, 60
      %v3909 = vpop.permute.xlu0 %3908
      %3910 = vrot.lane.b32.xlu0 %v3832, 60
      %v3911 = vpop.permute.xlu0 %3910
      %3912 = vrot.lane.b32.xlu0 %v3833, 60
      %v3913 = vpop.permute.xlu0 %3912
      %3914 = vrot.lane.b32.xlu0 %v3834, 60
      %v3915 = vpop.permute.xlu0 %3914
      %3916 = vrot.lane.b32.xlu0 %v3835, 60
      %v3917 = vpop.permute.xlu0 %3916
      %3918 = vrot.lane.b32.xlu0 %v3836, 60
      %v3919 = vpop.permute.xlu0 %3918
      %3920 = vrot.lane.b32.xlu0 %v3837, 60
      %v3921 = vpop.permute.xlu0 %3920
      %3922 = vrot.lane.b32.xlu0 %v3838, 60
      %v3923 = vpop.permute.xlu0 %3922
      %3924 = vrot.lane.b32.xlu0 %v3839, 60
      %v3925 = vpop.permute.xlu0 %3924
      %3926 = vrot.lane.b32.xlu0 %v3840, 60
      %v3927 = vpop.permute.xlu0 %3926
      %3928 = vrot.lane.b32.xlu0 %v3841, 60
      %v3929 = vpop.permute.xlu0 %3928
      %3930 = vrot.lane.b32.xlu0 %v3842, 60
      %v3931 = vpop.permute.xlu0 %3930
      %3932 = vrot.lane.b32.xlu0 %v3843, 60
      %v3933 = vpop.permute.xlu0 %3932
      %3934 = vrot.lane.b32.xlu0 %v3844, 60
      %v3935 = vpop.permute.xlu0 %3934
      %3936 = vrot.lane.b32.xlu0 %v3845, 60
      %v3937 = vpop.permute.xlu0 %3936
      %3938 = vrot.lane.b32.xlu0 %v3846, 60
      %v3939 = vpop.permute.xlu0 %3938
      %3940 = vrot.lane.b32.xlu0 %v3847, 60
      %v3941 = vpop.permute.xlu0 %3940
      %3942 = vrot.lane.b32.xlu0 %v3848, 60
      %v3943 = vpop.permute.xlu0 %3942
      %3944 = vrot.lane.b32.xlu0 %v3849, 60
      %v3945 = vpop.permute.xlu0 %3944
      %vm3978 = vcmask 523744
      %3979 = vst.msk [vmem:[#allocation3] sm:$0xff] %vm3978, %v3883
      %3980 = vst.msk [vmem:[#allocation3 + $0x8] sm:$0xff] %vm3978, %v3885
      %3981 = vst.msk [vmem:[#allocation3 + $0x10] sm:$0xff] %vm3978, %v3887
      %3982 = vst.msk [vmem:[#allocation3 + $0x18] sm:$0xff] %vm3978, %v3889
      %3983 = vst.msk [vmem:[#allocation3 + $0x20] sm:$0xff] %vm3978, %v3891
      %3984 = vst.msk [vmem:[#allocation3 + $0x28] sm:$0xff] %vm3978, %v3893
      %3985 = vst.msk [vmem:[#allocation3 + $0x30] sm:$0xff] %vm3978, %v3895
      %3986 = vst.msk [vmem:[#allocation3 + $0x38] sm:$0xff] %vm3978, %v3897
      %3987 = vst.msk [vmem:[#allocation3 + $0x40] sm:$0xff] %vm3978, %v3899
      %3988 = vst.msk [vmem:[#allocation3 + $0x48] sm:$0xff] %vm3978, %v3901
      %3989 = vst.msk [vmem:[#allocation3 + $0x50] sm:$0xff] %vm3978, %v3903
      %3990 = vst.msk [vmem:[#allocation3 + $0x58] sm:$0xff] %vm3978, %v3905
      %3991 = vst.msk [vmem:[#allocation3 + $0x60] sm:$0xff] %vm3978, %v3907
      %3992 = vst.msk [vmem:[#allocation3 + $0x68] sm:$0xff] %vm3978, %v3909
      %3993 = vst.msk [vmem:[#allocation3 + $0x70] sm:$0xff] %vm3978, %v3911
      %3994 = vst.msk [vmem:[#allocation3 + $0x78] sm:$0xff] %vm3978, %v3913
      %3995 = vst.msk [vmem:[#allocation3 + $0x80] sm:$0xff] %vm3978, %v3915
      %3996 = vst.msk [vmem:[#allocation3 + $0x88] sm:$0xff] %vm3978, %v3917
      %3997 = vst.msk [vmem:[#allocation3 + $0x90] sm:$0xff] %vm3978, %v3919
      %3998 = vst.msk [vmem:[#allocation3 + $0x98] sm:$0xff] %vm3978, %v3921
      %3999 = vst.msk [vmem:[#allocation3 + $0xa0] sm:$0xff] %vm3978, %v3923
      %4000 = vst.msk [vmem:[#allocation3 + $0xa8] sm:$0xff] %vm3978, %v3925
      %4001 = vst.msk [vmem:[#allocation3 + $0xb0] sm:$0xff] %vm3978, %v3927
      %4002 = vst.msk [vmem:[#allocation3 + $0xb8] sm:$0xff] %vm3978, %v3929
      %4003 = vst.msk [vmem:[#allocation3 + $0xc0] sm:$0xff] %vm3978, %v3931
      %4004 = vst.msk [vmem:[#allocation3 + $0xc8] sm:$0xff] %vm3978, %v3933
      %4005 = vst.msk [vmem:[#allocation3 + $0xd0] sm:$0xff] %vm3978, %v3935
      %4006 = vst.msk [vmem:[#allocation3 + $0xd8] sm:$0xff] %vm3978, %v3937
      %4007 = vst.msk [vmem:[#allocation3 + $0xe0] sm:$0xff] %vm3978, %v3939
      %4008 = vst.msk [vmem:[#allocation3 + $0xe8] sm:$0xff] %vm3978, %v3941
      %4009 = vst.msk [vmem:[#allocation3 + $0xf0] sm:$0xff] %vm3978, %v3943
      %4010 = vst.msk [vmem:[#allocation3 + $0xf8] sm:$0xff] %vm3978, %v3945
      %v4011 = vld [vmem:[#allocation3] sm:$0xff]
      %v4012 = vld [vmem:[#allocation3 + $0x8] sm:$0xff]
      %v4013 = vld [vmem:[#allocation3 + $0x10] sm:$0xff]
      %v4014 = vld [vmem:[#allocation3 + $0x18] sm:$0xff]
      %v4015 = vld [vmem:[#allocation3 + $0x20] sm:$0xff]
      %v4016 = vld [vmem:[#allocation3 + $0x28] sm:$0xff]
      %v4017 = vld [vmem:[#allocation3 + $0x30] sm:$0xff]
      %v4018 = vld [vmem:[#allocation3 + $0x38] sm:$0xff]
      %v4019 = vld [vmem:[#allocation3 + $0x40] sm:$0xff]
      %v4020 = vld [vmem:[#allocation3 + $0x48] sm:$0xff]
      %v4021 = vld [vmem:[#allocation3 + $0x50] sm:$0xff]
      %v4022 = vld [vmem:[#allocation3 + $0x58] sm:$0xff]
      %v4023 = vld [vmem:[#allocation3 + $0x60] sm:$0xff]
      %v4024 = vld [vmem:[#allocation3 + $0x68] sm:$0xff]
      %v4025 = vld [vmem:[#allocation3 + $0x70] sm:$0xff]
      %v4026 = vld [vmem:[#allocation3 + $0x78] sm:$0xff]
      %v4027 = vld [vmem:[#allocation3 + $0x80] sm:$0xff]
      %v4028 = vld [vmem:[#allocation3 + $0x88] sm:$0xff]
      %v4029 = vld [vmem:[#allocation3 + $0x90] sm:$0xff]
      %v4030 = vld [vmem:[#allocation3 + $0x98] sm:$0xff]
      %v4031 = vld [vmem:[#allocation3 + $0xa0] sm:$0xff]
      %v4032 = vld [vmem:[#allocation3 + $0xa8] sm:$0xff]
      %v4033 = vld [vmem:[#allocation3 + $0xb0] sm:$0xff]
      %v4034 = vld [vmem:[#allocation3 + $0xb8] sm:$0xff]
      %v4035 = vld [vmem:[#allocation3 + $0xc0] sm:$0xff]
      %v4036 = vld [vmem:[#allocation3 + $0xc8] sm:$0xff]
      %v4037 = vld [vmem:[#allocation3 + $0xd0] sm:$0xff]
      %v4038 = vld [vmem:[#allocation3 + $0xd8] sm:$0xff]
      %v4039 = vld [vmem:[#allocation3 + $0xe0] sm:$0xff]
      %v4040 = vld [vmem:[#allocation3 + $0xe8] sm:$0xff]
      %v4041 = vld [vmem:[#allocation3 + $0xf0] sm:$0xff]
      %v4042 = vld [vmem:[#allocation3 + $0xf8] sm:$0xff]
      %v4043 = vld [vmem:[%s3] sm:$0xff]
      %v4044 = vld [vmem:[%s3 + $0x8] sm:$0xff]
      %v4045 = vld [vmem:[%s3 + $0x10] sm:$0xff]
      %v4046 = vld [vmem:[%s3 + $0x18] sm:$0xff]
      %v4047 = vld [vmem:[%s3 + $0x20] sm:$0xff]
      %v4048 = vld [vmem:[%s3 + $0x28] sm:$0xff]
      %v4049 = vld [vmem:[%s3 + $0x30] sm:$0xff]
      %v4050 = vld [vmem:[%s3 + $0x38] sm:$0xff]
      %vm4051 = vcmask 523264
      %v4053 = vsel %vm4051, %v4011, 0
      %v4056 = vsel %vm4051, %v4012, 0
      %v4059 = vsel %vm4051, %v4013, 0
      %v4062 = vsel %vm4051, %v4014, 0
      %v4065 = vsel %vm4051, %v4015, 0
      %v4068 = vsel %vm4051, %v4016, 0
      %v4071 = vsel %vm4051, %v4017, 0
      %v4074 = vsel %vm4051, %v4018, 0
      %v4077 = vsel %vm4051, %v4019, 0
      %v4080 = vsel %vm4051, %v4020, 0
      %v4083 = vsel %vm4051, %v4021, 0
      %v4086 = vsel %vm4051, %v4022, 0
      %v4089 = vsel %vm4051, %v4023, 0
      %v4092 = vsel %vm4051, %v4024, 0
      %v4095 = vsel %vm4051, %v4025, 0
      %v4098 = vsel %vm4051, %v4026, 0
      %v4101 = vsel %vm4051, %v4027, 0
      %v4104 = vsel %vm4051, %v4028, 0
      %v4107 = vsel %vm4051, %v4029, 0
      %v4110 = vsel %vm4051, %v4030, 0
      %v4113 = vsel %vm4051, %v4031, 0
      %v4116 = vsel %vm4051, %v4032, 0
      %v4119 = vsel %vm4051, %v4033, 0
      %v4122 = vsel %vm4051, %v4034, 0
      %v4125 = vsel %vm4051, %v4035, 0
      %v4128 = vsel %vm4051, %v4036, 0
      %v4131 = vsel %vm4051, %v4037, 0
      %v4134 = vsel %vm4051, %v4038, 0
      %v4137 = vsel %vm4051, %v4039, 0
      %v4140 = vsel %vm4051, %v4040, 0
      %v4143 = vsel %vm4051, %v4041, 0
      %v4146 = vsel %vm4051, %v4042, 0
      %4148 = vmatprep.subr.mxu0 0.0
      %4149 = vmatpush1.msra.mxu0 0.0
      %4150 = vmatprep.subr.mxu0 0.0
      %4151 = vmatpush1.msra.mxu0 0.0
      %4152 = vmatprep.subr.mxu0 0.0
      %4153 = vmatpush1.msra.mxu0 0.0
      %4154 = vmatprep.subr.mxu0 0.0
      %4155 = vmatpush1.msra.mxu0 0.0
      %4156 = vmatprep.subr.mxu0 0.0
      %4157 = vmatpush1.msra.mxu0 0.0
      %4158 = vmatprep.subr.mxu0 0.0
      %4159 = vmatpush1.msra.mxu0 0.0
      %4160 = vmatprep.subr.mxu0 0.0
      %4161 = vmatpush1.msra.mxu0 0.0
      %4162 = vmatprep.subr.mxu0 0.0
      %4163 = vmatpush1.msra.mxu0 0.0
      %4164 = vmatprep.subr.mxu0 0.0
      %4165 = vmatpush1.msra.mxu0 %v4050
      %4166 = vmatprep.subr.mxu0 0.0
      %4167 = vmatpush1.msra.mxu0 %v4049
      %4168 = vmatprep.subr.mxu0 0.0
      %4169 = vmatpush1.msra.mxu0 %v4048
      %4170 = vmatprep.subr.mxu0 0.0
      %4171 = vmatpush1.msra.mxu0 %v4047
      %4172 = vmatprep.subr.mxu0 0.0
      %4173 = vmatpush1.msra.mxu0 %v4046
      %4174 = vmatprep.subr.mxu0 0.0
      %4175 = vmatpush1.msra.mxu0 %v4045
      %4176 = vmatprep.subr.mxu0 0.0
      %4177 = vmatpush1.msra.mxu0 %v4044
      %4178 = vmatprep.subr.mxu0 0.0
      %4179 = vmatpush1.msra.mxu0 %v4043
      %4180 = vmatprep.subr.mxu0 0.0
      %4181 = vmatpush2.msra.mxu0 0.0
      %4182 = vmatprep.subr.mxu0 0.0
      %4183 = vmatpush2.msra.mxu0 0.0
      %4184 = vmatprep.subr.mxu0 0.0
      %4185 = vmatpush2.msra.mxu0 0.0
      %4186 = vmatprep.subr.mxu0 0.0
      %4187 = vmatpush2.msra.mxu0 0.0
      %4188 = vmatprep.subr.mxu0 0.0
      %4189 = vmatpush2.msra.mxu0 0.0
      %4190 = vmatprep.subr.mxu0 0.0
      %4191 = vmatpush2.msra.mxu0 0.0
      %4192 = vmatprep.subr.mxu0 0.0
      %4193 = vmatpush2.msra.mxu0 0.0
      %4194 = vmatprep.subr.mxu0 0.0
      %4195 = vmatpush2.msra.mxu0 0.0
      %4196 = vmatprep.subr.mxu0 0.0
      %4197 = vmatpush2.msra.mxu0 0.0
      %4198 = vmatprep.subr.mxu0 0.0
      %4199 = vmatpush2.msra.mxu0 0.0
      %4200 = vmatprep.subr.mxu0 0.0
      %4201 = vmatpush2.msra.mxu0 0.0
      %4202 = vmatprep.subr.mxu0 0.0
      %4203 = vmatpush2.msra.mxu0 0.0
      %4204 = vmatprep.subr.mxu0 0.0
      %4205 = vmatpush2.msra.mxu0 0.0
      %4206 = vmatprep.subr.mxu0 0.0
      %4207 = vmatpush2.msra.mxu0 0.0
      %4208 = vmatprep.subr.mxu0 0.0
      %4209 = vmatpush2.msra.mxu0 0.0
      %4210 = vmatprep.subr.mxu0 0.0
      %4211 = vmatpush2.msra.mxu0 0.0
      %4212 = vmatprep.mubr.f32.mxu0 0.0
      %4213 = vmatmul.mubr.f32.gmra.mxu0 %v4053
      %v4214 = vpop.f32.mrf.mxu0
      %v4215 = vadd.f32 0.0, %v4214
      %v4216 = vpop.f32.mrf.mxu0
      %4217 = vmatprep.mubr.f32.mxu0 0.0
      %4218 = vmatmul.mubr.f32.gmra.mxu0 %v4056
      %v4219 = vpop.f32.mrf.mxu0
      %v4220 = vadd.f32 0.0, %v4219
      %v4221 = vpop.f32.mrf.mxu0
      %4222 = vmatprep.mubr.f32.mxu0 0.0
      %4223 = vmatmul.mubr.f32.gmra.mxu0 %v4059
      %v4224 = vpop.f32.mrf.mxu0
      %v4225 = vadd.f32 0.0, %v4224
      %v4226 = vpop.f32.mrf.mxu0
      %4227 = vmatprep.mubr.f32.mxu0 0.0
      %4228 = vmatmul.mubr.f32.gmra.mxu0 %v4062
      %v4229 = vpop.f32.mrf.mxu0
      %v4230 = vadd.f32 0.0, %v4229
      %v4231 = vpop.f32.mrf.mxu0
      %4232 = vmatprep.mubr.f32.mxu0 0.0
      %4233 = vmatmul.mubr.f32.gmra.mxu0 %v4065
      %v4234 = vpop.f32.mrf.mxu0
      %v4235 = vadd.f32 0.0, %v4234
      %v4236 = vpop.f32.mrf.mxu0
      %4237 = vmatprep.mubr.f32.mxu0 0.0
      %4238 = vmatmul.mubr.f32.gmra.mxu0 %v4068
      %v4239 = vpop.f32.mrf.mxu0
      %v4240 = vadd.f32 0.0, %v4239
      %v4241 = vpop.f32.mrf.mxu0
      %4242 = vmatprep.mubr.f32.mxu0 0.0
      %4243 = vmatmul.mubr.f32.gmra.mxu0 %v4071
      %v4244 = vpop.f32.mrf.mxu0
      %v4245 = vadd.f32 0.0, %v4244
      %v4246 = vpop.f32.mrf.mxu0
      %4247 = vmatprep.mubr.f32.mxu0 0.0
      %4248 = vmatmul.mubr.f32.gmra.mxu0 %v4074
      %v4249 = vpop.f32.mrf.mxu0
      %v4250 = vadd.f32 0.0, %v4249
      %v4251 = vpop.f32.mrf.mxu0
      %4252 = vmatprep.mubr.f32.mxu0 0.0
      %4253 = vmatmul.mubr.f32.gmra.mxu0 %v4077
      %v4254 = vpop.f32.mrf.mxu0
      %v4255 = vadd.f32 0.0, %v4254
      %v4256 = vpop.f32.mrf.mxu0
      %4257 = vmatprep.mubr.f32.mxu0 0.0
      %4258 = vmatmul.mubr.f32.gmra.mxu0 %v4080
      %v4259 = vpop.f32.mrf.mxu0
      %v4260 = vadd.f32 0.0, %v4259
      %v4261 = vpop.f32.mrf.mxu0
      %4262 = vmatprep.mubr.f32.mxu0 0.0
      %4263 = vmatmul.mubr.f32.gmra.mxu0 %v4083
      %v4264 = vpop.f32.mrf.mxu0
      %v4265 = vadd.f32 0.0, %v4264
      %v4266 = vpop.f32.mrf.mxu0
      %4267 = vmatprep.mubr.f32.mxu0 0.0
      %4268 = vmatmul.mubr.f32.gmra.mxu0 %v4086
      %v4269 = vpop.f32.mrf.mxu0
      %v4270 = vadd.f32 0.0, %v4269
      %v4271 = vpop.f32.mrf.mxu0
      %4272 = vmatprep.mubr.f32.mxu0 0.0
      %4273 = vmatmul.mubr.f32.gmra.mxu0 %v4089
      %v4274 = vpop.f32.mrf.mxu0
      %v4275 = vadd.f32 0.0, %v4274
      %v4276 = vpop.f32.mrf.mxu0
      %4277 = vmatprep.mubr.f32.mxu0 0.0
      %4278 = vmatmul.mubr.f32.gmra.mxu0 %v4092
      %v4279 = vpop.f32.mrf.mxu0
      %v4280 = vadd.f32 0.0, %v4279
      %v4281 = vpop.f32.mrf.mxu0
      %4282 = vmatprep.mubr.f32.mxu0 0.0
      %4283 = vmatmul.mubr.f32.gmra.mxu0 %v4095
      %v4284 = vpop.f32.mrf.mxu0
      %v4285 = vadd.f32 0.0, %v4284
      %v4286 = vpop.f32.mrf.mxu0
      %4287 = vmatprep.mubr.f32.mxu0 0.0
      %4288 = vmatmul.mubr.f32.gmra.mxu0 %v4098
      %v4289 = vpop.f32.mrf.mxu0
      %v4290 = vadd.f32 0.0, %v4289
      %v4291 = vpop.f32.mrf.mxu0
      %4292 = vmatprep.mubr.f32.mxu0 0.0
      %4293 = vmatmul.mubr.f32.gmra.mxu0 %v4101
      %v4294 = vpop.f32.mrf.mxu0
      %v4295 = vadd.f32 0.0, %v4294
      %v4296 = vpop.f32.mrf.mxu0
      %4297 = vmatprep.mubr.f32.mxu0 0.0
      %4298 = vmatmul.mubr.f32.gmra.mxu0 %v4104
      %v4299 = vpop.f32.mrf.mxu0
      %v4300 = vadd.f32 0.0, %v4299
      %v4301 = vpop.f32.mrf.mxu0
      %4302 = vmatprep.mubr.f32.mxu0 0.0
      %4303 = vmatmul.mubr.f32.gmra.mxu0 %v4107
      %v4304 = vpop.f32.mrf.mxu0
      %v4305 = vadd.f32 0.0, %v4304
      %v4306 = vpop.f32.mrf.mxu0
      %4307 = vmatprep.mubr.f32.mxu0 0.0
      %4308 = vmatmul.mubr.f32.gmra.mxu0 %v4110
      %v4309 = vpop.f32.mrf.mxu0
      %v4310 = vadd.f32 0.0, %v4309
      %v4311 = vpop.f32.mrf.mxu0
      %4312 = vmatprep.mubr.f32.mxu0 0.0
      %4313 = vmatmul.mubr.f32.gmra.mxu0 %v4113
      %v4314 = vpop.f32.mrf.mxu0
      %v4315 = vadd.f32 0.0, %v4314
      %v4316 = vpop.f32.mrf.mxu0
      %4317 = vmatprep.mubr.f32.mxu0 0.0
      %4318 = vmatmul.mubr.f32.gmra.mxu0 %v4116
      %v4319 = vpop.f32.mrf.mxu0
      %v4320 = vadd.f32 0.0, %v4319
      %v4321 = vpop.f32.mrf.mxu0
      %4322 = vmatprep.mubr.f32.mxu0 0.0
      %4323 = vmatmul.mubr.f32.gmra.mxu0 %v4119
      %v4324 = vpop.f32.mrf.mxu0
      %v4325 = vadd.f32 0.0, %v4324
      %v4326 = vpop.f32.mrf.mxu0
      %4327 = vmatprep.mubr.f32.mxu0 0.0
      %4328 = vmatmul.mubr.f32.gmra.mxu0 %v4122
      %v4329 = vpop.f32.mrf.mxu0
      %v4330 = vadd.f32 0.0, %v4329
      %v4331 = vpop.f32.mrf.mxu0
      %4332 = vmatprep.mubr.f32.mxu0 0.0
      %4333 = vmatmul.mubr.f32.gmra.mxu0 %v4125
      %v4334 = vpop.f32.mrf.mxu0
      %v4335 = vadd.f32 0.0, %v4334
      %v4336 = vpop.f32.mrf.mxu0
      %4337 = vmatprep.mubr.f32.mxu0 0.0
      %4338 = vmatmul.mubr.f32.gmra.mxu0 %v4128
      %v4339 = vpop.f32.mrf.mxu0
      %v4340 = vadd.f32 0.0, %v4339
      %v4341 = vpop.f32.mrf.mxu0
      %4342 = vmatprep.mubr.f32.mxu0 0.0
      %4343 = vmatmul.mubr.f32.gmra.mxu0 %v4131
      %v4344 = vpop.f32.mrf.mxu0
      %v4345 = vadd.f32 0.0, %v4344
      %v4346 = vpop.f32.mrf.mxu0
      %4347 = vmatprep.mubr.f32.mxu0 0.0
      %4348 = vmatmul.mubr.f32.gmra.mxu0 %v4134
      %v4349 = vpop.f32.mrf.mxu0
      %v4350 = vadd.f32 0.0, %v4349
      %v4351 = vpop.f32.mrf.mxu0
      %4352 = vmatprep.mubr.f32.mxu0 0.0
      %4353 = vmatmul.mubr.f32.gmra.mxu0 %v4137
      %v4354 = vpop.f32.mrf.mxu0
      %v4355 = vadd.f32 0.0, %v4354
      %v4356 = vpop.f32.mrf.mxu0
      %4357 = vmatprep.mubr.f32.mxu0 0.0
      %4358 = vmatmul.mubr.f32.gmra.mxu0 %v4140
      %v4359 = vpop.f32.mrf.mxu0
      %v4360 = vadd.f32 0.0, %v4359
      %v4361 = vpop.f32.mrf.mxu0
      %4362 = vmatprep.mubr.f32.mxu0 0.0
      %4363 = vmatmul.mubr.f32.gmra.mxu0 %v4143
      %v4364 = vpop.f32.mrf.mxu0
      %v4365 = vadd.f32 0.0, %v4364
      %v4366 = vpop.f32.mrf.mxu0
      %4367 = vmatprep.mubr.f32.mxu0 0.0
      %4368 = vmatmul.mubr.f32.gmra.mxu0 %v4146
      %v4369 = vpop.f32.mrf.mxu0
      %v4370 = vadd.f32 0.0, %v4369
      %v4371 = vpop.f32.mrf.mxu0
      %4372 = vdwg.mxu0
      %vm4373 = vcmask 130048
      %4374 = vst.msk [vmem:[%s231] sm:$0xff] %vm4373, %v4215
      %4375 = vst.msk [vmem:[%s231 + $0x8] sm:$0xff] %vm4373, %v4220
      %4376 = vst.msk [vmem:[%s231 + $0x10] sm:$0xff] %vm4373, %v4225
      %4377 = vst.msk [vmem:[%s231 + $0x18] sm:$0xff] %vm4373, %v4230
      %4378 = vst.msk [vmem:[%s231 + $0x20] sm:$0xff] %vm4373, %v4235
      %4379 = vst.msk [vmem:[%s231 + $0x28] sm:$0xff] %vm4373, %v4240
      %4380 = vst.msk [vmem:[%s231 + $0x30] sm:$0xff] %vm4373, %v4245
      %4381 = vst.msk [vmem:[%s231 + $0x38] sm:$0xff] %vm4373, %v4250
      %4382 = vst.msk [vmem:[%s231 + $0x40] sm:$0xff] %vm4373, %v4255
      %4383 = vst.msk [vmem:[%s231 + $0x48] sm:$0xff] %vm4373, %v4260
      %4384 = vst.msk [vmem:[%s231 + $0x50] sm:$0xff] %vm4373, %v4265
      %4385 = vst.msk [vmem:[%s231 + $0x58] sm:$0xff] %vm4373, %v4270
      %4386 = vst.msk [vmem:[%s231 + $0x60] sm:$0xff] %vm4373, %v4275
      %4387 = vst.msk [vmem:[%s231 + $0x68] sm:$0xff] %vm4373, %v4280
      %4388 = vst.msk [vmem:[%s231 + $0x70] sm:$0xff] %vm4373, %v4285
      %4389 = vst.msk [vmem:[%s231 + $0x78] sm:$0xff] %vm4373, %v4290
      %4390 = vst.msk [vmem:[%s231 + $0x80] sm:$0xff] %vm4373, %v4295
      %4391 = vst.msk [vmem:[%s231 + $0x88] sm:$0xff] %vm4373, %v4300
      %4392 = vst.msk [vmem:[%s231 + $0x90] sm:$0xff] %vm4373, %v4305
      %4393 = vst.msk [vmem:[%s231 + $0x98] sm:$0xff] %vm4373, %v4310
      %4394 = vst.msk [vmem:[%s231 + $0xa0] sm:$0xff] %vm4373, %v4315
      %4395 = vst.msk [vmem:[%s231 + $0xa8] sm:$0xff] %vm4373, %v4320
      %4396 = vst.msk [vmem:[%s231 + $0xb0] sm:$0xff] %vm4373, %v4325
      %4397 = vst.msk [vmem:[%s231 + $0xb8] sm:$0xff] %vm4373, %v4330
      %4398 = vst.msk [vmem:[%s231 + $0xc0] sm:$0xff] %vm4373, %v4335
      %4399 = vst.msk [vmem:[%s231 + $0xc8] sm:$0xff] %vm4373, %v4340
      %4400 = vst.msk [vmem:[%s231 + $0xd0] sm:$0xff] %vm4373, %v4345
      %4401 = vst.msk [vmem:[%s231 + $0xd8] sm:$0xff] %vm4373, %v4350
      %4402 = vst.msk [vmem:[%s231 + $0xe0] sm:$0xff] %vm4373, %v4355
      %4403 = vst.msk [vmem:[%s231 + $0xe8] sm:$0xff] %vm4373, %v4360
      %4404 = vst.msk [vmem:[%s231 + $0xf0] sm:$0xff] %vm4373, %v4365
      %4405 = vst.msk [vmem:[%s231 + $0xf8] sm:$0xff] %vm4373, %v4370
      %v4406 = vsel %vm4373, %v4215, 0.0
      %v4407 = vsel %vm4373, %v4220, 0.0
      %v4408 = vadd.f32 %v4406, %v4407
      %v4409 = vsel %vm4373, %v4225, 0.0
      %v4410 = vadd.f32 %v4408, %v4409
      %v4411 = vsel %vm4373, %v4230, 0.0
      %v4412 = vadd.f32 %v4410, %v4411
      %v4413 = vsel %vm4373, %v4235, 0.0
      %v4414 = vadd.f32 %v4412, %v4413
      %v4415 = vsel %vm4373, %v4240, 0.0
      %v4416 = vadd.f32 %v4414, %v4415
      %v4417 = vsel %vm4373, %v4245, 0.0
      %v4418 = vadd.f32 %v4416, %v4417
      %v4419 = vsel %vm4373, %v4250, 0.0
      %v4420 = vadd.f32 %v4418, %v4419
      %v4421 = vsel %vm4373, %v4255, 0.0
      %v4422 = vadd.f32 %v4420, %v4421
      %v4423 = vsel %vm4373, %v4260, 0.0
      %v4424 = vadd.f32 %v4422, %v4423
      %v4425 = vsel %vm4373, %v4265, 0.0
      %v4426 = vadd.f32 %v4424, %v4425
      %v4427 = vsel %vm4373, %v4270, 0.0
      %v4428 = vadd.f32 %v4426, %v4427
      %v4429 = vsel %vm4373, %v4275, 0.0
      %v4430 = vadd.f32 %v4428, %v4429
      %v4431 = vsel %vm4373, %v4280, 0.0
      %v4432 = vadd.f32 %v4430, %v4431
      %v4433 = vsel %vm4373, %v4285, 0.0
      %v4434 = vadd.f32 %v4432, %v4433
      %v4435 = vsel %vm4373, %v4290, 0.0
      %v4436 = vadd.f32 %v4434, %v4435
      %v4437 = vsel %vm4373, %v4295, 0.0
      %v4438 = vadd.f32 %v4436, %v4437
      %v4439 = vsel %vm4373, %v4300, 0.0
      %v4440 = vadd.f32 %v4438, %v4439
      %v4441 = vsel %vm4373, %v4305, 0.0
      %v4442 = vadd.f32 %v4440, %v4441
      %v4443 = vsel %vm4373, %v4310, 0.0
      %v4444 = vadd.f32 %v4442, %v4443
      %v4445 = vsel %vm4373, %v4315, 0.0
      %v4446 = vadd.f32 %v4444, %v4445
      %v4447 = vsel %vm4373, %v4320, 0.0
      %v4448 = vadd.f32 %v4446, %v4447
      %v4449 = vsel %vm4373, %v4325, 0.0
      %v4450 = vadd.f32 %v4448, %v4449
      %v4451 = vsel %vm4373, %v4330, 0.0
      %v4452 = vadd.f32 %v4450, %v4451
      %v4453 = vsel %vm4373, %v4335, 0.0
      %v4454 = vadd.f32 %v4452, %v4453
      %v4455 = vsel %vm4373, %v4340, 0.0
      %v4456 = vadd.f32 %v4454, %v4455
      %v4457 = vsel %vm4373, %v4345, 0.0
      %v4458 = vadd.f32 %v4456, %v4457
      %v4459 = vsel %vm4373, %v4350, 0.0
      %v4460 = vadd.f32 %v4458, %v4459
      %v4461 = vsel %vm4373, %v4355, 0.0
      %v4462 = vadd.f32 %v4460, %v4461
      %v4463 = vsel %vm4373, %v4360, 0.0
      %v4464 = vadd.f32 %v4462, %v4463
      %v4465 = vsel %vm4373, %v4365, 0.0
      %v4466 = vadd.f32 %v4464, %v4465
      %v4467 = vsel %vm4373, %v4370, 0.0
      %v4468 = vadd.f32 %v4466, %v4467
      %v4469 = vrot.slane %v4468, 4
      %v4470 = vadd.f32 %v4468, %v4469
      %v4471 = vrot.slane %v4470, 2
      %v4472 = vadd.f32 %v4470, %v4471
      %v4473 = vrot.slane %v4472, 1
      %v4474 = vadd.f32 %v4472, %v4473
      %v4475 = vmul.f32 %v4215, %v4215
      %v4476 = vmul.f32 %v4220, %v4220
      %v4477 = vmul.f32 %v4225, %v4225
      %v4478 = vmul.f32 %v4230, %v4230
      %v4479 = vmul.f32 %v4235, %v4235
      %v4480 = vmul.f32 %v4240, %v4240
      %v4481 = vmul.f32 %v4245, %v4245
      %v4482 = vmul.f32 %v4250, %v4250
      %v4483 = vmul.f32 %v4255, %v4255
      %v4484 = vmul.f32 %v4260, %v4260
      %v4485 = vmul.f32 %v4265, %v4265
      %v4486 = vmul.f32 %v4270, %v4270
      %v4487 = vmul.f32 %v4275, %v4275
      %v4488 = vmul.f32 %v4280, %v4280
      %v4489 = vmul.f32 %v4285, %v4285
      %v4490 = vmul.f32 %v4290, %v4290
      %v4491 = vmul.f32 %v4295, %v4295
      %v4492 = vmul.f32 %v4300, %v4300
      %v4493 = vmul.f32 %v4305, %v4305
      %v4494 = vmul.f32 %v4310, %v4310
      %v4495 = vmul.f32 %v4315, %v4315
      %v4496 = vmul.f32 %v4320, %v4320
      %v4497 = vmul.f32 %v4325, %v4325
      %v4498 = vmul.f32 %v4330, %v4330
      %v4499 = vmul.f32 %v4335, %v4335
      %v4500 = vmul.f32 %v4340, %v4340
      %v4501 = vmul.f32 %v4345, %v4345
      %v4502 = vmul.f32 %v4350, %v4350
      %v4503 = vmul.f32 %v4355, %v4355
      %v4504 = vmul.f32 %v4360, %v4360
      %v4505 = vmul.f32 %v4365, %v4365
      %v4506 = vmul.f32 %v4370, %v4370
      %v4507 = vsel %vm4373, %v4475, 0.0
      %v4508 = vsel %vm4373, %v4476, 0.0
      %v4509 = vadd.f32 %v4507, %v4508
      %v4510 = vsel %vm4373, %v4477, 0.0
      %v4511 = vadd.f32 %v4509, %v4510
      %v4512 = vsel %vm4373, %v4478, 0.0
      %v4513 = vadd.f32 %v4511, %v4512
      %v4514 = vsel %vm4373, %v4479, 0.0
      %v4515 = vadd.f32 %v4513, %v4514
      %v4516 = vsel %vm4373, %v4480, 0.0
      %v4517 = vadd.f32 %v4515, %v4516
      %v4518 = vsel %vm4373, %v4481, 0.0
      %v4519 = vadd.f32 %v4517, %v4518
      %v4520 = vsel %vm4373, %v4482, 0.0
      %v4521 = vadd.f32 %v4519, %v4520
      %v4522 = vsel %vm4373, %v4483, 0.0
      %v4523 = vadd.f32 %v4521, %v4522
      %v4524 = vsel %vm4373, %v4484, 0.0
      %v4525 = vadd.f32 %v4523, %v4524
      %v4526 = vsel %vm4373, %v4485, 0.0
      %v4527 = vadd.f32 %v4525, %v4526
      %v4528 = vsel %vm4373, %v4486, 0.0
      %v4529 = vadd.f32 %v4527, %v4528
      %v4530 = vsel %vm4373, %v4487, 0.0
      %v4531 = vadd.f32 %v4529, %v4530
      %v4532 = vsel %vm4373, %v4488, 0.0
      %v4533 = vadd.f32 %v4531, %v4532
      %v4534 = vsel %vm4373, %v4489, 0.0
      %v4535 = vadd.f32 %v4533, %v4534
      %v4536 = vsel %vm4373, %v4490, 0.0
      %v4537 = vadd.f32 %v4535, %v4536
      %v4538 = vsel %vm4373, %v4491, 0.0
      %v4539 = vadd.f32 %v4537, %v4538
      %v4540 = vsel %vm4373, %v4492, 0.0
      %v4541 = vadd.f32 %v4539, %v4540
      %v4542 = vsel %vm4373, %v4493, 0.0
      %v4543 = vadd.f32 %v4541, %v4542
      %v4544 = vsel %vm4373, %v4494, 0.0
      %v4545 = vadd.f32 %v4543, %v4544
      %v4546 = vsel %vm4373, %v4495, 0.0
      %v4547 = vadd.f32 %v4545, %v4546
      %v4548 = vsel %vm4373, %v4496, 0.0
      %v4549 = vadd.f32 %v4547, %v4548
      %v4550 = vsel %vm4373, %v4497, 0.0
      %v4551 = vadd.f32 %v4549, %v4550
      %v4552 = vsel %vm4373, %v4498, 0.0
      %v4553 = vadd.f32 %v4551, %v4552
      %v4554 = vsel %vm4373, %v4499, 0.0
      %v4555 = vadd.f32 %v4553, %v4554
      %v4556 = vsel %vm4373, %v4500, 0.0
      %v4557 = vadd.f32 %v4555, %v4556
      %v4558 = vsel %vm4373, %v4501, 0.0
      %v4559 = vadd.f32 %v4557, %v4558
      %v4560 = vsel %vm4373, %v4502, 0.0
      %v4561 = vadd.f32 %v4559, %v4560
      %v4562 = vsel %vm4373, %v4503, 0.0
      %v4563 = vadd.f32 %v4561, %v4562
      %v4564 = vsel %vm4373, %v4504, 0.0
      %v4565 = vadd.f32 %v4563, %v4564
      %v4566 = vsel %vm4373, %v4505, 0.0
      %v4567 = vadd.f32 %v4565, %v4566
      %v4568 = vsel %vm4373, %v4506, 0.0
      %v4569 = vadd.f32 %v4567, %v4568
      %v4570 = vrot.slane %v4569, 4
      %v4571 = vadd.f32 %v4569, %v4570
      %v4572 = vrot.slane %v4571, 2
      %v4573 = vadd.f32 %v4571, %v4572
      %v4574 = vrot.slane %v4573, 1
      %v4575 = vadd.f32 %v4573, %v4574
      %vm4576 = vcmask 1040384
      %v4577 = vsel %vm4576, %v4474, %v4575
      %vm4578 = vcmask 123904
      %4579 = vst.msk [vmem:[%s235] sm:$0x3] %vm4578, %v4577
      %p4580 = scmp.lt.s32.totalorder %s17, 1
      %s4581 = scalar_select %p4580, %s17, 1
      %s4582 = smul.addr %s4581, 32
      %s4583 = smul.addr %s4582, 8
      %s4584 = scalar_lea.vmem %s4, %s4583
      %p4585 = scmp.lt.s32.totalorder %s17, 1
      %s4586 = scalar_select %p4585, %s17, 1
      %s4587 = smul.addr %s4586, 2
      %s4588 = scalar_lea.vmem %s5, %s4587
      // Predicated region
      $region37: #{stack_decoder_forward.4} parent=35 // pred_check
        %p4589 = pneg %p124
      $region38: #{stack_decoder_forward.4} parent=35 // pred_check_branch
        %4591 = sbr.rel (%p4589) target = $region40
      $region39: #{stack_decoder_forward.4} parent=35 // pred_region
        _
      $region40: #{stack_decoder_forward.4} parent=35 // pred_fallthru
        _
      // Predicated region
      $region41: #{stack_decoder_forward.4} parent=35 // pred_check
        %p4592 = pneg %p150
      $region42: #{stack_decoder_forward.4} parent=35 // pred_check_branch
        %4594 = sbr.rel (%p4592) target = $region44
      $region43: #{stack_decoder_forward.4} parent=35 // pred_region
        _
      $region44: #{stack_decoder_forward.4} parent=35 // pred_fallthru
        _
    $region36: #{stack_decoder_forward.4} parent=5 // pred_fallthru
      _
    %p4595 = scmp.le.s32.totalorder 2, %s12
    // Predicated region
    $region45: #{stack_decoder_forward.4} parent=5 // pred_check
      %p4596 = pneg %p4595
    $region46: #{stack_decoder_forward.4} parent=5 // pred_check_branch
      %4598 = sbr.rel (%p4596) target = $region48
    $region47: #{stack_decoder_forward.4} parent=5 // pred_region
      %s4599 = ssub.s32 %s12, 2
      // Predicated region
      $region49: #{stack_decoder_forward.4} parent=47 // pred_check
        %p4600 = pneg %p130
      $region50: #{stack_decoder_forward.4} parent=47 // pred_check_branch
        %4602 = sbr.rel (%p4600) target = $region52
      $region51: #{stack_decoder_forward.4} parent=47 // pred_region
        %p4603 = scmp.lt.s32.totalorder %s18, 1
        %s4604 = scalar_select %p4603, %s18, 1
        %s4605 = smul.addr %s4604, 32
        %s4606 = smul.addr %s4605, 8
        %s4607 = scalar_lea.vmem %s4, %s4606
      $region52: #{stack_decoder_forward.4} parent=47 // pred_fallthru
        _
      // Predicated region
      $region53: #{stack_decoder_forward.4} parent=47 // pred_check
        %p4608 = pneg %p156
      $region54: #{stack_decoder_forward.4} parent=47 // pred_check_branch
        %4610 = sbr.rel (%p4608) target = $region56
      $region55: #{stack_decoder_forward.4} parent=47 // pred_region
        %p4611 = scmp.lt.s32.totalorder %s18, 1
        %s4612 = scalar_select %p4611, %s18, 1
        %s4613 = smul.addr %s4612, 2
        %s4614 = scalar_lea.vmem %s5, %s4613
      $region56: #{stack_decoder_forward.4} parent=47 // pred_fallthru
        _
    $region48: #{stack_decoder_forward.4} parent=5 // pred_fallthru
      _
  $region6: #{stack_decoder_forward.4} parent=0 // loop_footer
    %s16 = sadd.s32 1, %s12
  $region7: #{stack_decoder_forward.4} parent=0 // loop_footer_branch
    %11 = sbr.rel target = $region3
  $region8: #{stack_decoder_forward.4} parent=0 // loop_exit
    _

</llo_original>
